<compile_context>
chip_gen: v7x
topology: tpu7x:2x2x1
jax: 0.10.0
libtpu: 0.0.40
codegen_flags: <defaults>
</compile_context>

<pallas_src>
import jax
import jax.numpy as jnp
from jax.experimental import pallas as pl
from jax.experimental.pallas import tpu as pltpu


# ----------------------------------------------------------------------------
# Fused kernel: conv3x3+BN+ReLU -> conv3x3+BN+ReLU -> (dropout=id) -> conv1x1
# ----------------------------------------------------------------------------
def _fused_cnn_kernel(xpad_ref, w1_ref, b1_ref, w2_ref, b2_ref, w3t_ref, b3_ref,
                      o_ref, h1pad_ref):
    """
    xpad_ref : (Bt, H+2, W+2, Cin)  zero-halo-padded NHWC input tile (Bt images)
    w1_ref   : (9, Cin, C1)         conv1 per-tap weights with BN1 scale folded in
    b1_ref   : (1, C1)              conv1 bias with BN1 folded in
    w2_ref   : (9, C1, C2)          conv2 per-tap weights with BN2 scale folded in
    b2_ref   : (1, C2)              conv2 bias with BN2 folded in
    w3t_ref  : (Cout, C2)           1x1 output conv weights, transposed
    b3_ref   : (Cout, 1)            1x1 output conv bias
    o_ref    : (Bt, Cout, H*W)      lane-dense logits (reshapes to NCHW for free)
    h1pad_ref: (Bt, H+2, W+2, C1)   persistent VMEM halo scratch for the second 3x3 conv
    """
    Bt, Hp, Wp, Cin = xpad_ref.shape
    C1 = h1pad_ref.shape[-1]
    H, W = Hp - 2, Wp - 2
    HW = H * W
    M = Bt * HW

    taps = [(dy, dx) for dy in range(3) for dx in range(3)]

    # ---- layer 1: 3x3 conv (+folded BN) as 9 accumulating per-tap matmuls + ReLU ----
    h1 = None
    for t, (dy, dx) in enumerate(taps):
        patch = xpad_ref[:, dy:dy + H, dx:dx + W, :].reshape(M, Cin)
        c = jnp.dot(patch, w1_ref[t], preferred_element_type=jnp.float32)
        h1 = c if h1 is None else h1 + c
    h1 = jnp.maximum(h1 + b1_ref[...], 0.0)                       # (M, C1)

    # Stage layer-1 output into the halo scratch. Only the 1-wide border is zeroed
    # (the interior is fully overwritten each step); the border zero runs every step so
    # the kernel is correct when the batch axis is sharded across TensorCores.
    h1pad_ref[:, 0:1, :, :] = jnp.zeros((Bt, 1, Wp, C1), jnp.float32)
    h1pad_ref[:, Hp - 1:Hp, :, :] = jnp.zeros((Bt, 1, Wp, C1), jnp.float32)
    h1pad_ref[:, :, 0:1, :] = jnp.zeros((Bt, Hp, 1, C1), jnp.float32)
    h1pad_ref[:, :, Wp - 1:Wp, :] = jnp.zeros((Bt, Hp, 1, C1), jnp.float32)
    h1pad_ref[:, 1:H + 1, 1:W + 1, :] = h1.reshape(Bt, H, W, C1)

    # ---- layer 2: 3x3 conv (+folded BN) as 9 accumulating per-tap matmuls + ReLU ----
    h2 = None
    for t, (dy, dx) in enumerate(taps):
        patch = h1pad_ref[:, dy:dy + H, dx:dx + W, :].reshape(M, C1)
        c = jnp.dot(patch, w2_ref[t], preferred_element_type=jnp.float32)
        h2 = c if h2 is None else h2 + c
    h2 = jnp.maximum(h2 + b2_ref[...], 0.0)                       # (M, C2)

    # Dropout(0.3) is the identity in eval mode.
    # TODO(synk): training-mode Dropout / batch-statistics BN not implemented.

    # ---- 1x1 output conv, computed transposed so the output stores are lane-dense ----
    lt = jax.lax.dot_general(
        w3t_ref[...], h2,
        dimension_numbers=(((1,), (1,)), ((), ())),               # contract C2 with C2
        preferred_element_type=jnp.float32)                       # (Cout, Bt*HW)
    lt = lt + b3_ref[...]
    for bb in range(Bt):                                          # aligned lane-slab stores
        o_ref[bb, :, :] = lt[:, bb * HW:(bb + 1) * HW].astype(o_ref.dtype)


# ----------------------------------------------------------------------------
# Wrapper
# ----------------------------------------------------------------------------
def module_placement_cnn_forward(x_nchw, prepped, block_batch=4):
    """Fused Pallas forward. Input NCHW, output NCHW logits.

    Matches PyTorch eval()-mode semantics: BN uses running stats (folded into the
    conv weights), Dropout is the identity.
    """
    # TODO(synk): for B==1 on v7x, add a second parallel grid axis over H row-tiles
    # (1-row halo overlap) so both TensorCores get work.
    B, Cin, H, W = x_nchw.shape
    C1 = prepped["w1"].shape[-1]
    num_classes = prepped["w3t"].shape[0]
    HW = H * W

    Bt = max(1, min(block_batch, B))
    Bpad = ((B + Bt - 1) // Bt) * Bt

    # NCHW -> NHWC, pad batch up to a multiple of Bt and add the 1-px spatial halo.
    x = jnp.transpose(x_nchw, (0, 2, 3, 1)).astype(jnp.float32)
    x = jnp.pad(x, ((0, Bpad - B), (1, 1), (1, 1), (0, 0)))       # (Bpad, H+2, W+2, Cin)

    out = pl.pallas_call(
        _fused_cnn_kernel,
        out_shape=jax.ShapeDtypeStruct((Bpad, num_classes, HW), jnp.float32),
        grid=(Bpad // Bt,),
        in_specs=[
            pl.BlockSpec((Bt, H + 2, W + 2, Cin), lambda g: (g, 0, 0, 0)),
            pl.BlockSpec(prepped["w1"].shape, lambda g: (0, 0, 0)),
            pl.BlockSpec(prepped["b1"].shape, lambda g: (0, 0)),
            pl.BlockSpec(prepped["w2"].shape, lambda g: (0, 0, 0)),
            pl.BlockSpec(prepped["b2"].shape, lambda g: (0, 0)),
            pl.BlockSpec(prepped["w3t"].shape, lambda g: (0, 0)),
            pl.BlockSpec(prepped["b3"].shape, lambda g: (0, 0)),
        ],
        out_specs=pl.BlockSpec((Bt, num_classes, HW), lambda g: (g, 0, 0)),
        scratch_shapes=[pltpu.VMEM((Bt, H + 2, W + 2, C1), jnp.float32)],
        compiler_params=pltpu.CompilerParams(dimension_semantics=("parallel",)),
    )(x, prepped["w1"], prepped["b1"], prepped["w2"], prepped["b2"],
      prepped["w3t"], prepped["b3"])

    # (Bpad, Cout, H*W) -> (B, Cout, H, W): already NCHW-ordered, so a free reshape.
    return out[:B].reshape(B, num_classes, H, W)


# ----------------------------------------------------------------------------
# One-time parameter prep: fold eval-mode BN into conv weights, pack layouts.
# ----------------------------------------------------------------------------
def prepare_params(params, eps=1e-5):
    cin1 = params["w1"].shape[2]
    c1 = params["w1"].shape[3]
    c2 = params["w2"].shape[3]

    s1 = params["g1"] * jax.lax.rsqrt(params["var1"] + eps)
    w1 = (params["w1"] * s1).reshape(9, cin1, c1)                 # (9, Cin, 32) tap-major
    b1 = ((params["b1"] - params["mean1"]) * s1 + params["beta1"]).reshape(1, -1)

    s2 = params["g2"] * jax.lax.rsqrt(params["var2"] + eps)
    w2 = (params["w2"] * s2).reshape(9, c1, c2)                   # (9, 32, 64) tap-major
    b2 = ((params["b2"] - params["mean2"]) * s2 + params["beta2"]).reshape(1, -1)

    w3t = params["w3"].T                                          # (Cout, 64)
    b3 = params["b3"].reshape(-1, 1)                              # (Cout, 1)
    return {"w1": w1, "b1": b1, "w2": w2, "b2": b2, "w3t": w3t, "b3": b3}


# ----------------------------------------------------------------------------
# Parameter construction (deterministic, mirrors the PyTorch module shapes)
# ----------------------------------------------------------------------------
def init_params(key, input_channels, num_output_classes):
    ks = jax.random.split(key, 12)

    def conv_w(k, kh, kw, cin, cout):
        return 0.1 * jax.random.normal(k, (kh, kw, cin, cout), jnp.float32)  # HWIO

    p = {}
    # conv1: Conv2d(in, 32, 3, padding=1)
    p["w1"] = conv_w(ks[0], 3, 3, input_channels, 32)
    p["b1"] = 0.05 * jax.random.normal(ks[1], (32,), jnp.float32)
    # bn1: BatchNorm2d(32) — eval-mode (running) statistics
    p["g1"] = 1.0 + 0.1 * jax.random.normal(ks[2], (32,), jnp.float32)
    p["beta1"] = 0.05 * jax.random.normal(ks[3], (32,), jnp.float32)
    p["mean1"] = 0.05 * jax.random.normal(ks[4], (32,), jnp.float32)
    p["var1"] = 1.0 + 0.1 * jax.random.uniform(ks[5], (32,), jnp.float32)
    # conv2: Conv2d(32, 64, 3, padding=1)
    p["w2"] = conv_w(ks[6], 3, 3, 32, 64)
    p["b2"] = 0.05 * jax.random.normal(ks[7], (64,), jnp.float32)
    # bn2: BatchNorm2d(64)
    p["g2"] = 1.0 + 0.1 * jax.random.normal(ks[8], (64,), jnp.float32)
    p["beta2"] = 0.05 * jax.random.normal(ks[9], (64,), jnp.float32)
    p["mean2"] = 0.05 * jax.random.normal(ks[10], (64,), jnp.float32)
    p["var2"] = 1.0 + 0.1 * jax.random.uniform(ks[11], (64,), jnp.float32)
    # output_conv: Conv2d(64, num_classes, 1)
    k_a, k_b = jax.random.split(jax.random.fold_in(key, 99))
    p["w3"] = 0.1 * jax.random.normal(k_a, (64, num_output_classes), jnp.float32)
    p["b3"] = 0.05 * jax.random.normal(k_b, (num_output_classes,), jnp.float32)
    return p


# ----------------------------------------------------------------------------
# Pure-JAX reference (for correctness check; uses the raw, un-folded params)
# ----------------------------------------------------------------------------
def _ref_forward(x_nchw, params):
    x = jnp.transpose(x_nchw, (0, 2, 3, 1)).astype(jnp.float32)
    dn = ("NHWC", "HWIO", "NHWC")

    def conv(x, w, b):
        y = jax.lax.conv_general_dilated(x, w, (1, 1), "SAME", dimension_numbers=dn)
        return y + b

    def bn(y, g, beta, mean, var, eps=1e-5):
        return (y - mean) * jax.lax.rsqrt(var + eps) * g + beta

    h = jnp.maximum(bn(conv(x, params["w1"], params["b1"]),
                       params["g1"], params["beta1"], params["mean1"], params["var1"]), 0.0)
    h = jnp.maximum(bn(conv(h, params["w2"], params["b2"]),
                       params["g2"], params["beta2"], params["mean2"], params["var2"]), 0.0)
    out = jnp.einsum("bhwc,co->bhwo", h, params["w3"]) + params["b3"]
    return jnp.transpose(out, (0, 3, 1, 2))


# ----------------------------------------------------------------------------
if __name__ == "__main__":
    B, C_IN, H, W = 2, 4, 16, 16
    NUM_CLASSES = 3

    key = jax.random.PRNGKey(0)
    k_x, k_p = jax.random.split(key)
    x = jax.random.normal(k_x, (B, C_IN, H, W), jnp.float32)  # NCHW like PyTorch
    params = init_params(k_p, C_IN, NUM_CLASSES)

    # One-time parameter prep (BN folding + tap-major layout packing), outside the forward.
    prepped = prepare_params(params)

    fwd = jax.jit(module_placement_cnn_forward)
    out = jax.block_until_ready(fwd(x, prepped))

    ref = jax.block_until_ready(_ref_forward(x, params))
    assert out.shape == (B, NUM_CLASSES, H, W), out.shape
    max_err = float(jnp.max(jnp.abs(out - ref)))
    assert jnp.allclose(out, ref, rtol=1e-4, atol=5e-4), max_err

    print("KERNEL_OK")
</pallas_src>

<mosaic_0001>
module attributes {stable_mosaic.version = 11 : i64} {
  func.func @_fused_cnn_kernel(%arg0: i32, %arg1: memref<2x18x18x4xf32, #tpu.memory_space<vmem>>, %arg2: memref<9x4x32xf32, #tpu.memory_space<vmem>>, %arg3: memref<1x32xf32, #tpu.memory_space<vmem>>, %arg4: memref<9x32x64xf32, #tpu.memory_space<vmem>>, %arg5: memref<1x64xf32, #tpu.memory_space<vmem>>, %arg6: memref<3x64xf32, #tpu.memory_space<vmem>>, %arg7: memref<3x1xf32, #tpu.memory_space<vmem>>, %arg8: memref<2x3x256xf32, #tpu.memory_space<vmem>>, %arg9: memref<2x18x18x32xf32, #tpu.memory_space<vmem>>) attributes {dimension_semantics = [#tpu.dimension_semantics<parallel>], iteration_bounds = array<i64: 1>, scalar_prefetch = 0 : i64, scratch_operands = 1 : i64, tpu.core_type = #tpu.core_type<tc>, window_params = [{transform_indices = @transform_0, window_bounds = array<i64: 2, 18, 18, 4>}, {pipeline_mode = #tpu.pipeline_mode<synchronous>, transform_indices = @transform_1, window_bounds = array<i64: 9, 4, 32>}, {pipeline_mode = #tpu.pipeline_mode<synchronous>, transform_indices = @transform_2, window_bounds = array<i64: 1, 32>}, {pipeline_mode = #tpu.pipeline_mode<synchronous>, transform_indices = @transform_3, window_bounds = array<i64: 9, 32, 64>}, {pipeline_mode = #tpu.pipeline_mode<synchronous>, transform_indices = @transform_4, window_bounds = array<i64: 1, 64>}, {pipeline_mode = #tpu.pipeline_mode<synchronous>, transform_indices = @transform_5, window_bounds = array<i64: 3, 64>}, {pipeline_mode = #tpu.pipeline_mode<synchronous>, transform_indices = @transform_6, window_bounds = array<i64: 3, 1>}, {transform_indices = @transform_7, window_bounds = array<i64: 2, 3, 256>}]} {
    %c0 = arith.constant 0 : index
    %c0_0 = arith.constant 0 : index
    %c0_1 = arith.constant 0 : index
    %c0_2 = arith.constant 0 : index
    %0 = vector.load %arg1[%c0, %c0_0, %c0_1, %c0_2] : memref<2x18x18x4xf32, #tpu.memory_space<vmem>>, vector<2x16x16x4xf32>
    %1 = vector.shape_cast %0 : vector<2x16x16x4xf32> to vector<512x4xf32>
    %c0_3 = arith.constant 0 : index
    %c0_4 = arith.constant 0 : index
    %c0_5 = arith.constant 0 : index
    %2 = vector.load %arg2[%c0_3, %c0_4, %c0_5] : memref<9x4x32xf32, #tpu.memory_space<vmem>>, vector<1x4x32xf32>
    %3 = vector.shape_cast %2 : vector<1x4x32xf32> to vector<4x32xf32>
    %cst = arith.constant dense<0.000000e+00> : vector<512x32xf32>
    %4 = tpu.matmul %1, %3, %cst {dimension_numbers = #tpu.dot_dimension_numbers<[1], [0], [0], [1], [0, 0, 1, 1], [], []>} : vector<512x4xf32>, vector<4x32xf32>, vector<512x32xf32> -> vector<512x32xf32>
    %c0_6 = arith.constant 0 : index
    %c0_7 = arith.constant 0 : index
    %c1 = arith.constant 1 : index
    %c0_8 = arith.constant 0 : index
    %5 = vector.load %arg1[%c0_6, %c0_7, %c1, %c0_8] : memref<2x18x18x4xf32, #tpu.memory_space<vmem>>, vector<2x16x16x4xf32>
    %6 = vector.shape_cast %5 : vector<2x16x16x4xf32> to vector<512x4xf32>
    %c1_9 = arith.constant 1 : index
    %c0_10 = arith.constant 0 : index
    %c0_11 = arith.constant 0 : index
    %7 = vector.load %arg2[%c1_9, %c0_10, %c0_11] : memref<9x4x32xf32, #tpu.memory_space<vmem>>, vector<1x4x32xf32>
    %8 = vector.shape_cast %7 : vector<1x4x32xf32> to vector<4x32xf32>
    %cst_12 = arith.constant dense<0.000000e+00> : vector<512x32xf32>
    %9 = tpu.matmul %6, %8, %cst_12 {dimension_numbers = #tpu.dot_dimension_numbers<[1], [0], [0], [1], [0, 0, 1, 1], [], []>} : vector<512x4xf32>, vector<4x32xf32>, vector<512x32xf32> -> vector<512x32xf32>
    %10 = arith.addf %4, %9 : vector<512x32xf32>
    %c0_13 = arith.constant 0 : index
    %c0_14 = arith.constant 0 : index
    %c2 = arith.constant 2 : index
    %c0_15 = arith.constant 0 : index
    %11 = vector.load %arg1[%c0_13, %c0_14, %c2, %c0_15] : memref<2x18x18x4xf32, #tpu.memory_space<vmem>>, vector<2x16x16x4xf32>
    %12 = vector.shape_cast %11 : vector<2x16x16x4xf32> to vector<512x4xf32>
    %c2_16 = arith.constant 2 : index
    %c0_17 = arith.constant 0 : index
    %c0_18 = arith.constant 0 : index
    %13 = vector.load %arg2[%c2_16, %c0_17, %c0_18] : memref<9x4x32xf32, #tpu.memory_space<vmem>>, vector<1x4x32xf32>
    %14 = vector.shape_cast %13 : vector<1x4x32xf32> to vector<4x32xf32>
    %cst_19 = arith.constant dense<0.000000e+00> : vector<512x32xf32>
    %15 = tpu.matmul %12, %14, %cst_19 {dimension_numbers = #tpu.dot_dimension_numbers<[1], [0], [0], [1], [0, 0, 1, 1], [], []>} : vector<512x4xf32>, vector<4x32xf32>, vector<512x32xf32> -> vector<512x32xf32>
    %16 = arith.addf %10, %15 : vector<512x32xf32>
    %c0_20 = arith.constant 0 : index
    %c1_21 = arith.constant 1 : index
    %c0_22 = arith.constant 0 : index
    %c0_23 = arith.constant 0 : index
    %17 = vector.load %arg1[%c0_20, %c1_21, %c0_22, %c0_23] : memref<2x18x18x4xf32, #tpu.memory_space<vmem>>, vector<2x16x16x4xf32>
    %18 = vector.shape_cast %17 : vector<2x16x16x4xf32> to vector<512x4xf32>
    %c3 = arith.constant 3 : index
    %c0_24 = arith.constant 0 : index
    %c0_25 = arith.constant 0 : index
    %19 = vector.load %arg2[%c3, %c0_24, %c0_25] : memref<9x4x32xf32, #tpu.memory_space<vmem>>, vector<1x4x32xf32>
    %20 = vector.shape_cast %19 : vector<1x4x32xf32> to vector<4x32xf32>
    %cst_26 = arith.constant dense<0.000000e+00> : vector<512x32xf32>
    %21 = tpu.matmul %18, %20, %cst_26 {dimension_numbers = #tpu.dot_dimension_numbers<[1], [0], [0], [1], [0, 0, 1, 1], [], []>} : vector<512x4xf32>, vector<4x32xf32>, vector<512x32xf32> -> vector<512x32xf32>
    %22 = arith.addf %16, %21 : vector<512x32xf32>
    %c0_27 = arith.constant 0 : index
    %c1_28 = arith.constant 1 : index
    %c1_29 = arith.constant 1 : index
    %c0_30 = arith.constant 0 : index
    %23 = vector.load %arg1[%c0_27, %c1_28, %c1_29, %c0_30] : memref<2x18x18x4xf32, #tpu.memory_space<vmem>>, vector<2x16x16x4xf32>
    %24 = vector.shape_cast %23 : vector<2x16x16x4xf32> to vector<512x4xf32>
    %c4 = arith.constant 4 : index
    %c0_31 = arith.constant 0 : index
    %c0_32 = arith.constant 0 : index
    %25 = vector.load %arg2[%c4, %c0_31, %c0_32] : memref<9x4x32xf32, #tpu.memory_space<vmem>>, vector<1x4x32xf32>
    %26 = vector.shape_cast %25 : vector<1x4x32xf32> to vector<4x32xf32>
    %cst_33 = arith.constant dense<0.000000e+00> : vector<512x32xf32>
    %27 = tpu.matmul %24, %26, %cst_33 {dimension_numbers = #tpu.dot_dimension_numbers<[1], [0], [0], [1], [0, 0, 1, 1], [], []>} : vector<512x4xf32>, vector<4x32xf32>, vector<512x32xf32> -> vector<512x32xf32>
    %28 = arith.addf %22, %27 : vector<512x32xf32>
    %c0_34 = arith.constant 0 : index
    %c1_35 = arith.constant 1 : index
    %c2_36 = arith.constant 2 : index
    %c0_37 = arith.constant 0 : index
    %29 = vector.load %arg1[%c0_34, %c1_35, %c2_36, %c0_37] : memref<2x18x18x4xf32, #tpu.memory_space<vmem>>, vector<2x16x16x4xf32>
    %30 = vector.shape_cast %29 : vector<2x16x16x4xf32> to vector<512x4xf32>
    %c5 = arith.constant 5 : index
    %c0_38 = arith.constant 0 : index
    %c0_39 = arith.constant 0 : index
    %31 = vector.load %arg2[%c5, %c0_38, %c0_39] : memref<9x4x32xf32, #tpu.memory_space<vmem>>, vector<1x4x32xf32>
    %32 = vector.shape_cast %31 : vector<1x4x32xf32> to vector<4x32xf32>
    %cst_40 = arith.constant dense<0.000000e+00> : vector<512x32xf32>
    %33 = tpu.matmul %30, %32, %cst_40 {dimension_numbers = #tpu.dot_dimension_numbers<[1], [0], [0], [1], [0, 0, 1, 1], [], []>} : vector<512x4xf32>, vector<4x32xf32>, vector<512x32xf32> -> vector<512x32xf32>
    %34 = arith.addf %28, %33 : vector<512x32xf32>
    %c0_41 = arith.constant 0 : index
    %c2_42 = arith.constant 2 : index
    %c0_43 = arith.constant 0 : index
    %c0_44 = arith.constant 0 : index
    %35 = vector.load %arg1[%c0_41, %c2_42, %c0_43, %c0_44] : memref<2x18x18x4xf32, #tpu.memory_space<vmem>>, vector<2x16x16x4xf32>
    %36 = vector.shape_cast %35 : vector<2x16x16x4xf32> to vector<512x4xf32>
    %c6 = arith.constant 6 : index
    %c0_45 = arith.constant 0 : index
    %c0_46 = arith.constant 0 : index
    %37 = vector.load %arg2[%c6, %c0_45, %c0_46] : memref<9x4x32xf32, #tpu.memory_space<vmem>>, vector<1x4x32xf32>
    %38 = vector.shape_cast %37 : vector<1x4x32xf32> to vector<4x32xf32>
    %cst_47 = arith.constant dense<0.000000e+00> : vector<512x32xf32>
    %39 = tpu.matmul %36, %38, %cst_47 {dimension_numbers = #tpu.dot_dimension_numbers<[1], [0], [0], [1], [0, 0, 1, 1], [], []>} : vector<512x4xf32>, vector<4x32xf32>, vector<512x32xf32> -> vector<512x32xf32>
    %40 = arith.addf %34, %39 : vector<512x32xf32>
    %c0_48 = arith.constant 0 : index
    %c2_49 = arith.constant 2 : index
    %c1_50 = arith.constant 1 : index
    %c0_51 = arith.constant 0 : index
    %41 = vector.load %arg1[%c0_48, %c2_49, %c1_50, %c0_51] : memref<2x18x18x4xf32, #tpu.memory_space<vmem>>, vector<2x16x16x4xf32>
    %42 = vector.shape_cast %41 : vector<2x16x16x4xf32> to vector<512x4xf32>
    %c7 = arith.constant 7 : index
    %c0_52 = arith.constant 0 : index
    %c0_53 = arith.constant 0 : index
    %43 = vector.load %arg2[%c7, %c0_52, %c0_53] : memref<9x4x32xf32, #tpu.memory_space<vmem>>, vector<1x4x32xf32>
    %44 = vector.shape_cast %43 : vector<1x4x32xf32> to vector<4x32xf32>
    %cst_54 = arith.constant dense<0.000000e+00> : vector<512x32xf32>
    %45 = tpu.matmul %42, %44, %cst_54 {dimension_numbers = #tpu.dot_dimension_numbers<[1], [0], [0], [1], [0, 0, 1, 1], [], []>} : vector<512x4xf32>, vector<4x32xf32>, vector<512x32xf32> -> vector<512x32xf32>
    %46 = arith.addf %40, %45 : vector<512x32xf32>
    %c0_55 = arith.constant 0 : index
    %c2_56 = arith.constant 2 : index
    %c2_57 = arith.constant 2 : index
    %c0_58 = arith.constant 0 : index
    %47 = vector.load %arg1[%c0_55, %c2_56, %c2_57, %c0_58] : memref<2x18x18x4xf32, #tpu.memory_space<vmem>>, vector<2x16x16x4xf32>
    %48 = vector.shape_cast %47 : vector<2x16x16x4xf32> to vector<512x4xf32>
    %c8 = arith.constant 8 : index
    %c0_59 = arith.constant 0 : index
    %c0_60 = arith.constant 0 : index
    %49 = vector.load %arg2[%c8, %c0_59, %c0_60] : memref<9x4x32xf32, #tpu.memory_space<vmem>>, vector<1x4x32xf32>
    %50 = vector.shape_cast %49 : vector<1x4x32xf32> to vector<4x32xf32>
    %cst_61 = arith.constant dense<0.000000e+00> : vector<512x32xf32>
    %51 = tpu.matmul %48, %50, %cst_61 {dimension_numbers = #tpu.dot_dimension_numbers<[1], [0], [0], [1], [0, 0, 1, 1], [], []>} : vector<512x4xf32>, vector<4x32xf32>, vector<512x32xf32> -> vector<512x32xf32>
    %52 = arith.addf %46, %51 : vector<512x32xf32>
    %c0_62 = arith.constant 0 : index
    %c0_63 = arith.constant 0 : index
    %53 = vector.load %arg3[%c0_62, %c0_63] : memref<1x32xf32, #tpu.memory_space<vmem>>, vector<1x32xf32>
    %54 = vector.broadcast %53 : vector<1x32xf32> to vector<512x32xf32>
    %55 = arith.addf %52, %54 : vector<512x32xf32>
    %cst_64 = arith.constant 0.000000e+00 : f32
    %56 = vector.broadcast %cst_64 : f32 to vector<512x32xf32>
    %57 = arith.maximumf %55, %56 : vector<512x32xf32>
    %cst_65 = arith.constant 0.000000e+00 : f32
    %58 = vector.broadcast %cst_65 : f32 to vector<2x1x18x32xf32>
    %c0_66 = arith.constant 0 : index
    %c0_67 = arith.constant 0 : index
    %c0_68 = arith.constant 0 : index
    %c0_69 = arith.constant 0 : index
    %59 = vector.load %arg9[%c0_66, %c0_67, %c0_68, %c0_69] : memref<2x18x18x32xf32, #tpu.memory_space<vmem>>, vector<2x1x18x32xf32>
    tpu.vector_store %arg9[%c0_66, %c0_67, %c0_68, %c0_69], %58 {strides = array<i32>} : memref<2x18x18x32xf32, #tpu.memory_space<vmem>>, vector<2x1x18x32xf32>,
    %cst_70 = arith.constant 0.000000e+00 : f32
    %60 = vector.broadcast %cst_70 : f32 to vector<2x1x18x32xf32>
    %c0_71 = arith.constant 0 : index
    %c17 = arith.constant 17 : index
    %c0_72 = arith.constant 0 : index
    %c0_73 = arith.constant 0 : index
    %61 = vector.load %arg9[%c0_71, %c17, %c0_72, %c0_73] : memref<2x18x18x32xf32, #tpu.memory_space<vmem>>, vector<2x1x18x32xf32>
    tpu.vector_store %arg9[%c0_71, %c17, %c0_72, %c0_73], %60 {strides = array<i32>} : memref<2x18x18x32xf32, #tpu.memory_space<vmem>>, vector<2x1x18x32xf32>,
    %cst_74 = arith.constant 0.000000e+00 : f32
    %62 = vector.broadcast %cst_74 : f32 to vector<2x18x1x32xf32>
    %c0_75 = arith.constant 0 : index
    %c0_76 = arith.constant 0 : index
    %c0_77 = arith.constant 0 : index
    %c0_78 = arith.constant 0 : index
    %63 = vector.load %arg9[%c0_75, %c0_76, %c0_77, %c0_78] : memref<2x18x18x32xf32, #tpu.memory_space<vmem>>, vector<2x18x1x32xf32>
    tpu.vector_store %arg9[%c0_75, %c0_76, %c0_77, %c0_78], %62 {strides = array<i32>} : memref<2x18x18x32xf32, #tpu.memory_space<vmem>>, vector<2x18x1x32xf32>,
    %cst_79 = arith.constant 0.000000e+00 : f32
    %64 = vector.broadcast %cst_79 : f32 to vector<2x18x1x32xf32>
    %c0_80 = arith.constant 0 : index
    %c0_81 = arith.constant 0 : index
    %c17_82 = arith.constant 17 : index
    %c0_83 = arith.constant 0 : index
    %65 = vector.load %arg9[%c0_80, %c0_81, %c17_82, %c0_83] : memref<2x18x18x32xf32, #tpu.memory_space<vmem>>, vector<2x18x1x32xf32>
    tpu.vector_store %arg9[%c0_80, %c0_81, %c17_82, %c0_83], %64 {strides = array<i32>} : memref<2x18x18x32xf32, #tpu.memory_space<vmem>>, vector<2x18x1x32xf32>,
    %66 = vector.shape_cast %57 : vector<512x32xf32> to vector<2x16x16x32xf32>
    %c0_84 = arith.constant 0 : index
    %c1_85 = arith.constant 1 : index
    %c1_86 = arith.constant 1 : index
    %c0_87 = arith.constant 0 : index
    %67 = vector.load %arg9[%c0_84, %c1_85, %c1_86, %c0_87] : memref<2x18x18x32xf32, #tpu.memory_space<vmem>>, vector<2x16x16x32xf32>
    tpu.vector_store %arg9[%c0_84, %c1_85, %c1_86, %c0_87], %66 {strides = array<i32>} : memref<2x18x18x32xf32, #tpu.memory_space<vmem>>, vector<2x16x16x32xf32>,
    %c0_88 = arith.constant 0 : index
    %c0_89 = arith.constant 0 : index
    %c0_90 = arith.constant 0 : index
    %c0_91 = arith.constant 0 : index
    %68 = vector.load %arg9[%c0_88, %c0_89, %c0_90, %c0_91] : memref<2x18x18x32xf32, #tpu.memory_space<vmem>>, vector<2x16x16x32xf32>
    %69 = vector.shape_cast %68 : vector<2x16x16x32xf32> to vector<512x32xf32>
    %c0_92 = arith.constant 0 : index
    %c0_93 = arith.constant 0 : index
    %c0_94 = arith.constant 0 : index
    %70 = vector.load %arg4[%c0_92, %c0_93, %c0_94] : memref<9x32x64xf32, #tpu.memory_space<vmem>>, vector<1x32x64xf32>
    %71 = vector.shape_cast %70 : vector<1x32x64xf32> to vector<32x64xf32>
    %cst_95 = arith.constant dense<0.000000e+00> : vector<512x64xf32>
    %72 = tpu.matmul %69, %71, %cst_95 {dimension_numbers = #tpu.dot_dimension_numbers<[1], [0], [0], [1], [0, 0, 1, 1], [], []>} : vector<512x32xf32>, vector<32x64xf32>, vector<512x64xf32> -> vector<512x64xf32>
    %c0_96 = arith.constant 0 : index
    %c0_97 = arith.constant 0 : index
    %c1_98 = arith.constant 1 : index
    %c0_99 = arith.constant 0 : index
    %73 = vector.load %arg9[%c0_96, %c0_97, %c1_98, %c0_99] : memref<2x18x18x32xf32, #tpu.memory_space<vmem>>, vector<2x16x16x32xf32>
    %74 = vector.shape_cast %73 : vector<2x16x16x32xf32> to vector<512x32xf32>
    %c1_100 = arith.constant 1 : index
    %c0_101 = arith.constant 0 : index
    %c0_102 = arith.constant 0 : index
    %75 = vector.load %arg4[%c1_100, %c0_101, %c0_102] : memref<9x32x64xf32, #tpu.memory_space<vmem>>, vector<1x32x64xf32>
    %76 = vector.shape_cast %75 : vector<1x32x64xf32> to vector<32x64xf32>
    %cst_103 = arith.constant dense<0.000000e+00> : vector<512x64xf32>
    %77 = tpu.matmul %74, %76, %cst_103 {dimension_numbers = #tpu.dot_dimension_numbers<[1], [0], [0], [1], [0, 0, 1, 1], [], []>} : vector<512x32xf32>, vector<32x64xf32>, vector<512x64xf32> -> vector<512x64xf32>
    %78 = arith.addf %72, %77 : vector<512x64xf32>
    %c0_104 = arith.constant 0 : index
    %c0_105 = arith.constant 0 : index
    %c2_106 = arith.constant 2 : index
    %c0_107 = arith.constant 0 : index
    %79 = vector.load %arg9[%c0_104, %c0_105, %c2_106, %c0_107] : memref<2x18x18x32xf32, #tpu.memory_space<vmem>>, vector<2x16x16x32xf32>
    %80 = vector.shape_cast %79 : vector<2x16x16x32xf32> to vector<512x32xf32>
    %c2_108 = arith.constant 2 : index
    %c0_109 = arith.constant 0 : index
    %c0_110 = arith.constant 0 : index
    %81 = vector.load %arg4[%c2_108, %c0_109, %c0_110] : memref<9x32x64xf32, #tpu.memory_space<vmem>>, vector<1x32x64xf32>
    %82 = vector.shape_cast %81 : vector<1x32x64xf32> to vector<32x64xf32>
    %cst_111 = arith.constant dense<0.000000e+00> : vector<512x64xf32>
    %83 = tpu.matmul %80, %82, %cst_111 {dimension_numbers = #tpu.dot_dimension_numbers<[1], [0], [0], [1], [0, 0, 1, 1], [], []>} : vector<512x32xf32>, vector<32x64xf32>, vector<512x64xf32> -> vector<512x64xf32>
    %84 = arith.addf %78, %83 : vector<512x64xf32>
    %c0_112 = arith.constant 0 : index
    %c1_113 = arith.constant 1 : index
    %c0_114 = arith.constant 0 : index
    %c0_115 = arith.constant 0 : index
    %85 = vector.load %arg9[%c0_112, %c1_113, %c0_114, %c0_115] : memref<2x18x18x32xf32, #tpu.memory_space<vmem>>, vector<2x16x16x32xf32>
    %86 = vector.shape_cast %85 : vector<2x16x16x32xf32> to vector<512x32xf32>
    %c3_116 = arith.constant 3 : index
    %c0_117 = arith.constant 0 : index
    %c0_118 = arith.constant 0 : index
    %87 = vector.load %arg4[%c3_116, %c0_117, %c0_118] : memref<9x32x64xf32, #tpu.memory_space<vmem>>, vector<1x32x64xf32>
    %88 = vector.shape_cast %87 : vector<1x32x64xf32> to vector<32x64xf32>
    %cst_119 = arith.constant dense<0.000000e+00> : vector<512x64xf32>
    %89 = tpu.matmul %86, %88, %cst_119 {dimension_numbers = #tpu.dot_dimension_numbers<[1], [0], [0], [1], [0, 0, 1, 1], [], []>} : vector<512x32xf32>, vector<32x64xf32>, vector<512x64xf32> -> vector<512x64xf32>
    %90 = arith.addf %84, %89 : vector<512x64xf32>
    %c0_120 = arith.constant 0 : index
    %c1_121 = arith.constant 1 : index
    %c1_122 = arith.constant 1 : index
    %c0_123 = arith.constant 0 : index
    %91 = vector.load %arg9[%c0_120, %c1_121, %c1_122, %c0_123] : memref<2x18x18x32xf32, #tpu.memory_space<vmem>>, vector<2x16x16x32xf32>
    %92 = vector.shape_cast %91 : vector<2x16x16x32xf32> to vector<512x32xf32>
    %c4_124 = arith.constant 4 : index
    %c0_125 = arith.constant 0 : index
    %c0_126 = arith.constant 0 : index
    %93 = vector.load %arg4[%c4_124, %c0_125, %c0_126] : memref<9x32x64xf32, #tpu.memory_space<vmem>>, vector<1x32x64xf32>
    %94 = vector.shape_cast %93 : vector<1x32x64xf32> to vector<32x64xf32>
    %cst_127 = arith.constant dense<0.000000e+00> : vector<512x64xf32>
    %95 = tpu.matmul %92, %94, %cst_127 {dimension_numbers = #tpu.dot_dimension_numbers<[1], [0], [0], [1], [0, 0, 1, 1], [], []>} : vector<512x32xf32>, vector<32x64xf32>, vector<512x64xf32> -> vector<512x64xf32>
    %96 = arith.addf %90, %95 : vector<512x64xf32>
    %c0_128 = arith.constant 0 : index
    %c1_129 = arith.constant 1 : index
    %c2_130 = arith.constant 2 : index
    %c0_131 = arith.constant 0 : index
    %97 = vector.load %arg9[%c0_128, %c1_129, %c2_130, %c0_131] : memref<2x18x18x32xf32, #tpu.memory_space<vmem>>, vector<2x16x16x32xf32>
    %98 = vector.shape_cast %97 : vector<2x16x16x32xf32> to vector<512x32xf32>
    %c5_132 = arith.constant 5 : index
    %c0_133 = arith.constant 0 : index
    %c0_134 = arith.constant 0 : index
    %99 = vector.load %arg4[%c5_132, %c0_133, %c0_134] : memref<9x32x64xf32, #tpu.memory_space<vmem>>, vector<1x32x64xf32>
    %100 = vector.shape_cast %99 : vector<1x32x64xf32> to vector<32x64xf32>
    %cst_135 = arith.constant dense<0.000000e+00> : vector<512x64xf32>
    %101 = tpu.matmul %98, %100, %cst_135 {dimension_numbers = #tpu.dot_dimension_numbers<[1], [0], [0], [1], [0, 0, 1, 1], [], []>} : vector<512x32xf32>, vector<32x64xf32>, vector<512x64xf32> -> vector<512x64xf32>
    %102 = arith.addf %96, %101 : vector<512x64xf32>
    %c0_136 = arith.constant 0 : index
    %c2_137 = arith.constant 2 : index
    %c0_138 = arith.constant 0 : index
    %c0_139 = arith.constant 0 : index
    %103 = vector.load %arg9[%c0_136, %c2_137, %c0_138, %c0_139] : memref<2x18x18x32xf32, #tpu.memory_space<vmem>>, vector<2x16x16x32xf32>
    %104 = vector.shape_cast %103 : vector<2x16x16x32xf32> to vector<512x32xf32>
    %c6_140 = arith.constant 6 : index
    %c0_141 = arith.constant 0 : index
    %c0_142 = arith.constant 0 : index
    %105 = vector.load %arg4[%c6_140, %c0_141, %c0_142] : memref<9x32x64xf32, #tpu.memory_space<vmem>>, vector<1x32x64xf32>
    %106 = vector.shape_cast %105 : vector<1x32x64xf32> to vector<32x64xf32>
    %cst_143 = arith.constant dense<0.000000e+00> : vector<512x64xf32>
    %107 = tpu.matmul %104, %106, %cst_143 {dimension_numbers = #tpu.dot_dimension_numbers<[1], [0], [0], [1], [0, 0, 1, 1], [], []>} : vector<512x32xf32>, vector<32x64xf32>, vector<512x64xf32> -> vector<512x64xf32>
    %108 = arith.addf %102, %107 : vector<512x64xf32>
    %c0_144 = arith.constant 0 : index
    %c2_145 = arith.constant 2 : index
    %c1_146 = arith.constant 1 : index
    %c0_147 = arith.constant 0 : index
    %109 = vector.load %arg9[%c0_144, %c2_145, %c1_146, %c0_147] : memref<2x18x18x32xf32, #tpu.memory_space<vmem>>, vector<2x16x16x32xf32>
    %110 = vector.shape_cast %109 : vector<2x16x16x32xf32> to vector<512x32xf32>
    %c7_148 = arith.constant 7 : index
    %c0_149 = arith.constant 0 : index
    %c0_150 = arith.constant 0 : index
    %111 = vector.load %arg4[%c7_148, %c0_149, %c0_150] : memref<9x32x64xf32, #tpu.memory_space<vmem>>, vector<1x32x64xf32>
    %112 = vector.shape_cast %111 : vector<1x32x64xf32> to vector<32x64xf32>
    %cst_151 = arith.constant dense<0.000000e+00> : vector<512x64xf32>
    %113 = tpu.matmul %110, %112, %cst_151 {dimension_numbers = #tpu.dot_dimension_numbers<[1], [0], [0], [1], [0, 0, 1, 1], [], []>} : vector<512x32xf32>, vector<32x64xf32>, vector<512x64xf32> -> vector<512x64xf32>
    %114 = arith.addf %108, %113 : vector<512x64xf32>
    %c0_152 = arith.constant 0 : index
    %c2_153 = arith.constant 2 : index
    %c2_154 = arith.constant 2 : index
    %c0_155 = arith.constant 0 : index
    %115 = vector.load %arg9[%c0_152, %c2_153, %c2_154, %c0_155] : memref<2x18x18x32xf32, #tpu.memory_space<vmem>>, vector<2x16x16x32xf32>
    %116 = vector.shape_cast %115 : vector<2x16x16x32xf32> to vector<512x32xf32>
    %c8_156 = arith.constant 8 : index
    %c0_157 = arith.constant 0 : index
    %c0_158 = arith.constant 0 : index
    %117 = vector.load %arg4[%c8_156, %c0_157, %c0_158] : memref<9x32x64xf32, #tpu.memory_space<vmem>>, vector<1x32x64xf32>
    %118 = vector.shape_cast %117 : vector<1x32x64xf32> to vector<32x64xf32>
    %cst_159 = arith.constant dense<0.000000e+00> : vector<512x64xf32>
    %119 = tpu.matmul %116, %118, %cst_159 {dimension_numbers = #tpu.dot_dimension_numbers<[1], [0], [0], [1], [0, 0, 1, 1], [], []>} : vector<512x32xf32>, vector<32x64xf32>, vector<512x64xf32> -> vector<512x64xf32>
    %120 = arith.addf %114, %119 : vector<512x64xf32>
    %c0_160 = arith.constant 0 : index
    %c0_161 = arith.constant 0 : index
    %121 = vector.load %arg5[%c0_160, %c0_161] : memref<1x64xf32, #tpu.memory_space<vmem>>, vector<1x64xf32>
    %122 = vector.broadcast %121 : vector<1x64xf32> to vector<512x64xf32>
    %123 = arith.addf %120, %122 : vector<512x64xf32>
    %cst_162 = arith.constant 0.000000e+00 : f32
    %124 = vector.broadcast %cst_162 : f32 to vector<512x64xf32>
    %125 = arith.maximumf %123, %124 : vector<512x64xf32>
    %c0_163 = arith.constant 0 : index
    %c0_164 = arith.constant 0 : index
    %126 = vector.load %arg6[%c0_163, %c0_164] : memref<3x64xf32, #tpu.memory_space<vmem>>, vector<3x64xf32>
    %cst_165 = arith.constant dense<0.000000e+00> : vector<3x512xf32>
    %127 = tpu.matmul %126, %125, %cst_165 {dimension_numbers = #tpu.dot_dimension_numbers<[1], [1], [0], [0], [0, 0, 1, 0], [], []>} : vector<3x64xf32>, vector<512x64xf32>, vector<3x512xf32> -> vector<3x512xf32>
    %c0_166 = arith.constant 0 : index
    %c0_167 = arith.constant 0 : index
    %128 = vector.load %arg7[%c0_166, %c0_167] : memref<3x1xf32, #tpu.memory_space<vmem>>, vector<3x1xf32>
    %129 = vector.broadcast %128 : vector<3x1xf32> to vector<3x512xf32>
    %130 = arith.addf %127, %129 : vector<3x512xf32>
    %131 = vector.extract_strided_slice %130 {offsets = [0, 0], sizes = [3, 256], strides = [1, 1]} : vector<3x512xf32> to vector<3x256xf32>
    %c0_168 = arith.constant 0 : index
    %c0_169 = arith.constant 0 : index
    %c0_170 = arith.constant 0 : index
    %132 = vector.load %arg8[%c0_168, %c0_169, %c0_170] : memref<2x3x256xf32, #tpu.memory_space<vmem>>, vector<1x3x256xf32>
    %133 = vector.shape_cast %132 : vector<1x3x256xf32> to vector<3x256xf32>
    %134 = vector.shape_cast %131 : vector<3x256xf32> to vector<1x3x256xf32>
    tpu.vector_store %arg8[%c0_168, %c0_169, %c0_170], %134 {strides = array<i32>} : memref<2x3x256xf32, #tpu.memory_space<vmem>>, vector<1x3x256xf32>,
    %135 = vector.extract_strided_slice %130 {offsets = [0, 256], sizes = [3, 256], strides = [1, 1]} : vector<3x512xf32> to vector<3x256xf32>
    %c1_171 = arith.constant 1 : index
    %c0_172 = arith.constant 0 : index
    %c0_173 = arith.constant 0 : index
    %136 = vector.load %arg8[%c1_171, %c0_172, %c0_173] : memref<2x3x256xf32, #tpu.memory_space<vmem>>, vector<1x3x256xf32>
    %137 = vector.shape_cast %136 : vector<1x3x256xf32> to vector<3x256xf32>
    %138 = vector.shape_cast %135 : vector<3x256xf32> to vector<1x3x256xf32>
    tpu.vector_store %arg8[%c1_171, %c0_172, %c0_173], %138 {strides = array<i32>} : memref<2x3x256xf32, #tpu.memory_space<vmem>>, vector<1x3x256xf32>,
    return
  }
  func.func @transform_0(%arg0: i32) -> (i32, i32, i32, i32) {
    %c0_i32 = arith.constant 0 : i32
    %c0_i32_0 = arith.constant 0 : i32
    %c0_i32_1 = arith.constant 0 : i32
    %c0_i32_2 = arith.constant 0 : i32
    return %arg0, %c0_i32, %c0_i32_0, %c0_i32_1 : i32, i32, i32, i32
  }
  func.func @transform_1(%arg0: i32) -> (i32, i32, i32) {
    %c0_i32 = arith.constant 0 : i32
    %c0_i32_0 = arith.constant 0 : i32
    %c0_i32_1 = arith.constant 0 : i32
    %c0_i32_2 = arith.constant 0 : i32
    return %c0_i32, %c0_i32_0, %c0_i32_1 : i32, i32, i32
  }
  func.func @transform_2(%arg0: i32) -> (i32, i32) {
    %c0_i32 = arith.constant 0 : i32
    %c0_i32_0 = arith.constant 0 : i32
    %c0_i32_1 = arith.constant 0 : i32
    return %c0_i32, %c0_i32_0 : i32, i32
  }
  func.func @transform_3(%arg0: i32) -> (i32, i32, i32) {
    %c0_i32 = arith.constant 0 : i32
    %c0_i32_0 = arith.constant 0 : i32
    %c0_i32_1 = arith.constant 0 : i32
    %c0_i32_2 = arith.constant 0 : i32
    return %c0_i32, %c0_i32_0, %c0_i32_1 : i32, i32, i32
  }
  func.func @transform_4(%arg0: i32) -> (i32, i32) {
    %c0_i32 = arith.constant 0 : i32
    %c0_i32_0 = arith.constant 0 : i32
    %c0_i32_1 = arith.constant 0 : i32
    return %c0_i32, %c0_i32_0 : i32, i32
  }
  func.func @transform_5(%arg0: i32) -> (i32, i32) {
    %c0_i32 = arith.constant 0 : i32
    %c0_i32_0 = arith.constant 0 : i32
    %c0_i32_1 = arith.constant 0 : i32
    return %c0_i32, %c0_i32_0 : i32, i32
  }
  func.func @transform_6(%arg0: i32) -> (i32, i32) {
    %c0_i32 = arith.constant 0 : i32
    %c0_i32_0 = arith.constant 0 : i32
    %c0_i32_1 = arith.constant 0 : i32
    return %c0_i32, %c0_i32_0 : i32, i32
  }
  func.func @transform_7(%arg0: i32) -> (i32, i32, i32) {
    %c0_i32 = arith.constant 0 : i32
    %c0_i32_0 = arith.constant 0 : i32
    %c0_i32_1 = arith.constant 0 : i32
    return %arg0, %c0_i32, %c0_i32_0 : i32, i32, i32
  }
}

</mosaic_0001>

<llo_original>
// kernel: module_placement_cnn_forward.1
$region0: #{module_placement_cnn_forward.1}
  #allocation0 [shape = 'u32[]', space=smem, size = 0x4, offset = 0x4, fixed_abs, tag = 'smem constant byte address 0x4 - core index']
  #allocation1 [shape = 'u32[144,128]{1,0:T(1,128)}', space=vmem, size = 0x12000, scoped, tag = 'internal scratch']
  #allocation2 [shape = 'f32[2,18,18,32]{3,2,1,0:T(8,128)}', space=vmem, size = 0x6c000, scoped, tag = 'scratch operand']
  %s0 = inlined_call_operand.vmem [shape: f32[2,18,18,4], index: 0, kind: input, shape index: {}]
  %s1 = inlined_call_operand.vmem [shape: f32[9,4,32], index: 1, kind: input, shape index: {}]
  %s2 = inlined_call_operand.vmem [shape: f32[1,32], index: 2, kind: input, shape index: {}]
  %s3 = inlined_call_operand.vmem [shape: f32[9,32,64], index: 3, kind: input, shape index: {}]
  %s4 = inlined_call_operand.vmem [shape: f32[1,64], index: 4, kind: input, shape index: {}]
  %s5 = inlined_call_operand.vmem [shape: f32[3,64], index: 5, kind: input, shape index: {}]
  %s6 = inlined_call_operand.vmem [shape: f32[3,1], index: 6, kind: input, shape index: {}]
  %s7 = inlined_call_operand.vmem [shape: f32[2,3,256], index: 7, kind: output, shape index: {}]
  %s8 = sld [smem:[#allocation0]]
  $region38: #{module_placement_cnn_forward.1} parent=0
    _
  %s10 = ssub.s32 1, %s8
  %s11 = scalar_select 0, %s10, %s8
  // Predicated region
  $region2: #{module_placement_cnn_forward.1} parent=0 // pred_check
    _
  $region3: #{module_placement_cnn_forward.1} parent=0 // pred_check_branch
    %13 = sbr.rel (0) target = $region5
  $region4: #{module_placement_cnn_forward.1} parent=0 // pred_region
    _
  $region5: #{module_placement_cnn_forward.1} parent=0 // pred_fallthru
    _
  // Predicated region
  $region6: #{module_placement_cnn_forward.1} parent=0 // pred_check
    _
  $region7: #{module_placement_cnn_forward.1} parent=0 // pred_check_branch
    %15 = sbr.rel (0) target = $region9
  $region8: #{module_placement_cnn_forward.1} parent=0 // pred_region
    _
  $region9: #{module_placement_cnn_forward.1} parent=0 // pred_fallthru
    _
  // Predicated region
  $region10: #{module_placement_cnn_forward.1} parent=0 // pred_check
    _
  $region11: #{module_placement_cnn_forward.1} parent=0 // pred_check_branch
    %17 = sbr.rel (0) target = $region13
  $region12: #{module_placement_cnn_forward.1} parent=0 // pred_region
    _
  $region13: #{module_placement_cnn_forward.1} parent=0 // pred_fallthru
    _
  // Predicated region
  $region14: #{module_placement_cnn_forward.1} parent=0 // pred_check
    _
  $region15: #{module_placement_cnn_forward.1} parent=0 // pred_check_branch
    %19 = sbr.rel (0) target = $region17
  $region16: #{module_placement_cnn_forward.1} parent=0 // pred_region
    _
  $region17: #{module_placement_cnn_forward.1} parent=0 // pred_fallthru
    _
  // Predicated region
  $region18: #{module_placement_cnn_forward.1} parent=0 // pred_check
    _
  $region19: #{module_placement_cnn_forward.1} parent=0 // pred_check_branch
    %21 = sbr.rel (0) target = $region21
  $region20: #{module_placement_cnn_forward.1} parent=0 // pred_region
    _
  $region21: #{module_placement_cnn_forward.1} parent=0 // pred_fallthru
    _
  // Predicated region
  $region22: #{module_placement_cnn_forward.1} parent=0 // pred_check
    _
  $region23: #{module_placement_cnn_forward.1} parent=0 // pred_check_branch
    %23 = sbr.rel (0) target = $region25
  $region24: #{module_placement_cnn_forward.1} parent=0 // pred_region
    _
  $region25: #{module_placement_cnn_forward.1} parent=0 // pred_fallthru
    _
  // Predicated region
  $region26: #{module_placement_cnn_forward.1} parent=0 // pred_check
    _
  $region27: #{module_placement_cnn_forward.1} parent=0 // pred_check_branch
    %25 = sbr.rel (0) target = $region29
  $region28: #{module_placement_cnn_forward.1} parent=0 // pred_region
    _
  $region29: #{module_placement_cnn_forward.1} parent=0 // pred_fallthru
    _
  %v26 = vld [vmem:[%s0] sm:$0xff]
  %v27 = vld [vmem:[%s0 + $0x8] sm:$0xff]
  %v28 = vld [vmem:[%s0 + $0x18] sm:$0xff]
  %v29 = vld [vmem:[%s0 + $0x20] sm:$0xff]
  %v30 = vld [vmem:[%s0 + $0x30] sm:$0xff]
  %v31 = vld [vmem:[%s0 + $0x38] sm:$0xff]
  %v32 = vld [vmem:[%s0 + $0x48] sm:$0xff]
  %v33 = vld [vmem:[%s0 + $0x50] sm:$0xff]
  %v34 = vld [vmem:[%s0 + $0x60] sm:$0xff]
  %v35 = vld [vmem:[%s0 + $0x68] sm:$0xff]
  %v36 = vld [vmem:[%s0 + $0x78] sm:$0xff]
  %v37 = vld [vmem:[%s0 + $0x80] sm:$0xff]
  %v38 = vld [vmem:[%s0 + $0x90] sm:$0xff]
  %v39 = vld [vmem:[%s0 + $0x98] sm:$0xff]
  %v40 = vld [vmem:[%s0 + $0xa8] sm:$0xff]
  %v41 = vld [vmem:[%s0 + $0xb0] sm:$0xff]
  %v42 = vld [vmem:[%s0 + $0xc0] sm:$0xff]
  %v43 = vld [vmem:[%s0 + $0xc8] sm:$0xff]
  %v44 = vld [vmem:[%s0 + $0xd8] sm:$0xff]
  %v45 = vld [vmem:[%s0 + $0xe0] sm:$0xff]
  %v46 = vld [vmem:[%s0 + $0xf0] sm:$0xff]
  %v47 = vld [vmem:[%s0 + $0xf8] sm:$0xff]
  %v48 = vld [vmem:[%s0 + $0x108] sm:$0xff]
  %v49 = vld [vmem:[%s0 + $0x110] sm:$0xff]
  %v50 = vld [vmem:[%s0 + $0x120] sm:$0xff]
  %v51 = vld [vmem:[%s0 + $0x128] sm:$0xff]
  %v52 = vld [vmem:[%s0 + $0x138] sm:$0xff]
  %v53 = vld [vmem:[%s0 + $0x140] sm:$0xff]
  %v54 = vld [vmem:[%s0 + $0x150] sm:$0xff]
  %v55 = vld [vmem:[%s0 + $0x158] sm:$0xff]
  %v56 = vld [vmem:[%s0 + $0x168] sm:$0xff]
  %v57 = vld [vmem:[%s0 + $0x170] sm:$0xff]
  %v58 = vld [vmem:[%s0 + $0x1b0] sm:$0xff]
  %v59 = vld [vmem:[%s0 + $0x1b8] sm:$0xff]
  %v60 = vld [vmem:[%s0 + $0x1c8] sm:$0xff]
  %v61 = vld [vmem:[%s0 + $0x1d0] sm:$0xff]
  %v62 = vld [vmem:[%s0 + $0x1e0] sm:$0xff]
  %v63 = vld [vmem:[%s0 + $0x1e8] sm:$0xff]
  %v64 = vld [vmem:[%s0 + $0x1f8] sm:$0xff]
  %v65 = vld [vmem:[%s0 + $0x200] sm:$0xff]
  %v66 = vld [vmem:[%s0 + $0x210] sm:$0xff]
  %v67 = vld [vmem:[%s0 + $0x218] sm:$0xff]
  %v68 = vld [vmem:[%s0 + $0x228] sm:$0xff]
  %v69 = vld [vmem:[%s0 + $0x230] sm:$0xff]
  %v70 = vld [vmem:[%s0 + $0x240] sm:$0xff]
  %v71 = vld [vmem:[%s0 + $0x248] sm:$0xff]
  %v72 = vld [vmem:[%s0 + $0x258] sm:$0xff]
  %v73 = vld [vmem:[%s0 + $0x260] sm:$0xff]
  %v74 = vld [vmem:[%s0 + $0x270] sm:$0xff]
  %v75 = vld [vmem:[%s0 + $0x278] sm:$0xff]
  %v76 = vld [vmem:[%s0 + $0x288] sm:$0xff]
  %v77 = vld [vmem:[%s0 + $0x290] sm:$0xff]
  %v78 = vld [vmem:[%s0 + $0x2a0] sm:$0xff]
  %v79 = vld [vmem:[%s0 + $0x2a8] sm:$0xff]
  %v80 = vld [vmem:[%s0 + $0x2b8] sm:$0xff]
  %v81 = vld [vmem:[%s0 + $0x2c0] sm:$0xff]
  %v82 = vld [vmem:[%s0 + $0x2d0] sm:$0xff]
  %v83 = vld [vmem:[%s0 + $0x2d8] sm:$0xff]
  %v84 = vld [vmem:[%s0 + $0x2e8] sm:$0xff]
  %v85 = vld [vmem:[%s0 + $0x2f0] sm:$0xff]
  %v86 = vld [vmem:[%s0 + $0x300] sm:$0xff]
  %v87 = vld [vmem:[%s0 + $0x308] sm:$0xff]
  %v88 = vld [vmem:[%s0 + $0x318] sm:$0xff]
  %v89 = vld [vmem:[%s0 + $0x320] sm:$0xff]
  %v90 = vld [vmem:[%s1] sm:$0xf]
  %v91 = vld [vmem:[%s0 + $0x1] sm:$0xff]
  %v92 = vld [vmem:[%s0 + $0x9] sm:$0xff]
  %v93 = vld [vmem:[%s0 + $0x19] sm:$0xff]
  %v94 = vld [vmem:[%s0 + $0x21] sm:$0xff]
  %v95 = vld [vmem:[%s0 + $0x31] sm:$0xff]
  %v96 = vld [vmem:[%s0 + $0x39] sm:$0xff]
  %v97 = vld [vmem:[%s0 + $0x49] sm:$0xff]
  %v98 = vld [vmem:[%s0 + $0x51] sm:$0xff]
  %v99 = vld [vmem:[%s0 + $0x61] sm:$0xff]
  %v100 = vld [vmem:[%s0 + $0x69] sm:$0xff]
  %v101 = vld [vmem:[%s0 + $0x79] sm:$0xff]
  %v102 = vld [vmem:[%s0 + $0x81] sm:$0xff]
  %v103 = vld [vmem:[%s0 + $0x91] sm:$0xff]
  %v104 = vld [vmem:[%s0 + $0x99] sm:$0xff]
  %v105 = vld [vmem:[%s0 + $0xa9] sm:$0xff]
  %v106 = vld [vmem:[%s0 + $0xb1] sm:$0xff]
  %v107 = vld [vmem:[%s0 + $0xc1] sm:$0xff]
  %v108 = vld [vmem:[%s0 + $0xc9] sm:$0xff]
  %v109 = vld [vmem:[%s0 + $0xd9] sm:$0xff]
  %v110 = vld [vmem:[%s0 + $0xe1] sm:$0xff]
  %v111 = vld [vmem:[%s0 + $0xf1] sm:$0xff]
  %v112 = vld [vmem:[%s0 + $0xf9] sm:$0xff]
  %v113 = vld [vmem:[%s0 + $0x109] sm:$0xff]
  %v114 = vld [vmem:[%s0 + $0x111] sm:$0xff]
  %v115 = vld [vmem:[%s0 + $0x121] sm:$0xff]
  %v116 = vld [vmem:[%s0 + $0x129] sm:$0xff]
  %v117 = vld [vmem:[%s0 + $0x139] sm:$0xff]
  %v118 = vld [vmem:[%s0 + $0x141] sm:$0xff]
  %v119 = vld [vmem:[%s0 + $0x151] sm:$0xff]
  %v120 = vld [vmem:[%s0 + $0x159] sm:$0xff]
  %v121 = vld [vmem:[%s0 + $0x169] sm:$0xff]
  %v122 = vld [vmem:[%s0 + $0x171] sm:$0xff]
  %v123 = vld [vmem:[%s0 + $0x1b1] sm:$0xff]
  %v124 = vld [vmem:[%s0 + $0x1b9] sm:$0xff]
  %v125 = vld [vmem:[%s0 + $0x1c9] sm:$0xff]
  %v126 = vld [vmem:[%s0 + $0x1d1] sm:$0xff]
  %v127 = vld [vmem:[%s0 + $0x1e1] sm:$0xff]
  %v128 = vld [vmem:[%s0 + $0x1e9] sm:$0xff]
  %v129 = vld [vmem:[%s0 + $0x1f9] sm:$0xff]
  %v130 = vld [vmem:[%s0 + $0x201] sm:$0xff]
  %v131 = vld [vmem:[%s0 + $0x211] sm:$0xff]
  %v132 = vld [vmem:[%s0 + $0x219] sm:$0xff]
  %v133 = vld [vmem:[%s0 + $0x229] sm:$0xff]
  %v134 = vld [vmem:[%s0 + $0x231] sm:$0xff]
  %v135 = vld [vmem:[%s0 + $0x241] sm:$0xff]
  %v136 = vld [vmem:[%s0 + $0x249] sm:$0xff]
  %v137 = vld [vmem:[%s0 + $0x259] sm:$0xff]
  %v138 = vld [vmem:[%s0 + $0x261] sm:$0xff]
  %v139 = vld [vmem:[%s0 + $0x271] sm:$0xff]
  %v140 = vld [vmem:[%s0 + $0x279] sm:$0xff]
  %v141 = vld [vmem:[%s0 + $0x289] sm:$0xff]
  %v142 = vld [vmem:[%s0 + $0x291] sm:$0xff]
  %v143 = vld [vmem:[%s0 + $0x2a1] sm:$0xff]
  %v144 = vld [vmem:[%s0 + $0x2a9] sm:$0xff]
  %v145 = vld [vmem:[%s0 + $0x2b9] sm:$0xff]
  %v146 = vld [vmem:[%s0 + $0x2c1] sm:$0xff]
  %v147 = vld [vmem:[%s0 + $0x2d1] sm:$0xff]
  %v148 = vld [vmem:[%s0 + $0x2d9] sm:$0xff]
  %v149 = vld [vmem:[%s0 + $0x2e9] sm:$0xff]
  %v150 = vld [vmem:[%s0 + $0x2f1] sm:$0xff]
  %v151 = vld [vmem:[%s0 + $0x301] sm:$0xff]
  %v152 = vld [vmem:[%s0 + $0x309] sm:$0xff]
  %v153 = vld [vmem:[%s0 + $0x319] sm:$0xff]
  %v154 = vld [vmem:[%s0 + $0x321] sm:$0xff]
  %s155 = scalar_lea.vmem %s1, 4
  %v156 = vld [vmem:[%s155] sm:$0xf]
  %vm157 = vcmask 31744
  %v159 = vsel %vm157, %v91, 0
  %v162 = vsel %vm157, %v92, 0
  %v165 = vsel %vm157, %v93, 0
  %v168 = vsel %vm157, %v94, 0
  %v171 = vsel %vm157, %v95, 0
  %v174 = vsel %vm157, %v96, 0
  %v177 = vsel %vm157, %v97, 0
  %v180 = vsel %vm157, %v98, 0
  %v183 = vsel %vm157, %v99, 0
  %v186 = vsel %vm157, %v100, 0
  %v189 = vsel %vm157, %v101, 0
  %v192 = vsel %vm157, %v102, 0
  %v195 = vsel %vm157, %v103, 0
  %v198 = vsel %vm157, %v104, 0
  %v201 = vsel %vm157, %v105, 0
  %v204 = vsel %vm157, %v106, 0
  %v207 = vsel %vm157, %v107, 0
  %v210 = vsel %vm157, %v108, 0
  %v213 = vsel %vm157, %v109, 0
  %v216 = vsel %vm157, %v110, 0
  %v219 = vsel %vm157, %v111, 0
  %v222 = vsel %vm157, %v112, 0
  %v225 = vsel %vm157, %v113, 0
  %v228 = vsel %vm157, %v114, 0
  %v231 = vsel %vm157, %v115, 0
  %v234 = vsel %vm157, %v116, 0
  %v237 = vsel %vm157, %v117, 0
  %v240 = vsel %vm157, %v118, 0
  %v243 = vsel %vm157, %v119, 0
  %v246 = vsel %vm157, %v120, 0
  %v249 = vsel %vm157, %v121, 0
  %v252 = vsel %vm157, %v122, 0
  %v255 = vsel %vm157, %v123, 0
  %v258 = vsel %vm157, %v124, 0
  %v261 = vsel %vm157, %v125, 0
  %v264 = vsel %vm157, %v126, 0
  %v267 = vsel %vm157, %v127, 0
  %v270 = vsel %vm157, %v128, 0
  %v273 = vsel %vm157, %v129, 0
  %v276 = vsel %vm157, %v130, 0
  %v279 = vsel %vm157, %v131, 0
  %v282 = vsel %vm157, %v132, 0
  %v285 = vsel %vm157, %v133, 0
  %v288 = vsel %vm157, %v134, 0
  %v291 = vsel %vm157, %v135, 0
  %v294 = vsel %vm157, %v136, 0
  %v297 = vsel %vm157, %v137, 0
  %v300 = vsel %vm157, %v138, 0
  %v303 = vsel %vm157, %v139, 0
  %v306 = vsel %vm157, %v140, 0
  %v309 = vsel %vm157, %v141, 0
  %v312 = vsel %vm157, %v142, 0
  %v315 = vsel %vm157, %v143, 0
  %v318 = vsel %vm157, %v144, 0
  %v321 = vsel %vm157, %v145, 0
  %v324 = vsel %vm157, %v146, 0
  %v327 = vsel %vm157, %v147, 0
  %v330 = vsel %vm157, %v148, 0
  %v333 = vsel %vm157, %v149, 0
  %v336 = vsel %vm157, %v150, 0
  %v339 = vsel %vm157, %v151, 0
  %v342 = vsel %vm157, %v152, 0
  %v345 = vsel %vm157, %v153, 0
  %v348 = vsel %vm157, %v154, 0
  %vm350 = vcmask 1043456
  %v352 = vsel %vm350, %v156, 0
  %354 = vmatprep.subr.mxu0 0.0
  %355 = vmatpush1.msra.mxu0 %v352
  %356 = vmatprep.subr.mxu0 0.0
  %357 = vmatpush1.msra.mxu0 0.0
  %358 = vmatprep.subr.mxu0 0.0
  %359 = vmatpush1.msra.mxu0 0.0
  %360 = vmatprep.subr.mxu0 0.0
  %361 = vmatpush1.msra.mxu0 0.0
  %362 = vmatprep.subr.mxu0 0.0
  %363 = vmatpush1.msra.mxu0 0.0
  %364 = vmatprep.subr.mxu0 0.0
  %365 = vmatpush1.msra.mxu0 0.0
  %366 = vmatprep.subr.mxu0 0.0
  %367 = vmatpush1.msra.mxu0 0.0
  %368 = vmatprep.subr.mxu0 0.0
  %369 = vmatpush1.msra.mxu0 0.0
  %370 = vmatprep.subr.mxu0 0.0
  %371 = vmatpush1.msra.mxu0 0.0
  %372 = vmatprep.subr.mxu0 0.0
  %373 = vmatpush1.msra.mxu0 0.0
  %374 = vmatprep.subr.mxu0 0.0
  %375 = vmatpush1.msra.mxu0 0.0
  %376 = vmatprep.subr.mxu0 0.0
  %377 = vmatpush1.msra.mxu0 0.0
  %378 = vmatprep.subr.mxu0 0.0
  %379 = vmatpush1.msra.mxu0 0.0
  %380 = vmatprep.subr.mxu0 0.0
  %381 = vmatpush1.msra.mxu0 0.0
  %382 = vmatprep.subr.mxu0 0.0
  %383 = vmatpush1.msra.mxu0 0.0
  %384 = vmatprep.subr.mxu0 0.0
  %385 = vmatpush1.msra.mxu0 0.0
  %386 = vmatprep.subr.mxu0 0.0
  %387 = vmatpush1.msra.mxu0 0.0
  %388 = vmatprep.subr.mxu0 0.0
  %389 = vmatpush1.msra.mxu0 0.0
  %390 = vmatprep.subr.mxu0 0.0
  %391 = vmatpush1.msra.mxu0 0.0
  %392 = vmatprep.subr.mxu0 0.0
  %393 = vmatpush1.msra.mxu0 0.0
  %394 = vmatprep.subr.mxu0 0.0
  %395 = vmatpush1.msra.mxu0 0.0
  %396 = vmatprep.subr.mxu0 0.0
  %397 = vmatpush1.msra.mxu0 0.0
  %398 = vmatprep.subr.mxu0 0.0
  %399 = vmatpush1.msra.mxu0 0.0
  %400 = vmatprep.subr.mxu0 0.0
  %401 = vmatpush1.msra.mxu0 0.0
  %402 = vmatprep.subr.mxu0 0.0
  %403 = vmatpush1.msra.mxu0 0.0
  %404 = vmatprep.subr.mxu0 0.0
  %405 = vmatpush1.msra.mxu0 0.0
  %406 = vmatprep.subr.mxu0 0.0
  %407 = vmatpush1.msra.mxu0 0.0
  %408 = vmatprep.subr.mxu0 0.0
  %409 = vmatpush1.msra.mxu0 0.0
  %410 = vmatprep.subr.mxu0 0.0
  %411 = vmatpush1.msra.mxu0 0.0
  %412 = vmatprep.subr.mxu0 0.0
  %413 = vmatpush1.msra.mxu0 0.0
  %414 = vmatprep.subr.mxu0 0.0
  %415 = vmatpush1.msra.mxu0 0.0
  %416 = vmatprep.subr.mxu0 0.0
  %417 = vmatpush1.msra.mxu0 0.0
  %418 = vmatprep.mubr.f32.mxu0 0.0
  %419 = vmatmul.mubr.f32.gmra.mrb[0].mxu0 %v159
  %v420 = vpop.f32.mrb[0].mxu0
  %v421 = vadd.f32 0.0, %v420
  %v422 = vpop.f32.mrb[0].mxu0
  %423 = vmatprep.mubr.f32.mxu0 0.0
  %424 = vmatmul.mubr.f32.gmra.mrb[0].mxu0 %v162
  %v425 = vpop.f32.mrb[0].mxu0
  %v426 = vadd.f32 0.0, %v425
  %v427 = vpop.f32.mrb[0].mxu0
  %428 = vmatprep.mubr.f32.mxu0 0.0
  %429 = vmatmul.mubr.f32.gmra.mrb[0].mxu0 %v165
  %v430 = vpop.f32.mrb[0].mxu0
  %v431 = vadd.f32 0.0, %v430
  %v432 = vpop.f32.mrb[0].mxu0
  %433 = vmatprep.mubr.f32.mxu0 0.0
  %434 = vmatmul.mubr.f32.gmra.mrb[0].mxu0 %v168
  %v435 = vpop.f32.mrb[0].mxu0
  %v436 = vadd.f32 0.0, %v435
  %v437 = vpop.f32.mrb[0].mxu0
  %438 = vmatprep.mubr.f32.mxu0 0.0
  %439 = vmatmul.mubr.f32.gmra.mrb[0].mxu0 %v171
  %v440 = vpop.f32.mrb[0].mxu0
  %v441 = vadd.f32 0.0, %v440
  %v442 = vpop.f32.mrb[0].mxu0
  %443 = vmatprep.mubr.f32.mxu0 0.0
  %444 = vmatmul.mubr.f32.gmra.mrb[0].mxu0 %v174
  %v445 = vpop.f32.mrb[0].mxu0
  %v446 = vadd.f32 0.0, %v445
  %v447 = vpop.f32.mrb[0].mxu0
  %448 = vmatprep.mubr.f32.mxu0 0.0
  %449 = vmatmul.mubr.f32.gmra.mrb[0].mxu0 %v177
  %v450 = vpop.f32.mrb[0].mxu0
  %v451 = vadd.f32 0.0, %v450
  %v452 = vpop.f32.mrb[0].mxu0
  %453 = vmatprep.mubr.f32.mxu0 0.0
  %454 = vmatmul.mubr.f32.gmra.mrb[0].mxu0 %v180
  %v455 = vpop.f32.mrb[0].mxu0
  %v456 = vadd.f32 0.0, %v455
  %v457 = vpop.f32.mrb[0].mxu0
  %458 = vmatprep.mubr.f32.mxu0 0.0
  %459 = vmatmul.mubr.f32.gmra.mrb[0].mxu0 %v183
  %v460 = vpop.f32.mrb[0].mxu0
  %v461 = vadd.f32 0.0, %v460
  %v462 = vpop.f32.mrb[0].mxu0
  %463 = vmatprep.mubr.f32.mxu0 0.0
  %464 = vmatmul.mubr.f32.gmra.mrb[0].mxu0 %v186
  %v465 = vpop.f32.mrb[0].mxu0
  %v466 = vadd.f32 0.0, %v465
  %v467 = vpop.f32.mrb[0].mxu0
  %468 = vmatprep.mubr.f32.mxu0 0.0
  %469 = vmatmul.mubr.f32.gmra.mrb[0].mxu0 %v189
  %v470 = vpop.f32.mrb[0].mxu0
  %v471 = vadd.f32 0.0, %v470
  %v472 = vpop.f32.mrb[0].mxu0
  %473 = vmatprep.mubr.f32.mxu0 0.0
  %474 = vmatmul.mubr.f32.gmra.mrb[0].mxu0 %v192
  %v475 = vpop.f32.mrb[0].mxu0
  %v476 = vadd.f32 0.0, %v475
  %v477 = vpop.f32.mrb[0].mxu0
  %478 = vmatprep.mubr.f32.mxu0 0.0
  %479 = vmatmul.mubr.f32.gmra.mrb[0].mxu0 %v195
  %v480 = vpop.f32.mrb[0].mxu0
  %v481 = vadd.f32 0.0, %v480
  %v482 = vpop.f32.mrb[0].mxu0
  %483 = vmatprep.mubr.f32.mxu0 0.0
  %484 = vmatmul.mubr.f32.gmra.mrb[0].mxu0 %v198
  %v485 = vpop.f32.mrb[0].mxu0
  %v486 = vadd.f32 0.0, %v485
  %v487 = vpop.f32.mrb[0].mxu0
  %488 = vmatprep.mubr.f32.mxu0 0.0
  %489 = vmatmul.mubr.f32.gmra.mrb[0].mxu0 %v201
  %v490 = vpop.f32.mrb[0].mxu0
  %v491 = vadd.f32 0.0, %v490
  %v492 = vpop.f32.mrb[0].mxu0
  %493 = vmatprep.mubr.f32.mxu0 0.0
  %494 = vmatmul.mubr.f32.gmra.mrb[0].mxu0 %v204
  %v495 = vpop.f32.mrb[0].mxu0
  %v496 = vadd.f32 0.0, %v495
  %v497 = vpop.f32.mrb[0].mxu0
  %498 = vmatprep.mubr.f32.mxu0 0.0
  %499 = vmatmul.mubr.f32.gmra.mrb[0].mxu0 %v207
  %v500 = vpop.f32.mrb[0].mxu0
  %v501 = vadd.f32 0.0, %v500
  %v502 = vpop.f32.mrb[0].mxu0
  %503 = vmatprep.mubr.f32.mxu0 0.0
  %504 = vmatmul.mubr.f32.gmra.mrb[0].mxu0 %v210
  %v505 = vpop.f32.mrb[0].mxu0
  %v506 = vadd.f32 0.0, %v505
  %v507 = vpop.f32.mrb[0].mxu0
  %508 = vmatprep.mubr.f32.mxu0 0.0
  %509 = vmatmul.mubr.f32.gmra.mrb[0].mxu0 %v213
  %v510 = vpop.f32.mrb[0].mxu0
  %v511 = vadd.f32 0.0, %v510
  %v512 = vpop.f32.mrb[0].mxu0
  %513 = vmatprep.mubr.f32.mxu0 0.0
  %514 = vmatmul.mubr.f32.gmra.mrb[0].mxu0 %v216
  %v515 = vpop.f32.mrb[0].mxu0
  %v516 = vadd.f32 0.0, %v515
  %v517 = vpop.f32.mrb[0].mxu0
  %518 = vmatprep.mubr.f32.mxu0 0.0
  %519 = vmatmul.mubr.f32.gmra.mrb[0].mxu0 %v219
  %v520 = vpop.f32.mrb[0].mxu0
  %v521 = vadd.f32 0.0, %v520
  %v522 = vpop.f32.mrb[0].mxu0
  %523 = vmatprep.mubr.f32.mxu0 0.0
  %524 = vmatmul.mubr.f32.gmra.mrb[0].mxu0 %v222
  %v525 = vpop.f32.mrb[0].mxu0
  %v526 = vadd.f32 0.0, %v525
  %v527 = vpop.f32.mrb[0].mxu0
  %528 = vmatprep.mubr.f32.mxu0 0.0
  %529 = vmatmul.mubr.f32.gmra.mrb[0].mxu0 %v225
  %v530 = vpop.f32.mrb[0].mxu0
  %v531 = vadd.f32 0.0, %v530
  %v532 = vpop.f32.mrb[0].mxu0
  %533 = vmatprep.mubr.f32.mxu0 0.0
  %534 = vmatmul.mubr.f32.gmra.mrb[0].mxu0 %v228
  %v535 = vpop.f32.mrb[0].mxu0
  %v536 = vadd.f32 0.0, %v535
  %v537 = vpop.f32.mrb[0].mxu0
  %538 = vmatprep.mubr.f32.mxu0 0.0
  %539 = vmatmul.mubr.f32.gmra.mrb[0].mxu0 %v231
  %v540 = vpop.f32.mrb[0].mxu0
  %v541 = vadd.f32 0.0, %v540
  %v542 = vpop.f32.mrb[0].mxu0
  %543 = vmatprep.mubr.f32.mxu0 0.0
  %544 = vmatmul.mubr.f32.gmra.mrb[0].mxu0 %v234
  %v545 = vpop.f32.mrb[0].mxu0
  %v546 = vadd.f32 0.0, %v545
  %v547 = vpop.f32.mrb[0].mxu0
  %548 = vmatprep.mubr.f32.mxu0 0.0
  %549 = vmatmul.mubr.f32.gmra.mrb[0].mxu0 %v237
  %v550 = vpop.f32.mrb[0].mxu0
  %v551 = vadd.f32 0.0, %v550
  %v552 = vpop.f32.mrb[0].mxu0
  %553 = vmatprep.mubr.f32.mxu0 0.0
  %554 = vmatmul.mubr.f32.gmra.mrb[0].mxu0 %v240
  %v555 = vpop.f32.mrb[0].mxu0
  %v556 = vadd.f32 0.0, %v555
  %v557 = vpop.f32.mrb[0].mxu0
  %558 = vmatprep.mubr.f32.mxu0 0.0
  %559 = vmatmul.mubr.f32.gmra.mrb[0].mxu0 %v243
  %v560 = vpop.f32.mrb[0].mxu0
  %v561 = vadd.f32 0.0, %v560
  %v562 = vpop.f32.mrb[0].mxu0
  %563 = vmatprep.mubr.f32.mxu0 0.0
  %564 = vmatmul.mubr.f32.gmra.mrb[0].mxu0 %v246
  %v565 = vpop.f32.mrb[0].mxu0
  %v566 = vadd.f32 0.0, %v565
  %v567 = vpop.f32.mrb[0].mxu0
  %568 = vmatprep.mubr.f32.mxu0 0.0
  %569 = vmatmul.mubr.f32.gmra.mrb[0].mxu0 %v249
  %v570 = vpop.f32.mrb[0].mxu0
  %v571 = vadd.f32 0.0, %v570
  %v572 = vpop.f32.mrb[0].mxu0
  %573 = vmatprep.mubr.f32.mxu0 0.0
  %574 = vmatmul.mubr.f32.gmra.mrb[0].mxu0 %v252
  %v575 = vpop.f32.mrb[0].mxu0
  %v576 = vadd.f32 0.0, %v575
  %v577 = vpop.f32.mrb[0].mxu0
  %578 = vmatprep.mubr.f32.mxu0 0.0
  %579 = vmatmul.mubr.f32.gmra.mrb[0].mxu0 %v255
  %v580 = vpop.f32.mrb[0].mxu0
  %v581 = vadd.f32 0.0, %v580
  %v582 = vpop.f32.mrb[0].mxu0
  %583 = vmatprep.mubr.f32.mxu0 0.0
  %584 = vmatmul.mubr.f32.gmra.mrb[0].mxu0 %v258
  %v585 = vpop.f32.mrb[0].mxu0
  %v586 = vadd.f32 0.0, %v585
  %v587 = vpop.f32.mrb[0].mxu0
  %588 = vmatprep.mubr.f32.mxu0 0.0
  %589 = vmatmul.mubr.f32.gmra.mrb[0].mxu0 %v261
  %v590 = vpop.f32.mrb[0].mxu0
  %v591 = vadd.f32 0.0, %v590
  %v592 = vpop.f32.mrb[0].mxu0
  %593 = vmatprep.mubr.f32.mxu0 0.0
  %594 = vmatmul.mubr.f32.gmra.mrb[0].mxu0 %v264
  %v595 = vpop.f32.mrb[0].mxu0
  %v596 = vadd.f32 0.0, %v595
  %v597 = vpop.f32.mrb[0].mxu0
  %598 = vmatprep.mubr.f32.mxu0 0.0
  %599 = vmatmul.mubr.f32.gmra.mrb[0].mxu0 %v267
  %v600 = vpop.f32.mrb[0].mxu0
  %v601 = vadd.f32 0.0, %v600
  %v602 = vpop.f32.mrb[0].mxu0
  %603 = vmatprep.mubr.f32.mxu0 0.0
  %604 = vmatmul.mubr.f32.gmra.mrb[0].mxu0 %v270
  %v605 = vpop.f32.mrb[0].mxu0
  %v606 = vadd.f32 0.0, %v605
  %v607 = vpop.f32.mrb[0].mxu0
  %608 = vmatprep.mubr.f32.mxu0 0.0
  %609 = vmatmul.mubr.f32.gmra.mrb[0].mxu0 %v273
  %v610 = vpop.f32.mrb[0].mxu0
  %v611 = vadd.f32 0.0, %v610
  %v612 = vpop.f32.mrb[0].mxu0
  %613 = vmatprep.mubr.f32.mxu0 0.0
  %614 = vmatmul.mubr.f32.gmra.mrb[0].mxu0 %v276
  %v615 = vpop.f32.mrb[0].mxu0
  %v616 = vadd.f32 0.0, %v615
  %v617 = vpop.f32.mrb[0].mxu0
  %618 = vmatprep.mubr.f32.mxu0 0.0
  %619 = vmatmul.mubr.f32.gmra.mrb[0].mxu0 %v279
  %v620 = vpop.f32.mrb[0].mxu0
  %v621 = vadd.f32 0.0, %v620
  %v622 = vpop.f32.mrb[0].mxu0
  %623 = vmatprep.mubr.f32.mxu0 0.0
  %624 = vmatmul.mubr.f32.gmra.mrb[0].mxu0 %v282
  %v625 = vpop.f32.mrb[0].mxu0
  %v626 = vadd.f32 0.0, %v625
  %v627 = vpop.f32.mrb[0].mxu0
  %628 = vmatprep.mubr.f32.mxu0 0.0
  %629 = vmatmul.mubr.f32.gmra.mrb[0].mxu0 %v285
  %v630 = vpop.f32.mrb[0].mxu0
  %v631 = vadd.f32 0.0, %v630
  %v632 = vpop.f32.mrb[0].mxu0
  %633 = vmatprep.mubr.f32.mxu0 0.0
  %634 = vmatmul.mubr.f32.gmra.mrb[0].mxu0 %v288
  %v635 = vpop.f32.mrb[0].mxu0
  %v636 = vadd.f32 0.0, %v635
  %v637 = vpop.f32.mrb[0].mxu0
  %638 = vmatprep.mubr.f32.mxu0 0.0
  %639 = vmatmul.mubr.f32.gmra.mrb[0].mxu0 %v291
  %v640 = vpop.f32.mrb[0].mxu0
  %v641 = vadd.f32 0.0, %v640
  %v642 = vpop.f32.mrb[0].mxu0
  %643 = vmatprep.mubr.f32.mxu0 0.0
  %644 = vmatmul.mubr.f32.gmra.mrb[0].mxu0 %v294
  %v645 = vpop.f32.mrb[0].mxu0
  %v646 = vadd.f32 0.0, %v645
  %v647 = vpop.f32.mrb[0].mxu0
  %648 = vmatprep.mubr.f32.mxu0 0.0
  %649 = vmatmul.mubr.f32.gmra.mrb[0].mxu0 %v297
  %v650 = vpop.f32.mrb[0].mxu0
  %v651 = vadd.f32 0.0, %v650
  %v652 = vpop.f32.mrb[0].mxu0
  %653 = vmatprep.mubr.f32.mxu0 0.0
  %654 = vmatmul.mubr.f32.gmra.mrb[0].mxu0 %v300
  %v655 = vpop.f32.mrb[0].mxu0
  %v656 = vadd.f32 0.0, %v655
  %v657 = vpop.f32.mrb[0].mxu0
  %658 = vmatprep.mubr.f32.mxu0 0.0
  %659 = vmatmul.mubr.f32.gmra.mrb[0].mxu0 %v303
  %v660 = vpop.f32.mrb[0].mxu0
  %v661 = vadd.f32 0.0, %v660
  %v662 = vpop.f32.mrb[0].mxu0
  %663 = vmatprep.mubr.f32.mxu0 0.0
  %664 = vmatmul.mubr.f32.gmra.mrb[0].mxu0 %v306
  %v665 = vpop.f32.mrb[0].mxu0
  %v666 = vadd.f32 0.0, %v665
  %v667 = vpop.f32.mrb[0].mxu0
  %668 = vmatprep.mubr.f32.mxu0 0.0
  %669 = vmatmul.mubr.f32.gmra.mrb[0].mxu0 %v309
  %v670 = vpop.f32.mrb[0].mxu0
  %v671 = vadd.f32 0.0, %v670
  %v672 = vpop.f32.mrb[0].mxu0
  %673 = vmatprep.mubr.f32.mxu0 0.0
  %674 = vmatmul.mubr.f32.gmra.mrb[0].mxu0 %v312
  %v675 = vpop.f32.mrb[0].mxu0
  %v676 = vadd.f32 0.0, %v675
  %v677 = vpop.f32.mrb[0].mxu0
  %678 = vmatprep.mubr.f32.mxu0 0.0
  %679 = vmatmul.mubr.f32.gmra.mrb[0].mxu0 %v315
  %v680 = vpop.f32.mrb[0].mxu0
  %v681 = vadd.f32 0.0, %v680
  %v682 = vpop.f32.mrb[0].mxu0
  %683 = vmatprep.mubr.f32.mxu0 0.0
  %684 = vmatmul.mubr.f32.gmra.mrb[0].mxu0 %v318
  %v685 = vpop.f32.mrb[0].mxu0
  %v686 = vadd.f32 0.0, %v685
  %v687 = vpop.f32.mrb[0].mxu0
  %688 = vmatprep.mubr.f32.mxu0 0.0
  %689 = vmatmul.mubr.f32.gmra.mrb[0].mxu0 %v321
  %v690 = vpop.f32.mrb[0].mxu0
  %v691 = vadd.f32 0.0, %v690
  %v692 = vpop.f32.mrb[0].mxu0
  %693 = vmatprep.mubr.f32.mxu0 0.0
  %694 = vmatmul.mubr.f32.gmra.mrb[0].mxu0 %v324
  %v695 = vpop.f32.mrb[0].mxu0
  %v696 = vadd.f32 0.0, %v695
  %v697 = vpop.f32.mrb[0].mxu0
  %698 = vmatprep.mubr.f32.mxu0 0.0
  %699 = vmatmul.mubr.f32.gmra.mrb[0].mxu0 %v327
  %v700 = vpop.f32.mrb[0].mxu0
  %v701 = vadd.f32 0.0, %v700
  %v702 = vpop.f32.mrb[0].mxu0
  %703 = vmatprep.mubr.f32.mxu0 0.0
  %704 = vmatmul.mubr.f32.gmra.mrb[0].mxu0 %v330
  %v705 = vpop.f32.mrb[0].mxu0
  %v706 = vadd.f32 0.0, %v705
  %v707 = vpop.f32.mrb[0].mxu0
  %708 = vmatprep.mubr.f32.mxu0 0.0
  %709 = vmatmul.mubr.f32.gmra.mrb[0].mxu0 %v333
  %v710 = vpop.f32.mrb[0].mxu0
  %v711 = vadd.f32 0.0, %v710
  %v712 = vpop.f32.mrb[0].mxu0
  %713 = vmatprep.mubr.f32.mxu0 0.0
  %714 = vmatmul.mubr.f32.gmra.mrb[0].mxu0 %v336
  %v715 = vpop.f32.mrb[0].mxu0
  %v716 = vadd.f32 0.0, %v715
  %v717 = vpop.f32.mrb[0].mxu0
  %718 = vmatprep.mubr.f32.mxu0 0.0
  %719 = vmatmul.mubr.f32.gmra.mrb[0].mxu0 %v339
  %v720 = vpop.f32.mrb[0].mxu0
  %v721 = vadd.f32 0.0, %v720
  %v722 = vpop.f32.mrb[0].mxu0
  %723 = vmatprep.mubr.f32.mxu0 0.0
  %724 = vmatmul.mubr.f32.gmra.mrb[0].mxu0 %v342
  %v725 = vpop.f32.mrb[0].mxu0
  %v726 = vadd.f32 0.0, %v725
  %v727 = vpop.f32.mrb[0].mxu0
  %728 = vmatprep.mubr.f32.mxu0 0.0
  %729 = vmatmul.mubr.f32.gmra.mrb[0].mxu0 %v345
  %v730 = vpop.f32.mrb[0].mxu0
  %v731 = vadd.f32 0.0, %v730
  %v732 = vpop.f32.mrb[0].mxu0
  %733 = vmatprep.mubr.f32.mxu0 0.0
  %734 = vmatmul.mubr.f32.gmra.mrb[0].mxu0 %v348
  %v735 = vpop.f32.mrb[0].mxu0
  %v736 = vadd.f32 0.0, %v735
  %v737 = vpop.f32.mrb[0].mxu0
  %738 = vdwg.mxu0
  %v740 = vsel %vm157, %v26, 0
  %v743 = vsel %vm157, %v27, 0
  %v746 = vsel %vm157, %v28, 0
  %v749 = vsel %vm157, %v29, 0
  %v752 = vsel %vm157, %v30, 0
  %v755 = vsel %vm157, %v31, 0
  %v758 = vsel %vm157, %v32, 0
  %v761 = vsel %vm157, %v33, 0
  %v764 = vsel %vm157, %v34, 0
  %v767 = vsel %vm157, %v35, 0
  %v770 = vsel %vm157, %v36, 0
  %v773 = vsel %vm157, %v37, 0
  %v776 = vsel %vm157, %v38, 0
  %v779 = vsel %vm157, %v39, 0
  %v782 = vsel %vm157, %v40, 0
  %v785 = vsel %vm157, %v41, 0
  %v788 = vsel %vm157, %v42, 0
  %v791 = vsel %vm157, %v43, 0
  %v794 = vsel %vm157, %v44, 0
  %v797 = vsel %vm157, %v45, 0
  %v800 = vsel %vm157, %v46, 0
  %v803 = vsel %vm157, %v47, 0
  %v806 = vsel %vm157, %v48, 0
  %v809 = vsel %vm157, %v49, 0
  %v812 = vsel %vm157, %v50, 0
  %v815 = vsel %vm157, %v51, 0
  %v818 = vsel %vm157, %v52, 0
  %v821 = vsel %vm157, %v53, 0
  %v824 = vsel %vm157, %v54, 0
  %v827 = vsel %vm157, %v55, 0
  %v830 = vsel %vm157, %v56, 0
  %v833 = vsel %vm157, %v57, 0
  %v836 = vsel %vm157, %v58, 0
  %v839 = vsel %vm157, %v59, 0
  %v842 = vsel %vm157, %v60, 0
  %v845 = vsel %vm157, %v61, 0
  %v848 = vsel %vm157, %v62, 0
  %v851 = vsel %vm157, %v63, 0
  %v854 = vsel %vm157, %v64, 0
  %v857 = vsel %vm157, %v65, 0
  %v860 = vsel %vm157, %v66, 0
  %v863 = vsel %vm157, %v67, 0
  %v866 = vsel %vm157, %v68, 0
  %v869 = vsel %vm157, %v69, 0
  %v872 = vsel %vm157, %v70, 0
  %v875 = vsel %vm157, %v71, 0
  %v878 = vsel %vm157, %v72, 0
  %v881 = vsel %vm157, %v73, 0
  %v884 = vsel %vm157, %v74, 0
  %v887 = vsel %vm157, %v75, 0
  %v890 = vsel %vm157, %v76, 0
  %v893 = vsel %vm157, %v77, 0
  %v896 = vsel %vm157, %v78, 0
  %v899 = vsel %vm157, %v79, 0
  %v902 = vsel %vm157, %v80, 0
  %v905 = vsel %vm157, %v81, 0
  %v908 = vsel %vm157, %v82, 0
  %v911 = vsel %vm157, %v83, 0
  %v914 = vsel %vm157, %v84, 0
  %v917 = vsel %vm157, %v85, 0
  %v920 = vsel %vm157, %v86, 0
  %v923 = vsel %vm157, %v87, 0
  %v926 = vsel %vm157, %v88, 0
  %v929 = vsel %vm157, %v89, 0
  %v932 = vsel %vm350, %v90, 0
  %934 = vmatprep.subr.mxu0 0.0
  %935 = vmatpush1.msra.mxu0 %v932
  %936 = vmatprep.subr.mxu0 0.0
  %937 = vmatpush1.msra.mxu0 0.0
  %938 = vmatprep.subr.mxu0 0.0
  %939 = vmatpush1.msra.mxu0 0.0
  %940 = vmatprep.subr.mxu0 0.0
  %941 = vmatpush1.msra.mxu0 0.0
  %942 = vmatprep.subr.mxu0 0.0
  %943 = vmatpush1.msra.mxu0 0.0
  %944 = vmatprep.subr.mxu0 0.0
  %945 = vmatpush1.msra.mxu0 0.0
  %946 = vmatprep.subr.mxu0 0.0
  %947 = vmatpush1.msra.mxu0 0.0
  %948 = vmatprep.subr.mxu0 0.0
  %949 = vmatpush1.msra.mxu0 0.0
  %950 = vmatprep.subr.mxu0 0.0
  %951 = vmatpush1.msra.mxu0 0.0
  %952 = vmatprep.subr.mxu0 0.0
  %953 = vmatpush1.msra.mxu0 0.0
  %954 = vmatprep.subr.mxu0 0.0
  %955 = vmatpush1.msra.mxu0 0.0
  %956 = vmatprep.subr.mxu0 0.0
  %957 = vmatpush1.msra.mxu0 0.0
  %958 = vmatprep.subr.mxu0 0.0
  %959 = vmatpush1.msra.mxu0 0.0
  %960 = vmatprep.subr.mxu0 0.0
  %961 = vmatpush1.msra.mxu0 0.0
  %962 = vmatprep.subr.mxu0 0.0
  %963 = vmatpush1.msra.mxu0 0.0
  %964 = vmatprep.subr.mxu0 0.0
  %965 = vmatpush1.msra.mxu0 0.0
  %966 = vmatprep.subr.mxu0 0.0
  %967 = vmatpush1.msra.mxu0 0.0
  %968 = vmatprep.subr.mxu0 0.0
  %969 = vmatpush1.msra.mxu0 0.0
  %970 = vmatprep.subr.mxu0 0.0
  %971 = vmatpush1.msra.mxu0 0.0
  %972 = vmatprep.subr.mxu0 0.0
  %973 = vmatpush1.msra.mxu0 0.0
  %974 = vmatprep.subr.mxu0 0.0
  %975 = vmatpush1.msra.mxu0 0.0
  %976 = vmatprep.subr.mxu0 0.0
  %977 = vmatpush1.msra.mxu0 0.0
  %978 = vmatprep.subr.mxu0 0.0
  %979 = vmatpush1.msra.mxu0 0.0
  %980 = vmatprep.subr.mxu0 0.0
  %981 = vmatpush1.msra.mxu0 0.0
  %982 = vmatprep.subr.mxu0 0.0
  %983 = vmatpush1.msra.mxu0 0.0
  %984 = vmatprep.subr.mxu0 0.0
  %985 = vmatpush1.msra.mxu0 0.0
  %986 = vmatprep.subr.mxu0 0.0
  %987 = vmatpush1.msra.mxu0 0.0
  %988 = vmatprep.subr.mxu0 0.0
  %989 = vmatpush1.msra.mxu0 0.0
  %990 = vmatprep.subr.mxu0 0.0
  %991 = vmatpush1.msra.mxu0 0.0
  %992 = vmatprep.subr.mxu0 0.0
  %993 = vmatpush1.msra.mxu0 0.0
  %994 = vmatprep.subr.mxu0 0.0
  %995 = vmatpush1.msra.mxu0 0.0
  %996 = vmatprep.subr.mxu0 0.0
  %997 = vmatpush1.msra.mxu0 0.0
  %998 = vmatprep.mubr.f32.mxu0 0.0
  %999 = vmatmul.mubr.f32.gmra.mrb[0].mxu0 %v740
  %v1000 = vpop.f32.mrb[0].mxu0
  %v1001 = vadd.f32 %v421, %v1000
  %v1002 = vpop.f32.mrb[0].mxu0
  %1003 = vmatprep.mubr.f32.mxu0 0.0
  %1004 = vmatmul.mubr.f32.gmra.mrb[0].mxu0 %v743
  %v1005 = vpop.f32.mrb[0].mxu0
  %v1006 = vadd.f32 %v426, %v1005
  %v1007 = vpop.f32.mrb[0].mxu0
  %1008 = vmatprep.mubr.f32.mxu0 0.0
  %1009 = vmatmul.mubr.f32.gmra.mrb[0].mxu0 %v746
  %v1010 = vpop.f32.mrb[0].mxu0
  %v1011 = vadd.f32 %v431, %v1010
  %v1012 = vpop.f32.mrb[0].mxu0
  %1013 = vmatprep.mubr.f32.mxu0 0.0
  %1014 = vmatmul.mubr.f32.gmra.mrb[0].mxu0 %v749
  %v1015 = vpop.f32.mrb[0].mxu0
  %v1016 = vadd.f32 %v436, %v1015
  %v1017 = vpop.f32.mrb[0].mxu0
  %1018 = vmatprep.mubr.f32.mxu0 0.0
  %1019 = vmatmul.mubr.f32.gmra.mrb[0].mxu0 %v752
  %v1020 = vpop.f32.mrb[0].mxu0
  %v1021 = vadd.f32 %v441, %v1020
  %v1022 = vpop.f32.mrb[0].mxu0
  %1023 = vmatprep.mubr.f32.mxu0 0.0
  %1024 = vmatmul.mubr.f32.gmra.mrb[0].mxu0 %v755
  %v1025 = vpop.f32.mrb[0].mxu0
  %v1026 = vadd.f32 %v446, %v1025
  %v1027 = vpop.f32.mrb[0].mxu0
  %1028 = vmatprep.mubr.f32.mxu0 0.0
  %1029 = vmatmul.mubr.f32.gmra.mrb[0].mxu0 %v758
  %v1030 = vpop.f32.mrb[0].mxu0
  %v1031 = vadd.f32 %v451, %v1030
  %v1032 = vpop.f32.mrb[0].mxu0
  %1033 = vmatprep.mubr.f32.mxu0 0.0
  %1034 = vmatmul.mubr.f32.gmra.mrb[0].mxu0 %v761
  %v1035 = vpop.f32.mrb[0].mxu0
  %v1036 = vadd.f32 %v456, %v1035
  %v1037 = vpop.f32.mrb[0].mxu0
  %1038 = vmatprep.mubr.f32.mxu0 0.0
  %1039 = vmatmul.mubr.f32.gmra.mrb[0].mxu0 %v764
  %v1040 = vpop.f32.mrb[0].mxu0
  %v1041 = vadd.f32 %v461, %v1040
  %v1042 = vpop.f32.mrb[0].mxu0
  %1043 = vmatprep.mubr.f32.mxu0 0.0
  %1044 = vmatmul.mubr.f32.gmra.mrb[0].mxu0 %v767
  %v1045 = vpop.f32.mrb[0].mxu0
  %v1046 = vadd.f32 %v466, %v1045
  %v1047 = vpop.f32.mrb[0].mxu0
  %1048 = vmatprep.mubr.f32.mxu0 0.0
  %1049 = vmatmul.mubr.f32.gmra.mrb[0].mxu0 %v770
  %v1050 = vpop.f32.mrb[0].mxu0
  %v1051 = vadd.f32 %v471, %v1050
  %v1052 = vpop.f32.mrb[0].mxu0
  %1053 = vmatprep.mubr.f32.mxu0 0.0
  %1054 = vmatmul.mubr.f32.gmra.mrb[0].mxu0 %v773
  %v1055 = vpop.f32.mrb[0].mxu0
  %v1056 = vadd.f32 %v476, %v1055
  %v1057 = vpop.f32.mrb[0].mxu0
  %1058 = vmatprep.mubr.f32.mxu0 0.0
  %1059 = vmatmul.mubr.f32.gmra.mrb[0].mxu0 %v776
  %v1060 = vpop.f32.mrb[0].mxu0
  %v1061 = vadd.f32 %v481, %v1060
  %v1062 = vpop.f32.mrb[0].mxu0
  %1063 = vmatprep.mubr.f32.mxu0 0.0
  %1064 = vmatmul.mubr.f32.gmra.mrb[0].mxu0 %v779
  %v1065 = vpop.f32.mrb[0].mxu0
  %v1066 = vadd.f32 %v486, %v1065
  %v1067 = vpop.f32.mrb[0].mxu0
  %1068 = vmatprep.mubr.f32.mxu0 0.0
  %1069 = vmatmul.mubr.f32.gmra.mrb[0].mxu0 %v782
  %v1070 = vpop.f32.mrb[0].mxu0
  %v1071 = vadd.f32 %v491, %v1070
  %v1072 = vpop.f32.mrb[0].mxu0
  %1073 = vmatprep.mubr.f32.mxu0 0.0
  %1074 = vmatmul.mubr.f32.gmra.mrb[0].mxu0 %v785
  %v1075 = vpop.f32.mrb[0].mxu0
  %v1076 = vadd.f32 %v496, %v1075
  %v1077 = vpop.f32.mrb[0].mxu0
  %1078 = vmatprep.mubr.f32.mxu0 0.0
  %1079 = vmatmul.mubr.f32.gmra.mrb[0].mxu0 %v788
  %v1080 = vpop.f32.mrb[0].mxu0
  %v1081 = vadd.f32 %v501, %v1080
  %v1082 = vpop.f32.mrb[0].mxu0
  %1083 = vmatprep.mubr.f32.mxu0 0.0
  %1084 = vmatmul.mubr.f32.gmra.mrb[0].mxu0 %v791
  %v1085 = vpop.f32.mrb[0].mxu0
  %v1086 = vadd.f32 %v506, %v1085
  %v1087 = vpop.f32.mrb[0].mxu0
  %1088 = vmatprep.mubr.f32.mxu0 0.0
  %1089 = vmatmul.mubr.f32.gmra.mrb[0].mxu0 %v794
  %v1090 = vpop.f32.mrb[0].mxu0
  %v1091 = vadd.f32 %v511, %v1090
  %v1092 = vpop.f32.mrb[0].mxu0
  %1093 = vmatprep.mubr.f32.mxu0 0.0
  %1094 = vmatmul.mubr.f32.gmra.mrb[0].mxu0 %v797
  %v1095 = vpop.f32.mrb[0].mxu0
  %v1096 = vadd.f32 %v516, %v1095
  %v1097 = vpop.f32.mrb[0].mxu0
  %1098 = vmatprep.mubr.f32.mxu0 0.0
  %1099 = vmatmul.mubr.f32.gmra.mrb[0].mxu0 %v800
  %v1100 = vpop.f32.mrb[0].mxu0
  %v1101 = vadd.f32 %v521, %v1100
  %v1102 = vpop.f32.mrb[0].mxu0
  %1103 = vmatprep.mubr.f32.mxu0 0.0
  %1104 = vmatmul.mubr.f32.gmra.mrb[0].mxu0 %v803
  %v1105 = vpop.f32.mrb[0].mxu0
  %v1106 = vadd.f32 %v526, %v1105
  %v1107 = vpop.f32.mrb[0].mxu0
  %1108 = vmatprep.mubr.f32.mxu0 0.0
  %1109 = vmatmul.mubr.f32.gmra.mrb[0].mxu0 %v806
  %v1110 = vpop.f32.mrb[0].mxu0
  %v1111 = vadd.f32 %v531, %v1110
  %v1112 = vpop.f32.mrb[0].mxu0
  %1113 = vmatprep.mubr.f32.mxu0 0.0
  %1114 = vmatmul.mubr.f32.gmra.mrb[0].mxu0 %v809
  %v1115 = vpop.f32.mrb[0].mxu0
  %v1116 = vadd.f32 %v536, %v1115
  %v1117 = vpop.f32.mrb[0].mxu0
  %1118 = vmatprep.mubr.f32.mxu0 0.0
  %1119 = vmatmul.mubr.f32.gmra.mrb[0].mxu0 %v812
  %v1120 = vpop.f32.mrb[0].mxu0
  %v1121 = vadd.f32 %v541, %v1120
  %v1122 = vpop.f32.mrb[0].mxu0
  %1123 = vmatprep.mubr.f32.mxu0 0.0
  %1124 = vmatmul.mubr.f32.gmra.mrb[0].mxu0 %v815
  %v1125 = vpop.f32.mrb[0].mxu0
  %v1126 = vadd.f32 %v546, %v1125
  %v1127 = vpop.f32.mrb[0].mxu0
  %1128 = vmatprep.mubr.f32.mxu0 0.0
  %1129 = vmatmul.mubr.f32.gmra.mrb[0].mxu0 %v818
  %v1130 = vpop.f32.mrb[0].mxu0
  %v1131 = vadd.f32 %v551, %v1130
  %v1132 = vpop.f32.mrb[0].mxu0
  %1133 = vmatprep.mubr.f32.mxu0 0.0
  %1134 = vmatmul.mubr.f32.gmra.mrb[0].mxu0 %v821
  %v1135 = vpop.f32.mrb[0].mxu0
  %v1136 = vadd.f32 %v556, %v1135
  %v1137 = vpop.f32.mrb[0].mxu0
  %1138 = vmatprep.mubr.f32.mxu0 0.0
  %1139 = vmatmul.mubr.f32.gmra.mrb[0].mxu0 %v824
  %v1140 = vpop.f32.mrb[0].mxu0
  %v1141 = vadd.f32 %v561, %v1140
  %v1142 = vpop.f32.mrb[0].mxu0
  %1143 = vmatprep.mubr.f32.mxu0 0.0
  %1144 = vmatmul.mubr.f32.gmra.mrb[0].mxu0 %v827
  %v1145 = vpop.f32.mrb[0].mxu0
  %v1146 = vadd.f32 %v566, %v1145
  %v1147 = vpop.f32.mrb[0].mxu0
  %1148 = vmatprep.mubr.f32.mxu0 0.0
  %1149 = vmatmul.mubr.f32.gmra.mrb[0].mxu0 %v830
  %v1150 = vpop.f32.mrb[0].mxu0
  %v1151 = vadd.f32 %v571, %v1150
  %v1152 = vpop.f32.mrb[0].mxu0
  %1153 = vmatprep.mubr.f32.mxu0 0.0
  %1154 = vmatmul.mubr.f32.gmra.mrb[0].mxu0 %v833
  %v1155 = vpop.f32.mrb[0].mxu0
  %v1156 = vadd.f32 %v576, %v1155
  %v1157 = vpop.f32.mrb[0].mxu0
  %1158 = vmatprep.mubr.f32.mxu0 0.0
  %1159 = vmatmul.mubr.f32.gmra.mrb[0].mxu0 %v836
  %v1160 = vpop.f32.mrb[0].mxu0
  %v1161 = vadd.f32 %v581, %v1160
  %v1162 = vpop.f32.mrb[0].mxu0
  %1163 = vmatprep.mubr.f32.mxu0 0.0
  %1164 = vmatmul.mubr.f32.gmra.mrb[0].mxu0 %v839
  %v1165 = vpop.f32.mrb[0].mxu0
  %v1166 = vadd.f32 %v586, %v1165
  %v1167 = vpop.f32.mrb[0].mxu0
  %1168 = vmatprep.mubr.f32.mxu0 0.0
  %1169 = vmatmul.mubr.f32.gmra.mrb[0].mxu0 %v842
  %v1170 = vpop.f32.mrb[0].mxu0
  %v1171 = vadd.f32 %v591, %v1170
  %v1172 = vpop.f32.mrb[0].mxu0
  %1173 = vmatprep.mubr.f32.mxu0 0.0
  %1174 = vmatmul.mubr.f32.gmra.mrb[0].mxu0 %v845
  %v1175 = vpop.f32.mrb[0].mxu0
  %v1176 = vadd.f32 %v596, %v1175
  %v1177 = vpop.f32.mrb[0].mxu0
  %1178 = vmatprep.mubr.f32.mxu0 0.0
  %1179 = vmatmul.mubr.f32.gmra.mrb[0].mxu0 %v848
  %v1180 = vpop.f32.mrb[0].mxu0
  %v1181 = vadd.f32 %v601, %v1180
  %v1182 = vpop.f32.mrb[0].mxu0
  %1183 = vmatprep.mubr.f32.mxu0 0.0
  %1184 = vmatmul.mubr.f32.gmra.mrb[0].mxu0 %v851
  %v1185 = vpop.f32.mrb[0].mxu0
  %v1186 = vadd.f32 %v606, %v1185
  %v1187 = vpop.f32.mrb[0].mxu0
  %1188 = vmatprep.mubr.f32.mxu0 0.0
  %1189 = vmatmul.mubr.f32.gmra.mrb[0].mxu0 %v854
  %v1190 = vpop.f32.mrb[0].mxu0
  %v1191 = vadd.f32 %v611, %v1190
  %v1192 = vpop.f32.mrb[0].mxu0
  %1193 = vmatprep.mubr.f32.mxu0 0.0
  %1194 = vmatmul.mubr.f32.gmra.mrb[0].mxu0 %v857
  %v1195 = vpop.f32.mrb[0].mxu0
  %v1196 = vadd.f32 %v616, %v1195
  %v1197 = vpop.f32.mrb[0].mxu0
  %1198 = vmatprep.mubr.f32.mxu0 0.0
  %1199 = vmatmul.mubr.f32.gmra.mrb[0].mxu0 %v860
  %v1200 = vpop.f32.mrb[0].mxu0
  %v1201 = vadd.f32 %v621, %v1200
  %v1202 = vpop.f32.mrb[0].mxu0
  %1203 = vmatprep.mubr.f32.mxu0 0.0
  %1204 = vmatmul.mubr.f32.gmra.mrb[0].mxu0 %v863
  %v1205 = vpop.f32.mrb[0].mxu0
  %v1206 = vadd.f32 %v626, %v1205
  %v1207 = vpop.f32.mrb[0].mxu0
  %1208 = vmatprep.mubr.f32.mxu0 0.0
  %1209 = vmatmul.mubr.f32.gmra.mrb[0].mxu0 %v866
  %v1210 = vpop.f32.mrb[0].mxu0
  %v1211 = vadd.f32 %v631, %v1210
  %v1212 = vpop.f32.mrb[0].mxu0
  %1213 = vmatprep.mubr.f32.mxu0 0.0
  %1214 = vmatmul.mubr.f32.gmra.mrb[0].mxu0 %v869
  %v1215 = vpop.f32.mrb[0].mxu0
  %v1216 = vadd.f32 %v636, %v1215
  %v1217 = vpop.f32.mrb[0].mxu0
  %1218 = vmatprep.mubr.f32.mxu0 0.0
  %1219 = vmatmul.mubr.f32.gmra.mrb[0].mxu0 %v872
  %v1220 = vpop.f32.mrb[0].mxu0
  %v1221 = vadd.f32 %v641, %v1220
  %v1222 = vpop.f32.mrb[0].mxu0
  %1223 = vmatprep.mubr.f32.mxu0 0.0
  %1224 = vmatmul.mubr.f32.gmra.mrb[0].mxu0 %v875
  %v1225 = vpop.f32.mrb[0].mxu0
  %v1226 = vadd.f32 %v646, %v1225
  %v1227 = vpop.f32.mrb[0].mxu0
  %1228 = vmatprep.mubr.f32.mxu0 0.0
  %1229 = vmatmul.mubr.f32.gmra.mrb[0].mxu0 %v878
  %v1230 = vpop.f32.mrb[0].mxu0
  %v1231 = vadd.f32 %v651, %v1230
  %v1232 = vpop.f32.mrb[0].mxu0
  %1233 = vmatprep.mubr.f32.mxu0 0.0
  %1234 = vmatmul.mubr.f32.gmra.mrb[0].mxu0 %v881
  %v1235 = vpop.f32.mrb[0].mxu0
  %v1236 = vadd.f32 %v656, %v1235
  %v1237 = vpop.f32.mrb[0].mxu0
  %1238 = vmatprep.mubr.f32.mxu0 0.0
  %1239 = vmatmul.mubr.f32.gmra.mrb[0].mxu0 %v884
  %v1240 = vpop.f32.mrb[0].mxu0
  %v1241 = vadd.f32 %v661, %v1240
  %v1242 = vpop.f32.mrb[0].mxu0
  %1243 = vmatprep.mubr.f32.mxu0 0.0
  %1244 = vmatmul.mubr.f32.gmra.mrb[0].mxu0 %v887
  %v1245 = vpop.f32.mrb[0].mxu0
  %v1246 = vadd.f32 %v666, %v1245
  %v1247 = vpop.f32.mrb[0].mxu0
  %1248 = vmatprep.mubr.f32.mxu0 0.0
  %1249 = vmatmul.mubr.f32.gmra.mrb[0].mxu0 %v890
  %v1250 = vpop.f32.mrb[0].mxu0
  %v1251 = vadd.f32 %v671, %v1250
  %v1252 = vpop.f32.mrb[0].mxu0
  %1253 = vmatprep.mubr.f32.mxu0 0.0
  %1254 = vmatmul.mubr.f32.gmra.mrb[0].mxu0 %v893
  %v1255 = vpop.f32.mrb[0].mxu0
  %v1256 = vadd.f32 %v676, %v1255
  %v1257 = vpop.f32.mrb[0].mxu0
  %1258 = vmatprep.mubr.f32.mxu0 0.0
  %1259 = vmatmul.mubr.f32.gmra.mrb[0].mxu0 %v896
  %v1260 = vpop.f32.mrb[0].mxu0
  %v1261 = vadd.f32 %v681, %v1260
  %v1262 = vpop.f32.mrb[0].mxu0
  %1263 = vmatprep.mubr.f32.mxu0 0.0
  %1264 = vmatmul.mubr.f32.gmra.mrb[0].mxu0 %v899
  %v1265 = vpop.f32.mrb[0].mxu0
  %v1266 = vadd.f32 %v686, %v1265
  %v1267 = vpop.f32.mrb[0].mxu0
  %1268 = vmatprep.mubr.f32.mxu0 0.0
  %1269 = vmatmul.mubr.f32.gmra.mrb[0].mxu0 %v902
  %v1270 = vpop.f32.mrb[0].mxu0
  %v1271 = vadd.f32 %v691, %v1270
  %v1272 = vpop.f32.mrb[0].mxu0
  %1273 = vmatprep.mubr.f32.mxu0 0.0
  %1274 = vmatmul.mubr.f32.gmra.mrb[0].mxu0 %v905
  %v1275 = vpop.f32.mrb[0].mxu0
  %v1276 = vadd.f32 %v696, %v1275
  %v1277 = vpop.f32.mrb[0].mxu0
  %1278 = vmatprep.mubr.f32.mxu0 0.0
  %1279 = vmatmul.mubr.f32.gmra.mrb[0].mxu0 %v908
  %v1280 = vpop.f32.mrb[0].mxu0
  %v1281 = vadd.f32 %v701, %v1280
  %v1282 = vpop.f32.mrb[0].mxu0
  %1283 = vmatprep.mubr.f32.mxu0 0.0
  %1284 = vmatmul.mubr.f32.gmra.mrb[0].mxu0 %v911
  %v1285 = vpop.f32.mrb[0].mxu0
  %v1286 = vadd.f32 %v706, %v1285
  %v1287 = vpop.f32.mrb[0].mxu0
  %1288 = vmatprep.mubr.f32.mxu0 0.0
  %1289 = vmatmul.mubr.f32.gmra.mrb[0].mxu0 %v914
  %v1290 = vpop.f32.mrb[0].mxu0
  %v1291 = vadd.f32 %v711, %v1290
  %v1292 = vpop.f32.mrb[0].mxu0
  %1293 = vmatprep.mubr.f32.mxu0 0.0
  %1294 = vmatmul.mubr.f32.gmra.mrb[0].mxu0 %v917
  %v1295 = vpop.f32.mrb[0].mxu0
  %v1296 = vadd.f32 %v716, %v1295
  %v1297 = vpop.f32.mrb[0].mxu0
  %1298 = vmatprep.mubr.f32.mxu0 0.0
  %1299 = vmatmul.mubr.f32.gmra.mrb[0].mxu0 %v920
  %v1300 = vpop.f32.mrb[0].mxu0
  %v1301 = vadd.f32 %v721, %v1300
  %v1302 = vpop.f32.mrb[0].mxu0
  %1303 = vmatprep.mubr.f32.mxu0 0.0
  %1304 = vmatmul.mubr.f32.gmra.mrb[0].mxu0 %v923
  %v1305 = vpop.f32.mrb[0].mxu0
  %v1306 = vadd.f32 %v726, %v1305
  %v1307 = vpop.f32.mrb[0].mxu0
  %1308 = vmatprep.mubr.f32.mxu0 0.0
  %1309 = vmatmul.mubr.f32.gmra.mrb[0].mxu0 %v926
  %v1310 = vpop.f32.mrb[0].mxu0
  %v1311 = vadd.f32 %v731, %v1310
  %v1312 = vpop.f32.mrb[0].mxu0
  %1313 = vmatprep.mubr.f32.mxu0 0.0
  %1314 = vmatmul.mubr.f32.gmra.mrb[0].mxu0 %v929
  %v1315 = vpop.f32.mrb[0].mxu0
  %v1316 = vadd.f32 %v736, %v1315
  %v1317 = vpop.f32.mrb[0].mxu0
  %1318 = vdwg.mxu0
  %v1319 = vld [vmem:[%s0 + $0x2] sm:$0xff]
  %v1320 = vld [vmem:[%s0 + $0xa] sm:$0xff]
  %v1321 = vld [vmem:[%s0 + $0x1a] sm:$0xff]
  %v1322 = vld [vmem:[%s0 + $0x22] sm:$0xff]
  %v1323 = vld [vmem:[%s0 + $0x32] sm:$0xff]
  %v1324 = vld [vmem:[%s0 + $0x3a] sm:$0xff]
  %v1325 = vld [vmem:[%s0 + $0x4a] sm:$0xff]
  %v1326 = vld [vmem:[%s0 + $0x52] sm:$0xff]
  %v1327 = vld [vmem:[%s0 + $0x62] sm:$0xff]
  %v1328 = vld [vmem:[%s0 + $0x6a] sm:$0xff]
  %v1329 = vld [vmem:[%s0 + $0x7a] sm:$0xff]
  %v1330 = vld [vmem:[%s0 + $0x82] sm:$0xff]
  %v1331 = vld [vmem:[%s0 + $0x92] sm:$0xff]
  %v1332 = vld [vmem:[%s0 + $0x9a] sm:$0xff]
  %v1333 = vld [vmem:[%s0 + $0xaa] sm:$0xff]
  %v1334 = vld [vmem:[%s0 + $0xb2] sm:$0xff]
  %v1335 = vld [vmem:[%s0 + $0xc2] sm:$0xff]
  %v1336 = vld [vmem:[%s0 + $0xca] sm:$0xff]
  %v1337 = vld [vmem:[%s0 + $0xda] sm:$0xff]
  %v1338 = vld [vmem:[%s0 + $0xe2] sm:$0xff]
  %v1339 = vld [vmem:[%s0 + $0xf2] sm:$0xff]
  %v1340 = vld [vmem:[%s0 + $0xfa] sm:$0xff]
  %v1341 = vld [vmem:[%s0 + $0x10a] sm:$0xff]
  %v1342 = vld [vmem:[%s0 + $0x112] sm:$0xff]
  %v1343 = vld [vmem:[%s0 + $0x122] sm:$0xff]
  %v1344 = vld [vmem:[%s0 + $0x12a] sm:$0xff]
  %v1345 = vld [vmem:[%s0 + $0x13a] sm:$0xff]
  %v1346 = vld [vmem:[%s0 + $0x142] sm:$0xff]
  %v1347 = vld [vmem:[%s0 + $0x152] sm:$0xff]
  %v1348 = vld [vmem:[%s0 + $0x15a] sm:$0xff]
  %v1349 = vld [vmem:[%s0 + $0x16a] sm:$0xff]
  %v1350 = vld [vmem:[%s0 + $0x172] sm:$0xff]
  %v1351 = vld [vmem:[%s0 + $0x1b2] sm:$0xff]
  %v1352 = vld [vmem:[%s0 + $0x1ba] sm:$0xff]
  %v1353 = vld [vmem:[%s0 + $0x1ca] sm:$0xff]
  %v1354 = vld [vmem:[%s0 + $0x1d2] sm:$0xff]
  %v1355 = vld [vmem:[%s0 + $0x1e2] sm:$0xff]
  %v1356 = vld [vmem:[%s0 + $0x1ea] sm:$0xff]
  %v1357 = vld [vmem:[%s0 + $0x1fa] sm:$0xff]
  %v1358 = vld [vmem:[%s0 + $0x202] sm:$0xff]
  %v1359 = vld [vmem:[%s0 + $0x212] sm:$0xff]
  %v1360 = vld [vmem:[%s0 + $0x21a] sm:$0xff]
  %v1361 = vld [vmem:[%s0 + $0x22a] sm:$0xff]
  %v1362 = vld [vmem:[%s0 + $0x232] sm:$0xff]
  %v1363 = vld [vmem:[%s0 + $0x242] sm:$0xff]
  %v1364 = vld [vmem:[%s0 + $0x24a] sm:$0xff]
  %v1365 = vld [vmem:[%s0 + $0x25a] sm:$0xff]
  %v1366 = vld [vmem:[%s0 + $0x262] sm:$0xff]
  %v1367 = vld [vmem:[%s0 + $0x272] sm:$0xff]
  %v1368 = vld [vmem:[%s0 + $0x27a] sm:$0xff]
  %v1369 = vld [vmem:[%s0 + $0x28a] sm:$0xff]
  %v1370 = vld [vmem:[%s0 + $0x292] sm:$0xff]
  %v1371 = vld [vmem:[%s0 + $0x2a2] sm:$0xff]
  %v1372 = vld [vmem:[%s0 + $0x2aa] sm:$0xff]
  %v1373 = vld [vmem:[%s0 + $0x2ba] sm:$0xff]
  %v1374 = vld [vmem:[%s0 + $0x2c2] sm:$0xff]
  %v1375 = vld [vmem:[%s0 + $0x2d2] sm:$0xff]
  %v1376 = vld [vmem:[%s0 + $0x2da] sm:$0xff]
  %v1377 = vld [vmem:[%s0 + $0x2ea] sm:$0xff]
  %v1378 = vld [vmem:[%s0 + $0x2f2] sm:$0xff]
  %v1379 = vld [vmem:[%s0 + $0x302] sm:$0xff]
  %v1380 = vld [vmem:[%s0 + $0x30a] sm:$0xff]
  %v1381 = vld [vmem:[%s0 + $0x31a] sm:$0xff]
  %v1382 = vld [vmem:[%s0 + $0x322] sm:$0xff]
  %s1383 = scalar_lea.vmem %s1, 8
  %v1384 = vld [vmem:[%s1383] sm:$0xf]
  %v1386 = vsel %vm157, %v1319, 0
  %v1389 = vsel %vm157, %v1320, 0
  %v1392 = vsel %vm157, %v1321, 0
  %v1395 = vsel %vm157, %v1322, 0
  %v1398 = vsel %vm157, %v1323, 0
  %v1401 = vsel %vm157, %v1324, 0
  %v1404 = vsel %vm157, %v1325, 0
  %v1407 = vsel %vm157, %v1326, 0
  %v1410 = vsel %vm157, %v1327, 0
  %v1413 = vsel %vm157, %v1328, 0
  %v1416 = vsel %vm157, %v1329, 0
  %v1419 = vsel %vm157, %v1330, 0
  %v1422 = vsel %vm157, %v1331, 0
  %v1425 = vsel %vm157, %v1332, 0
  %v1428 = vsel %vm157, %v1333, 0
  %v1431 = vsel %vm157, %v1334, 0
  %v1434 = vsel %vm157, %v1335, 0
  %v1437 = vsel %vm157, %v1336, 0
  %v1440 = vsel %vm157, %v1337, 0
  %v1443 = vsel %vm157, %v1338, 0
  %v1446 = vsel %vm157, %v1339, 0
  %v1449 = vsel %vm157, %v1340, 0
  %v1452 = vsel %vm157, %v1341, 0
  %v1455 = vsel %vm157, %v1342, 0
  %v1458 = vsel %vm157, %v1343, 0
  %v1461 = vsel %vm157, %v1344, 0
  %v1464 = vsel %vm157, %v1345, 0
  %v1467 = vsel %vm157, %v1346, 0
  %v1470 = vsel %vm157, %v1347, 0
  %v1473 = vsel %vm157, %v1348, 0
  %v1476 = vsel %vm157, %v1349, 0
  %v1479 = vsel %vm157, %v1350, 0
  %v1482 = vsel %vm157, %v1351, 0
  %v1485 = vsel %vm157, %v1352, 0
  %v1488 = vsel %vm157, %v1353, 0
  %v1491 = vsel %vm157, %v1354, 0
  %v1494 = vsel %vm157, %v1355, 0
  %v1497 = vsel %vm157, %v1356, 0
  %v1500 = vsel %vm157, %v1357, 0
  %v1503 = vsel %vm157, %v1358, 0
  %v1506 = vsel %vm157, %v1359, 0
  %v1509 = vsel %vm157, %v1360, 0
  %v1512 = vsel %vm157, %v1361, 0
  %v1515 = vsel %vm157, %v1362, 0
  %v1518 = vsel %vm157, %v1363, 0
  %v1521 = vsel %vm157, %v1364, 0
  %v1524 = vsel %vm157, %v1365, 0
  %v1527 = vsel %vm157, %v1366, 0
  %v1530 = vsel %vm157, %v1367, 0
  %v1533 = vsel %vm157, %v1368, 0
  %v1536 = vsel %vm157, %v1369, 0
  %v1539 = vsel %vm157, %v1370, 0
  %v1542 = vsel %vm157, %v1371, 0
  %v1545 = vsel %vm157, %v1372, 0
  %v1548 = vsel %vm157, %v1373, 0
  %v1551 = vsel %vm157, %v1374, 0
  %v1554 = vsel %vm157, %v1375, 0
  %v1557 = vsel %vm157, %v1376, 0
  %v1560 = vsel %vm157, %v1377, 0
  %v1563 = vsel %vm157, %v1378, 0
  %v1566 = vsel %vm157, %v1379, 0
  %v1569 = vsel %vm157, %v1380, 0
  %v1572 = vsel %vm157, %v1381, 0
  %v1575 = vsel %vm157, %v1382, 0
  %v1578 = vsel %vm350, %v1384, 0
  %1580 = vmatprep.subr.mxu0 0.0
  %1581 = vmatpush1.msra.mxu0 %v1578
  %1582 = vmatprep.subr.mxu0 0.0
  %1583 = vmatpush1.msra.mxu0 0.0
  %1584 = vmatprep.subr.mxu0 0.0
  %1585 = vmatpush1.msra.mxu0 0.0
  %1586 = vmatprep.subr.mxu0 0.0
  %1587 = vmatpush1.msra.mxu0 0.0
  %1588 = vmatprep.subr.mxu0 0.0
  %1589 = vmatpush1.msra.mxu0 0.0
  %1590 = vmatprep.subr.mxu0 0.0
  %1591 = vmatpush1.msra.mxu0 0.0
  %1592 = vmatprep.subr.mxu0 0.0
  %1593 = vmatpush1.msra.mxu0 0.0
  %1594 = vmatprep.subr.mxu0 0.0
  %1595 = vmatpush1.msra.mxu0 0.0
  %1596 = vmatprep.subr.mxu0 0.0
  %1597 = vmatpush1.msra.mxu0 0.0
  %1598 = vmatprep.subr.mxu0 0.0
  %1599 = vmatpush1.msra.mxu0 0.0
  %1600 = vmatprep.subr.mxu0 0.0
  %1601 = vmatpush1.msra.mxu0 0.0
  %1602 = vmatprep.subr.mxu0 0.0
  %1603 = vmatpush1.msra.mxu0 0.0
  %1604 = vmatprep.subr.mxu0 0.0
  %1605 = vmatpush1.msra.mxu0 0.0
  %1606 = vmatprep.subr.mxu0 0.0
  %1607 = vmatpush1.msra.mxu0 0.0
  %1608 = vmatprep.subr.mxu0 0.0
  %1609 = vmatpush1.msra.mxu0 0.0
  %1610 = vmatprep.subr.mxu0 0.0
  %1611 = vmatpush1.msra.mxu0 0.0
  %1612 = vmatprep.subr.mxu0 0.0
  %1613 = vmatpush1.msra.mxu0 0.0
  %1614 = vmatprep.subr.mxu0 0.0
  %1615 = vmatpush1.msra.mxu0 0.0
  %1616 = vmatprep.subr.mxu0 0.0
  %1617 = vmatpush1.msra.mxu0 0.0
  %1618 = vmatprep.subr.mxu0 0.0
  %1619 = vmatpush1.msra.mxu0 0.0
  %1620 = vmatprep.subr.mxu0 0.0
  %1621 = vmatpush1.msra.mxu0 0.0
  %1622 = vmatprep.subr.mxu0 0.0
  %1623 = vmatpush1.msra.mxu0 0.0
  %1624 = vmatprep.subr.mxu0 0.0
  %1625 = vmatpush1.msra.mxu0 0.0
  %1626 = vmatprep.subr.mxu0 0.0
  %1627 = vmatpush1.msra.mxu0 0.0
  %1628 = vmatprep.subr.mxu0 0.0
  %1629 = vmatpush1.msra.mxu0 0.0
  %1630 = vmatprep.subr.mxu0 0.0
  %1631 = vmatpush1.msra.mxu0 0.0
  %1632 = vmatprep.subr.mxu0 0.0
  %1633 = vmatpush1.msra.mxu0 0.0
  %1634 = vmatprep.subr.mxu0 0.0
  %1635 = vmatpush1.msra.mxu0 0.0
  %1636 = vmatprep.subr.mxu0 0.0
  %1637 = vmatpush1.msra.mxu0 0.0
  %1638 = vmatprep.subr.mxu0 0.0
  %1639 = vmatpush1.msra.mxu0 0.0
  %1640 = vmatprep.subr.mxu0 0.0
  %1641 = vmatpush1.msra.mxu0 0.0
  %1642 = vmatprep.subr.mxu0 0.0
  %1643 = vmatpush1.msra.mxu0 0.0
  %1644 = vmatprep.mubr.f32.mxu0 0.0
  %1645 = vmatmul.mubr.f32.gmra.mrb[0].mxu0 %v1386
  %v1646 = vpop.f32.mrb[0].mxu0
  %v1647 = vadd.f32 0.0, %v1646
  %v1648 = vpop.f32.mrb[0].mxu0
  %1649 = vmatprep.mubr.f32.mxu0 0.0
  %1650 = vmatmul.mubr.f32.gmra.mrb[0].mxu0 %v1389
  %v1651 = vpop.f32.mrb[0].mxu0
  %v1652 = vadd.f32 0.0, %v1651
  %v1653 = vpop.f32.mrb[0].mxu0
  %1654 = vmatprep.mubr.f32.mxu0 0.0
  %1655 = vmatmul.mubr.f32.gmra.mrb[0].mxu0 %v1392
  %v1656 = vpop.f32.mrb[0].mxu0
  %v1657 = vadd.f32 0.0, %v1656
  %v1658 = vpop.f32.mrb[0].mxu0
  %1659 = vmatprep.mubr.f32.mxu0 0.0
  %1660 = vmatmul.mubr.f32.gmra.mrb[0].mxu0 %v1395
  %v1661 = vpop.f32.mrb[0].mxu0
  %v1662 = vadd.f32 0.0, %v1661
  %v1663 = vpop.f32.mrb[0].mxu0
  %1664 = vmatprep.mubr.f32.mxu0 0.0
  %1665 = vmatmul.mubr.f32.gmra.mrb[0].mxu0 %v1398
  %v1666 = vpop.f32.mrb[0].mxu0
  %v1667 = vadd.f32 0.0, %v1666
  %v1668 = vpop.f32.mrb[0].mxu0
  %1669 = vmatprep.mubr.f32.mxu0 0.0
  %1670 = vmatmul.mubr.f32.gmra.mrb[0].mxu0 %v1401
  %v1671 = vpop.f32.mrb[0].mxu0
  %v1672 = vadd.f32 0.0, %v1671
  %v1673 = vpop.f32.mrb[0].mxu0
  %1674 = vmatprep.mubr.f32.mxu0 0.0
  %1675 = vmatmul.mubr.f32.gmra.mrb[0].mxu0 %v1404
  %v1676 = vpop.f32.mrb[0].mxu0
  %v1677 = vadd.f32 0.0, %v1676
  %v1678 = vpop.f32.mrb[0].mxu0
  %1679 = vmatprep.mubr.f32.mxu0 0.0
  %1680 = vmatmul.mubr.f32.gmra.mrb[0].mxu0 %v1407
  %v1681 = vpop.f32.mrb[0].mxu0
  %v1682 = vadd.f32 0.0, %v1681
  %v1683 = vpop.f32.mrb[0].mxu0
  %1684 = vmatprep.mubr.f32.mxu0 0.0
  %1685 = vmatmul.mubr.f32.gmra.mrb[0].mxu0 %v1410
  %v1686 = vpop.f32.mrb[0].mxu0
  %v1687 = vadd.f32 0.0, %v1686
  %v1688 = vpop.f32.mrb[0].mxu0
  %1689 = vmatprep.mubr.f32.mxu0 0.0
  %1690 = vmatmul.mubr.f32.gmra.mrb[0].mxu0 %v1413
  %v1691 = vpop.f32.mrb[0].mxu0
  %v1692 = vadd.f32 0.0, %v1691
  %v1693 = vpop.f32.mrb[0].mxu0
  %1694 = vmatprep.mubr.f32.mxu0 0.0
  %1695 = vmatmul.mubr.f32.gmra.mrb[0].mxu0 %v1416
  %v1696 = vpop.f32.mrb[0].mxu0
  %v1697 = vadd.f32 0.0, %v1696
  %v1698 = vpop.f32.mrb[0].mxu0
  %1699 = vmatprep.mubr.f32.mxu0 0.0
  %1700 = vmatmul.mubr.f32.gmra.mrb[0].mxu0 %v1419
  %v1701 = vpop.f32.mrb[0].mxu0
  %v1702 = vadd.f32 0.0, %v1701
  %v1703 = vpop.f32.mrb[0].mxu0
  %1704 = vmatprep.mubr.f32.mxu0 0.0
  %1705 = vmatmul.mubr.f32.gmra.mrb[0].mxu0 %v1422
  %v1706 = vpop.f32.mrb[0].mxu0
  %v1707 = vadd.f32 0.0, %v1706
  %v1708 = vpop.f32.mrb[0].mxu0
  %1709 = vmatprep.mubr.f32.mxu0 0.0
  %1710 = vmatmul.mubr.f32.gmra.mrb[0].mxu0 %v1425
  %v1711 = vpop.f32.mrb[0].mxu0
  %v1712 = vadd.f32 0.0, %v1711
  %v1713 = vpop.f32.mrb[0].mxu0
  %1714 = vmatprep.mubr.f32.mxu0 0.0
  %1715 = vmatmul.mubr.f32.gmra.mrb[0].mxu0 %v1428
  %v1716 = vpop.f32.mrb[0].mxu0
  %v1717 = vadd.f32 0.0, %v1716
  %v1718 = vpop.f32.mrb[0].mxu0
  %1719 = vmatprep.mubr.f32.mxu0 0.0
  %1720 = vmatmul.mubr.f32.gmra.mrb[0].mxu0 %v1431
  %v1721 = vpop.f32.mrb[0].mxu0
  %v1722 = vadd.f32 0.0, %v1721
  %v1723 = vpop.f32.mrb[0].mxu0
  %1724 = vmatprep.mubr.f32.mxu0 0.0
  %1725 = vmatmul.mubr.f32.gmra.mrb[0].mxu0 %v1434
  %v1726 = vpop.f32.mrb[0].mxu0
  %v1727 = vadd.f32 0.0, %v1726
  %v1728 = vpop.f32.mrb[0].mxu0
  %1729 = vmatprep.mubr.f32.mxu0 0.0
  %1730 = vmatmul.mubr.f32.gmra.mrb[0].mxu0 %v1437
  %v1731 = vpop.f32.mrb[0].mxu0
  %v1732 = vadd.f32 0.0, %v1731
  %v1733 = vpop.f32.mrb[0].mxu0
  %1734 = vmatprep.mubr.f32.mxu0 0.0
  %1735 = vmatmul.mubr.f32.gmra.mrb[0].mxu0 %v1440
  %v1736 = vpop.f32.mrb[0].mxu0
  %v1737 = vadd.f32 0.0, %v1736
  %v1738 = vpop.f32.mrb[0].mxu0
  %1739 = vmatprep.mubr.f32.mxu0 0.0
  %1740 = vmatmul.mubr.f32.gmra.mrb[0].mxu0 %v1443
  %v1741 = vpop.f32.mrb[0].mxu0
  %v1742 = vadd.f32 0.0, %v1741
  %v1743 = vpop.f32.mrb[0].mxu0
  %1744 = vmatprep.mubr.f32.mxu0 0.0
  %1745 = vmatmul.mubr.f32.gmra.mrb[0].mxu0 %v1446
  %v1746 = vpop.f32.mrb[0].mxu0
  %v1747 = vadd.f32 0.0, %v1746
  %v1748 = vpop.f32.mrb[0].mxu0
  %1749 = vmatprep.mubr.f32.mxu0 0.0
  %1750 = vmatmul.mubr.f32.gmra.mrb[0].mxu0 %v1449
  %v1751 = vpop.f32.mrb[0].mxu0
  %v1752 = vadd.f32 0.0, %v1751
  %v1753 = vpop.f32.mrb[0].mxu0
  %1754 = vmatprep.mubr.f32.mxu0 0.0
  %1755 = vmatmul.mubr.f32.gmra.mrb[0].mxu0 %v1452
  %v1756 = vpop.f32.mrb[0].mxu0
  %v1757 = vadd.f32 0.0, %v1756
  %v1758 = vpop.f32.mrb[0].mxu0
  %1759 = vmatprep.mubr.f32.mxu0 0.0
  %1760 = vmatmul.mubr.f32.gmra.mrb[0].mxu0 %v1455
  %v1761 = vpop.f32.mrb[0].mxu0
  %v1762 = vadd.f32 0.0, %v1761
  %v1763 = vpop.f32.mrb[0].mxu0
  %1764 = vmatprep.mubr.f32.mxu0 0.0
  %1765 = vmatmul.mubr.f32.gmra.mrb[0].mxu0 %v1458
  %v1766 = vpop.f32.mrb[0].mxu0
  %v1767 = vadd.f32 0.0, %v1766
  %v1768 = vpop.f32.mrb[0].mxu0
  %1769 = vmatprep.mubr.f32.mxu0 0.0
  %1770 = vmatmul.mubr.f32.gmra.mrb[0].mxu0 %v1461
  %v1771 = vpop.f32.mrb[0].mxu0
  %v1772 = vadd.f32 0.0, %v1771
  %v1773 = vpop.f32.mrb[0].mxu0
  %1774 = vmatprep.mubr.f32.mxu0 0.0
  %1775 = vmatmul.mubr.f32.gmra.mrb[0].mxu0 %v1464
  %v1776 = vpop.f32.mrb[0].mxu0
  %v1777 = vadd.f32 0.0, %v1776
  %v1778 = vpop.f32.mrb[0].mxu0
  %1779 = vmatprep.mubr.f32.mxu0 0.0
  %1780 = vmatmul.mubr.f32.gmra.mrb[0].mxu0 %v1467
  %v1781 = vpop.f32.mrb[0].mxu0
  %v1782 = vadd.f32 0.0, %v1781
  %v1783 = vpop.f32.mrb[0].mxu0
  %1784 = vmatprep.mubr.f32.mxu0 0.0
  %1785 = vmatmul.mubr.f32.gmra.mrb[0].mxu0 %v1470
  %v1786 = vpop.f32.mrb[0].mxu0
  %v1787 = vadd.f32 0.0, %v1786
  %v1788 = vpop.f32.mrb[0].mxu0
  %1789 = vmatprep.mubr.f32.mxu0 0.0
  %1790 = vmatmul.mubr.f32.gmra.mrb[0].mxu0 %v1473
  %v1791 = vpop.f32.mrb[0].mxu0
  %v1792 = vadd.f32 0.0, %v1791
  %v1793 = vpop.f32.mrb[0].mxu0
  %1794 = vmatprep.mubr.f32.mxu0 0.0
  %1795 = vmatmul.mubr.f32.gmra.mrb[0].mxu0 %v1476
  %v1796 = vpop.f32.mrb[0].mxu0
  %v1797 = vadd.f32 0.0, %v1796
  %v1798 = vpop.f32.mrb[0].mxu0
  %1799 = vmatprep.mubr.f32.mxu0 0.0
  %1800 = vmatmul.mubr.f32.gmra.mrb[0].mxu0 %v1479
  %v1801 = vpop.f32.mrb[0].mxu0
  %v1802 = vadd.f32 0.0, %v1801
  %v1803 = vpop.f32.mrb[0].mxu0
  %1804 = vmatprep.mubr.f32.mxu0 0.0
  %1805 = vmatmul.mubr.f32.gmra.mrb[0].mxu0 %v1482
  %v1806 = vpop.f32.mrb[0].mxu0
  %v1807 = vadd.f32 0.0, %v1806
  %v1808 = vpop.f32.mrb[0].mxu0
  %1809 = vmatprep.mubr.f32.mxu0 0.0
  %1810 = vmatmul.mubr.f32.gmra.mrb[0].mxu0 %v1485
  %v1811 = vpop.f32.mrb[0].mxu0
  %v1812 = vadd.f32 0.0, %v1811
  %v1813 = vpop.f32.mrb[0].mxu0
  %1814 = vmatprep.mubr.f32.mxu0 0.0
  %1815 = vmatmul.mubr.f32.gmra.mrb[0].mxu0 %v1488
  %v1816 = vpop.f32.mrb[0].mxu0
  %v1817 = vadd.f32 0.0, %v1816
  %v1818 = vpop.f32.mrb[0].mxu0
  %1819 = vmatprep.mubr.f32.mxu0 0.0
  %1820 = vmatmul.mubr.f32.gmra.mrb[0].mxu0 %v1491
  %v1821 = vpop.f32.mrb[0].mxu0
  %v1822 = vadd.f32 0.0, %v1821
  %v1823 = vpop.f32.mrb[0].mxu0
  %1824 = vmatprep.mubr.f32.mxu0 0.0
  %1825 = vmatmul.mubr.f32.gmra.mrb[0].mxu0 %v1494
  %v1826 = vpop.f32.mrb[0].mxu0
  %v1827 = vadd.f32 0.0, %v1826
  %v1828 = vpop.f32.mrb[0].mxu0
  %1829 = vmatprep.mubr.f32.mxu0 0.0
  %1830 = vmatmul.mubr.f32.gmra.mrb[0].mxu0 %v1497
  %v1831 = vpop.f32.mrb[0].mxu0
  %v1832 = vadd.f32 0.0, %v1831
  %v1833 = vpop.f32.mrb[0].mxu0
  %1834 = vmatprep.mubr.f32.mxu0 0.0
  %1835 = vmatmul.mubr.f32.gmra.mrb[0].mxu0 %v1500
  %v1836 = vpop.f32.mrb[0].mxu0
  %v1837 = vadd.f32 0.0, %v1836
  %v1838 = vpop.f32.mrb[0].mxu0
  %1839 = vmatprep.mubr.f32.mxu0 0.0
  %1840 = vmatmul.mubr.f32.gmra.mrb[0].mxu0 %v1503
  %v1841 = vpop.f32.mrb[0].mxu0
  %v1842 = vadd.f32 0.0, %v1841
  %v1843 = vpop.f32.mrb[0].mxu0
  %1844 = vmatprep.mubr.f32.mxu0 0.0
  %1845 = vmatmul.mubr.f32.gmra.mrb[0].mxu0 %v1506
  %v1846 = vpop.f32.mrb[0].mxu0
  %v1847 = vadd.f32 0.0, %v1846
  %v1848 = vpop.f32.mrb[0].mxu0
  %1849 = vmatprep.mubr.f32.mxu0 0.0
  %1850 = vmatmul.mubr.f32.gmra.mrb[0].mxu0 %v1509
  %v1851 = vpop.f32.mrb[0].mxu0
  %v1852 = vadd.f32 0.0, %v1851
  %v1853 = vpop.f32.mrb[0].mxu0
  %1854 = vmatprep.mubr.f32.mxu0 0.0
  %1855 = vmatmul.mubr.f32.gmra.mrb[0].mxu0 %v1512
  %v1856 = vpop.f32.mrb[0].mxu0
  %v1857 = vadd.f32 0.0, %v1856
  %v1858 = vpop.f32.mrb[0].mxu0
  %1859 = vmatprep.mubr.f32.mxu0 0.0
  %1860 = vmatmul.mubr.f32.gmra.mrb[0].mxu0 %v1515
  %v1861 = vpop.f32.mrb[0].mxu0
  %v1862 = vadd.f32 0.0, %v1861
  %v1863 = vpop.f32.mrb[0].mxu0
  %1864 = vmatprep.mubr.f32.mxu0 0.0
  %1865 = vmatmul.mubr.f32.gmra.mrb[0].mxu0 %v1518
  %v1866 = vpop.f32.mrb[0].mxu0
  %v1867 = vadd.f32 0.0, %v1866
  %v1868 = vpop.f32.mrb[0].mxu0
  %1869 = vmatprep.mubr.f32.mxu0 0.0
  %1870 = vmatmul.mubr.f32.gmra.mrb[0].mxu0 %v1521
  %v1871 = vpop.f32.mrb[0].mxu0
  %v1872 = vadd.f32 0.0, %v1871
  %v1873 = vpop.f32.mrb[0].mxu0
  %1874 = vmatprep.mubr.f32.mxu0 0.0
  %1875 = vmatmul.mubr.f32.gmra.mrb[0].mxu0 %v1524
  %v1876 = vpop.f32.mrb[0].mxu0
  %v1877 = vadd.f32 0.0, %v1876
  %v1878 = vpop.f32.mrb[0].mxu0
  %1879 = vmatprep.mubr.f32.mxu0 0.0
  %1880 = vmatmul.mubr.f32.gmra.mrb[0].mxu0 %v1527
  %v1881 = vpop.f32.mrb[0].mxu0
  %v1882 = vadd.f32 0.0, %v1881
  %v1883 = vpop.f32.mrb[0].mxu0
  %1884 = vmatprep.mubr.f32.mxu0 0.0
  %1885 = vmatmul.mubr.f32.gmra.mrb[0].mxu0 %v1530
  %v1886 = vpop.f32.mrb[0].mxu0
  %v1887 = vadd.f32 0.0, %v1886
  %v1888 = vpop.f32.mrb[0].mxu0
  %1889 = vmatprep.mubr.f32.mxu0 0.0
  %1890 = vmatmul.mubr.f32.gmra.mrb[0].mxu0 %v1533
  %v1891 = vpop.f32.mrb[0].mxu0
  %v1892 = vadd.f32 0.0, %v1891
  %v1893 = vpop.f32.mrb[0].mxu0
  %1894 = vmatprep.mubr.f32.mxu0 0.0
  %1895 = vmatmul.mubr.f32.gmra.mrb[0].mxu0 %v1536
  %v1896 = vpop.f32.mrb[0].mxu0
  %v1897 = vadd.f32 0.0, %v1896
  %v1898 = vpop.f32.mrb[0].mxu0
  %1899 = vmatprep.mubr.f32.mxu0 0.0
  %1900 = vmatmul.mubr.f32.gmra.mrb[0].mxu0 %v1539
  %v1901 = vpop.f32.mrb[0].mxu0
  %v1902 = vadd.f32 0.0, %v1901
  %v1903 = vpop.f32.mrb[0].mxu0
  %1904 = vmatprep.mubr.f32.mxu0 0.0
  %1905 = vmatmul.mubr.f32.gmra.mrb[0].mxu0 %v1542
  %v1906 = vpop.f32.mrb[0].mxu0
  %v1907 = vadd.f32 0.0, %v1906
  %v1908 = vpop.f32.mrb[0].mxu0
  %1909 = vmatprep.mubr.f32.mxu0 0.0
  %1910 = vmatmul.mubr.f32.gmra.mrb[0].mxu0 %v1545
  %v1911 = vpop.f32.mrb[0].mxu0
  %v1912 = vadd.f32 0.0, %v1911
  %v1913 = vpop.f32.mrb[0].mxu0
  %1914 = vmatprep.mubr.f32.mxu0 0.0
  %1915 = vmatmul.mubr.f32.gmra.mrb[0].mxu0 %v1548
  %v1916 = vpop.f32.mrb[0].mxu0
  %v1917 = vadd.f32 0.0, %v1916
  %v1918 = vpop.f32.mrb[0].mxu0
  %1919 = vmatprep.mubr.f32.mxu0 0.0
  %1920 = vmatmul.mubr.f32.gmra.mrb[0].mxu0 %v1551
  %v1921 = vpop.f32.mrb[0].mxu0
  %v1922 = vadd.f32 0.0, %v1921
  %v1923 = vpop.f32.mrb[0].mxu0
  %1924 = vmatprep.mubr.f32.mxu0 0.0
  %1925 = vmatmul.mubr.f32.gmra.mrb[0].mxu0 %v1554
  %v1926 = vpop.f32.mrb[0].mxu0
  %v1927 = vadd.f32 0.0, %v1926
  %v1928 = vpop.f32.mrb[0].mxu0
  %1929 = vmatprep.mubr.f32.mxu0 0.0
  %1930 = vmatmul.mubr.f32.gmra.mrb[0].mxu0 %v1557
  %v1931 = vpop.f32.mrb[0].mxu0
  %v1932 = vadd.f32 0.0, %v1931
  %v1933 = vpop.f32.mrb[0].mxu0
  %1934 = vmatprep.mubr.f32.mxu0 0.0
  %1935 = vmatmul.mubr.f32.gmra.mrb[0].mxu0 %v1560
  %v1936 = vpop.f32.mrb[0].mxu0
  %v1937 = vadd.f32 0.0, %v1936
  %v1938 = vpop.f32.mrb[0].mxu0
  %1939 = vmatprep.mubr.f32.mxu0 0.0
  %1940 = vmatmul.mubr.f32.gmra.mrb[0].mxu0 %v1563
  %v1941 = vpop.f32.mrb[0].mxu0
  %v1942 = vadd.f32 0.0, %v1941
  %v1943 = vpop.f32.mrb[0].mxu0
  %1944 = vmatprep.mubr.f32.mxu0 0.0
  %1945 = vmatmul.mubr.f32.gmra.mrb[0].mxu0 %v1566
  %v1946 = vpop.f32.mrb[0].mxu0
  %v1947 = vadd.f32 0.0, %v1946
  %v1948 = vpop.f32.mrb[0].mxu0
  %1949 = vmatprep.mubr.f32.mxu0 0.0
  %1950 = vmatmul.mubr.f32.gmra.mrb[0].mxu0 %v1569
  %v1951 = vpop.f32.mrb[0].mxu0
  %v1952 = vadd.f32 0.0, %v1951
  %v1953 = vpop.f32.mrb[0].mxu0
  %1954 = vmatprep.mubr.f32.mxu0 0.0
  %1955 = vmatmul.mubr.f32.gmra.mrb[0].mxu0 %v1572
  %v1956 = vpop.f32.mrb[0].mxu0
  %v1957 = vadd.f32 0.0, %v1956
  %v1958 = vpop.f32.mrb[0].mxu0
  %1959 = vmatprep.mubr.f32.mxu0 0.0
  %1960 = vmatmul.mubr.f32.gmra.mrb[0].mxu0 %v1575
  %v1961 = vpop.f32.mrb[0].mxu0
  %v1962 = vadd.f32 0.0, %v1961
  %v1963 = vpop.f32.mrb[0].mxu0
  %1964 = vdwg.mxu0
  %v1965 = vadd.f32 %v1001, %v1647
  %v1966 = vadd.f32 %v1006, %v1652
  %v1967 = vadd.f32 %v1011, %v1657
  %v1968 = vadd.f32 %v1016, %v1662
  %v1969 = vadd.f32 %v1021, %v1667
  %v1970 = vadd.f32 %v1026, %v1672
  %v1971 = vadd.f32 %v1031, %v1677
  %v1972 = vadd.f32 %v1036, %v1682
  %v1973 = vadd.f32 %v1041, %v1687
  %v1974 = vadd.f32 %v1046, %v1692
  %v1975 = vadd.f32 %v1051, %v1697
  %v1976 = vadd.f32 %v1056, %v1702
  %v1977 = vadd.f32 %v1061, %v1707
  %v1978 = vadd.f32 %v1066, %v1712
  %v1979 = vadd.f32 %v1071, %v1717
  %v1980 = vadd.f32 %v1076, %v1722
  %v1981 = vadd.f32 %v1081, %v1727
  %v1982 = vadd.f32 %v1086, %v1732
  %v1983 = vadd.f32 %v1091, %v1737
  %v1984 = vadd.f32 %v1096, %v1742
  %v1985 = vadd.f32 %v1101, %v1747
  %v1986 = vadd.f32 %v1106, %v1752
  %v1987 = vadd.f32 %v1111, %v1757
  %v1988 = vadd.f32 %v1116, %v1762
  %v1989 = vadd.f32 %v1121, %v1767
  %v1990 = vadd.f32 %v1126, %v1772
  %v1991 = vadd.f32 %v1131, %v1777
  %v1992 = vadd.f32 %v1136, %v1782
  %v1993 = vadd.f32 %v1141, %v1787
  %v1994 = vadd.f32 %v1146, %v1792
  %v1995 = vadd.f32 %v1151, %v1797
  %v1996 = vadd.f32 %v1156, %v1802
  %v1997 = vadd.f32 %v1161, %v1807
  %v1998 = vadd.f32 %v1166, %v1812
  %v1999 = vadd.f32 %v1171, %v1817
  %v2000 = vadd.f32 %v1176, %v1822
  %v2001 = vadd.f32 %v1181, %v1827
  %v2002 = vadd.f32 %v1186, %v1832
  %v2003 = vadd.f32 %v1191, %v1837
  %v2004 = vadd.f32 %v1196, %v1842
  %v2005 = vadd.f32 %v1201, %v1847
  %v2006 = vadd.f32 %v1206, %v1852
  %v2007 = vadd.f32 %v1211, %v1857
  %v2008 = vadd.f32 %v1216, %v1862
  %v2009 = vadd.f32 %v1221, %v1867
  %v2010 = vadd.f32 %v1226, %v1872
  %v2011 = vadd.f32 %v1231, %v1877
  %v2012 = vadd.f32 %v1236, %v1882
  %v2013 = vadd.f32 %v1241, %v1887
  %v2014 = vadd.f32 %v1246, %v1892
  %v2015 = vadd.f32 %v1251, %v1897
  %v2016 = vadd.f32 %v1256, %v1902
  %v2017 = vadd.f32 %v1261, %v1907
  %v2018 = vadd.f32 %v1266, %v1912
  %v2019 = vadd.f32 %v1271, %v1917
  %v2020 = vadd.f32 %v1276, %v1922
  %v2021 = vadd.f32 %v1281, %v1927
  %v2022 = vadd.f32 %v1286, %v1932
  %v2023 = vadd.f32 %v1291, %v1937
  %v2024 = vadd.f32 %v1296, %v1942
  %v2025 = vadd.f32 %v1301, %v1947
  %v2026 = vadd.f32 %v1306, %v1952
  %v2027 = vadd.f32 %v1311, %v1957
  %v2028 = vadd.f32 %v1316, %v1962
  %s2029 = scalar_lea.vmem %s0, 24
  %v2030 = vld [vmem:[%s2029] sm:$0xff]
  %v2031 = vld [vmem:[%s2029 + $0x8] sm:$0xff]
  %v2032 = vld [vmem:[%s2029 + $0x18] sm:$0xff]
  %v2033 = vld [vmem:[%s2029 + $0x20] sm:$0xff]
  %v2034 = vld [vmem:[%s2029 + $0x30] sm:$0xff]
  %v2035 = vld [vmem:[%s2029 + $0x38] sm:$0xff]
  %v2036 = vld [vmem:[%s2029 + $0x48] sm:$0xff]
  %v2037 = vld [vmem:[%s2029 + $0x50] sm:$0xff]
  %v2038 = vld [vmem:[%s2029 + $0x60] sm:$0xff]
  %v2039 = vld [vmem:[%s2029 + $0x68] sm:$0xff]
  %v2040 = vld [vmem:[%s2029 + $0x78] sm:$0xff]
  %v2041 = vld [vmem:[%s2029 + $0x80] sm:$0xff]
  %v2042 = vld [vmem:[%s2029 + $0x90] sm:$0xff]
  %v2043 = vld [vmem:[%s2029 + $0x98] sm:$0xff]
  %v2044 = vld [vmem:[%s2029 + $0xa8] sm:$0xff]
  %v2045 = vld [vmem:[%s2029 + $0xb0] sm:$0xff]
  %v2046 = vld [vmem:[%s2029 + $0xc0] sm:$0xff]
  %v2047 = vld [vmem:[%s2029 + $0xc8] sm:$0xff]
  %v2048 = vld [vmem:[%s2029 + $0xd8] sm:$0xff]
  %v2049 = vld [vmem:[%s2029 + $0xe0] sm:$0xff]
  %v2050 = vld [vmem:[%s2029 + $0xf0] sm:$0xff]
  %v2051 = vld [vmem:[%s2029 + $0xf8] sm:$0xff]
  %v2052 = vld [vmem:[%s2029 + $0x108] sm:$0xff]
  %v2053 = vld [vmem:[%s2029 + $0x110] sm:$0xff]
  %v2054 = vld [vmem:[%s2029 + $0x120] sm:$0xff]
  %v2055 = vld [vmem:[%s2029 + $0x128] sm:$0xff]
  %v2056 = vld [vmem:[%s2029 + $0x138] sm:$0xff]
  %v2057 = vld [vmem:[%s2029 + $0x140] sm:$0xff]
  %v2058 = vld [vmem:[%s2029 + $0x150] sm:$0xff]
  %v2059 = vld [vmem:[%s2029 + $0x158] sm:$0xff]
  %v2060 = vld [vmem:[%s2029 + $0x168] sm:$0xff]
  %v2061 = vld [vmem:[%s2029 + $0x170] sm:$0xff]
  %v2062 = vld [vmem:[%s2029 + $0x1b0] sm:$0xff]
  %v2063 = vld [vmem:[%s2029 + $0x1b8] sm:$0xff]
  %v2064 = vld [vmem:[%s2029 + $0x1c8] sm:$0xff]
  %v2065 = vld [vmem:[%s2029 + $0x1d0] sm:$0xff]
  %v2066 = vld [vmem:[%s2029 + $0x1e0] sm:$0xff]
  %v2067 = vld [vmem:[%s2029 + $0x1e8] sm:$0xff]
  %v2068 = vld [vmem:[%s2029 + $0x1f8] sm:$0xff]
  %v2069 = vld [vmem:[%s2029 + $0x200] sm:$0xff]
  %v2070 = vld [vmem:[%s2029 + $0x210] sm:$0xff]
  %v2071 = vld [vmem:[%s2029 + $0x218] sm:$0xff]
  %v2072 = vld [vmem:[%s2029 + $0x228] sm:$0xff]
  %v2073 = vld [vmem:[%s2029 + $0x230] sm:$0xff]
  %v2074 = vld [vmem:[%s2029 + $0x240] sm:$0xff]
  %v2075 = vld [vmem:[%s2029 + $0x248] sm:$0xff]
  %v2076 = vld [vmem:[%s2029 + $0x258] sm:$0xff]
  %v2077 = vld [vmem:[%s2029 + $0x260] sm:$0xff]
  %v2078 = vld [vmem:[%s2029 + $0x270] sm:$0xff]
  %v2079 = vld [vmem:[%s2029 + $0x278] sm:$0xff]
  %v2080 = vld [vmem:[%s2029 + $0x288] sm:$0xff]
  %v2081 = vld [vmem:[%s2029 + $0x290] sm:$0xff]
  %v2082 = vld [vmem:[%s2029 + $0x2a0] sm:$0xff]
  %v2083 = vld [vmem:[%s2029 + $0x2a8] sm:$0xff]
  %v2084 = vld [vmem:[%s2029 + $0x2b8] sm:$0xff]
  %v2085 = vld [vmem:[%s2029 + $0x2c0] sm:$0xff]
  %v2086 = vld [vmem:[%s2029 + $0x2d0] sm:$0xff]
  %v2087 = vld [vmem:[%s2029 + $0x2d8] sm:$0xff]
  %v2088 = vld [vmem:[%s2029 + $0x2e8] sm:$0xff]
  %v2089 = vld [vmem:[%s2029 + $0x2f0] sm:$0xff]
  %v2090 = vld [vmem:[%s2029 + $0x300] sm:$0xff]
  %v2091 = vld [vmem:[%s2029 + $0x308] sm:$0xff]
  %v2092 = vld [vmem:[%s2029 + $0x318] sm:$0xff]
  %v2093 = vld [vmem:[%s2029 + $0x320] sm:$0xff]
  %s2094 = scalar_lea.vmem %s1, 12
  %v2095 = vld [vmem:[%s2094] sm:$0xf]
  %v2097 = vsel %vm157, %v2030, 0
  %v2100 = vsel %vm157, %v2031, 0
  %v2103 = vsel %vm157, %v2032, 0
  %v2106 = vsel %vm157, %v2033, 0
  %v2109 = vsel %vm157, %v2034, 0
  %v2112 = vsel %vm157, %v2035, 0
  %v2115 = vsel %vm157, %v2036, 0
  %v2118 = vsel %vm157, %v2037, 0
  %v2121 = vsel %vm157, %v2038, 0
  %v2124 = vsel %vm157, %v2039, 0
  %v2127 = vsel %vm157, %v2040, 0
  %v2130 = vsel %vm157, %v2041, 0
  %v2133 = vsel %vm157, %v2042, 0
  %v2136 = vsel %vm157, %v2043, 0
  %v2139 = vsel %vm157, %v2044, 0
  %v2142 = vsel %vm157, %v2045, 0
  %v2145 = vsel %vm157, %v2046, 0
  %v2148 = vsel %vm157, %v2047, 0
  %v2151 = vsel %vm157, %v2048, 0
  %v2154 = vsel %vm157, %v2049, 0
  %v2157 = vsel %vm157, %v2050, 0
  %v2160 = vsel %vm157, %v2051, 0
  %v2163 = vsel %vm157, %v2052, 0
  %v2166 = vsel %vm157, %v2053, 0
  %v2169 = vsel %vm157, %v2054, 0
  %v2172 = vsel %vm157, %v2055, 0
  %v2175 = vsel %vm157, %v2056, 0
  %v2178 = vsel %vm157, %v2057, 0
  %v2181 = vsel %vm157, %v2058, 0
  %v2184 = vsel %vm157, %v2059, 0
  %v2187 = vsel %vm157, %v2060, 0
  %v2190 = vsel %vm157, %v2061, 0
  %v2193 = vsel %vm157, %v2062, 0
  %v2196 = vsel %vm157, %v2063, 0
  %v2199 = vsel %vm157, %v2064, 0
  %v2202 = vsel %vm157, %v2065, 0
  %v2205 = vsel %vm157, %v2066, 0
  %v2208 = vsel %vm157, %v2067, 0
  %v2211 = vsel %vm157, %v2068, 0
  %v2214 = vsel %vm157, %v2069, 0
  %v2217 = vsel %vm157, %v2070, 0
  %v2220 = vsel %vm157, %v2071, 0
  %v2223 = vsel %vm157, %v2072, 0
  %v2226 = vsel %vm157, %v2073, 0
  %v2229 = vsel %vm157, %v2074, 0
  %v2232 = vsel %vm157, %v2075, 0
  %v2235 = vsel %vm157, %v2076, 0
  %v2238 = vsel %vm157, %v2077, 0
  %v2241 = vsel %vm157, %v2078, 0
  %v2244 = vsel %vm157, %v2079, 0
  %v2247 = vsel %vm157, %v2080, 0
  %v2250 = vsel %vm157, %v2081, 0
  %v2253 = vsel %vm157, %v2082, 0
  %v2256 = vsel %vm157, %v2083, 0
  %v2259 = vsel %vm157, %v2084, 0
  %v2262 = vsel %vm157, %v2085, 0
  %v2265 = vsel %vm157, %v2086, 0
  %v2268 = vsel %vm157, %v2087, 0
  %v2271 = vsel %vm157, %v2088, 0
  %v2274 = vsel %vm157, %v2089, 0
  %v2277 = vsel %vm157, %v2090, 0
  %v2280 = vsel %vm157, %v2091, 0
  %v2283 = vsel %vm157, %v2092, 0
  %v2286 = vsel %vm157, %v2093, 0
  %v2289 = vsel %vm350, %v2095, 0
  %2291 = vmatprep.subr.mxu0 0.0
  %2292 = vmatpush1.msra.mxu0 %v2289
  %2293 = vmatprep.subr.mxu0 0.0
  %2294 = vmatpush1.msra.mxu0 0.0
  %2295 = vmatprep.subr.mxu0 0.0
  %2296 = vmatpush1.msra.mxu0 0.0
  %2297 = vmatprep.subr.mxu0 0.0
  %2298 = vmatpush1.msra.mxu0 0.0
  %2299 = vmatprep.subr.mxu0 0.0
  %2300 = vmatpush1.msra.mxu0 0.0
  %2301 = vmatprep.subr.mxu0 0.0
  %2302 = vmatpush1.msra.mxu0 0.0
  %2303 = vmatprep.subr.mxu0 0.0
  %2304 = vmatpush1.msra.mxu0 0.0
  %2305 = vmatprep.subr.mxu0 0.0
  %2306 = vmatpush1.msra.mxu0 0.0
  %2307 = vmatprep.subr.mxu0 0.0
  %2308 = vmatpush1.msra.mxu0 0.0
  %2309 = vmatprep.subr.mxu0 0.0
  %2310 = vmatpush1.msra.mxu0 0.0
  %2311 = vmatprep.subr.mxu0 0.0
  %2312 = vmatpush1.msra.mxu0 0.0
  %2313 = vmatprep.subr.mxu0 0.0
  %2314 = vmatpush1.msra.mxu0 0.0
  %2315 = vmatprep.subr.mxu0 0.0
  %2316 = vmatpush1.msra.mxu0 0.0
  %2317 = vmatprep.subr.mxu0 0.0
  %2318 = vmatpush1.msra.mxu0 0.0
  %2319 = vmatprep.subr.mxu0 0.0
  %2320 = vmatpush1.msra.mxu0 0.0
  %2321 = vmatprep.subr.mxu0 0.0
  %2322 = vmatpush1.msra.mxu0 0.0
  %2323 = vmatprep.subr.mxu0 0.0
  %2324 = vmatpush1.msra.mxu0 0.0
  %2325 = vmatprep.subr.mxu0 0.0
  %2326 = vmatpush1.msra.mxu0 0.0
  %2327 = vmatprep.subr.mxu0 0.0
  %2328 = vmatpush1.msra.mxu0 0.0
  %2329 = vmatprep.subr.mxu0 0.0
  %2330 = vmatpush1.msra.mxu0 0.0
  %2331 = vmatprep.subr.mxu0 0.0
  %2332 = vmatpush1.msra.mxu0 0.0
  %2333 = vmatprep.subr.mxu0 0.0
  %2334 = vmatpush1.msra.mxu0 0.0
  %2335 = vmatprep.subr.mxu0 0.0
  %2336 = vmatpush1.msra.mxu0 0.0
  %2337 = vmatprep.subr.mxu0 0.0
  %2338 = vmatpush1.msra.mxu0 0.0
  %2339 = vmatprep.subr.mxu0 0.0
  %2340 = vmatpush1.msra.mxu0 0.0
  %2341 = vmatprep.subr.mxu0 0.0
  %2342 = vmatpush1.msra.mxu0 0.0
  %2343 = vmatprep.subr.mxu0 0.0
  %2344 = vmatpush1.msra.mxu0 0.0
  %2345 = vmatprep.subr.mxu0 0.0
  %2346 = vmatpush1.msra.mxu0 0.0
  %2347 = vmatprep.subr.mxu0 0.0
  %2348 = vmatpush1.msra.mxu0 0.0
  %2349 = vmatprep.subr.mxu0 0.0
  %2350 = vmatpush1.msra.mxu0 0.0
  %2351 = vmatprep.subr.mxu0 0.0
  %2352 = vmatpush1.msra.mxu0 0.0
  %2353 = vmatprep.subr.mxu0 0.0
  %2354 = vmatpush1.msra.mxu0 0.0
  %2355 = vmatprep.mubr.f32.mxu0 0.0
  %2356 = vmatmul.mubr.f32.gmra.mrb[0].mxu0 %v2097
  %v2357 = vpop.f32.mrb[0].mxu0
  %v2358 = vadd.f32 0.0, %v2357
  %v2359 = vpop.f32.mrb[0].mxu0
  %2360 = vmatprep.mubr.f32.mxu0 0.0
  %2361 = vmatmul.mubr.f32.gmra.mrb[0].mxu0 %v2100
  %v2362 = vpop.f32.mrb[0].mxu0
  %v2363 = vadd.f32 0.0, %v2362
  %v2364 = vpop.f32.mrb[0].mxu0
  %2365 = vmatprep.mubr.f32.mxu0 0.0
  %2366 = vmatmul.mubr.f32.gmra.mrb[0].mxu0 %v2103
  %v2367 = vpop.f32.mrb[0].mxu0
  %v2368 = vadd.f32 0.0, %v2367
  %v2369 = vpop.f32.mrb[0].mxu0
  %2370 = vmatprep.mubr.f32.mxu0 0.0
  %2371 = vmatmul.mubr.f32.gmra.mrb[0].mxu0 %v2106
  %v2372 = vpop.f32.mrb[0].mxu0
  %v2373 = vadd.f32 0.0, %v2372
  %v2374 = vpop.f32.mrb[0].mxu0
  %2375 = vmatprep.mubr.f32.mxu0 0.0
  %2376 = vmatmul.mubr.f32.gmra.mrb[0].mxu0 %v2109
  %v2377 = vpop.f32.mrb[0].mxu0
  %v2378 = vadd.f32 0.0, %v2377
  %v2379 = vpop.f32.mrb[0].mxu0
  %2380 = vmatprep.mubr.f32.mxu0 0.0
  %2381 = vmatmul.mubr.f32.gmra.mrb[0].mxu0 %v2112
  %v2382 = vpop.f32.mrb[0].mxu0
  %v2383 = vadd.f32 0.0, %v2382
  %v2384 = vpop.f32.mrb[0].mxu0
  %2385 = vmatprep.mubr.f32.mxu0 0.0
  %2386 = vmatmul.mubr.f32.gmra.mrb[0].mxu0 %v2115
  %v2387 = vpop.f32.mrb[0].mxu0
  %v2388 = vadd.f32 0.0, %v2387
  %v2389 = vpop.f32.mrb[0].mxu0
  %2390 = vmatprep.mubr.f32.mxu0 0.0
  %2391 = vmatmul.mubr.f32.gmra.mrb[0].mxu0 %v2118
  %v2392 = vpop.f32.mrb[0].mxu0
  %v2393 = vadd.f32 0.0, %v2392
  %v2394 = vpop.f32.mrb[0].mxu0
  %2395 = vmatprep.mubr.f32.mxu0 0.0
  %2396 = vmatmul.mubr.f32.gmra.mrb[0].mxu0 %v2121
  %v2397 = vpop.f32.mrb[0].mxu0
  %v2398 = vadd.f32 0.0, %v2397
  %v2399 = vpop.f32.mrb[0].mxu0
  %2400 = vmatprep.mubr.f32.mxu0 0.0
  %2401 = vmatmul.mubr.f32.gmra.mrb[0].mxu0 %v2124
  %v2402 = vpop.f32.mrb[0].mxu0
  %v2403 = vadd.f32 0.0, %v2402
  %v2404 = vpop.f32.mrb[0].mxu0
  %2405 = vmatprep.mubr.f32.mxu0 0.0
  %2406 = vmatmul.mubr.f32.gmra.mrb[0].mxu0 %v2127
  %v2407 = vpop.f32.mrb[0].mxu0
  %v2408 = vadd.f32 0.0, %v2407
  %v2409 = vpop.f32.mrb[0].mxu0
  %2410 = vmatprep.mubr.f32.mxu0 0.0
  %2411 = vmatmul.mubr.f32.gmra.mrb[0].mxu0 %v2130
  %v2412 = vpop.f32.mrb[0].mxu0
  %v2413 = vadd.f32 0.0, %v2412
  %v2414 = vpop.f32.mrb[0].mxu0
  %2415 = vmatprep.mubr.f32.mxu0 0.0
  %2416 = vmatmul.mubr.f32.gmra.mrb[0].mxu0 %v2133
  %v2417 = vpop.f32.mrb[0].mxu0
  %v2418 = vadd.f32 0.0, %v2417
  %v2419 = vpop.f32.mrb[0].mxu0
  %2420 = vmatprep.mubr.f32.mxu0 0.0
  %2421 = vmatmul.mubr.f32.gmra.mrb[0].mxu0 %v2136
  %v2422 = vpop.f32.mrb[0].mxu0
  %v2423 = vadd.f32 0.0, %v2422
  %v2424 = vpop.f32.mrb[0].mxu0
  %2425 = vmatprep.mubr.f32.mxu0 0.0
  %2426 = vmatmul.mubr.f32.gmra.mrb[0].mxu0 %v2139
  %v2427 = vpop.f32.mrb[0].mxu0
  %v2428 = vadd.f32 0.0, %v2427
  %v2429 = vpop.f32.mrb[0].mxu0
  %2430 = vmatprep.mubr.f32.mxu0 0.0
  %2431 = vmatmul.mubr.f32.gmra.mrb[0].mxu0 %v2142
  %v2432 = vpop.f32.mrb[0].mxu0
  %v2433 = vadd.f32 0.0, %v2432
  %v2434 = vpop.f32.mrb[0].mxu0
  %2435 = vmatprep.mubr.f32.mxu0 0.0
  %2436 = vmatmul.mubr.f32.gmra.mrb[0].mxu0 %v2145
  %v2437 = vpop.f32.mrb[0].mxu0
  %v2438 = vadd.f32 0.0, %v2437
  %v2439 = vpop.f32.mrb[0].mxu0
  %2440 = vmatprep.mubr.f32.mxu0 0.0
  %2441 = vmatmul.mubr.f32.gmra.mrb[0].mxu0 %v2148
  %v2442 = vpop.f32.mrb[0].mxu0
  %v2443 = vadd.f32 0.0, %v2442
  %v2444 = vpop.f32.mrb[0].mxu0
  %2445 = vmatprep.mubr.f32.mxu0 0.0
  %2446 = vmatmul.mubr.f32.gmra.mrb[0].mxu0 %v2151
  %v2447 = vpop.f32.mrb[0].mxu0
  %v2448 = vadd.f32 0.0, %v2447
  %v2449 = vpop.f32.mrb[0].mxu0
  %2450 = vmatprep.mubr.f32.mxu0 0.0
  %2451 = vmatmul.mubr.f32.gmra.mrb[0].mxu0 %v2154
  %v2452 = vpop.f32.mrb[0].mxu0
  %v2453 = vadd.f32 0.0, %v2452
  %v2454 = vpop.f32.mrb[0].mxu0
  %2455 = vmatprep.mubr.f32.mxu0 0.0
  %2456 = vmatmul.mubr.f32.gmra.mrb[0].mxu0 %v2157
  %v2457 = vpop.f32.mrb[0].mxu0
  %v2458 = vadd.f32 0.0, %v2457
  %v2459 = vpop.f32.mrb[0].mxu0
  %2460 = vmatprep.mubr.f32.mxu0 0.0
  %2461 = vmatmul.mubr.f32.gmra.mrb[0].mxu0 %v2160
  %v2462 = vpop.f32.mrb[0].mxu0
  %v2463 = vadd.f32 0.0, %v2462
  %v2464 = vpop.f32.mrb[0].mxu0
  %2465 = vmatprep.mubr.f32.mxu0 0.0
  %2466 = vmatmul.mubr.f32.gmra.mrb[0].mxu0 %v2163
  %v2467 = vpop.f32.mrb[0].mxu0
  %v2468 = vadd.f32 0.0, %v2467
  %v2469 = vpop.f32.mrb[0].mxu0
  %2470 = vmatprep.mubr.f32.mxu0 0.0
  %2471 = vmatmul.mubr.f32.gmra.mrb[0].mxu0 %v2166
  %v2472 = vpop.f32.mrb[0].mxu0
  %v2473 = vadd.f32 0.0, %v2472
  %v2474 = vpop.f32.mrb[0].mxu0
  %2475 = vmatprep.mubr.f32.mxu0 0.0
  %2476 = vmatmul.mubr.f32.gmra.mrb[0].mxu0 %v2169
  %v2477 = vpop.f32.mrb[0].mxu0
  %v2478 = vadd.f32 0.0, %v2477
  %v2479 = vpop.f32.mrb[0].mxu0
  %2480 = vmatprep.mubr.f32.mxu0 0.0
  %2481 = vmatmul.mubr.f32.gmra.mrb[0].mxu0 %v2172
  %v2482 = vpop.f32.mrb[0].mxu0
  %v2483 = vadd.f32 0.0, %v2482
  %v2484 = vpop.f32.mrb[0].mxu0
  %2485 = vmatprep.mubr.f32.mxu0 0.0
  %2486 = vmatmul.mubr.f32.gmra.mrb[0].mxu0 %v2175
  %v2487 = vpop.f32.mrb[0].mxu0
  %v2488 = vadd.f32 0.0, %v2487
  %v2489 = vpop.f32.mrb[0].mxu0
  %2490 = vmatprep.mubr.f32.mxu0 0.0
  %2491 = vmatmul.mubr.f32.gmra.mrb[0].mxu0 %v2178
  %v2492 = vpop.f32.mrb[0].mxu0
  %v2493 = vadd.f32 0.0, %v2492
  %v2494 = vpop.f32.mrb[0].mxu0
  %2495 = vmatprep.mubr.f32.mxu0 0.0
  %2496 = vmatmul.mubr.f32.gmra.mrb[0].mxu0 %v2181
  %v2497 = vpop.f32.mrb[0].mxu0
  %v2498 = vadd.f32 0.0, %v2497
  %v2499 = vpop.f32.mrb[0].mxu0
  %2500 = vmatprep.mubr.f32.mxu0 0.0
  %2501 = vmatmul.mubr.f32.gmra.mrb[0].mxu0 %v2184
  %v2502 = vpop.f32.mrb[0].mxu0
  %v2503 = vadd.f32 0.0, %v2502
  %v2504 = vpop.f32.mrb[0].mxu0
  %2505 = vmatprep.mubr.f32.mxu0 0.0
  %2506 = vmatmul.mubr.f32.gmra.mrb[0].mxu0 %v2187
  %v2507 = vpop.f32.mrb[0].mxu0
  %v2508 = vadd.f32 0.0, %v2507
  %v2509 = vpop.f32.mrb[0].mxu0
  %2510 = vmatprep.mubr.f32.mxu0 0.0
  %2511 = vmatmul.mubr.f32.gmra.mrb[0].mxu0 %v2190
  %v2512 = vpop.f32.mrb[0].mxu0
  %v2513 = vadd.f32 0.0, %v2512
  %v2514 = vpop.f32.mrb[0].mxu0
  %2515 = vmatprep.mubr.f32.mxu0 0.0
  %2516 = vmatmul.mubr.f32.gmra.mrb[0].mxu0 %v2193
  %v2517 = vpop.f32.mrb[0].mxu0
  %v2518 = vadd.f32 0.0, %v2517
  %v2519 = vpop.f32.mrb[0].mxu0
  %2520 = vmatprep.mubr.f32.mxu0 0.0
  %2521 = vmatmul.mubr.f32.gmra.mrb[0].mxu0 %v2196
  %v2522 = vpop.f32.mrb[0].mxu0
  %v2523 = vadd.f32 0.0, %v2522
  %v2524 = vpop.f32.mrb[0].mxu0
  %2525 = vmatprep.mubr.f32.mxu0 0.0
  %2526 = vmatmul.mubr.f32.gmra.mrb[0].mxu0 %v2199
  %v2527 = vpop.f32.mrb[0].mxu0
  %v2528 = vadd.f32 0.0, %v2527
  %v2529 = vpop.f32.mrb[0].mxu0
  %2530 = vmatprep.mubr.f32.mxu0 0.0
  %2531 = vmatmul.mubr.f32.gmra.mrb[0].mxu0 %v2202
  %v2532 = vpop.f32.mrb[0].mxu0
  %v2533 = vadd.f32 0.0, %v2532
  %v2534 = vpop.f32.mrb[0].mxu0
  %2535 = vmatprep.mubr.f32.mxu0 0.0
  %2536 = vmatmul.mubr.f32.gmra.mrb[0].mxu0 %v2205
  %v2537 = vpop.f32.mrb[0].mxu0
  %v2538 = vadd.f32 0.0, %v2537
  %v2539 = vpop.f32.mrb[0].mxu0
  %2540 = vmatprep.mubr.f32.mxu0 0.0
  %2541 = vmatmul.mubr.f32.gmra.mrb[0].mxu0 %v2208
  %v2542 = vpop.f32.mrb[0].mxu0
  %v2543 = vadd.f32 0.0, %v2542
  %v2544 = vpop.f32.mrb[0].mxu0
  %2545 = vmatprep.mubr.f32.mxu0 0.0
  %2546 = vmatmul.mubr.f32.gmra.mrb[0].mxu0 %v2211
  %v2547 = vpop.f32.mrb[0].mxu0
  %v2548 = vadd.f32 0.0, %v2547
  %v2549 = vpop.f32.mrb[0].mxu0
  %2550 = vmatprep.mubr.f32.mxu0 0.0
  %2551 = vmatmul.mubr.f32.gmra.mrb[0].mxu0 %v2214
  %v2552 = vpop.f32.mrb[0].mxu0
  %v2553 = vadd.f32 0.0, %v2552
  %v2554 = vpop.f32.mrb[0].mxu0
  %2555 = vmatprep.mubr.f32.mxu0 0.0
  %2556 = vmatmul.mubr.f32.gmra.mrb[0].mxu0 %v2217
  %v2557 = vpop.f32.mrb[0].mxu0
  %v2558 = vadd.f32 0.0, %v2557
  %v2559 = vpop.f32.mrb[0].mxu0
  %2560 = vmatprep.mubr.f32.mxu0 0.0
  %2561 = vmatmul.mubr.f32.gmra.mrb[0].mxu0 %v2220
  %v2562 = vpop.f32.mrb[0].mxu0
  %v2563 = vadd.f32 0.0, %v2562
  %v2564 = vpop.f32.mrb[0].mxu0
  %2565 = vmatprep.mubr.f32.mxu0 0.0
  %2566 = vmatmul.mubr.f32.gmra.mrb[0].mxu0 %v2223
  %v2567 = vpop.f32.mrb[0].mxu0
  %v2568 = vadd.f32 0.0, %v2567
  %v2569 = vpop.f32.mrb[0].mxu0
  %2570 = vmatprep.mubr.f32.mxu0 0.0
  %2571 = vmatmul.mubr.f32.gmra.mrb[0].mxu0 %v2226
  %v2572 = vpop.f32.mrb[0].mxu0
  %v2573 = vadd.f32 0.0, %v2572
  %v2574 = vpop.f32.mrb[0].mxu0
  %2575 = vmatprep.mubr.f32.mxu0 0.0
  %2576 = vmatmul.mubr.f32.gmra.mrb[0].mxu0 %v2229
  %v2577 = vpop.f32.mrb[0].mxu0
  %v2578 = vadd.f32 0.0, %v2577
  %v2579 = vpop.f32.mrb[0].mxu0
  %2580 = vmatprep.mubr.f32.mxu0 0.0
  %2581 = vmatmul.mubr.f32.gmra.mrb[0].mxu0 %v2232
  %v2582 = vpop.f32.mrb[0].mxu0
  %v2583 = vadd.f32 0.0, %v2582
  %v2584 = vpop.f32.mrb[0].mxu0
  %2585 = vmatprep.mubr.f32.mxu0 0.0
  %2586 = vmatmul.mubr.f32.gmra.mrb[0].mxu0 %v2235
  %v2587 = vpop.f32.mrb[0].mxu0
  %v2588 = vadd.f32 0.0, %v2587
  %v2589 = vpop.f32.mrb[0].mxu0
  %2590 = vmatprep.mubr.f32.mxu0 0.0
  %2591 = vmatmul.mubr.f32.gmra.mrb[0].mxu0 %v2238
  %v2592 = vpop.f32.mrb[0].mxu0
  %v2593 = vadd.f32 0.0, %v2592
  %v2594 = vpop.f32.mrb[0].mxu0
  %2595 = vmatprep.mubr.f32.mxu0 0.0
  %2596 = vmatmul.mubr.f32.gmra.mrb[0].mxu0 %v2241
  %v2597 = vpop.f32.mrb[0].mxu0
  %v2598 = vadd.f32 0.0, %v2597
  %v2599 = vpop.f32.mrb[0].mxu0
  %2600 = vmatprep.mubr.f32.mxu0 0.0
  %2601 = vmatmul.mubr.f32.gmra.mrb[0].mxu0 %v2244
  %v2602 = vpop.f32.mrb[0].mxu0
  %v2603 = vadd.f32 0.0, %v2602
  %v2604 = vpop.f32.mrb[0].mxu0
  %2605 = vmatprep.mubr.f32.mxu0 0.0
  %2606 = vmatmul.mubr.f32.gmra.mrb[0].mxu0 %v2247
  %v2607 = vpop.f32.mrb[0].mxu0
  %v2608 = vadd.f32 0.0, %v2607
  %v2609 = vpop.f32.mrb[0].mxu0
  %2610 = vmatprep.mubr.f32.mxu0 0.0
  %2611 = vmatmul.mubr.f32.gmra.mrb[0].mxu0 %v2250
  %v2612 = vpop.f32.mrb[0].mxu0
  %v2613 = vadd.f32 0.0, %v2612
  %v2614 = vpop.f32.mrb[0].mxu0
  %2615 = vmatprep.mubr.f32.mxu0 0.0
  %2616 = vmatmul.mubr.f32.gmra.mrb[0].mxu0 %v2253
  %v2617 = vpop.f32.mrb[0].mxu0
  %v2618 = vadd.f32 0.0, %v2617
  %v2619 = vpop.f32.mrb[0].mxu0
  %2620 = vmatprep.mubr.f32.mxu0 0.0
  %2621 = vmatmul.mubr.f32.gmra.mrb[0].mxu0 %v2256
  %v2622 = vpop.f32.mrb[0].mxu0
  %v2623 = vadd.f32 0.0, %v2622
  %v2624 = vpop.f32.mrb[0].mxu0
  %2625 = vmatprep.mubr.f32.mxu0 0.0
  %2626 = vmatmul.mubr.f32.gmra.mrb[0].mxu0 %v2259
  %v2627 = vpop.f32.mrb[0].mxu0
  %v2628 = vadd.f32 0.0, %v2627
  %v2629 = vpop.f32.mrb[0].mxu0
  %2630 = vmatprep.mubr.f32.mxu0 0.0
  %2631 = vmatmul.mubr.f32.gmra.mrb[0].mxu0 %v2262
  %v2632 = vpop.f32.mrb[0].mxu0
  %v2633 = vadd.f32 0.0, %v2632
  %v2634 = vpop.f32.mrb[0].mxu0
  %2635 = vmatprep.mubr.f32.mxu0 0.0
  %2636 = vmatmul.mubr.f32.gmra.mrb[0].mxu0 %v2265
  %v2637 = vpop.f32.mrb[0].mxu0
  %v2638 = vadd.f32 0.0, %v2637
  %v2639 = vpop.f32.mrb[0].mxu0
  %2640 = vmatprep.mubr.f32.mxu0 0.0
  %2641 = vmatmul.mubr.f32.gmra.mrb[0].mxu0 %v2268
  %v2642 = vpop.f32.mrb[0].mxu0
  %v2643 = vadd.f32 0.0, %v2642
  %v2644 = vpop.f32.mrb[0].mxu0
  %2645 = vmatprep.mubr.f32.mxu0 0.0
  %2646 = vmatmul.mubr.f32.gmra.mrb[0].mxu0 %v2271
  %v2647 = vpop.f32.mrb[0].mxu0
  %v2648 = vadd.f32 0.0, %v2647
  %v2649 = vpop.f32.mrb[0].mxu0
  %2650 = vmatprep.mubr.f32.mxu0 0.0
  %2651 = vmatmul.mubr.f32.gmra.mrb[0].mxu0 %v2274
  %v2652 = vpop.f32.mrb[0].mxu0
  %v2653 = vadd.f32 0.0, %v2652
  %v2654 = vpop.f32.mrb[0].mxu0
  %2655 = vmatprep.mubr.f32.mxu0 0.0
  %2656 = vmatmul.mubr.f32.gmra.mrb[0].mxu0 %v2277
  %v2657 = vpop.f32.mrb[0].mxu0
  %v2658 = vadd.f32 0.0, %v2657
  %v2659 = vpop.f32.mrb[0].mxu0
  %2660 = vmatprep.mubr.f32.mxu0 0.0
  %2661 = vmatmul.mubr.f32.gmra.mrb[0].mxu0 %v2280
  %v2662 = vpop.f32.mrb[0].mxu0
  %v2663 = vadd.f32 0.0, %v2662
  %v2664 = vpop.f32.mrb[0].mxu0
  %2665 = vmatprep.mubr.f32.mxu0 0.0
  %2666 = vmatmul.mubr.f32.gmra.mrb[0].mxu0 %v2283
  %v2667 = vpop.f32.mrb[0].mxu0
  %v2668 = vadd.f32 0.0, %v2667
  %v2669 = vpop.f32.mrb[0].mxu0
  %2670 = vmatprep.mubr.f32.mxu0 0.0
  %2671 = vmatmul.mubr.f32.gmra.mrb[0].mxu0 %v2286
  %v2672 = vpop.f32.mrb[0].mxu0
  %v2673 = vadd.f32 0.0, %v2672
  %v2674 = vpop.f32.mrb[0].mxu0
  %2675 = vdwg.mxu0
  %v2676 = vadd.f32 %v1965, %v2358
  %v2677 = vadd.f32 %v1966, %v2363
  %v2678 = vadd.f32 %v1967, %v2368
  %v2679 = vadd.f32 %v1968, %v2373
  %v2680 = vadd.f32 %v1969, %v2378
  %v2681 = vadd.f32 %v1970, %v2383
  %v2682 = vadd.f32 %v1971, %v2388
  %v2683 = vadd.f32 %v1972, %v2393
  %v2684 = vadd.f32 %v1973, %v2398
  %v2685 = vadd.f32 %v1974, %v2403
  %v2686 = vadd.f32 %v1975, %v2408
  %v2687 = vadd.f32 %v1976, %v2413
  %v2688 = vadd.f32 %v1977, %v2418
  %v2689 = vadd.f32 %v1978, %v2423
  %v2690 = vadd.f32 %v1979, %v2428
  %v2691 = vadd.f32 %v1980, %v2433
  %v2692 = vadd.f32 %v1981, %v2438
  %v2693 = vadd.f32 %v1982, %v2443
  %v2694 = vadd.f32 %v1983, %v2448
  %v2695 = vadd.f32 %v1984, %v2453
  %v2696 = vadd.f32 %v1985, %v2458
  %v2697 = vadd.f32 %v1986, %v2463
  %v2698 = vadd.f32 %v1987, %v2468
  %v2699 = vadd.f32 %v1988, %v2473
  %v2700 = vadd.f32 %v1989, %v2478
  %v2701 = vadd.f32 %v1990, %v2483
  %v2702 = vadd.f32 %v1991, %v2488
  %v2703 = vadd.f32 %v1992, %v2493
  %v2704 = vadd.f32 %v1993, %v2498
  %v2705 = vadd.f32 %v1994, %v2503
  %v2706 = vadd.f32 %v1995, %v2508
  %v2707 = vadd.f32 %v1996, %v2513
  %v2708 = vadd.f32 %v1997, %v2518
  %v2709 = vadd.f32 %v1998, %v2523
  %v2710 = vadd.f32 %v1999, %v2528
  %v2711 = vadd.f32 %v2000, %v2533
  %v2712 = vadd.f32 %v2001, %v2538
  %v2713 = vadd.f32 %v2002, %v2543
  %v2714 = vadd.f32 %v2003, %v2548
  %v2715 = vadd.f32 %v2004, %v2553
  %v2716 = vadd.f32 %v2005, %v2558
  %v2717 = vadd.f32 %v2006, %v2563
  %v2718 = vadd.f32 %v2007, %v2568
  %v2719 = vadd.f32 %v2008, %v2573
  %v2720 = vadd.f32 %v2009, %v2578
  %v2721 = vadd.f32 %v2010, %v2583
  %v2722 = vadd.f32 %v2011, %v2588
  %v2723 = vadd.f32 %v2012, %v2593
  %v2724 = vadd.f32 %v2013, %v2598
  %v2725 = vadd.f32 %v2014, %v2603
  %v2726 = vadd.f32 %v2015, %v2608
  %v2727 = vadd.f32 %v2016, %v2613
  %v2728 = vadd.f32 %v2017, %v2618
  %v2729 = vadd.f32 %v2018, %v2623
  %v2730 = vadd.f32 %v2019, %v2628
  %v2731 = vadd.f32 %v2020, %v2633
  %v2732 = vadd.f32 %v2021, %v2638
  %v2733 = vadd.f32 %v2022, %v2643
  %v2734 = vadd.f32 %v2023, %v2648
  %v2735 = vadd.f32 %v2024, %v2653
  %v2736 = vadd.f32 %v2025, %v2658
  %v2737 = vadd.f32 %v2026, %v2663
  %v2738 = vadd.f32 %v2027, %v2668
  %v2739 = vadd.f32 %v2028, %v2673
  %v2740 = vld [vmem:[%s2029 + $0x1] sm:$0xff]
  %v2741 = vld [vmem:[%s2029 + $0x9] sm:$0xff]
  %v2742 = vld [vmem:[%s2029 + $0x19] sm:$0xff]
  %v2743 = vld [vmem:[%s2029 + $0x21] sm:$0xff]
  %v2744 = vld [vmem:[%s2029 + $0x31] sm:$0xff]
  %v2745 = vld [vmem:[%s2029 + $0x39] sm:$0xff]
  %v2746 = vld [vmem:[%s2029 + $0x49] sm:$0xff]
  %v2747 = vld [vmem:[%s2029 + $0x51] sm:$0xff]
  %v2748 = vld [vmem:[%s2029 + $0x61] sm:$0xff]
  %v2749 = vld [vmem:[%s2029 + $0x69] sm:$0xff]
  %v2750 = vld [vmem:[%s2029 + $0x79] sm:$0xff]
  %v2751 = vld [vmem:[%s2029 + $0x81] sm:$0xff]
  %v2752 = vld [vmem:[%s2029 + $0x91] sm:$0xff]
  %v2753 = vld [vmem:[%s2029 + $0x99] sm:$0xff]
  %v2754 = vld [vmem:[%s2029 + $0xa9] sm:$0xff]
  %v2755 = vld [vmem:[%s2029 + $0xb1] sm:$0xff]
  %v2756 = vld [vmem:[%s2029 + $0xc1] sm:$0xff]
  %v2757 = vld [vmem:[%s2029 + $0xc9] sm:$0xff]
  %v2758 = vld [vmem:[%s2029 + $0xd9] sm:$0xff]
  %v2759 = vld [vmem:[%s2029 + $0xe1] sm:$0xff]
  %v2760 = vld [vmem:[%s2029 + $0xf1] sm:$0xff]
  %v2761 = vld [vmem:[%s2029 + $0xf9] sm:$0xff]
  %v2762 = vld [vmem:[%s2029 + $0x109] sm:$0xff]
  %v2763 = vld [vmem:[%s2029 + $0x111] sm:$0xff]
  %v2764 = vld [vmem:[%s2029 + $0x121] sm:$0xff]
  %v2765 = vld [vmem:[%s2029 + $0x129] sm:$0xff]
  %v2766 = vld [vmem:[%s2029 + $0x139] sm:$0xff]
  %v2767 = vld [vmem:[%s2029 + $0x141] sm:$0xff]
  %v2768 = vld [vmem:[%s2029 + $0x151] sm:$0xff]
  %v2769 = vld [vmem:[%s2029 + $0x159] sm:$0xff]
  %v2770 = vld [vmem:[%s2029 + $0x169] sm:$0xff]
  %v2771 = vld [vmem:[%s2029 + $0x171] sm:$0xff]
  %v2772 = vld [vmem:[%s2029 + $0x1b1] sm:$0xff]
  %v2773 = vld [vmem:[%s2029 + $0x1b9] sm:$0xff]
  %v2774 = vld [vmem:[%s2029 + $0x1c9] sm:$0xff]
  %v2775 = vld [vmem:[%s2029 + $0x1d1] sm:$0xff]
  %v2776 = vld [vmem:[%s2029 + $0x1e1] sm:$0xff]
  %v2777 = vld [vmem:[%s2029 + $0x1e9] sm:$0xff]
  %v2778 = vld [vmem:[%s2029 + $0x1f9] sm:$0xff]
  %v2779 = vld [vmem:[%s2029 + $0x201] sm:$0xff]
  %v2780 = vld [vmem:[%s2029 + $0x211] sm:$0xff]
  %v2781 = vld [vmem:[%s2029 + $0x219] sm:$0xff]
  %v2782 = vld [vmem:[%s2029 + $0x229] sm:$0xff]
  %v2783 = vld [vmem:[%s2029 + $0x231] sm:$0xff]
  %v2784 = vld [vmem:[%s2029 + $0x241] sm:$0xff]
  %v2785 = vld [vmem:[%s2029 + $0x249] sm:$0xff]
  %v2786 = vld [vmem:[%s2029 + $0x259] sm:$0xff]
  %v2787 = vld [vmem:[%s2029 + $0x261] sm:$0xff]
  %v2788 = vld [vmem:[%s2029 + $0x271] sm:$0xff]
  %v2789 = vld [vmem:[%s2029 + $0x279] sm:$0xff]
  %v2790 = vld [vmem:[%s2029 + $0x289] sm:$0xff]
  %v2791 = vld [vmem:[%s2029 + $0x291] sm:$0xff]
  %v2792 = vld [vmem:[%s2029 + $0x2a1] sm:$0xff]
  %v2793 = vld [vmem:[%s2029 + $0x2a9] sm:$0xff]
  %v2794 = vld [vmem:[%s2029 + $0x2b9] sm:$0xff]
  %v2795 = vld [vmem:[%s2029 + $0x2c1] sm:$0xff]
  %v2796 = vld [vmem:[%s2029 + $0x2d1] sm:$0xff]
  %v2797 = vld [vmem:[%s2029 + $0x2d9] sm:$0xff]
  %v2798 = vld [vmem:[%s2029 + $0x2e9] sm:$0xff]
  %v2799 = vld [vmem:[%s2029 + $0x2f1] sm:$0xff]
  %v2800 = vld [vmem:[%s2029 + $0x301] sm:$0xff]
  %v2801 = vld [vmem:[%s2029 + $0x309] sm:$0xff]
  %v2802 = vld [vmem:[%s2029 + $0x319] sm:$0xff]
  %v2803 = vld [vmem:[%s2029 + $0x321] sm:$0xff]
  %s2804 = scalar_lea.vmem %s1, 16
  %v2805 = vld [vmem:[%s2804] sm:$0xf]
  %v2807 = vsel %vm157, %v2740, 0
  %v2810 = vsel %vm157, %v2741, 0
  %v2813 = vsel %vm157, %v2742, 0
  %v2816 = vsel %vm157, %v2743, 0
  %v2819 = vsel %vm157, %v2744, 0
  %v2822 = vsel %vm157, %v2745, 0
  %v2825 = vsel %vm157, %v2746, 0
  %v2828 = vsel %vm157, %v2747, 0
  %v2831 = vsel %vm157, %v2748, 0
  %v2834 = vsel %vm157, %v2749, 0
  %v2837 = vsel %vm157, %v2750, 0
  %v2840 = vsel %vm157, %v2751, 0
  %v2843 = vsel %vm157, %v2752, 0
  %v2846 = vsel %vm157, %v2753, 0
  %v2849 = vsel %vm157, %v2754, 0
  %v2852 = vsel %vm157, %v2755, 0
  %v2855 = vsel %vm157, %v2756, 0
  %v2858 = vsel %vm157, %v2757, 0
  %v2861 = vsel %vm157, %v2758, 0
  %v2864 = vsel %vm157, %v2759, 0
  %v2867 = vsel %vm157, %v2760, 0
  %v2870 = vsel %vm157, %v2761, 0
  %v2873 = vsel %vm157, %v2762, 0
  %v2876 = vsel %vm157, %v2763, 0
  %v2879 = vsel %vm157, %v2764, 0
  %v2882 = vsel %vm157, %v2765, 0
  %v2885 = vsel %vm157, %v2766, 0
  %v2888 = vsel %vm157, %v2767, 0
  %v2891 = vsel %vm157, %v2768, 0
  %v2894 = vsel %vm157, %v2769, 0
  %v2897 = vsel %vm157, %v2770, 0
  %v2900 = vsel %vm157, %v2771, 0
  %v2903 = vsel %vm157, %v2772, 0
  %v2906 = vsel %vm157, %v2773, 0
  %v2909 = vsel %vm157, %v2774, 0
  %v2912 = vsel %vm157, %v2775, 0
  %v2915 = vsel %vm157, %v2776, 0
  %v2918 = vsel %vm157, %v2777, 0
  %v2921 = vsel %vm157, %v2778, 0
  %v2924 = vsel %vm157, %v2779, 0
  %v2927 = vsel %vm157, %v2780, 0
  %v2930 = vsel %vm157, %v2781, 0
  %v2933 = vsel %vm157, %v2782, 0
  %v2936 = vsel %vm157, %v2783, 0
  %v2939 = vsel %vm157, %v2784, 0
  %v2942 = vsel %vm157, %v2785, 0
  %v2945 = vsel %vm157, %v2786, 0
  %v2948 = vsel %vm157, %v2787, 0
  %v2951 = vsel %vm157, %v2788, 0
  %v2954 = vsel %vm157, %v2789, 0
  %v2957 = vsel %vm157, %v2790, 0
  %v2960 = vsel %vm157, %v2791, 0
  %v2963 = vsel %vm157, %v2792, 0
  %v2966 = vsel %vm157, %v2793, 0
  %v2969 = vsel %vm157, %v2794, 0
  %v2972 = vsel %vm157, %v2795, 0
  %v2975 = vsel %vm157, %v2796, 0
  %v2978 = vsel %vm157, %v2797, 0
  %v2981 = vsel %vm157, %v2798, 0
  %v2984 = vsel %vm157, %v2799, 0
  %v2987 = vsel %vm157, %v2800, 0
  %v2990 = vsel %vm157, %v2801, 0
  %v2993 = vsel %vm157, %v2802, 0
  %v2996 = vsel %vm157, %v2803, 0
  %v2999 = vsel %vm350, %v2805, 0
  %3001 = vmatprep.subr.mxu0 0.0
  %3002 = vmatpush1.msra.mxu0 %v2999
  %3003 = vmatprep.subr.mxu0 0.0
  %3004 = vmatpush1.msra.mxu0 0.0
  %3005 = vmatprep.subr.mxu0 0.0
  %3006 = vmatpush1.msra.mxu0 0.0
  %3007 = vmatprep.subr.mxu0 0.0
  %3008 = vmatpush1.msra.mxu0 0.0
  %3009 = vmatprep.subr.mxu0 0.0
  %3010 = vmatpush1.msra.mxu0 0.0
  %3011 = vmatprep.subr.mxu0 0.0
  %3012 = vmatpush1.msra.mxu0 0.0
  %3013 = vmatprep.subr.mxu0 0.0
  %3014 = vmatpush1.msra.mxu0 0.0
  %3015 = vmatprep.subr.mxu0 0.0
  %3016 = vmatpush1.msra.mxu0 0.0
  %3017 = vmatprep.subr.mxu0 0.0
  %3018 = vmatpush1.msra.mxu0 0.0
  %3019 = vmatprep.subr.mxu0 0.0
  %3020 = vmatpush1.msra.mxu0 0.0
  %3021 = vmatprep.subr.mxu0 0.0
  %3022 = vmatpush1.msra.mxu0 0.0
  %3023 = vmatprep.subr.mxu0 0.0
  %3024 = vmatpush1.msra.mxu0 0.0
  %3025 = vmatprep.subr.mxu0 0.0
  %3026 = vmatpush1.msra.mxu0 0.0
  %3027 = vmatprep.subr.mxu0 0.0
  %3028 = vmatpush1.msra.mxu0 0.0
  %3029 = vmatprep.subr.mxu0 0.0
  %3030 = vmatpush1.msra.mxu0 0.0
  %3031 = vmatprep.subr.mxu0 0.0
  %3032 = vmatpush1.msra.mxu0 0.0
  %3033 = vmatprep.subr.mxu0 0.0
  %3034 = vmatpush1.msra.mxu0 0.0
  %3035 = vmatprep.subr.mxu0 0.0
  %3036 = vmatpush1.msra.mxu0 0.0
  %3037 = vmatprep.subr.mxu0 0.0
  %3038 = vmatpush1.msra.mxu0 0.0
  %3039 = vmatprep.subr.mxu0 0.0
  %3040 = vmatpush1.msra.mxu0 0.0
  %3041 = vmatprep.subr.mxu0 0.0
  %3042 = vmatpush1.msra.mxu0 0.0
  %3043 = vmatprep.subr.mxu0 0.0
  %3044 = vmatpush1.msra.mxu0 0.0
  %3045 = vmatprep.subr.mxu0 0.0
  %3046 = vmatpush1.msra.mxu0 0.0
  %3047 = vmatprep.subr.mxu0 0.0
  %3048 = vmatpush1.msra.mxu0 0.0
  %3049 = vmatprep.subr.mxu0 0.0
  %3050 = vmatpush1.msra.mxu0 0.0
  %3051 = vmatprep.subr.mxu0 0.0
  %3052 = vmatpush1.msra.mxu0 0.0
  %3053 = vmatprep.subr.mxu0 0.0
  %3054 = vmatpush1.msra.mxu0 0.0
  %3055 = vmatprep.subr.mxu0 0.0
  %3056 = vmatpush1.msra.mxu0 0.0
  %3057 = vmatprep.subr.mxu0 0.0
  %3058 = vmatpush1.msra.mxu0 0.0
  %3059 = vmatprep.subr.mxu0 0.0
  %3060 = vmatpush1.msra.mxu0 0.0
  %3061 = vmatprep.subr.mxu0 0.0
  %3062 = vmatpush1.msra.mxu0 0.0
  %3063 = vmatprep.subr.mxu0 0.0
  %3064 = vmatpush1.msra.mxu0 0.0
  %3065 = vmatprep.mubr.f32.mxu0 0.0
  %3066 = vmatmul.mubr.f32.gmra.mrb[0].mxu0 %v2807
  %v3067 = vpop.f32.mrb[0].mxu0
  %v3068 = vadd.f32 0.0, %v3067
  %v3069 = vpop.f32.mrb[0].mxu0
  %3070 = vmatprep.mubr.f32.mxu0 0.0
  %3071 = vmatmul.mubr.f32.gmra.mrb[0].mxu0 %v2810
  %v3072 = vpop.f32.mrb[0].mxu0
  %v3073 = vadd.f32 0.0, %v3072
  %v3074 = vpop.f32.mrb[0].mxu0
  %3075 = vmatprep.mubr.f32.mxu0 0.0
  %3076 = vmatmul.mubr.f32.gmra.mrb[0].mxu0 %v2813
  %v3077 = vpop.f32.mrb[0].mxu0
  %v3078 = vadd.f32 0.0, %v3077
  %v3079 = vpop.f32.mrb[0].mxu0
  %3080 = vmatprep.mubr.f32.mxu0 0.0
  %3081 = vmatmul.mubr.f32.gmra.mrb[0].mxu0 %v2816
  %v3082 = vpop.f32.mrb[0].mxu0
  %v3083 = vadd.f32 0.0, %v3082
  %v3084 = vpop.f32.mrb[0].mxu0
  %3085 = vmatprep.mubr.f32.mxu0 0.0
  %3086 = vmatmul.mubr.f32.gmra.mrb[0].mxu0 %v2819
  %v3087 = vpop.f32.mrb[0].mxu0
  %v3088 = vadd.f32 0.0, %v3087
  %v3089 = vpop.f32.mrb[0].mxu0
  %3090 = vmatprep.mubr.f32.mxu0 0.0
  %3091 = vmatmul.mubr.f32.gmra.mrb[0].mxu0 %v2822
  %v3092 = vpop.f32.mrb[0].mxu0
  %v3093 = vadd.f32 0.0, %v3092
  %v3094 = vpop.f32.mrb[0].mxu0
  %3095 = vmatprep.mubr.f32.mxu0 0.0
  %3096 = vmatmul.mubr.f32.gmra.mrb[0].mxu0 %v2825
  %v3097 = vpop.f32.mrb[0].mxu0
  %v3098 = vadd.f32 0.0, %v3097
  %v3099 = vpop.f32.mrb[0].mxu0
  %3100 = vmatprep.mubr.f32.mxu0 0.0
  %3101 = vmatmul.mubr.f32.gmra.mrb[0].mxu0 %v2828
  %v3102 = vpop.f32.mrb[0].mxu0
  %v3103 = vadd.f32 0.0, %v3102
  %v3104 = vpop.f32.mrb[0].mxu0
  %3105 = vmatprep.mubr.f32.mxu0 0.0
  %3106 = vmatmul.mubr.f32.gmra.mrb[0].mxu0 %v2831
  %v3107 = vpop.f32.mrb[0].mxu0
  %v3108 = vadd.f32 0.0, %v3107
  %v3109 = vpop.f32.mrb[0].mxu0
  %3110 = vmatprep.mubr.f32.mxu0 0.0
  %3111 = vmatmul.mubr.f32.gmra.mrb[0].mxu0 %v2834
  %v3112 = vpop.f32.mrb[0].mxu0
  %v3113 = vadd.f32 0.0, %v3112
  %v3114 = vpop.f32.mrb[0].mxu0
  %3115 = vmatprep.mubr.f32.mxu0 0.0
  %3116 = vmatmul.mubr.f32.gmra.mrb[0].mxu0 %v2837
  %v3117 = vpop.f32.mrb[0].mxu0
  %v3118 = vadd.f32 0.0, %v3117
  %v3119 = vpop.f32.mrb[0].mxu0
  %3120 = vmatprep.mubr.f32.mxu0 0.0
  %3121 = vmatmul.mubr.f32.gmra.mrb[0].mxu0 %v2840
  %v3122 = vpop.f32.mrb[0].mxu0
  %v3123 = vadd.f32 0.0, %v3122
  %v3124 = vpop.f32.mrb[0].mxu0
  %3125 = vmatprep.mubr.f32.mxu0 0.0
  %3126 = vmatmul.mubr.f32.gmra.mrb[0].mxu0 %v2843
  %v3127 = vpop.f32.mrb[0].mxu0
  %v3128 = vadd.f32 0.0, %v3127
  %v3129 = vpop.f32.mrb[0].mxu0
  %3130 = vmatprep.mubr.f32.mxu0 0.0
  %3131 = vmatmul.mubr.f32.gmra.mrb[0].mxu0 %v2846
  %v3132 = vpop.f32.mrb[0].mxu0
  %v3133 = vadd.f32 0.0, %v3132
  %v3134 = vpop.f32.mrb[0].mxu0
  %3135 = vmatprep.mubr.f32.mxu0 0.0
  %3136 = vmatmul.mubr.f32.gmra.mrb[0].mxu0 %v2849
  %v3137 = vpop.f32.mrb[0].mxu0
  %v3138 = vadd.f32 0.0, %v3137
  %v3139 = vpop.f32.mrb[0].mxu0
  %3140 = vmatprep.mubr.f32.mxu0 0.0
  %3141 = vmatmul.mubr.f32.gmra.mrb[0].mxu0 %v2852
  %v3142 = vpop.f32.mrb[0].mxu0
  %v3143 = vadd.f32 0.0, %v3142
  %v3144 = vpop.f32.mrb[0].mxu0
  %3145 = vmatprep.mubr.f32.mxu0 0.0
  %3146 = vmatmul.mubr.f32.gmra.mrb[0].mxu0 %v2855
  %v3147 = vpop.f32.mrb[0].mxu0
  %v3148 = vadd.f32 0.0, %v3147
  %v3149 = vpop.f32.mrb[0].mxu0
  %3150 = vmatprep.mubr.f32.mxu0 0.0
  %3151 = vmatmul.mubr.f32.gmra.mrb[0].mxu0 %v2858
  %v3152 = vpop.f32.mrb[0].mxu0
  %v3153 = vadd.f32 0.0, %v3152
  %v3154 = vpop.f32.mrb[0].mxu0
  %3155 = vmatprep.mubr.f32.mxu0 0.0
  %3156 = vmatmul.mubr.f32.gmra.mrb[0].mxu0 %v2861
  %v3157 = vpop.f32.mrb[0].mxu0
  %v3158 = vadd.f32 0.0, %v3157
  %v3159 = vpop.f32.mrb[0].mxu0
  %3160 = vmatprep.mubr.f32.mxu0 0.0
  %3161 = vmatmul.mubr.f32.gmra.mrb[0].mxu0 %v2864
  %v3162 = vpop.f32.mrb[0].mxu0
  %v3163 = vadd.f32 0.0, %v3162
  %v3164 = vpop.f32.mrb[0].mxu0
  %3165 = vmatprep.mubr.f32.mxu0 0.0
  %3166 = vmatmul.mubr.f32.gmra.mrb[0].mxu0 %v2867
  %v3167 = vpop.f32.mrb[0].mxu0
  %v3168 = vadd.f32 0.0, %v3167
  %v3169 = vpop.f32.mrb[0].mxu0
  %3170 = vmatprep.mubr.f32.mxu0 0.0
  %3171 = vmatmul.mubr.f32.gmra.mrb[0].mxu0 %v2870
  %v3172 = vpop.f32.mrb[0].mxu0
  %v3173 = vadd.f32 0.0, %v3172
  %v3174 = vpop.f32.mrb[0].mxu0
  %3175 = vmatprep.mubr.f32.mxu0 0.0
  %3176 = vmatmul.mubr.f32.gmra.mrb[0].mxu0 %v2873
  %v3177 = vpop.f32.mrb[0].mxu0
  %v3178 = vadd.f32 0.0, %v3177
  %v3179 = vpop.f32.mrb[0].mxu0
  %3180 = vmatprep.mubr.f32.mxu0 0.0
  %3181 = vmatmul.mubr.f32.gmra.mrb[0].mxu0 %v2876
  %v3182 = vpop.f32.mrb[0].mxu0
  %v3183 = vadd.f32 0.0, %v3182
  %v3184 = vpop.f32.mrb[0].mxu0
  %3185 = vmatprep.mubr.f32.mxu0 0.0
  %3186 = vmatmul.mubr.f32.gmra.mrb[0].mxu0 %v2879
  %v3187 = vpop.f32.mrb[0].mxu0
  %v3188 = vadd.f32 0.0, %v3187
  %v3189 = vpop.f32.mrb[0].mxu0
  %3190 = vmatprep.mubr.f32.mxu0 0.0
  %3191 = vmatmul.mubr.f32.gmra.mrb[0].mxu0 %v2882
  %v3192 = vpop.f32.mrb[0].mxu0
  %v3193 = vadd.f32 0.0, %v3192
  %v3194 = vpop.f32.mrb[0].mxu0
  %3195 = vmatprep.mubr.f32.mxu0 0.0
  %3196 = vmatmul.mubr.f32.gmra.mrb[0].mxu0 %v2885
  %v3197 = vpop.f32.mrb[0].mxu0
  %v3198 = vadd.f32 0.0, %v3197
  %v3199 = vpop.f32.mrb[0].mxu0
  %3200 = vmatprep.mubr.f32.mxu0 0.0
  %3201 = vmatmul.mubr.f32.gmra.mrb[0].mxu0 %v2888
  %v3202 = vpop.f32.mrb[0].mxu0
  %v3203 = vadd.f32 0.0, %v3202
  %v3204 = vpop.f32.mrb[0].mxu0
  %3205 = vmatprep.mubr.f32.mxu0 0.0
  %3206 = vmatmul.mubr.f32.gmra.mrb[0].mxu0 %v2891
  %v3207 = vpop.f32.mrb[0].mxu0
  %v3208 = vadd.f32 0.0, %v3207
  %v3209 = vpop.f32.mrb[0].mxu0
  %3210 = vmatprep.mubr.f32.mxu0 0.0
  %3211 = vmatmul.mubr.f32.gmra.mrb[0].mxu0 %v2894
  %v3212 = vpop.f32.mrb[0].mxu0
  %v3213 = vadd.f32 0.0, %v3212
  %v3214 = vpop.f32.mrb[0].mxu0
  %3215 = vmatprep.mubr.f32.mxu0 0.0
  %3216 = vmatmul.mubr.f32.gmra.mrb[0].mxu0 %v2897
  %v3217 = vpop.f32.mrb[0].mxu0
  %v3218 = vadd.f32 0.0, %v3217
  %v3219 = vpop.f32.mrb[0].mxu0
  %3220 = vmatprep.mubr.f32.mxu0 0.0
  %3221 = vmatmul.mubr.f32.gmra.mrb[0].mxu0 %v2900
  %v3222 = vpop.f32.mrb[0].mxu0
  %v3223 = vadd.f32 0.0, %v3222
  %v3224 = vpop.f32.mrb[0].mxu0
  %3225 = vmatprep.mubr.f32.mxu0 0.0
  %3226 = vmatmul.mubr.f32.gmra.mrb[0].mxu0 %v2903
  %v3227 = vpop.f32.mrb[0].mxu0
  %v3228 = vadd.f32 0.0, %v3227
  %v3229 = vpop.f32.mrb[0].mxu0
  %3230 = vmatprep.mubr.f32.mxu0 0.0
  %3231 = vmatmul.mubr.f32.gmra.mrb[0].mxu0 %v2906
  %v3232 = vpop.f32.mrb[0].mxu0
  %v3233 = vadd.f32 0.0, %v3232
  %v3234 = vpop.f32.mrb[0].mxu0
  %3235 = vmatprep.mubr.f32.mxu0 0.0
  %3236 = vmatmul.mubr.f32.gmra.mrb[0].mxu0 %v2909
  %v3237 = vpop.f32.mrb[0].mxu0
  %v3238 = vadd.f32 0.0, %v3237
  %v3239 = vpop.f32.mrb[0].mxu0
  %3240 = vmatprep.mubr.f32.mxu0 0.0
  %3241 = vmatmul.mubr.f32.gmra.mrb[0].mxu0 %v2912
  %v3242 = vpop.f32.mrb[0].mxu0
  %v3243 = vadd.f32 0.0, %v3242
  %v3244 = vpop.f32.mrb[0].mxu0
  %3245 = vmatprep.mubr.f32.mxu0 0.0
  %3246 = vmatmul.mubr.f32.gmra.mrb[0].mxu0 %v2915
  %v3247 = vpop.f32.mrb[0].mxu0
  %v3248 = vadd.f32 0.0, %v3247
  %v3249 = vpop.f32.mrb[0].mxu0
  %3250 = vmatprep.mubr.f32.mxu0 0.0
  %3251 = vmatmul.mubr.f32.gmra.mrb[0].mxu0 %v2918
  %v3252 = vpop.f32.mrb[0].mxu0
  %v3253 = vadd.f32 0.0, %v3252
  %v3254 = vpop.f32.mrb[0].mxu0
  %3255 = vmatprep.mubr.f32.mxu0 0.0
  %3256 = vmatmul.mubr.f32.gmra.mrb[0].mxu0 %v2921
  %v3257 = vpop.f32.mrb[0].mxu0
  %v3258 = vadd.f32 0.0, %v3257
  %v3259 = vpop.f32.mrb[0].mxu0
  %3260 = vmatprep.mubr.f32.mxu0 0.0
  %3261 = vmatmul.mubr.f32.gmra.mrb[0].mxu0 %v2924
  %v3262 = vpop.f32.mrb[0].mxu0
  %v3263 = vadd.f32 0.0, %v3262
  %v3264 = vpop.f32.mrb[0].mxu0
  %3265 = vmatprep.mubr.f32.mxu0 0.0
  %3266 = vmatmul.mubr.f32.gmra.mrb[0].mxu0 %v2927
  %v3267 = vpop.f32.mrb[0].mxu0
  %v3268 = vadd.f32 0.0, %v3267
  %v3269 = vpop.f32.mrb[0].mxu0
  %3270 = vmatprep.mubr.f32.mxu0 0.0
  %3271 = vmatmul.mubr.f32.gmra.mrb[0].mxu0 %v2930
  %v3272 = vpop.f32.mrb[0].mxu0
  %v3273 = vadd.f32 0.0, %v3272
  %v3274 = vpop.f32.mrb[0].mxu0
  %3275 = vmatprep.mubr.f32.mxu0 0.0
  %3276 = vmatmul.mubr.f32.gmra.mrb[0].mxu0 %v2933
  %v3277 = vpop.f32.mrb[0].mxu0
  %v3278 = vadd.f32 0.0, %v3277
  %v3279 = vpop.f32.mrb[0].mxu0
  %3280 = vmatprep.mubr.f32.mxu0 0.0
  %3281 = vmatmul.mubr.f32.gmra.mrb[0].mxu0 %v2936
  %v3282 = vpop.f32.mrb[0].mxu0
  %v3283 = vadd.f32 0.0, %v3282
  %v3284 = vpop.f32.mrb[0].mxu0
  %3285 = vmatprep.mubr.f32.mxu0 0.0
  %3286 = vmatmul.mubr.f32.gmra.mrb[0].mxu0 %v2939
  %v3287 = vpop.f32.mrb[0].mxu0
  %v3288 = vadd.f32 0.0, %v3287
  %v3289 = vpop.f32.mrb[0].mxu0
  %3290 = vmatprep.mubr.f32.mxu0 0.0
  %3291 = vmatmul.mubr.f32.gmra.mrb[0].mxu0 %v2942
  %v3292 = vpop.f32.mrb[0].mxu0
  %v3293 = vadd.f32 0.0, %v3292
  %v3294 = vpop.f32.mrb[0].mxu0
  %3295 = vmatprep.mubr.f32.mxu0 0.0
  %3296 = vmatmul.mubr.f32.gmra.mrb[0].mxu0 %v2945
  %v3297 = vpop.f32.mrb[0].mxu0
  %v3298 = vadd.f32 0.0, %v3297
  %v3299 = vpop.f32.mrb[0].mxu0
  %3300 = vmatprep.mubr.f32.mxu0 0.0
  %3301 = vmatmul.mubr.f32.gmra.mrb[0].mxu0 %v2948
  %v3302 = vpop.f32.mrb[0].mxu0
  %v3303 = vadd.f32 0.0, %v3302
  %v3304 = vpop.f32.mrb[0].mxu0
  %3305 = vmatprep.mubr.f32.mxu0 0.0
  %3306 = vmatmul.mubr.f32.gmra.mrb[0].mxu0 %v2951
  %v3307 = vpop.f32.mrb[0].mxu0
  %v3308 = vadd.f32 0.0, %v3307
  %v3309 = vpop.f32.mrb[0].mxu0
  %3310 = vmatprep.mubr.f32.mxu0 0.0
  %3311 = vmatmul.mubr.f32.gmra.mrb[0].mxu0 %v2954
  %v3312 = vpop.f32.mrb[0].mxu0
  %v3313 = vadd.f32 0.0, %v3312
  %v3314 = vpop.f32.mrb[0].mxu0
  %3315 = vmatprep.mubr.f32.mxu0 0.0
  %3316 = vmatmul.mubr.f32.gmra.mrb[0].mxu0 %v2957
  %v3317 = vpop.f32.mrb[0].mxu0
  %v3318 = vadd.f32 0.0, %v3317
  %v3319 = vpop.f32.mrb[0].mxu0
  %3320 = vmatprep.mubr.f32.mxu0 0.0
  %3321 = vmatmul.mubr.f32.gmra.mrb[0].mxu0 %v2960
  %v3322 = vpop.f32.mrb[0].mxu0
  %v3323 = vadd.f32 0.0, %v3322
  %v3324 = vpop.f32.mrb[0].mxu0
  %3325 = vmatprep.mubr.f32.mxu0 0.0
  %3326 = vmatmul.mubr.f32.gmra.mrb[0].mxu0 %v2963
  %v3327 = vpop.f32.mrb[0].mxu0
  %v3328 = vadd.f32 0.0, %v3327
  %v3329 = vpop.f32.mrb[0].mxu0
  %3330 = vmatprep.mubr.f32.mxu0 0.0
  %3331 = vmatmul.mubr.f32.gmra.mrb[0].mxu0 %v2966
  %v3332 = vpop.f32.mrb[0].mxu0
  %v3333 = vadd.f32 0.0, %v3332
  %v3334 = vpop.f32.mrb[0].mxu0
  %3335 = vmatprep.mubr.f32.mxu0 0.0
  %3336 = vmatmul.mubr.f32.gmra.mrb[0].mxu0 %v2969
  %v3337 = vpop.f32.mrb[0].mxu0
  %v3338 = vadd.f32 0.0, %v3337
  %v3339 = vpop.f32.mrb[0].mxu0
  %3340 = vmatprep.mubr.f32.mxu0 0.0
  %3341 = vmatmul.mubr.f32.gmra.mrb[0].mxu0 %v2972
  %v3342 = vpop.f32.mrb[0].mxu0
  %v3343 = vadd.f32 0.0, %v3342
  %v3344 = vpop.f32.mrb[0].mxu0
  %3345 = vmatprep.mubr.f32.mxu0 0.0
  %3346 = vmatmul.mubr.f32.gmra.mrb[0].mxu0 %v2975
  %v3347 = vpop.f32.mrb[0].mxu0
  %v3348 = vadd.f32 0.0, %v3347
  %v3349 = vpop.f32.mrb[0].mxu0
  %3350 = vmatprep.mubr.f32.mxu0 0.0
  %3351 = vmatmul.mubr.f32.gmra.mrb[0].mxu0 %v2978
  %v3352 = vpop.f32.mrb[0].mxu0
  %v3353 = vadd.f32 0.0, %v3352
  %v3354 = vpop.f32.mrb[0].mxu0
  %3355 = vmatprep.mubr.f32.mxu0 0.0
  %3356 = vmatmul.mubr.f32.gmra.mrb[0].mxu0 %v2981
  %v3357 = vpop.f32.mrb[0].mxu0
  %v3358 = vadd.f32 0.0, %v3357
  %v3359 = vpop.f32.mrb[0].mxu0
  %3360 = vmatprep.mubr.f32.mxu0 0.0
  %3361 = vmatmul.mubr.f32.gmra.mrb[0].mxu0 %v2984
  %v3362 = vpop.f32.mrb[0].mxu0
  %v3363 = vadd.f32 0.0, %v3362
  %v3364 = vpop.f32.mrb[0].mxu0
  %3365 = vmatprep.mubr.f32.mxu0 0.0
  %3366 = vmatmul.mubr.f32.gmra.mrb[0].mxu0 %v2987
  %v3367 = vpop.f32.mrb[0].mxu0
  %v3368 = vadd.f32 0.0, %v3367
  %v3369 = vpop.f32.mrb[0].mxu0
  %3370 = vmatprep.mubr.f32.mxu0 0.0
  %3371 = vmatmul.mubr.f32.gmra.mrb[0].mxu0 %v2990
  %v3372 = vpop.f32.mrb[0].mxu0
  %v3373 = vadd.f32 0.0, %v3372
  %v3374 = vpop.f32.mrb[0].mxu0
  %3375 = vmatprep.mubr.f32.mxu0 0.0
  %3376 = vmatmul.mubr.f32.gmra.mrb[0].mxu0 %v2993
  %v3377 = vpop.f32.mrb[0].mxu0
  %v3378 = vadd.f32 0.0, %v3377
  %v3379 = vpop.f32.mrb[0].mxu0
  %3380 = vmatprep.mubr.f32.mxu0 0.0
  %3381 = vmatmul.mubr.f32.gmra.mrb[0].mxu0 %v2996
  %v3382 = vpop.f32.mrb[0].mxu0
  %v3383 = vadd.f32 0.0, %v3382
  %v3384 = vpop.f32.mrb[0].mxu0
  %3385 = vdwg.mxu0
  %v3386 = vadd.f32 %v2676, %v3068
  %v3387 = vadd.f32 %v2677, %v3073
  %v3388 = vadd.f32 %v2678, %v3078
  %v3389 = vadd.f32 %v2679, %v3083
  %v3390 = vadd.f32 %v2680, %v3088
  %v3391 = vadd.f32 %v2681, %v3093
  %v3392 = vadd.f32 %v2682, %v3098
  %v3393 = vadd.f32 %v2683, %v3103
  %v3394 = vadd.f32 %v2684, %v3108
  %v3395 = vadd.f32 %v2685, %v3113
  %v3396 = vadd.f32 %v2686, %v3118
  %v3397 = vadd.f32 %v2687, %v3123
  %v3398 = vadd.f32 %v2688, %v3128
  %v3399 = vadd.f32 %v2689, %v3133
  %v3400 = vadd.f32 %v2690, %v3138
  %v3401 = vadd.f32 %v2691, %v3143
  %v3402 = vadd.f32 %v2692, %v3148
  %v3403 = vadd.f32 %v2693, %v3153
  %v3404 = vadd.f32 %v2694, %v3158
  %v3405 = vadd.f32 %v2695, %v3163
  %v3406 = vadd.f32 %v2696, %v3168
  %v3407 = vadd.f32 %v2697, %v3173
  %v3408 = vadd.f32 %v2698, %v3178
  %v3409 = vadd.f32 %v2699, %v3183
  %v3410 = vadd.f32 %v2700, %v3188
  %v3411 = vadd.f32 %v2701, %v3193
  %v3412 = vadd.f32 %v2702, %v3198
  %v3413 = vadd.f32 %v2703, %v3203
  %v3414 = vadd.f32 %v2704, %v3208
  %v3415 = vadd.f32 %v2705, %v3213
  %v3416 = vadd.f32 %v2706, %v3218
  %v3417 = vadd.f32 %v2707, %v3223
  %v3418 = vadd.f32 %v2708, %v3228
  %v3419 = vadd.f32 %v2709, %v3233
  %v3420 = vadd.f32 %v2710, %v3238
  %v3421 = vadd.f32 %v2711, %v3243
  %v3422 = vadd.f32 %v2712, %v3248
  %v3423 = vadd.f32 %v2713, %v3253
  %v3424 = vadd.f32 %v2714, %v3258
  %v3425 = vadd.f32 %v2715, %v3263
  %v3426 = vadd.f32 %v2716, %v3268
  %v3427 = vadd.f32 %v2717, %v3273
  %v3428 = vadd.f32 %v2718, %v3278
  %v3429 = vadd.f32 %v2719, %v3283
  %v3430 = vadd.f32 %v2720, %v3288
  %v3431 = vadd.f32 %v2721, %v3293
  %v3432 = vadd.f32 %v2722, %v3298
  %v3433 = vadd.f32 %v2723, %v3303
  %v3434 = vadd.f32 %v2724, %v3308
  %v3435 = vadd.f32 %v2725, %v3313
  %v3436 = vadd.f32 %v2726, %v3318
  %v3437 = vadd.f32 %v2727, %v3323
  %v3438 = vadd.f32 %v2728, %v3328
  %v3439 = vadd.f32 %v2729, %v3333
  %v3440 = vadd.f32 %v2730, %v3338
  %v3441 = vadd.f32 %v2731, %v3343
  %v3442 = vadd.f32 %v2732, %v3348
  %v3443 = vadd.f32 %v2733, %v3353
  %v3444 = vadd.f32 %v2734, %v3358
  %v3445 = vadd.f32 %v2735, %v3363
  %v3446 = vadd.f32 %v2736, %v3368
  %v3447 = vadd.f32 %v2737, %v3373
  %v3448 = vadd.f32 %v2738, %v3378
  %v3449 = vadd.f32 %v2739, %v3383
  %v3450 = vld [vmem:[%s2029 + $0x2] sm:$0xff]
  %v3451 = vld [vmem:[%s2029 + $0xa] sm:$0xff]
  %v3452 = vld [vmem:[%s2029 + $0x1a] sm:$0xff]
  %v3453 = vld [vmem:[%s2029 + $0x22] sm:$0xff]
  %v3454 = vld [vmem:[%s2029 + $0x32] sm:$0xff]
  %v3455 = vld [vmem:[%s2029 + $0x3a] sm:$0xff]
  %v3456 = vld [vmem:[%s2029 + $0x4a] sm:$0xff]
  %v3457 = vld [vmem:[%s2029 + $0x52] sm:$0xff]
  %v3458 = vld [vmem:[%s2029 + $0x62] sm:$0xff]
  %v3459 = vld [vmem:[%s2029 + $0x6a] sm:$0xff]
  %v3460 = vld [vmem:[%s2029 + $0x7a] sm:$0xff]
  %v3461 = vld [vmem:[%s2029 + $0x82] sm:$0xff]
  %v3462 = vld [vmem:[%s2029 + $0x92] sm:$0xff]
  %v3463 = vld [vmem:[%s2029 + $0x9a] sm:$0xff]
  %v3464 = vld [vmem:[%s2029 + $0xaa] sm:$0xff]
  %v3465 = vld [vmem:[%s2029 + $0xb2] sm:$0xff]
  %v3466 = vld [vmem:[%s2029 + $0xc2] sm:$0xff]
  %v3467 = vld [vmem:[%s2029 + $0xca] sm:$0xff]
  %v3468 = vld [vmem:[%s2029 + $0xda] sm:$0xff]
  %v3469 = vld [vmem:[%s2029 + $0xe2] sm:$0xff]
  %v3470 = vld [vmem:[%s2029 + $0xf2] sm:$0xff]
  %v3471 = vld [vmem:[%s2029 + $0xfa] sm:$0xff]
  %v3472 = vld [vmem:[%s2029 + $0x10a] sm:$0xff]
  %v3473 = vld [vmem:[%s2029 + $0x112] sm:$0xff]
  %v3474 = vld [vmem:[%s2029 + $0x122] sm:$0xff]
  %v3475 = vld [vmem:[%s2029 + $0x12a] sm:$0xff]
  %v3476 = vld [vmem:[%s2029 + $0x13a] sm:$0xff]
  %v3477 = vld [vmem:[%s2029 + $0x142] sm:$0xff]
  %v3478 = vld [vmem:[%s2029 + $0x152] sm:$0xff]
  %v3479 = vld [vmem:[%s2029 + $0x15a] sm:$0xff]
  %v3480 = vld [vmem:[%s2029 + $0x16a] sm:$0xff]
  %v3481 = vld [vmem:[%s2029 + $0x172] sm:$0xff]
  %v3482 = vld [vmem:[%s2029 + $0x1b2] sm:$0xff]
  %v3483 = vld [vmem:[%s2029 + $0x1ba] sm:$0xff]
  %v3484 = vld [vmem:[%s2029 + $0x1ca] sm:$0xff]
  %v3485 = vld [vmem:[%s2029 + $0x1d2] sm:$0xff]
  %v3486 = vld [vmem:[%s2029 + $0x1e2] sm:$0xff]
  %v3487 = vld [vmem:[%s2029 + $0x1ea] sm:$0xff]
  %v3488 = vld [vmem:[%s2029 + $0x1fa] sm:$0xff]
  %v3489 = vld [vmem:[%s2029 + $0x202] sm:$0xff]
  %v3490 = vld [vmem:[%s2029 + $0x212] sm:$0xff]
  %v3491 = vld [vmem:[%s2029 + $0x21a] sm:$0xff]
  %v3492 = vld [vmem:[%s2029 + $0x22a] sm:$0xff]
  %v3493 = vld [vmem:[%s2029 + $0x232] sm:$0xff]
  %v3494 = vld [vmem:[%s2029 + $0x242] sm:$0xff]
  %v3495 = vld [vmem:[%s2029 + $0x24a] sm:$0xff]
  %v3496 = vld [vmem:[%s2029 + $0x25a] sm:$0xff]
  %v3497 = vld [vmem:[%s2029 + $0x262] sm:$0xff]
  %v3498 = vld [vmem:[%s2029 + $0x272] sm:$0xff]
  %v3499 = vld [vmem:[%s2029 + $0x27a] sm:$0xff]
  %v3500 = vld [vmem:[%s2029 + $0x28a] sm:$0xff]
  %v3501 = vld [vmem:[%s2029 + $0x292] sm:$0xff]
  %v3502 = vld [vmem:[%s2029 + $0x2a2] sm:$0xff]
  %v3503 = vld [vmem:[%s2029 + $0x2aa] sm:$0xff]
  %v3504 = vld [vmem:[%s2029 + $0x2ba] sm:$0xff]
  %v3505 = vld [vmem:[%s2029 + $0x2c2] sm:$0xff]
  %v3506 = vld [vmem:[%s2029 + $0x2d2] sm:$0xff]
  %v3507 = vld [vmem:[%s2029 + $0x2da] sm:$0xff]
  %v3508 = vld [vmem:[%s2029 + $0x2ea] sm:$0xff]
  %v3509 = vld [vmem:[%s2029 + $0x2f2] sm:$0xff]
  %v3510 = vld [vmem:[%s2029 + $0x302] sm:$0xff]
  %v3511 = vld [vmem:[%s2029 + $0x30a] sm:$0xff]
  %v3512 = vld [vmem:[%s2029 + $0x31a] sm:$0xff]
  %v3513 = vld [vmem:[%s2029 + $0x322] sm:$0xff]
  %s3514 = scalar_lea.vmem %s1, 20
  %v3515 = vld [vmem:[%s3514] sm:$0xf]
  %v3517 = vsel %vm157, %v3450, 0
  %v3520 = vsel %vm157, %v3451, 0
  %v3523 = vsel %vm157, %v3452, 0
  %v3526 = vsel %vm157, %v3453, 0
  %v3529 = vsel %vm157, %v3454, 0
  %v3532 = vsel %vm157, %v3455, 0
  %v3535 = vsel %vm157, %v3456, 0
  %v3538 = vsel %vm157, %v3457, 0
  %v3541 = vsel %vm157, %v3458, 0
  %v3544 = vsel %vm157, %v3459, 0
  %v3547 = vsel %vm157, %v3460, 0
  %v3550 = vsel %vm157, %v3461, 0
  %v3553 = vsel %vm157, %v3462, 0
  %v3556 = vsel %vm157, %v3463, 0
  %v3559 = vsel %vm157, %v3464, 0
  %v3562 = vsel %vm157, %v3465, 0
  %v3565 = vsel %vm157, %v3466, 0
  %v3568 = vsel %vm157, %v3467, 0
  %v3571 = vsel %vm157, %v3468, 0
  %v3574 = vsel %vm157, %v3469, 0
  %v3577 = vsel %vm157, %v3470, 0
  %v3580 = vsel %vm157, %v3471, 0
  %v3583 = vsel %vm157, %v3472, 0
  %v3586 = vsel %vm157, %v3473, 0
  %v3589 = vsel %vm157, %v3474, 0
  %v3592 = vsel %vm157, %v3475, 0
  %v3595 = vsel %vm157, %v3476, 0
  %v3598 = vsel %vm157, %v3477, 0
  %v3601 = vsel %vm157, %v3478, 0
  %v3604 = vsel %vm157, %v3479, 0
  %v3607 = vsel %vm157, %v3480, 0
  %v3610 = vsel %vm157, %v3481, 0
  %v3613 = vsel %vm157, %v3482, 0
  %v3616 = vsel %vm157, %v3483, 0
  %v3619 = vsel %vm157, %v3484, 0
  %v3622 = vsel %vm157, %v3485, 0
  %v3625 = vsel %vm157, %v3486, 0
  %v3628 = vsel %vm157, %v3487, 0
  %v3631 = vsel %vm157, %v3488, 0
  %v3634 = vsel %vm157, %v3489, 0
  %v3637 = vsel %vm157, %v3490, 0
  %v3640 = vsel %vm157, %v3491, 0
  %v3643 = vsel %vm157, %v3492, 0
  %v3646 = vsel %vm157, %v3493, 0
  %v3649 = vsel %vm157, %v3494, 0
  %v3652 = vsel %vm157, %v3495, 0
  %v3655 = vsel %vm157, %v3496, 0
  %v3658 = vsel %vm157, %v3497, 0
  %v3661 = vsel %vm157, %v3498, 0
  %v3664 = vsel %vm157, %v3499, 0
  %v3667 = vsel %vm157, %v3500, 0
  %v3670 = vsel %vm157, %v3501, 0
  %v3673 = vsel %vm157, %v3502, 0
  %v3676 = vsel %vm157, %v3503, 0
  %v3679 = vsel %vm157, %v3504, 0
  %v3682 = vsel %vm157, %v3505, 0
  %v3685 = vsel %vm157, %v3506, 0
  %v3688 = vsel %vm157, %v3507, 0
  %v3691 = vsel %vm157, %v3508, 0
  %v3694 = vsel %vm157, %v3509, 0
  %v3697 = vsel %vm157, %v3510, 0
  %v3700 = vsel %vm157, %v3511, 0
  %v3703 = vsel %vm157, %v3512, 0
  %v3706 = vsel %vm157, %v3513, 0
  %v3709 = vsel %vm350, %v3515, 0
  %3711 = vmatprep.subr.mxu0 0.0
  %3712 = vmatpush1.msra.mxu0 %v3709
  %3713 = vmatprep.subr.mxu0 0.0
  %3714 = vmatpush1.msra.mxu0 0.0
  %3715 = vmatprep.subr.mxu0 0.0
  %3716 = vmatpush1.msra.mxu0 0.0
  %3717 = vmatprep.subr.mxu0 0.0
  %3718 = vmatpush1.msra.mxu0 0.0
  %3719 = vmatprep.subr.mxu0 0.0
  %3720 = vmatpush1.msra.mxu0 0.0
  %3721 = vmatprep.subr.mxu0 0.0
  %3722 = vmatpush1.msra.mxu0 0.0
  %3723 = vmatprep.subr.mxu0 0.0
  %3724 = vmatpush1.msra.mxu0 0.0
  %3725 = vmatprep.subr.mxu0 0.0
  %3726 = vmatpush1.msra.mxu0 0.0
  %3727 = vmatprep.subr.mxu0 0.0
  %3728 = vmatpush1.msra.mxu0 0.0
  %3729 = vmatprep.subr.mxu0 0.0
  %3730 = vmatpush1.msra.mxu0 0.0
  %3731 = vmatprep.subr.mxu0 0.0
  %3732 = vmatpush1.msra.mxu0 0.0
  %3733 = vmatprep.subr.mxu0 0.0
  %3734 = vmatpush1.msra.mxu0 0.0
  %3735 = vmatprep.subr.mxu0 0.0
  %3736 = vmatpush1.msra.mxu0 0.0
  %3737 = vmatprep.subr.mxu0 0.0
  %3738 = vmatpush1.msra.mxu0 0.0
  %3739 = vmatprep.subr.mxu0 0.0
  %3740 = vmatpush1.msra.mxu0 0.0
  %3741 = vmatprep.subr.mxu0 0.0
  %3742 = vmatpush1.msra.mxu0 0.0
  %3743 = vmatprep.subr.mxu0 0.0
  %3744 = vmatpush1.msra.mxu0 0.0
  %3745 = vmatprep.subr.mxu0 0.0
  %3746 = vmatpush1.msra.mxu0 0.0
  %3747 = vmatprep.subr.mxu0 0.0
  %3748 = vmatpush1.msra.mxu0 0.0
  %3749 = vmatprep.subr.mxu0 0.0
  %3750 = vmatpush1.msra.mxu0 0.0
  %3751 = vmatprep.subr.mxu0 0.0
  %3752 = vmatpush1.msra.mxu0 0.0
  %3753 = vmatprep.subr.mxu0 0.0
  %3754 = vmatpush1.msra.mxu0 0.0
  %3755 = vmatprep.subr.mxu0 0.0
  %3756 = vmatpush1.msra.mxu0 0.0
  %3757 = vmatprep.subr.mxu0 0.0
  %3758 = vmatpush1.msra.mxu0 0.0
  %3759 = vmatprep.subr.mxu0 0.0
  %3760 = vmatpush1.msra.mxu0 0.0
  %3761 = vmatprep.subr.mxu0 0.0
  %3762 = vmatpush1.msra.mxu0 0.0
  %3763 = vmatprep.subr.mxu0 0.0
  %3764 = vmatpush1.msra.mxu0 0.0
  %3765 = vmatprep.subr.mxu0 0.0
  %3766 = vmatpush1.msra.mxu0 0.0
  %3767 = vmatprep.subr.mxu0 0.0
  %3768 = vmatpush1.msra.mxu0 0.0
  %3769 = vmatprep.subr.mxu0 0.0
  %3770 = vmatpush1.msra.mxu0 0.0
  %3771 = vmatprep.subr.mxu0 0.0
  %3772 = vmatpush1.msra.mxu0 0.0
  %3773 = vmatprep.subr.mxu0 0.0
  %3774 = vmatpush1.msra.mxu0 0.0
  %3775 = vmatprep.mubr.f32.mxu0 0.0
  %3776 = vmatmul.mubr.f32.gmra.mrb[0].mxu0 %v3517
  %v3777 = vpop.f32.mrb[0].mxu0
  %v3778 = vadd.f32 0.0, %v3777
  %v3779 = vpop.f32.mrb[0].mxu0
  %3780 = vmatprep.mubr.f32.mxu0 0.0
  %3781 = vmatmul.mubr.f32.gmra.mrb[0].mxu0 %v3520
  %v3782 = vpop.f32.mrb[0].mxu0
  %v3783 = vadd.f32 0.0, %v3782
  %v3784 = vpop.f32.mrb[0].mxu0
  %3785 = vmatprep.mubr.f32.mxu0 0.0
  %3786 = vmatmul.mubr.f32.gmra.mrb[0].mxu0 %v3523
  %v3787 = vpop.f32.mrb[0].mxu0
  %v3788 = vadd.f32 0.0, %v3787
  %v3789 = vpop.f32.mrb[0].mxu0
  %3790 = vmatprep.mubr.f32.mxu0 0.0
  %3791 = vmatmul.mubr.f32.gmra.mrb[0].mxu0 %v3526
  %v3792 = vpop.f32.mrb[0].mxu0
  %v3793 = vadd.f32 0.0, %v3792
  %v3794 = vpop.f32.mrb[0].mxu0
  %3795 = vmatprep.mubr.f32.mxu0 0.0
  %3796 = vmatmul.mubr.f32.gmra.mrb[0].mxu0 %v3529
  %v3797 = vpop.f32.mrb[0].mxu0
  %v3798 = vadd.f32 0.0, %v3797
  %v3799 = vpop.f32.mrb[0].mxu0
  %3800 = vmatprep.mubr.f32.mxu0 0.0
  %3801 = vmatmul.mubr.f32.gmra.mrb[0].mxu0 %v3532
  %v3802 = vpop.f32.mrb[0].mxu0
  %v3803 = vadd.f32 0.0, %v3802
  %v3804 = vpop.f32.mrb[0].mxu0
  %3805 = vmatprep.mubr.f32.mxu0 0.0
  %3806 = vmatmul.mubr.f32.gmra.mrb[0].mxu0 %v3535
  %v3807 = vpop.f32.mrb[0].mxu0
  %v3808 = vadd.f32 0.0, %v3807
  %v3809 = vpop.f32.mrb[0].mxu0
  %3810 = vmatprep.mubr.f32.mxu0 0.0
  %3811 = vmatmul.mubr.f32.gmra.mrb[0].mxu0 %v3538
  %v3812 = vpop.f32.mrb[0].mxu0
  %v3813 = vadd.f32 0.0, %v3812
  %v3814 = vpop.f32.mrb[0].mxu0
  %3815 = vmatprep.mubr.f32.mxu0 0.0
  %3816 = vmatmul.mubr.f32.gmra.mrb[0].mxu0 %v3541
  %v3817 = vpop.f32.mrb[0].mxu0
  %v3818 = vadd.f32 0.0, %v3817
  %v3819 = vpop.f32.mrb[0].mxu0
  %3820 = vmatprep.mubr.f32.mxu0 0.0
  %3821 = vmatmul.mubr.f32.gmra.mrb[0].mxu0 %v3544
  %v3822 = vpop.f32.mrb[0].mxu0
  %v3823 = vadd.f32 0.0, %v3822
  %v3824 = vpop.f32.mrb[0].mxu0
  %3825 = vmatprep.mubr.f32.mxu0 0.0
  %3826 = vmatmul.mubr.f32.gmra.mrb[0].mxu0 %v3547
  %v3827 = vpop.f32.mrb[0].mxu0
  %v3828 = vadd.f32 0.0, %v3827
  %v3829 = vpop.f32.mrb[0].mxu0
  %3830 = vmatprep.mubr.f32.mxu0 0.0
  %3831 = vmatmul.mubr.f32.gmra.mrb[0].mxu0 %v3550
  %v3832 = vpop.f32.mrb[0].mxu0
  %v3833 = vadd.f32 0.0, %v3832
  %v3834 = vpop.f32.mrb[0].mxu0
  %3835 = vmatprep.mubr.f32.mxu0 0.0
  %3836 = vmatmul.mubr.f32.gmra.mrb[0].mxu0 %v3553
  %v3837 = vpop.f32.mrb[0].mxu0
  %v3838 = vadd.f32 0.0, %v3837
  %v3839 = vpop.f32.mrb[0].mxu0
  %3840 = vmatprep.mubr.f32.mxu0 0.0
  %3841 = vmatmul.mubr.f32.gmra.mrb[0].mxu0 %v3556
  %v3842 = vpop.f32.mrb[0].mxu0
  %v3843 = vadd.f32 0.0, %v3842
  %v3844 = vpop.f32.mrb[0].mxu0
  %3845 = vmatprep.mubr.f32.mxu0 0.0
  %3846 = vmatmul.mubr.f32.gmra.mrb[0].mxu0 %v3559
  %v3847 = vpop.f32.mrb[0].mxu0
  %v3848 = vadd.f32 0.0, %v3847
  %v3849 = vpop.f32.mrb[0].mxu0
  %3850 = vmatprep.mubr.f32.mxu0 0.0
  %3851 = vmatmul.mubr.f32.gmra.mrb[0].mxu0 %v3562
  %v3852 = vpop.f32.mrb[0].mxu0
  %v3853 = vadd.f32 0.0, %v3852
  %v3854 = vpop.f32.mrb[0].mxu0
  %3855 = vmatprep.mubr.f32.mxu0 0.0
  %3856 = vmatmul.mubr.f32.gmra.mrb[0].mxu0 %v3565
  %v3857 = vpop.f32.mrb[0].mxu0
  %v3858 = vadd.f32 0.0, %v3857
  %v3859 = vpop.f32.mrb[0].mxu0
  %3860 = vmatprep.mubr.f32.mxu0 0.0
  %3861 = vmatmul.mubr.f32.gmra.mrb[0].mxu0 %v3568
  %v3862 = vpop.f32.mrb[0].mxu0
  %v3863 = vadd.f32 0.0, %v3862
  %v3864 = vpop.f32.mrb[0].mxu0
  %3865 = vmatprep.mubr.f32.mxu0 0.0
  %3866 = vmatmul.mubr.f32.gmra.mrb[0].mxu0 %v3571
  %v3867 = vpop.f32.mrb[0].mxu0
  %v3868 = vadd.f32 0.0, %v3867
  %v3869 = vpop.f32.mrb[0].mxu0
  %3870 = vmatprep.mubr.f32.mxu0 0.0
  %3871 = vmatmul.mubr.f32.gmra.mrb[0].mxu0 %v3574
  %v3872 = vpop.f32.mrb[0].mxu0
  %v3873 = vadd.f32 0.0, %v3872
  %v3874 = vpop.f32.mrb[0].mxu0
  %3875 = vmatprep.mubr.f32.mxu0 0.0
  %3876 = vmatmul.mubr.f32.gmra.mrb[0].mxu0 %v3577
  %v3877 = vpop.f32.mrb[0].mxu0
  %v3878 = vadd.f32 0.0, %v3877
  %v3879 = vpop.f32.mrb[0].mxu0
  %3880 = vmatprep.mubr.f32.mxu0 0.0
  %3881 = vmatmul.mubr.f32.gmra.mrb[0].mxu0 %v3580
  %v3882 = vpop.f32.mrb[0].mxu0
  %v3883 = vadd.f32 0.0, %v3882
  %v3884 = vpop.f32.mrb[0].mxu0
  %3885 = vmatprep.mubr.f32.mxu0 0.0
  %3886 = vmatmul.mubr.f32.gmra.mrb[0].mxu0 %v3583
  %v3887 = vpop.f32.mrb[0].mxu0
  %v3888 = vadd.f32 0.0, %v3887
  %v3889 = vpop.f32.mrb[0].mxu0
  %3890 = vmatprep.mubr.f32.mxu0 0.0
  %3891 = vmatmul.mubr.f32.gmra.mrb[0].mxu0 %v3586
  %v3892 = vpop.f32.mrb[0].mxu0
  %v3893 = vadd.f32 0.0, %v3892
  %v3894 = vpop.f32.mrb[0].mxu0
  %3895 = vmatprep.mubr.f32.mxu0 0.0
  %3896 = vmatmul.mubr.f32.gmra.mrb[0].mxu0 %v3589
  %v3897 = vpop.f32.mrb[0].mxu0
  %v3898 = vadd.f32 0.0, %v3897
  %v3899 = vpop.f32.mrb[0].mxu0
  %3900 = vmatprep.mubr.f32.mxu0 0.0
  %3901 = vmatmul.mubr.f32.gmra.mrb[0].mxu0 %v3592
  %v3902 = vpop.f32.mrb[0].mxu0
  %v3903 = vadd.f32 0.0, %v3902
  %v3904 = vpop.f32.mrb[0].mxu0
  %3905 = vmatprep.mubr.f32.mxu0 0.0
  %3906 = vmatmul.mubr.f32.gmra.mrb[0].mxu0 %v3595
  %v3907 = vpop.f32.mrb[0].mxu0
  %v3908 = vadd.f32 0.0, %v3907
  %v3909 = vpop.f32.mrb[0].mxu0
  %3910 = vmatprep.mubr.f32.mxu0 0.0
  %3911 = vmatmul.mubr.f32.gmra.mrb[0].mxu0 %v3598
  %v3912 = vpop.f32.mrb[0].mxu0
  %v3913 = vadd.f32 0.0, %v3912
  %v3914 = vpop.f32.mrb[0].mxu0
  %3915 = vmatprep.mubr.f32.mxu0 0.0
  %3916 = vmatmul.mubr.f32.gmra.mrb[0].mxu0 %v3601
  %v3917 = vpop.f32.mrb[0].mxu0
  %v3918 = vadd.f32 0.0, %v3917
  %v3919 = vpop.f32.mrb[0].mxu0
  %3920 = vmatprep.mubr.f32.mxu0 0.0
  %3921 = vmatmul.mubr.f32.gmra.mrb[0].mxu0 %v3604
  %v3922 = vpop.f32.mrb[0].mxu0
  %v3923 = vadd.f32 0.0, %v3922
  %v3924 = vpop.f32.mrb[0].mxu0
  %3925 = vmatprep.mubr.f32.mxu0 0.0
  %3926 = vmatmul.mubr.f32.gmra.mrb[0].mxu0 %v3607
  %v3927 = vpop.f32.mrb[0].mxu0
  %v3928 = vadd.f32 0.0, %v3927
  %v3929 = vpop.f32.mrb[0].mxu0
  %3930 = vmatprep.mubr.f32.mxu0 0.0
  %3931 = vmatmul.mubr.f32.gmra.mrb[0].mxu0 %v3610
  %v3932 = vpop.f32.mrb[0].mxu0
  %v3933 = vadd.f32 0.0, %v3932
  %v3934 = vpop.f32.mrb[0].mxu0
  %3935 = vmatprep.mubr.f32.mxu0 0.0
  %3936 = vmatmul.mubr.f32.gmra.mrb[0].mxu0 %v3613
  %v3937 = vpop.f32.mrb[0].mxu0
  %v3938 = vadd.f32 0.0, %v3937
  %v3939 = vpop.f32.mrb[0].mxu0
  %3940 = vmatprep.mubr.f32.mxu0 0.0
  %3941 = vmatmul.mubr.f32.gmra.mrb[0].mxu0 %v3616
  %v3942 = vpop.f32.mrb[0].mxu0
  %v3943 = vadd.f32 0.0, %v3942
  %v3944 = vpop.f32.mrb[0].mxu0
  %3945 = vmatprep.mubr.f32.mxu0 0.0
  %3946 = vmatmul.mubr.f32.gmra.mrb[0].mxu0 %v3619
  %v3947 = vpop.f32.mrb[0].mxu0
  %v3948 = vadd.f32 0.0, %v3947
  %v3949 = vpop.f32.mrb[0].mxu0
  %3950 = vmatprep.mubr.f32.mxu0 0.0
  %3951 = vmatmul.mubr.f32.gmra.mrb[0].mxu0 %v3622
  %v3952 = vpop.f32.mrb[0].mxu0
  %v3953 = vadd.f32 0.0, %v3952
  %v3954 = vpop.f32.mrb[0].mxu0
  %3955 = vmatprep.mubr.f32.mxu0 0.0
  %3956 = vmatmul.mubr.f32.gmra.mrb[0].mxu0 %v3625
  %v3957 = vpop.f32.mrb[0].mxu0
  %v3958 = vadd.f32 0.0, %v3957
  %v3959 = vpop.f32.mrb[0].mxu0
  %3960 = vmatprep.mubr.f32.mxu0 0.0
  %3961 = vmatmul.mubr.f32.gmra.mrb[0].mxu0 %v3628
  %v3962 = vpop.f32.mrb[0].mxu0
  %v3963 = vadd.f32 0.0, %v3962
  %v3964 = vpop.f32.mrb[0].mxu0
  %3965 = vmatprep.mubr.f32.mxu0 0.0
  %3966 = vmatmul.mubr.f32.gmra.mrb[0].mxu0 %v3631
  %v3967 = vpop.f32.mrb[0].mxu0
  %v3968 = vadd.f32 0.0, %v3967
  %v3969 = vpop.f32.mrb[0].mxu0
  %3970 = vmatprep.mubr.f32.mxu0 0.0
  %3971 = vmatmul.mubr.f32.gmra.mrb[0].mxu0 %v3634
  %v3972 = vpop.f32.mrb[0].mxu0
  %v3973 = vadd.f32 0.0, %v3972
  %v3974 = vpop.f32.mrb[0].mxu0
  %3975 = vmatprep.mubr.f32.mxu0 0.0
  %3976 = vmatmul.mubr.f32.gmra.mrb[0].mxu0 %v3637
  %v3977 = vpop.f32.mrb[0].mxu0
  %v3978 = vadd.f32 0.0, %v3977
  %v3979 = vpop.f32.mrb[0].mxu0
  %3980 = vmatprep.mubr.f32.mxu0 0.0
  %3981 = vmatmul.mubr.f32.gmra.mrb[0].mxu0 %v3640
  %v3982 = vpop.f32.mrb[0].mxu0
  %v3983 = vadd.f32 0.0, %v3982
  %v3984 = vpop.f32.mrb[0].mxu0
  %3985 = vmatprep.mubr.f32.mxu0 0.0
  %3986 = vmatmul.mubr.f32.gmra.mrb[0].mxu0 %v3643
  %v3987 = vpop.f32.mrb[0].mxu0
  %v3988 = vadd.f32 0.0, %v3987
  %v3989 = vpop.f32.mrb[0].mxu0
  %3990 = vmatprep.mubr.f32.mxu0 0.0
  %3991 = vmatmul.mubr.f32.gmra.mrb[0].mxu0 %v3646
  %v3992 = vpop.f32.mrb[0].mxu0
  %v3993 = vadd.f32 0.0, %v3992
  %v3994 = vpop.f32.mrb[0].mxu0
  %3995 = vmatprep.mubr.f32.mxu0 0.0
  %3996 = vmatmul.mubr.f32.gmra.mrb[0].mxu0 %v3649
  %v3997 = vpop.f32.mrb[0].mxu0
  %v3998 = vadd.f32 0.0, %v3997
  %v3999 = vpop.f32.mrb[0].mxu0
  %4000 = vmatprep.mubr.f32.mxu0 0.0
  %4001 = vmatmul.mubr.f32.gmra.mrb[0].mxu0 %v3652
  %v4002 = vpop.f32.mrb[0].mxu0
  %v4003 = vadd.f32 0.0, %v4002
  %v4004 = vpop.f32.mrb[0].mxu0
  %4005 = vmatprep.mubr.f32.mxu0 0.0
  %4006 = vmatmul.mubr.f32.gmra.mrb[0].mxu0 %v3655
  %v4007 = vpop.f32.mrb[0].mxu0
  %v4008 = vadd.f32 0.0, %v4007
  %v4009 = vpop.f32.mrb[0].mxu0
  %4010 = vmatprep.mubr.f32.mxu0 0.0
  %4011 = vmatmul.mubr.f32.gmra.mrb[0].mxu0 %v3658
  %v4012 = vpop.f32.mrb[0].mxu0
  %v4013 = vadd.f32 0.0, %v4012
  %v4014 = vpop.f32.mrb[0].mxu0
  %4015 = vmatprep.mubr.f32.mxu0 0.0
  %4016 = vmatmul.mubr.f32.gmra.mrb[0].mxu0 %v3661
  %v4017 = vpop.f32.mrb[0].mxu0
  %v4018 = vadd.f32 0.0, %v4017
  %v4019 = vpop.f32.mrb[0].mxu0
  %4020 = vmatprep.mubr.f32.mxu0 0.0
  %4021 = vmatmul.mubr.f32.gmra.mrb[0].mxu0 %v3664
  %v4022 = vpop.f32.mrb[0].mxu0
  %v4023 = vadd.f32 0.0, %v4022
  %v4024 = vpop.f32.mrb[0].mxu0
  %4025 = vmatprep.mubr.f32.mxu0 0.0
  %4026 = vmatmul.mubr.f32.gmra.mrb[0].mxu0 %v3667
  %v4027 = vpop.f32.mrb[0].mxu0
  %v4028 = vadd.f32 0.0, %v4027
  %v4029 = vpop.f32.mrb[0].mxu0
  %4030 = vmatprep.mubr.f32.mxu0 0.0
  %4031 = vmatmul.mubr.f32.gmra.mrb[0].mxu0 %v3670
  %v4032 = vpop.f32.mrb[0].mxu0
  %v4033 = vadd.f32 0.0, %v4032
  %v4034 = vpop.f32.mrb[0].mxu0
  %4035 = vmatprep.mubr.f32.mxu0 0.0
  %4036 = vmatmul.mubr.f32.gmra.mrb[0].mxu0 %v3673
  %v4037 = vpop.f32.mrb[0].mxu0
  %v4038 = vadd.f32 0.0, %v4037
  %v4039 = vpop.f32.mrb[0].mxu0
  %4040 = vmatprep.mubr.f32.mxu0 0.0
  %4041 = vmatmul.mubr.f32.gmra.mrb[0].mxu0 %v3676
  %v4042 = vpop.f32.mrb[0].mxu0
  %v4043 = vadd.f32 0.0, %v4042
  %v4044 = vpop.f32.mrb[0].mxu0
  %4045 = vmatprep.mubr.f32.mxu0 0.0
  %4046 = vmatmul.mubr.f32.gmra.mrb[0].mxu0 %v3679
  %v4047 = vpop.f32.mrb[0].mxu0
  %v4048 = vadd.f32 0.0, %v4047
  %v4049 = vpop.f32.mrb[0].mxu0
  %4050 = vmatprep.mubr.f32.mxu0 0.0
  %4051 = vmatmul.mubr.f32.gmra.mrb[0].mxu0 %v3682
  %v4052 = vpop.f32.mrb[0].mxu0
  %v4053 = vadd.f32 0.0, %v4052
  %v4054 = vpop.f32.mrb[0].mxu0
  %4055 = vmatprep.mubr.f32.mxu0 0.0
  %4056 = vmatmul.mubr.f32.gmra.mrb[0].mxu0 %v3685
  %v4057 = vpop.f32.mrb[0].mxu0
  %v4058 = vadd.f32 0.0, %v4057
  %v4059 = vpop.f32.mrb[0].mxu0
  %4060 = vmatprep.mubr.f32.mxu0 0.0
  %4061 = vmatmul.mubr.f32.gmra.mrb[0].mxu0 %v3688
  %v4062 = vpop.f32.mrb[0].mxu0
  %v4063 = vadd.f32 0.0, %v4062
  %v4064 = vpop.f32.mrb[0].mxu0
  %4065 = vmatprep.mubr.f32.mxu0 0.0
  %4066 = vmatmul.mubr.f32.gmra.mrb[0].mxu0 %v3691
  %v4067 = vpop.f32.mrb[0].mxu0
  %v4068 = vadd.f32 0.0, %v4067
  %v4069 = vpop.f32.mrb[0].mxu0
  %4070 = vmatprep.mubr.f32.mxu0 0.0
  %4071 = vmatmul.mubr.f32.gmra.mrb[0].mxu0 %v3694
  %v4072 = vpop.f32.mrb[0].mxu0
  %v4073 = vadd.f32 0.0, %v4072
  %v4074 = vpop.f32.mrb[0].mxu0
  %4075 = vmatprep.mubr.f32.mxu0 0.0
  %4076 = vmatmul.mubr.f32.gmra.mrb[0].mxu0 %v3697
  %v4077 = vpop.f32.mrb[0].mxu0
  %v4078 = vadd.f32 0.0, %v4077
  %v4079 = vpop.f32.mrb[0].mxu0
  %4080 = vmatprep.mubr.f32.mxu0 0.0
  %4081 = vmatmul.mubr.f32.gmra.mrb[0].mxu0 %v3700
  %v4082 = vpop.f32.mrb[0].mxu0
  %v4083 = vadd.f32 0.0, %v4082
  %v4084 = vpop.f32.mrb[0].mxu0
  %4085 = vmatprep.mubr.f32.mxu0 0.0
  %4086 = vmatmul.mubr.f32.gmra.mrb[0].mxu0 %v3703
  %v4087 = vpop.f32.mrb[0].mxu0
  %v4088 = vadd.f32 0.0, %v4087
  %v4089 = vpop.f32.mrb[0].mxu0
  %4090 = vmatprep.mubr.f32.mxu0 0.0
  %4091 = vmatmul.mubr.f32.gmra.mrb[0].mxu0 %v3706
  %v4092 = vpop.f32.mrb[0].mxu0
  %v4093 = vadd.f32 0.0, %v4092
  %v4094 = vpop.f32.mrb[0].mxu0
  %4095 = vdwg.mxu0
  %v4096 = vadd.f32 %v3386, %v3778
  %v4097 = vadd.f32 %v3387, %v3783
  %v4098 = vadd.f32 %v3388, %v3788
  %v4099 = vadd.f32 %v3389, %v3793
  %v4100 = vadd.f32 %v3390, %v3798
  %v4101 = vadd.f32 %v3391, %v3803
  %v4102 = vadd.f32 %v3392, %v3808
  %v4103 = vadd.f32 %v3393, %v3813
  %v4104 = vadd.f32 %v3394, %v3818
  %v4105 = vadd.f32 %v3395, %v3823
  %v4106 = vadd.f32 %v3396, %v3828
  %v4107 = vadd.f32 %v3397, %v3833
  %v4108 = vadd.f32 %v3398, %v3838
  %v4109 = vadd.f32 %v3399, %v3843
  %v4110 = vadd.f32 %v3400, %v3848
  %v4111 = vadd.f32 %v3401, %v3853
  %v4112 = vadd.f32 %v3402, %v3858
  %v4113 = vadd.f32 %v3403, %v3863
  %v4114 = vadd.f32 %v3404, %v3868
  %v4115 = vadd.f32 %v3405, %v3873
  %v4116 = vadd.f32 %v3406, %v3878
  %v4117 = vadd.f32 %v3407, %v3883
  %v4118 = vadd.f32 %v3408, %v3888
  %v4119 = vadd.f32 %v3409, %v3893
  %v4120 = vadd.f32 %v3410, %v3898
  %v4121 = vadd.f32 %v3411, %v3903
  %v4122 = vadd.f32 %v3412, %v3908
  %v4123 = vadd.f32 %v3413, %v3913
  %v4124 = vadd.f32 %v3414, %v3918
  %v4125 = vadd.f32 %v3415, %v3923
  %v4126 = vadd.f32 %v3416, %v3928
  %v4127 = vadd.f32 %v3417, %v3933
  %v4128 = vadd.f32 %v3418, %v3938
  %v4129 = vadd.f32 %v3419, %v3943
  %v4130 = vadd.f32 %v3420, %v3948
  %v4131 = vadd.f32 %v3421, %v3953
  %v4132 = vadd.f32 %v3422, %v3958
  %v4133 = vadd.f32 %v3423, %v3963
  %v4134 = vadd.f32 %v3424, %v3968
  %v4135 = vadd.f32 %v3425, %v3973
  %v4136 = vadd.f32 %v3426, %v3978
  %v4137 = vadd.f32 %v3427, %v3983
  %v4138 = vadd.f32 %v3428, %v3988
  %v4139 = vadd.f32 %v3429, %v3993
  %v4140 = vadd.f32 %v3430, %v3998
  %v4141 = vadd.f32 %v3431, %v4003
  %v4142 = vadd.f32 %v3432, %v4008
  %v4143 = vadd.f32 %v3433, %v4013
  %v4144 = vadd.f32 %v3434, %v4018
  %v4145 = vadd.f32 %v3435, %v4023
  %v4146 = vadd.f32 %v3436, %v4028
  %v4147 = vadd.f32 %v3437, %v4033
  %v4148 = vadd.f32 %v3438, %v4038
  %v4149 = vadd.f32 %v3439, %v4043
  %v4150 = vadd.f32 %v3440, %v4048
  %v4151 = vadd.f32 %v3441, %v4053
  %v4152 = vadd.f32 %v3442, %v4058
  %v4153 = vadd.f32 %v3443, %v4063
  %v4154 = vadd.f32 %v3444, %v4068
  %v4155 = vadd.f32 %v3445, %v4073
  %v4156 = vadd.f32 %v3446, %v4078
  %v4157 = vadd.f32 %v3447, %v4083
  %v4158 = vadd.f32 %v3448, %v4088
  %v4159 = vadd.f32 %v3449, %v4093
  %s4160 = scalar_lea.vmem %s0, 48
  %v4161 = vld [vmem:[%s4160] sm:$0xff]
  %v4162 = vld [vmem:[%s4160 + $0x8] sm:$0xff]
  %v4163 = vld [vmem:[%s4160 + $0x18] sm:$0xff]
  %v4164 = vld [vmem:[%s4160 + $0x20] sm:$0xff]
  %v4165 = vld [vmem:[%s4160 + $0x30] sm:$0xff]
  %v4166 = vld [vmem:[%s4160 + $0x38] sm:$0xff]
  %v4167 = vld [vmem:[%s4160 + $0x48] sm:$0xff]
  %v4168 = vld [vmem:[%s4160 + $0x50] sm:$0xff]
  %v4169 = vld [vmem:[%s4160 + $0x60] sm:$0xff]
  %v4170 = vld [vmem:[%s4160 + $0x68] sm:$0xff]
  %v4171 = vld [vmem:[%s4160 + $0x78] sm:$0xff]
  %v4172 = vld [vmem:[%s4160 + $0x80] sm:$0xff]
  %v4173 = vld [vmem:[%s4160 + $0x90] sm:$0xff]
  %v4174 = vld [vmem:[%s4160 + $0x98] sm:$0xff]
  %v4175 = vld [vmem:[%s4160 + $0xa8] sm:$0xff]
  %v4176 = vld [vmem:[%s4160 + $0xb0] sm:$0xff]
  %v4177 = vld [vmem:[%s4160 + $0xc0] sm:$0xff]
  %v4178 = vld [vmem:[%s4160 + $0xc8] sm:$0xff]
  %v4179 = vld [vmem:[%s4160 + $0xd8] sm:$0xff]
  %v4180 = vld [vmem:[%s4160 + $0xe0] sm:$0xff]
  %v4181 = vld [vmem:[%s4160 + $0xf0] sm:$0xff]
  %v4182 = vld [vmem:[%s4160 + $0xf8] sm:$0xff]
  %v4183 = vld [vmem:[%s4160 + $0x108] sm:$0xff]
  %v4184 = vld [vmem:[%s4160 + $0x110] sm:$0xff]
  %v4185 = vld [vmem:[%s4160 + $0x120] sm:$0xff]
  %v4186 = vld [vmem:[%s4160 + $0x128] sm:$0xff]
  %v4187 = vld [vmem:[%s4160 + $0x138] sm:$0xff]
  %v4188 = vld [vmem:[%s4160 + $0x140] sm:$0xff]
  %v4189 = vld [vmem:[%s4160 + $0x150] sm:$0xff]
  %v4190 = vld [vmem:[%s4160 + $0x158] sm:$0xff]
  %v4191 = vld [vmem:[%s4160 + $0x168] sm:$0xff]
  %v4192 = vld [vmem:[%s4160 + $0x170] sm:$0xff]
  %v4193 = vld [vmem:[%s4160 + $0x1b0] sm:$0xff]
  %v4194 = vld [vmem:[%s4160 + $0x1b8] sm:$0xff]
  %v4195 = vld [vmem:[%s4160 + $0x1c8] sm:$0xff]
  %v4196 = vld [vmem:[%s4160 + $0x1d0] sm:$0xff]
  %v4197 = vld [vmem:[%s4160 + $0x1e0] sm:$0xff]
  %v4198 = vld [vmem:[%s4160 + $0x1e8] sm:$0xff]
  %v4199 = vld [vmem:[%s4160 + $0x1f8] sm:$0xff]
  %v4200 = vld [vmem:[%s4160 + $0x200] sm:$0xff]
  %v4201 = vld [vmem:[%s4160 + $0x210] sm:$0xff]
  %v4202 = vld [vmem:[%s4160 + $0x218] sm:$0xff]
  %v4203 = vld [vmem:[%s4160 + $0x228] sm:$0xff]
  %v4204 = vld [vmem:[%s4160 + $0x230] sm:$0xff]
  %v4205 = vld [vmem:[%s4160 + $0x240] sm:$0xff]
  %v4206 = vld [vmem:[%s4160 + $0x248] sm:$0xff]
  %v4207 = vld [vmem:[%s4160 + $0x258] sm:$0xff]
  %v4208 = vld [vmem:[%s4160 + $0x260] sm:$0xff]
  %v4209 = vld [vmem:[%s4160 + $0x270] sm:$0xff]
  %v4210 = vld [vmem:[%s4160 + $0x278] sm:$0xff]
  %v4211 = vld [vmem:[%s4160 + $0x288] sm:$0xff]
  %v4212 = vld [vmem:[%s4160 + $0x290] sm:$0xff]
  %v4213 = vld [vmem:[%s4160 + $0x2a0] sm:$0xff]
  %v4214 = vld [vmem:[%s4160 + $0x2a8] sm:$0xff]
  %v4215 = vld [vmem:[%s4160 + $0x2b8] sm:$0xff]
  %v4216 = vld [vmem:[%s4160 + $0x2c0] sm:$0xff]
  %v4217 = vld [vmem:[%s4160 + $0x2d0] sm:$0xff]
  %v4218 = vld [vmem:[%s4160 + $0x2d8] sm:$0xff]
  %v4219 = vld [vmem:[%s4160 + $0x2e8] sm:$0xff]
  %v4220 = vld [vmem:[%s4160 + $0x2f0] sm:$0xff]
  %v4221 = vld [vmem:[%s4160 + $0x300] sm:$0xff]
  %v4222 = vld [vmem:[%s4160 + $0x308] sm:$0xff]
  %v4223 = vld [vmem:[%s4160 + $0x318] sm:$0xff]
  %v4224 = vld [vmem:[%s4160 + $0x320] sm:$0xff]
  %s4225 = scalar_lea.vmem %s1, 24
  %v4226 = vld [vmem:[%s4225] sm:$0xf]
  %v4228 = vsel %vm157, %v4161, 0
  %v4231 = vsel %vm157, %v4162, 0
  %v4234 = vsel %vm157, %v4163, 0
  %v4237 = vsel %vm157, %v4164, 0
  %v4240 = vsel %vm157, %v4165, 0
  %v4243 = vsel %vm157, %v4166, 0
  %v4246 = vsel %vm157, %v4167, 0
  %v4249 = vsel %vm157, %v4168, 0
  %v4252 = vsel %vm157, %v4169, 0
  %v4255 = vsel %vm157, %v4170, 0
  %v4258 = vsel %vm157, %v4171, 0
  %v4261 = vsel %vm157, %v4172, 0
  %v4264 = vsel %vm157, %v4173, 0
  %v4267 = vsel %vm157, %v4174, 0
  %v4270 = vsel %vm157, %v4175, 0
  %v4273 = vsel %vm157, %v4176, 0
  %v4276 = vsel %vm157, %v4177, 0
  %v4279 = vsel %vm157, %v4178, 0
  %v4282 = vsel %vm157, %v4179, 0
  %v4285 = vsel %vm157, %v4180, 0
  %v4288 = vsel %vm157, %v4181, 0
  %v4291 = vsel %vm157, %v4182, 0
  %v4294 = vsel %vm157, %v4183, 0
  %v4297 = vsel %vm157, %v4184, 0
  %v4300 = vsel %vm157, %v4185, 0
  %v4303 = vsel %vm157, %v4186, 0
  %v4306 = vsel %vm157, %v4187, 0
  %v4309 = vsel %vm157, %v4188, 0
  %v4312 = vsel %vm157, %v4189, 0
  %v4315 = vsel %vm157, %v4190, 0
  %v4318 = vsel %vm157, %v4191, 0
  %v4321 = vsel %vm157, %v4192, 0
  %v4324 = vsel %vm157, %v4193, 0
  %v4327 = vsel %vm157, %v4194, 0
  %v4330 = vsel %vm157, %v4195, 0
  %v4333 = vsel %vm157, %v4196, 0
  %v4336 = vsel %vm157, %v4197, 0
  %v4339 = vsel %vm157, %v4198, 0
  %v4342 = vsel %vm157, %v4199, 0
  %v4345 = vsel %vm157, %v4200, 0
  %v4348 = vsel %vm157, %v4201, 0
  %v4351 = vsel %vm157, %v4202, 0
  %v4354 = vsel %vm157, %v4203, 0
  %v4357 = vsel %vm157, %v4204, 0
  %v4360 = vsel %vm157, %v4205, 0
  %v4363 = vsel %vm157, %v4206, 0
  %v4366 = vsel %vm157, %v4207, 0
  %v4369 = vsel %vm157, %v4208, 0
  %v4372 = vsel %vm157, %v4209, 0
  %v4375 = vsel %vm157, %v4210, 0
  %v4378 = vsel %vm157, %v4211, 0
  %v4381 = vsel %vm157, %v4212, 0
  %v4384 = vsel %vm157, %v4213, 0
  %v4387 = vsel %vm157, %v4214, 0
  %v4390 = vsel %vm157, %v4215, 0
  %v4393 = vsel %vm157, %v4216, 0
  %v4396 = vsel %vm157, %v4217, 0
  %v4399 = vsel %vm157, %v4218, 0
  %v4402 = vsel %vm157, %v4219, 0
  %v4405 = vsel %vm157, %v4220, 0
  %v4408 = vsel %vm157, %v4221, 0
  %v4411 = vsel %vm157, %v4222, 0
  %v4414 = vsel %vm157, %v4223, 0
  %v4417 = vsel %vm157, %v4224, 0
  %v4420 = vsel %vm350, %v4226, 0
  %4422 = vmatprep.subr.mxu0 0.0
  %4423 = vmatpush1.msra.mxu0 %v4420
  %4424 = vmatprep.subr.mxu0 0.0
  %4425 = vmatpush1.msra.mxu0 0.0
  %4426 = vmatprep.subr.mxu0 0.0
  %4427 = vmatpush1.msra.mxu0 0.0
  %4428 = vmatprep.subr.mxu0 0.0
  %4429 = vmatpush1.msra.mxu0 0.0
  %4430 = vmatprep.subr.mxu0 0.0
  %4431 = vmatpush1.msra.mxu0 0.0
  %4432 = vmatprep.subr.mxu0 0.0
  %4433 = vmatpush1.msra.mxu0 0.0
  %4434 = vmatprep.subr.mxu0 0.0
  %4435 = vmatpush1.msra.mxu0 0.0
  %4436 = vmatprep.subr.mxu0 0.0
  %4437 = vmatpush1.msra.mxu0 0.0
  %4438 = vmatprep.subr.mxu0 0.0
  %4439 = vmatpush1.msra.mxu0 0.0
  %4440 = vmatprep.subr.mxu0 0.0
  %4441 = vmatpush1.msra.mxu0 0.0
  %4442 = vmatprep.subr.mxu0 0.0
  %4443 = vmatpush1.msra.mxu0 0.0
  %4444 = vmatprep.subr.mxu0 0.0
  %4445 = vmatpush1.msra.mxu0 0.0
  %4446 = vmatprep.subr.mxu0 0.0
  %4447 = vmatpush1.msra.mxu0 0.0
  %4448 = vmatprep.subr.mxu0 0.0
  %4449 = vmatpush1.msra.mxu0 0.0
  %4450 = vmatprep.subr.mxu0 0.0
  %4451 = vmatpush1.msra.mxu0 0.0
  %4452 = vmatprep.subr.mxu0 0.0
  %4453 = vmatpush1.msra.mxu0 0.0
  %4454 = vmatprep.subr.mxu0 0.0
  %4455 = vmatpush1.msra.mxu0 0.0
  %4456 = vmatprep.subr.mxu0 0.0
  %4457 = vmatpush1.msra.mxu0 0.0
  %4458 = vmatprep.subr.mxu0 0.0
  %4459 = vmatpush1.msra.mxu0 0.0
  %4460 = vmatprep.subr.mxu0 0.0
  %4461 = vmatpush1.msra.mxu0 0.0
  %4462 = vmatprep.subr.mxu0 0.0
  %4463 = vmatpush1.msra.mxu0 0.0
  %4464 = vmatprep.subr.mxu0 0.0
  %4465 = vmatpush1.msra.mxu0 0.0
  %4466 = vmatprep.subr.mxu0 0.0
  %4467 = vmatpush1.msra.mxu0 0.0
  %4468 = vmatprep.subr.mxu0 0.0
  %4469 = vmatpush1.msra.mxu0 0.0
  %4470 = vmatprep.subr.mxu0 0.0
  %4471 = vmatpush1.msra.mxu0 0.0
  %4472 = vmatprep.subr.mxu0 0.0
  %4473 = vmatpush1.msra.mxu0 0.0
  %4474 = vmatprep.subr.mxu0 0.0
  %4475 = vmatpush1.msra.mxu0 0.0
  %4476 = vmatprep.subr.mxu0 0.0
  %4477 = vmatpush1.msra.mxu0 0.0
  %4478 = vmatprep.subr.mxu0 0.0
  %4479 = vmatpush1.msra.mxu0 0.0
  %4480 = vmatprep.subr.mxu0 0.0
  %4481 = vmatpush1.msra.mxu0 0.0
  %4482 = vmatprep.subr.mxu0 0.0
  %4483 = vmatpush1.msra.mxu0 0.0
  %4484 = vmatprep.subr.mxu0 0.0
  %4485 = vmatpush1.msra.mxu0 0.0
  %4486 = vmatprep.mubr.f32.mxu0 0.0
  %4487 = vmatmul.mubr.f32.gmra.mrb[0].mxu0 %v4228
  %v4488 = vpop.f32.mrb[0].mxu0
  %v4489 = vadd.f32 0.0, %v4488
  %v4490 = vpop.f32.mrb[0].mxu0
  %4491 = vmatprep.mubr.f32.mxu0 0.0
  %4492 = vmatmul.mubr.f32.gmra.mrb[0].mxu0 %v4231
  %v4493 = vpop.f32.mrb[0].mxu0
  %v4494 = vadd.f32 0.0, %v4493
  %v4495 = vpop.f32.mrb[0].mxu0
  %4496 = vmatprep.mubr.f32.mxu0 0.0
  %4497 = vmatmul.mubr.f32.gmra.mrb[0].mxu0 %v4234
  %v4498 = vpop.f32.mrb[0].mxu0
  %v4499 = vadd.f32 0.0, %v4498
  %v4500 = vpop.f32.mrb[0].mxu0
  %4501 = vmatprep.mubr.f32.mxu0 0.0
  %4502 = vmatmul.mubr.f32.gmra.mrb[0].mxu0 %v4237
  %v4503 = vpop.f32.mrb[0].mxu0
  %v4504 = vadd.f32 0.0, %v4503
  %v4505 = vpop.f32.mrb[0].mxu0
  %4506 = vmatprep.mubr.f32.mxu0 0.0
  %4507 = vmatmul.mubr.f32.gmra.mrb[0].mxu0 %v4240
  %v4508 = vpop.f32.mrb[0].mxu0
  %v4509 = vadd.f32 0.0, %v4508
  %v4510 = vpop.f32.mrb[0].mxu0
  %4511 = vmatprep.mubr.f32.mxu0 0.0
  %4512 = vmatmul.mubr.f32.gmra.mrb[0].mxu0 %v4243
  %v4513 = vpop.f32.mrb[0].mxu0
  %v4514 = vadd.f32 0.0, %v4513
  %v4515 = vpop.f32.mrb[0].mxu0
  %4516 = vmatprep.mubr.f32.mxu0 0.0
  %4517 = vmatmul.mubr.f32.gmra.mrb[0].mxu0 %v4246
  %v4518 = vpop.f32.mrb[0].mxu0
  %v4519 = vadd.f32 0.0, %v4518
  %v4520 = vpop.f32.mrb[0].mxu0
  %4521 = vmatprep.mubr.f32.mxu0 0.0
  %4522 = vmatmul.mubr.f32.gmra.mrb[0].mxu0 %v4249
  %v4523 = vpop.f32.mrb[0].mxu0
  %v4524 = vadd.f32 0.0, %v4523
  %v4525 = vpop.f32.mrb[0].mxu0
  %4526 = vmatprep.mubr.f32.mxu0 0.0
  %4527 = vmatmul.mubr.f32.gmra.mrb[0].mxu0 %v4252
  %v4528 = vpop.f32.mrb[0].mxu0
  %v4529 = vadd.f32 0.0, %v4528
  %v4530 = vpop.f32.mrb[0].mxu0
  %4531 = vmatprep.mubr.f32.mxu0 0.0
  %4532 = vmatmul.mubr.f32.gmra.mrb[0].mxu0 %v4255
  %v4533 = vpop.f32.mrb[0].mxu0
  %v4534 = vadd.f32 0.0, %v4533
  %v4535 = vpop.f32.mrb[0].mxu0
  %4536 = vmatprep.mubr.f32.mxu0 0.0
  %4537 = vmatmul.mubr.f32.gmra.mrb[0].mxu0 %v4258
  %v4538 = vpop.f32.mrb[0].mxu0
  %v4539 = vadd.f32 0.0, %v4538
  %v4540 = vpop.f32.mrb[0].mxu0
  %4541 = vmatprep.mubr.f32.mxu0 0.0
  %4542 = vmatmul.mubr.f32.gmra.mrb[0].mxu0 %v4261
  %v4543 = vpop.f32.mrb[0].mxu0
  %v4544 = vadd.f32 0.0, %v4543
  %v4545 = vpop.f32.mrb[0].mxu0
  %4546 = vmatprep.mubr.f32.mxu0 0.0
  %4547 = vmatmul.mubr.f32.gmra.mrb[0].mxu0 %v4264
  %v4548 = vpop.f32.mrb[0].mxu0
  %v4549 = vadd.f32 0.0, %v4548
  %v4550 = vpop.f32.mrb[0].mxu0
  %4551 = vmatprep.mubr.f32.mxu0 0.0
  %4552 = vmatmul.mubr.f32.gmra.mrb[0].mxu0 %v4267
  %v4553 = vpop.f32.mrb[0].mxu0
  %v4554 = vadd.f32 0.0, %v4553
  %v4555 = vpop.f32.mrb[0].mxu0
  %4556 = vmatprep.mubr.f32.mxu0 0.0
  %4557 = vmatmul.mubr.f32.gmra.mrb[0].mxu0 %v4270
  %v4558 = vpop.f32.mrb[0].mxu0
  %v4559 = vadd.f32 0.0, %v4558
  %v4560 = vpop.f32.mrb[0].mxu0
  %4561 = vmatprep.mubr.f32.mxu0 0.0
  %4562 = vmatmul.mubr.f32.gmra.mrb[0].mxu0 %v4273
  %v4563 = vpop.f32.mrb[0].mxu0
  %v4564 = vadd.f32 0.0, %v4563
  %v4565 = vpop.f32.mrb[0].mxu0
  %4566 = vmatprep.mubr.f32.mxu0 0.0
  %4567 = vmatmul.mubr.f32.gmra.mrb[0].mxu0 %v4276
  %v4568 = vpop.f32.mrb[0].mxu0
  %v4569 = vadd.f32 0.0, %v4568
  %v4570 = vpop.f32.mrb[0].mxu0
  %4571 = vmatprep.mubr.f32.mxu0 0.0
  %4572 = vmatmul.mubr.f32.gmra.mrb[0].mxu0 %v4279
  %v4573 = vpop.f32.mrb[0].mxu0
  %v4574 = vadd.f32 0.0, %v4573
  %v4575 = vpop.f32.mrb[0].mxu0
  %4576 = vmatprep.mubr.f32.mxu0 0.0
  %4577 = vmatmul.mubr.f32.gmra.mrb[0].mxu0 %v4282
  %v4578 = vpop.f32.mrb[0].mxu0
  %v4579 = vadd.f32 0.0, %v4578
  %v4580 = vpop.f32.mrb[0].mxu0
  %4581 = vmatprep.mubr.f32.mxu0 0.0
  %4582 = vmatmul.mubr.f32.gmra.mrb[0].mxu0 %v4285
  %v4583 = vpop.f32.mrb[0].mxu0
  %v4584 = vadd.f32 0.0, %v4583
  %v4585 = vpop.f32.mrb[0].mxu0
  %4586 = vmatprep.mubr.f32.mxu0 0.0
  %4587 = vmatmul.mubr.f32.gmra.mrb[0].mxu0 %v4288
  %v4588 = vpop.f32.mrb[0].mxu0
  %v4589 = vadd.f32 0.0, %v4588
  %v4590 = vpop.f32.mrb[0].mxu0
  %4591 = vmatprep.mubr.f32.mxu0 0.0
  %4592 = vmatmul.mubr.f32.gmra.mrb[0].mxu0 %v4291
  %v4593 = vpop.f32.mrb[0].mxu0
  %v4594 = vadd.f32 0.0, %v4593
  %v4595 = vpop.f32.mrb[0].mxu0
  %4596 = vmatprep.mubr.f32.mxu0 0.0
  %4597 = vmatmul.mubr.f32.gmra.mrb[0].mxu0 %v4294
  %v4598 = vpop.f32.mrb[0].mxu0
  %v4599 = vadd.f32 0.0, %v4598
  %v4600 = vpop.f32.mrb[0].mxu0
  %4601 = vmatprep.mubr.f32.mxu0 0.0
  %4602 = vmatmul.mubr.f32.gmra.mrb[0].mxu0 %v4297
  %v4603 = vpop.f32.mrb[0].mxu0
  %v4604 = vadd.f32 0.0, %v4603
  %v4605 = vpop.f32.mrb[0].mxu0
  %4606 = vmatprep.mubr.f32.mxu0 0.0
  %4607 = vmatmul.mubr.f32.gmra.mrb[0].mxu0 %v4300
  %v4608 = vpop.f32.mrb[0].mxu0
  %v4609 = vadd.f32 0.0, %v4608
  %v4610 = vpop.f32.mrb[0].mxu0
  %4611 = vmatprep.mubr.f32.mxu0 0.0
  %4612 = vmatmul.mubr.f32.gmra.mrb[0].mxu0 %v4303
  %v4613 = vpop.f32.mrb[0].mxu0
  %v4614 = vadd.f32 0.0, %v4613
  %v4615 = vpop.f32.mrb[0].mxu0
  %4616 = vmatprep.mubr.f32.mxu0 0.0
  %4617 = vmatmul.mubr.f32.gmra.mrb[0].mxu0 %v4306
  %v4618 = vpop.f32.mrb[0].mxu0
  %v4619 = vadd.f32 0.0, %v4618
  %v4620 = vpop.f32.mrb[0].mxu0
  %4621 = vmatprep.mubr.f32.mxu0 0.0
  %4622 = vmatmul.mubr.f32.gmra.mrb[0].mxu0 %v4309
  %v4623 = vpop.f32.mrb[0].mxu0
  %v4624 = vadd.f32 0.0, %v4623
  %v4625 = vpop.f32.mrb[0].mxu0
  %4626 = vmatprep.mubr.f32.mxu0 0.0
  %4627 = vmatmul.mubr.f32.gmra.mrb[0].mxu0 %v4312
  %v4628 = vpop.f32.mrb[0].mxu0
  %v4629 = vadd.f32 0.0, %v4628
  %v4630 = vpop.f32.mrb[0].mxu0
  %4631 = vmatprep.mubr.f32.mxu0 0.0
  %4632 = vmatmul.mubr.f32.gmra.mrb[0].mxu0 %v4315
  %v4633 = vpop.f32.mrb[0].mxu0
  %v4634 = vadd.f32 0.0, %v4633
  %v4635 = vpop.f32.mrb[0].mxu0
  %4636 = vmatprep.mubr.f32.mxu0 0.0
  %4637 = vmatmul.mubr.f32.gmra.mrb[0].mxu0 %v4318
  %v4638 = vpop.f32.mrb[0].mxu0
  %v4639 = vadd.f32 0.0, %v4638
  %v4640 = vpop.f32.mrb[0].mxu0
  %4641 = vmatprep.mubr.f32.mxu0 0.0
  %4642 = vmatmul.mubr.f32.gmra.mrb[0].mxu0 %v4321
  %v4643 = vpop.f32.mrb[0].mxu0
  %v4644 = vadd.f32 0.0, %v4643
  %v4645 = vpop.f32.mrb[0].mxu0
  %4646 = vmatprep.mubr.f32.mxu0 0.0
  %4647 = vmatmul.mubr.f32.gmra.mrb[0].mxu0 %v4324
  %v4648 = vpop.f32.mrb[0].mxu0
  %v4649 = vadd.f32 0.0, %v4648
  %v4650 = vpop.f32.mrb[0].mxu0
  %4651 = vmatprep.mubr.f32.mxu0 0.0
  %4652 = vmatmul.mubr.f32.gmra.mrb[0].mxu0 %v4327
  %v4653 = vpop.f32.mrb[0].mxu0
  %v4654 = vadd.f32 0.0, %v4653
  %v4655 = vpop.f32.mrb[0].mxu0
  %4656 = vmatprep.mubr.f32.mxu0 0.0
  %4657 = vmatmul.mubr.f32.gmra.mrb[0].mxu0 %v4330
  %v4658 = vpop.f32.mrb[0].mxu0
  %v4659 = vadd.f32 0.0, %v4658
  %v4660 = vpop.f32.mrb[0].mxu0
  %4661 = vmatprep.mubr.f32.mxu0 0.0
  %4662 = vmatmul.mubr.f32.gmra.mrb[0].mxu0 %v4333
  %v4663 = vpop.f32.mrb[0].mxu0
  %v4664 = vadd.f32 0.0, %v4663
  %v4665 = vpop.f32.mrb[0].mxu0
  %4666 = vmatprep.mubr.f32.mxu0 0.0
  %4667 = vmatmul.mubr.f32.gmra.mrb[0].mxu0 %v4336
  %v4668 = vpop.f32.mrb[0].mxu0
  %v4669 = vadd.f32 0.0, %v4668
  %v4670 = vpop.f32.mrb[0].mxu0
  %4671 = vmatprep.mubr.f32.mxu0 0.0
  %4672 = vmatmul.mubr.f32.gmra.mrb[0].mxu0 %v4339
  %v4673 = vpop.f32.mrb[0].mxu0
  %v4674 = vadd.f32 0.0, %v4673
  %v4675 = vpop.f32.mrb[0].mxu0
  %4676 = vmatprep.mubr.f32.mxu0 0.0
  %4677 = vmatmul.mubr.f32.gmra.mrb[0].mxu0 %v4342
  %v4678 = vpop.f32.mrb[0].mxu0
  %v4679 = vadd.f32 0.0, %v4678
  %v4680 = vpop.f32.mrb[0].mxu0
  %4681 = vmatprep.mubr.f32.mxu0 0.0
  %4682 = vmatmul.mubr.f32.gmra.mrb[0].mxu0 %v4345
  %v4683 = vpop.f32.mrb[0].mxu0
  %v4684 = vadd.f32 0.0, %v4683
  %v4685 = vpop.f32.mrb[0].mxu0
  %4686 = vmatprep.mubr.f32.mxu0 0.0
  %4687 = vmatmul.mubr.f32.gmra.mrb[0].mxu0 %v4348
  %v4688 = vpop.f32.mrb[0].mxu0
  %v4689 = vadd.f32 0.0, %v4688
  %v4690 = vpop.f32.mrb[0].mxu0
  %4691 = vmatprep.mubr.f32.mxu0 0.0
  %4692 = vmatmul.mubr.f32.gmra.mrb[0].mxu0 %v4351
  %v4693 = vpop.f32.mrb[0].mxu0
  %v4694 = vadd.f32 0.0, %v4693
  %v4695 = vpop.f32.mrb[0].mxu0
  %4696 = vmatprep.mubr.f32.mxu0 0.0
  %4697 = vmatmul.mubr.f32.gmra.mrb[0].mxu0 %v4354
  %v4698 = vpop.f32.mrb[0].mxu0
  %v4699 = vadd.f32 0.0, %v4698
  %v4700 = vpop.f32.mrb[0].mxu0
  %4701 = vmatprep.mubr.f32.mxu0 0.0
  %4702 = vmatmul.mubr.f32.gmra.mrb[0].mxu0 %v4357
  %v4703 = vpop.f32.mrb[0].mxu0
  %v4704 = vadd.f32 0.0, %v4703
  %v4705 = vpop.f32.mrb[0].mxu0
  %4706 = vmatprep.mubr.f32.mxu0 0.0
  %4707 = vmatmul.mubr.f32.gmra.mrb[0].mxu0 %v4360
  %v4708 = vpop.f32.mrb[0].mxu0
  %v4709 = vadd.f32 0.0, %v4708
  %v4710 = vpop.f32.mrb[0].mxu0
  %4711 = vmatprep.mubr.f32.mxu0 0.0
  %4712 = vmatmul.mubr.f32.gmra.mrb[0].mxu0 %v4363
  %v4713 = vpop.f32.mrb[0].mxu0
  %v4714 = vadd.f32 0.0, %v4713
  %v4715 = vpop.f32.mrb[0].mxu0
  %4716 = vmatprep.mubr.f32.mxu0 0.0
  %4717 = vmatmul.mubr.f32.gmra.mrb[0].mxu0 %v4366
  %v4718 = vpop.f32.mrb[0].mxu0
  %v4719 = vadd.f32 0.0, %v4718
  %v4720 = vpop.f32.mrb[0].mxu0
  %4721 = vmatprep.mubr.f32.mxu0 0.0
  %4722 = vmatmul.mubr.f32.gmra.mrb[0].mxu0 %v4369
  %v4723 = vpop.f32.mrb[0].mxu0
  %v4724 = vadd.f32 0.0, %v4723
  %v4725 = vpop.f32.mrb[0].mxu0
  %4726 = vmatprep.mubr.f32.mxu0 0.0
  %4727 = vmatmul.mubr.f32.gmra.mrb[0].mxu0 %v4372
  %v4728 = vpop.f32.mrb[0].mxu0
  %v4729 = vadd.f32 0.0, %v4728
  %v4730 = vpop.f32.mrb[0].mxu0
  %4731 = vmatprep.mubr.f32.mxu0 0.0
  %4732 = vmatmul.mubr.f32.gmra.mrb[0].mxu0 %v4375
  %v4733 = vpop.f32.mrb[0].mxu0
  %v4734 = vadd.f32 0.0, %v4733
  %v4735 = vpop.f32.mrb[0].mxu0
  %4736 = vmatprep.mubr.f32.mxu0 0.0
  %4737 = vmatmul.mubr.f32.gmra.mrb[0].mxu0 %v4378
  %v4738 = vpop.f32.mrb[0].mxu0
  %v4739 = vadd.f32 0.0, %v4738
  %v4740 = vpop.f32.mrb[0].mxu0
  %4741 = vmatprep.mubr.f32.mxu0 0.0
  %4742 = vmatmul.mubr.f32.gmra.mrb[0].mxu0 %v4381
  %v4743 = vpop.f32.mrb[0].mxu0
  %v4744 = vadd.f32 0.0, %v4743
  %v4745 = vpop.f32.mrb[0].mxu0
  %4746 = vmatprep.mubr.f32.mxu0 0.0
  %4747 = vmatmul.mubr.f32.gmra.mrb[0].mxu0 %v4384
  %v4748 = vpop.f32.mrb[0].mxu0
  %v4749 = vadd.f32 0.0, %v4748
  %v4750 = vpop.f32.mrb[0].mxu0
  %4751 = vmatprep.mubr.f32.mxu0 0.0
  %4752 = vmatmul.mubr.f32.gmra.mrb[0].mxu0 %v4387
  %v4753 = vpop.f32.mrb[0].mxu0
  %v4754 = vadd.f32 0.0, %v4753
  %v4755 = vpop.f32.mrb[0].mxu0
  %4756 = vmatprep.mubr.f32.mxu0 0.0
  %4757 = vmatmul.mubr.f32.gmra.mrb[0].mxu0 %v4390
  %v4758 = vpop.f32.mrb[0].mxu0
  %v4759 = vadd.f32 0.0, %v4758
  %v4760 = vpop.f32.mrb[0].mxu0
  %4761 = vmatprep.mubr.f32.mxu0 0.0
  %4762 = vmatmul.mubr.f32.gmra.mrb[0].mxu0 %v4393
  %v4763 = vpop.f32.mrb[0].mxu0
  %v4764 = vadd.f32 0.0, %v4763
  %v4765 = vpop.f32.mrb[0].mxu0
  %4766 = vmatprep.mubr.f32.mxu0 0.0
  %4767 = vmatmul.mubr.f32.gmra.mrb[0].mxu0 %v4396
  %v4768 = vpop.f32.mrb[0].mxu0
  %v4769 = vadd.f32 0.0, %v4768
  %v4770 = vpop.f32.mrb[0].mxu0
  %4771 = vmatprep.mubr.f32.mxu0 0.0
  %4772 = vmatmul.mubr.f32.gmra.mrb[0].mxu0 %v4399
  %v4773 = vpop.f32.mrb[0].mxu0
  %v4774 = vadd.f32 0.0, %v4773
  %v4775 = vpop.f32.mrb[0].mxu0
  %4776 = vmatprep.mubr.f32.mxu0 0.0
  %4777 = vmatmul.mubr.f32.gmra.mrb[0].mxu0 %v4402
  %v4778 = vpop.f32.mrb[0].mxu0
  %v4779 = vadd.f32 0.0, %v4778
  %v4780 = vpop.f32.mrb[0].mxu0
  %4781 = vmatprep.mubr.f32.mxu0 0.0
  %4782 = vmatmul.mubr.f32.gmra.mrb[0].mxu0 %v4405
  %v4783 = vpop.f32.mrb[0].mxu0
  %v4784 = vadd.f32 0.0, %v4783
  %v4785 = vpop.f32.mrb[0].mxu0
  %4786 = vmatprep.mubr.f32.mxu0 0.0
  %4787 = vmatmul.mubr.f32.gmra.mrb[0].mxu0 %v4408
  %v4788 = vpop.f32.mrb[0].mxu0
  %v4789 = vadd.f32 0.0, %v4788
  %v4790 = vpop.f32.mrb[0].mxu0
  %4791 = vmatprep.mubr.f32.mxu0 0.0
  %4792 = vmatmul.mubr.f32.gmra.mrb[0].mxu0 %v4411
  %v4793 = vpop.f32.mrb[0].mxu0
  %v4794 = vadd.f32 0.0, %v4793
  %v4795 = vpop.f32.mrb[0].mxu0
  %4796 = vmatprep.mubr.f32.mxu0 0.0
  %4797 = vmatmul.mubr.f32.gmra.mrb[0].mxu0 %v4414
  %v4798 = vpop.f32.mrb[0].mxu0
  %v4799 = vadd.f32 0.0, %v4798
  %v4800 = vpop.f32.mrb[0].mxu0
  %4801 = vmatprep.mubr.f32.mxu0 0.0
  %4802 = vmatmul.mubr.f32.gmra.mrb[0].mxu0 %v4417
  %v4803 = vpop.f32.mrb[0].mxu0
  %v4804 = vadd.f32 0.0, %v4803
  %v4805 = vpop.f32.mrb[0].mxu0
  %4806 = vdwg.mxu0
  %v4807 = vadd.f32 %v4096, %v4489
  %v4808 = vadd.f32 %v4097, %v4494
  %v4809 = vadd.f32 %v4098, %v4499
  %v4810 = vadd.f32 %v4099, %v4504
  %v4811 = vadd.f32 %v4100, %v4509
  %v4812 = vadd.f32 %v4101, %v4514
  %v4813 = vadd.f32 %v4102, %v4519
  %v4814 = vadd.f32 %v4103, %v4524
  %v4815 = vadd.f32 %v4104, %v4529
  %v4816 = vadd.f32 %v4105, %v4534
  %v4817 = vadd.f32 %v4106, %v4539
  %v4818 = vadd.f32 %v4107, %v4544
  %v4819 = vadd.f32 %v4108, %v4549
  %v4820 = vadd.f32 %v4109, %v4554
  %v4821 = vadd.f32 %v4110, %v4559
  %v4822 = vadd.f32 %v4111, %v4564
  %v4823 = vadd.f32 %v4112, %v4569
  %v4824 = vadd.f32 %v4113, %v4574
  %v4825 = vadd.f32 %v4114, %v4579
  %v4826 = vadd.f32 %v4115, %v4584
  %v4827 = vadd.f32 %v4116, %v4589
  %v4828 = vadd.f32 %v4117, %v4594
  %v4829 = vadd.f32 %v4118, %v4599
  %v4830 = vadd.f32 %v4119, %v4604
  %v4831 = vadd.f32 %v4120, %v4609
  %v4832 = vadd.f32 %v4121, %v4614
  %v4833 = vadd.f32 %v4122, %v4619
  %v4834 = vadd.f32 %v4123, %v4624
  %v4835 = vadd.f32 %v4124, %v4629
  %v4836 = vadd.f32 %v4125, %v4634
  %v4837 = vadd.f32 %v4126, %v4639
  %v4838 = vadd.f32 %v4127, %v4644
  %v4839 = vadd.f32 %v4128, %v4649
  %v4840 = vadd.f32 %v4129, %v4654
  %v4841 = vadd.f32 %v4130, %v4659
  %v4842 = vadd.f32 %v4131, %v4664
  %v4843 = vadd.f32 %v4132, %v4669
  %v4844 = vadd.f32 %v4133, %v4674
  %v4845 = vadd.f32 %v4134, %v4679
  %v4846 = vadd.f32 %v4135, %v4684
  %v4847 = vadd.f32 %v4136, %v4689
  %v4848 = vadd.f32 %v4137, %v4694
  %v4849 = vadd.f32 %v4138, %v4699
  %v4850 = vadd.f32 %v4139, %v4704
  %v4851 = vadd.f32 %v4140, %v4709
  %v4852 = vadd.f32 %v4141, %v4714
  %v4853 = vadd.f32 %v4142, %v4719
  %v4854 = vadd.f32 %v4143, %v4724
  %v4855 = vadd.f32 %v4144, %v4729
  %v4856 = vadd.f32 %v4145, %v4734
  %v4857 = vadd.f32 %v4146, %v4739
  %v4858 = vadd.f32 %v4147, %v4744
  %v4859 = vadd.f32 %v4148, %v4749
  %v4860 = vadd.f32 %v4149, %v4754
  %v4861 = vadd.f32 %v4150, %v4759
  %v4862 = vadd.f32 %v4151, %v4764
  %v4863 = vadd.f32 %v4152, %v4769
  %v4864 = vadd.f32 %v4153, %v4774
  %v4865 = vadd.f32 %v4154, %v4779
  %v4866 = vadd.f32 %v4155, %v4784
  %v4867 = vadd.f32 %v4156, %v4789
  %v4868 = vadd.f32 %v4157, %v4794
  %v4869 = vadd.f32 %v4158, %v4799
  %v4870 = vadd.f32 %v4159, %v4804
  %v4871 = vld [vmem:[%s4160 + $0x1] sm:$0xff]
  %v4872 = vld [vmem:[%s4160 + $0x9] sm:$0xff]
  %v4873 = vld [vmem:[%s4160 + $0x19] sm:$0xff]
  %v4874 = vld [vmem:[%s4160 + $0x21] sm:$0xff]
  %v4875 = vld [vmem:[%s4160 + $0x31] sm:$0xff]
  %v4876 = vld [vmem:[%s4160 + $0x39] sm:$0xff]
  %v4877 = vld [vmem:[%s4160 + $0x49] sm:$0xff]
  %v4878 = vld [vmem:[%s4160 + $0x51] sm:$0xff]
  %v4879 = vld [vmem:[%s4160 + $0x61] sm:$0xff]
  %v4880 = vld [vmem:[%s4160 + $0x69] sm:$0xff]
  %v4881 = vld [vmem:[%s4160 + $0x79] sm:$0xff]
  %v4882 = vld [vmem:[%s4160 + $0x81] sm:$0xff]
  %v4883 = vld [vmem:[%s4160 + $0x91] sm:$0xff]
  %v4884 = vld [vmem:[%s4160 + $0x99] sm:$0xff]
  %v4885 = vld [vmem:[%s4160 + $0xa9] sm:$0xff]
  %v4886 = vld [vmem:[%s4160 + $0xb1] sm:$0xff]
  %v4887 = vld [vmem:[%s4160 + $0xc1] sm:$0xff]
  %v4888 = vld [vmem:[%s4160 + $0xc9] sm:$0xff]
  %v4889 = vld [vmem:[%s4160 + $0xd9] sm:$0xff]
  %v4890 = vld [vmem:[%s4160 + $0xe1] sm:$0xff]
  %v4891 = vld [vmem:[%s4160 + $0xf1] sm:$0xff]
  %v4892 = vld [vmem:[%s4160 + $0xf9] sm:$0xff]
  %v4893 = vld [vmem:[%s4160 + $0x109] sm:$0xff]
  %v4894 = vld [vmem:[%s4160 + $0x111] sm:$0xff]
  %v4895 = vld [vmem:[%s4160 + $0x121] sm:$0xff]
  %v4896 = vld [vmem:[%s4160 + $0x129] sm:$0xff]
  %v4897 = vld [vmem:[%s4160 + $0x139] sm:$0xff]
  %v4898 = vld [vmem:[%s4160 + $0x141] sm:$0xff]
  %v4899 = vld [vmem:[%s4160 + $0x151] sm:$0xff]
  %v4900 = vld [vmem:[%s4160 + $0x159] sm:$0xff]
  %v4901 = vld [vmem:[%s4160 + $0x169] sm:$0xff]
  %v4902 = vld [vmem:[%s4160 + $0x171] sm:$0xff]
  %v4903 = vld [vmem:[%s4160 + $0x1b1] sm:$0xff]
  %v4904 = vld [vmem:[%s4160 + $0x1b9] sm:$0xff]
  %v4905 = vld [vmem:[%s4160 + $0x1c9] sm:$0xff]
  %v4906 = vld [vmem:[%s4160 + $0x1d1] sm:$0xff]
  %v4907 = vld [vmem:[%s4160 + $0x1e1] sm:$0xff]
  %v4908 = vld [vmem:[%s4160 + $0x1e9] sm:$0xff]
  %v4909 = vld [vmem:[%s4160 + $0x1f9] sm:$0xff]
  %v4910 = vld [vmem:[%s4160 + $0x201] sm:$0xff]
  %v4911 = vld [vmem:[%s4160 + $0x211] sm:$0xff]
  %v4912 = vld [vmem:[%s4160 + $0x219] sm:$0xff]
  %v4913 = vld [vmem:[%s4160 + $0x229] sm:$0xff]
  %v4914 = vld [vmem:[%s4160 + $0x231] sm:$0xff]
  %v4915 = vld [vmem:[%s4160 + $0x241] sm:$0xff]
  %v4916 = vld [vmem:[%s4160 + $0x249] sm:$0xff]
  %v4917 = vld [vmem:[%s4160 + $0x259] sm:$0xff]
  %v4918 = vld [vmem:[%s4160 + $0x261] sm:$0xff]
  %v4919 = vld [vmem:[%s4160 + $0x271] sm:$0xff]
  %v4920 = vld [vmem:[%s4160 + $0x279] sm:$0xff]
  %v4921 = vld [vmem:[%s4160 + $0x289] sm:$0xff]
  %v4922 = vld [vmem:[%s4160 + $0x291] sm:$0xff]
  %v4923 = vld [vmem:[%s4160 + $0x2a1] sm:$0xff]
  %v4924 = vld [vmem:[%s4160 + $0x2a9] sm:$0xff]
  %v4925 = vld [vmem:[%s4160 + $0x2b9] sm:$0xff]
  %v4926 = vld [vmem:[%s4160 + $0x2c1] sm:$0xff]
  %v4927 = vld [vmem:[%s4160 + $0x2d1] sm:$0xff]
  %v4928 = vld [vmem:[%s4160 + $0x2d9] sm:$0xff]
  %v4929 = vld [vmem:[%s4160 + $0x2e9] sm:$0xff]
  %v4930 = vld [vmem:[%s4160 + $0x2f1] sm:$0xff]
  %v4931 = vld [vmem:[%s4160 + $0x301] sm:$0xff]
  %v4932 = vld [vmem:[%s4160 + $0x309] sm:$0xff]
  %v4933 = vld [vmem:[%s4160 + $0x319] sm:$0xff]
  %v4934 = vld [vmem:[%s4160 + $0x321] sm:$0xff]
  %s4935 = scalar_lea.vmem %s1, 28
  %v4936 = vld [vmem:[%s4935] sm:$0xf]
  %v4938 = vsel %vm157, %v4871, 0
  %v4941 = vsel %vm157, %v4872, 0
  %v4944 = vsel %vm157, %v4873, 0
  %v4947 = vsel %vm157, %v4874, 0
  %v4950 = vsel %vm157, %v4875, 0
  %v4953 = vsel %vm157, %v4876, 0
  %v4956 = vsel %vm157, %v4877, 0
  %v4959 = vsel %vm157, %v4878, 0
  %v4962 = vsel %vm157, %v4879, 0
  %v4965 = vsel %vm157, %v4880, 0
  %v4968 = vsel %vm157, %v4881, 0
  %v4971 = vsel %vm157, %v4882, 0
  %v4974 = vsel %vm157, %v4883, 0
  %v4977 = vsel %vm157, %v4884, 0
  %v4980 = vsel %vm157, %v4885, 0
  %v4983 = vsel %vm157, %v4886, 0
  %v4986 = vsel %vm157, %v4887, 0
  %v4989 = vsel %vm157, %v4888, 0
  %v4992 = vsel %vm157, %v4889, 0
  %v4995 = vsel %vm157, %v4890, 0
  %v4998 = vsel %vm157, %v4891, 0
  %v5001 = vsel %vm157, %v4892, 0
  %v5004 = vsel %vm157, %v4893, 0
  %v5007 = vsel %vm157, %v4894, 0
  %v5010 = vsel %vm157, %v4895, 0
  %v5013 = vsel %vm157, %v4896, 0
  %v5016 = vsel %vm157, %v4897, 0
  %v5019 = vsel %vm157, %v4898, 0
  %v5022 = vsel %vm157, %v4899, 0
  %v5025 = vsel %vm157, %v4900, 0
  %v5028 = vsel %vm157, %v4901, 0
  %v5031 = vsel %vm157, %v4902, 0
  %v5034 = vsel %vm157, %v4903, 0
  %v5037 = vsel %vm157, %v4904, 0
  %v5040 = vsel %vm157, %v4905, 0
  %v5043 = vsel %vm157, %v4906, 0
  %v5046 = vsel %vm157, %v4907, 0
  %v5049 = vsel %vm157, %v4908, 0
  %v5052 = vsel %vm157, %v4909, 0
  %v5055 = vsel %vm157, %v4910, 0
  %v5058 = vsel %vm157, %v4911, 0
  %v5061 = vsel %vm157, %v4912, 0
  %v5064 = vsel %vm157, %v4913, 0
  %v5067 = vsel %vm157, %v4914, 0
  %v5070 = vsel %vm157, %v4915, 0
  %v5073 = vsel %vm157, %v4916, 0
  %v5076 = vsel %vm157, %v4917, 0
  %v5079 = vsel %vm157, %v4918, 0
  %v5082 = vsel %vm157, %v4919, 0
  %v5085 = vsel %vm157, %v4920, 0
  %v5088 = vsel %vm157, %v4921, 0
  %v5091 = vsel %vm157, %v4922, 0
  %v5094 = vsel %vm157, %v4923, 0
  %v5097 = vsel %vm157, %v4924, 0
  %v5100 = vsel %vm157, %v4925, 0
  %v5103 = vsel %vm157, %v4926, 0
  %v5106 = vsel %vm157, %v4927, 0
  %v5109 = vsel %vm157, %v4928, 0
  %v5112 = vsel %vm157, %v4929, 0
  %v5115 = vsel %vm157, %v4930, 0
  %v5118 = vsel %vm157, %v4931, 0
  %v5121 = vsel %vm157, %v4932, 0
  %v5124 = vsel %vm157, %v4933, 0
  %v5127 = vsel %vm157, %v4934, 0
  %v5130 = vsel %vm350, %v4936, 0
  %5132 = vmatprep.subr.mxu0 0.0
  %5133 = vmatpush1.msra.mxu0 %v5130
  %5134 = vmatprep.subr.mxu0 0.0
  %5135 = vmatpush1.msra.mxu0 0.0
  %5136 = vmatprep.subr.mxu0 0.0
  %5137 = vmatpush1.msra.mxu0 0.0
  %5138 = vmatprep.subr.mxu0 0.0
  %5139 = vmatpush1.msra.mxu0 0.0
  %5140 = vmatprep.subr.mxu0 0.0
  %5141 = vmatpush1.msra.mxu0 0.0
  %5142 = vmatprep.subr.mxu0 0.0
  %5143 = vmatpush1.msra.mxu0 0.0
  %5144 = vmatprep.subr.mxu0 0.0
  %5145 = vmatpush1.msra.mxu0 0.0
  %5146 = vmatprep.subr.mxu0 0.0
  %5147 = vmatpush1.msra.mxu0 0.0
  %5148 = vmatprep.subr.mxu0 0.0
  %5149 = vmatpush1.msra.mxu0 0.0
  %5150 = vmatprep.subr.mxu0 0.0
  %5151 = vmatpush1.msra.mxu0 0.0
  %5152 = vmatprep.subr.mxu0 0.0
  %5153 = vmatpush1.msra.mxu0 0.0
  %5154 = vmatprep.subr.mxu0 0.0
  %5155 = vmatpush1.msra.mxu0 0.0
  %5156 = vmatprep.subr.mxu0 0.0
  %5157 = vmatpush1.msra.mxu0 0.0
  %5158 = vmatprep.subr.mxu0 0.0
  %5159 = vmatpush1.msra.mxu0 0.0
  %5160 = vmatprep.subr.mxu0 0.0
  %5161 = vmatpush1.msra.mxu0 0.0
  %5162 = vmatprep.subr.mxu0 0.0
  %5163 = vmatpush1.msra.mxu0 0.0
  %5164 = vmatprep.subr.mxu0 0.0
  %5165 = vmatpush1.msra.mxu0 0.0
  %5166 = vmatprep.subr.mxu0 0.0
  %5167 = vmatpush1.msra.mxu0 0.0
  %5168 = vmatprep.subr.mxu0 0.0
  %5169 = vmatpush1.msra.mxu0 0.0
  %5170 = vmatprep.subr.mxu0 0.0
  %5171 = vmatpush1.msra.mxu0 0.0
  %5172 = vmatprep.subr.mxu0 0.0
  %5173 = vmatpush1.msra.mxu0 0.0
  %5174 = vmatprep.subr.mxu0 0.0
  %5175 = vmatpush1.msra.mxu0 0.0
  %5176 = vmatprep.subr.mxu0 0.0
  %5177 = vmatpush1.msra.mxu0 0.0
  %5178 = vmatprep.subr.mxu0 0.0
  %5179 = vmatpush1.msra.mxu0 0.0
  %5180 = vmatprep.subr.mxu0 0.0
  %5181 = vmatpush1.msra.mxu0 0.0
  %5182 = vmatprep.subr.mxu0 0.0
  %5183 = vmatpush1.msra.mxu0 0.0
  %5184 = vmatprep.subr.mxu0 0.0
  %5185 = vmatpush1.msra.mxu0 0.0
  %5186 = vmatprep.subr.mxu0 0.0
  %5187 = vmatpush1.msra.mxu0 0.0
  %5188 = vmatprep.subr.mxu0 0.0
  %5189 = vmatpush1.msra.mxu0 0.0
  %5190 = vmatprep.subr.mxu0 0.0
  %5191 = vmatpush1.msra.mxu0 0.0
  %5192 = vmatprep.subr.mxu0 0.0
  %5193 = vmatpush1.msra.mxu0 0.0
  %5194 = vmatprep.subr.mxu0 0.0
  %5195 = vmatpush1.msra.mxu0 0.0
  %5196 = vmatprep.mubr.f32.mxu0 0.0
  %5197 = vmatmul.mubr.f32.gmra.mrb[0].mxu0 %v4938
  %v5198 = vpop.f32.mrb[0].mxu0
  %v5199 = vadd.f32 0.0, %v5198
  %v5200 = vpop.f32.mrb[0].mxu0
  %5201 = vmatprep.mubr.f32.mxu0 0.0
  %5202 = vmatmul.mubr.f32.gmra.mrb[0].mxu0 %v4941
  %v5203 = vpop.f32.mrb[0].mxu0
  %v5204 = vadd.f32 0.0, %v5203
  %v5205 = vpop.f32.mrb[0].mxu0
  %5206 = vmatprep.mubr.f32.mxu0 0.0
  %5207 = vmatmul.mubr.f32.gmra.mrb[0].mxu0 %v4944
  %v5208 = vpop.f32.mrb[0].mxu0
  %v5209 = vadd.f32 0.0, %v5208
  %v5210 = vpop.f32.mrb[0].mxu0
  %5211 = vmatprep.mubr.f32.mxu0 0.0
  %5212 = vmatmul.mubr.f32.gmra.mrb[0].mxu0 %v4947
  %v5213 = vpop.f32.mrb[0].mxu0
  %v5214 = vadd.f32 0.0, %v5213
  %v5215 = vpop.f32.mrb[0].mxu0
  %5216 = vmatprep.mubr.f32.mxu0 0.0
  %5217 = vmatmul.mubr.f32.gmra.mrb[0].mxu0 %v4950
  %v5218 = vpop.f32.mrb[0].mxu0
  %v5219 = vadd.f32 0.0, %v5218
  %v5220 = vpop.f32.mrb[0].mxu0
  %5221 = vmatprep.mubr.f32.mxu0 0.0
  %5222 = vmatmul.mubr.f32.gmra.mrb[0].mxu0 %v4953
  %v5223 = vpop.f32.mrb[0].mxu0
  %v5224 = vadd.f32 0.0, %v5223
  %v5225 = vpop.f32.mrb[0].mxu0
  %5226 = vmatprep.mubr.f32.mxu0 0.0
  %5227 = vmatmul.mubr.f32.gmra.mrb[0].mxu0 %v4956
  %v5228 = vpop.f32.mrb[0].mxu0
  %v5229 = vadd.f32 0.0, %v5228
  %v5230 = vpop.f32.mrb[0].mxu0
  %5231 = vmatprep.mubr.f32.mxu0 0.0
  %5232 = vmatmul.mubr.f32.gmra.mrb[0].mxu0 %v4959
  %v5233 = vpop.f32.mrb[0].mxu0
  %v5234 = vadd.f32 0.0, %v5233
  %v5235 = vpop.f32.mrb[0].mxu0
  %5236 = vmatprep.mubr.f32.mxu0 0.0
  %5237 = vmatmul.mubr.f32.gmra.mrb[0].mxu0 %v4962
  %v5238 = vpop.f32.mrb[0].mxu0
  %v5239 = vadd.f32 0.0, %v5238
  %v5240 = vpop.f32.mrb[0].mxu0
  %5241 = vmatprep.mubr.f32.mxu0 0.0
  %5242 = vmatmul.mubr.f32.gmra.mrb[0].mxu0 %v4965
  %v5243 = vpop.f32.mrb[0].mxu0
  %v5244 = vadd.f32 0.0, %v5243
  %v5245 = vpop.f32.mrb[0].mxu0
  %5246 = vmatprep.mubr.f32.mxu0 0.0
  %5247 = vmatmul.mubr.f32.gmra.mrb[0].mxu0 %v4968
  %v5248 = vpop.f32.mrb[0].mxu0
  %v5249 = vadd.f32 0.0, %v5248
  %v5250 = vpop.f32.mrb[0].mxu0
  %5251 = vmatprep.mubr.f32.mxu0 0.0
  %5252 = vmatmul.mubr.f32.gmra.mrb[0].mxu0 %v4971
  %v5253 = vpop.f32.mrb[0].mxu0
  %v5254 = vadd.f32 0.0, %v5253
  %v5255 = vpop.f32.mrb[0].mxu0
  %5256 = vmatprep.mubr.f32.mxu0 0.0
  %5257 = vmatmul.mubr.f32.gmra.mrb[0].mxu0 %v4974
  %v5258 = vpop.f32.mrb[0].mxu0
  %v5259 = vadd.f32 0.0, %v5258
  %v5260 = vpop.f32.mrb[0].mxu0
  %5261 = vmatprep.mubr.f32.mxu0 0.0
  %5262 = vmatmul.mubr.f32.gmra.mrb[0].mxu0 %v4977
  %v5263 = vpop.f32.mrb[0].mxu0
  %v5264 = vadd.f32 0.0, %v5263
  %v5265 = vpop.f32.mrb[0].mxu0
  %5266 = vmatprep.mubr.f32.mxu0 0.0
  %5267 = vmatmul.mubr.f32.gmra.mrb[0].mxu0 %v4980
  %v5268 = vpop.f32.mrb[0].mxu0
  %v5269 = vadd.f32 0.0, %v5268
  %v5270 = vpop.f32.mrb[0].mxu0
  %5271 = vmatprep.mubr.f32.mxu0 0.0
  %5272 = vmatmul.mubr.f32.gmra.mrb[0].mxu0 %v4983
  %v5273 = vpop.f32.mrb[0].mxu0
  %v5274 = vadd.f32 0.0, %v5273
  %v5275 = vpop.f32.mrb[0].mxu0
  %5276 = vmatprep.mubr.f32.mxu0 0.0
  %5277 = vmatmul.mubr.f32.gmra.mrb[0].mxu0 %v4986
  %v5278 = vpop.f32.mrb[0].mxu0
  %v5279 = vadd.f32 0.0, %v5278
  %v5280 = vpop.f32.mrb[0].mxu0
  %5281 = vmatprep.mubr.f32.mxu0 0.0
  %5282 = vmatmul.mubr.f32.gmra.mrb[0].mxu0 %v4989
  %v5283 = vpop.f32.mrb[0].mxu0
  %v5284 = vadd.f32 0.0, %v5283
  %v5285 = vpop.f32.mrb[0].mxu0
  %5286 = vmatprep.mubr.f32.mxu0 0.0
  %5287 = vmatmul.mubr.f32.gmra.mrb[0].mxu0 %v4992
  %v5288 = vpop.f32.mrb[0].mxu0
  %v5289 = vadd.f32 0.0, %v5288
  %v5290 = vpop.f32.mrb[0].mxu0
  %5291 = vmatprep.mubr.f32.mxu0 0.0
  %5292 = vmatmul.mubr.f32.gmra.mrb[0].mxu0 %v4995
  %v5293 = vpop.f32.mrb[0].mxu0
  %v5294 = vadd.f32 0.0, %v5293
  %v5295 = vpop.f32.mrb[0].mxu0
  %5296 = vmatprep.mubr.f32.mxu0 0.0
  %5297 = vmatmul.mubr.f32.gmra.mrb[0].mxu0 %v4998
  %v5298 = vpop.f32.mrb[0].mxu0
  %v5299 = vadd.f32 0.0, %v5298
  %v5300 = vpop.f32.mrb[0].mxu0
  %5301 = vmatprep.mubr.f32.mxu0 0.0
  %5302 = vmatmul.mubr.f32.gmra.mrb[0].mxu0 %v5001
  %v5303 = vpop.f32.mrb[0].mxu0
  %v5304 = vadd.f32 0.0, %v5303
  %v5305 = vpop.f32.mrb[0].mxu0
  %5306 = vmatprep.mubr.f32.mxu0 0.0
  %5307 = vmatmul.mubr.f32.gmra.mrb[0].mxu0 %v5004
  %v5308 = vpop.f32.mrb[0].mxu0
  %v5309 = vadd.f32 0.0, %v5308
  %v5310 = vpop.f32.mrb[0].mxu0
  %5311 = vmatprep.mubr.f32.mxu0 0.0
  %5312 = vmatmul.mubr.f32.gmra.mrb[0].mxu0 %v5007
  %v5313 = vpop.f32.mrb[0].mxu0
  %v5314 = vadd.f32 0.0, %v5313
  %v5315 = vpop.f32.mrb[0].mxu0
  %5316 = vmatprep.mubr.f32.mxu0 0.0
  %5317 = vmatmul.mubr.f32.gmra.mrb[0].mxu0 %v5010
  %v5318 = vpop.f32.mrb[0].mxu0
  %v5319 = vadd.f32 0.0, %v5318
  %v5320 = vpop.f32.mrb[0].mxu0
  %5321 = vmatprep.mubr.f32.mxu0 0.0
  %5322 = vmatmul.mubr.f32.gmra.mrb[0].mxu0 %v5013
  %v5323 = vpop.f32.mrb[0].mxu0
  %v5324 = vadd.f32 0.0, %v5323
  %v5325 = vpop.f32.mrb[0].mxu0
  %5326 = vmatprep.mubr.f32.mxu0 0.0
  %5327 = vmatmul.mubr.f32.gmra.mrb[0].mxu0 %v5016
  %v5328 = vpop.f32.mrb[0].mxu0
  %v5329 = vadd.f32 0.0, %v5328
  %v5330 = vpop.f32.mrb[0].mxu0
  %5331 = vmatprep.mubr.f32.mxu0 0.0
  %5332 = vmatmul.mubr.f32.gmra.mrb[0].mxu0 %v5019
  %v5333 = vpop.f32.mrb[0].mxu0
  %v5334 = vadd.f32 0.0, %v5333
  %v5335 = vpop.f32.mrb[0].mxu0
  %5336 = vmatprep.mubr.f32.mxu0 0.0
  %5337 = vmatmul.mubr.f32.gmra.mrb[0].mxu0 %v5022
  %v5338 = vpop.f32.mrb[0].mxu0
  %v5339 = vadd.f32 0.0, %v5338
  %v5340 = vpop.f32.mrb[0].mxu0
  %5341 = vmatprep.mubr.f32.mxu0 0.0
  %5342 = vmatmul.mubr.f32.gmra.mrb[0].mxu0 %v5025
  %v5343 = vpop.f32.mrb[0].mxu0
  %v5344 = vadd.f32 0.0, %v5343
  %v5345 = vpop.f32.mrb[0].mxu0
  %5346 = vmatprep.mubr.f32.mxu0 0.0
  %5347 = vmatmul.mubr.f32.gmra.mrb[0].mxu0 %v5028
  %v5348 = vpop.f32.mrb[0].mxu0
  %v5349 = vadd.f32 0.0, %v5348
  %v5350 = vpop.f32.mrb[0].mxu0
  %5351 = vmatprep.mubr.f32.mxu0 0.0
  %5352 = vmatmul.mubr.f32.gmra.mrb[0].mxu0 %v5031
  %v5353 = vpop.f32.mrb[0].mxu0
  %v5354 = vadd.f32 0.0, %v5353
  %v5355 = vpop.f32.mrb[0].mxu0
  %5356 = vmatprep.mubr.f32.mxu0 0.0
  %5357 = vmatmul.mubr.f32.gmra.mrb[0].mxu0 %v5034
  %v5358 = vpop.f32.mrb[0].mxu0
  %v5359 = vadd.f32 0.0, %v5358
  %v5360 = vpop.f32.mrb[0].mxu0
  %5361 = vmatprep.mubr.f32.mxu0 0.0
  %5362 = vmatmul.mubr.f32.gmra.mrb[0].mxu0 %v5037
  %v5363 = vpop.f32.mrb[0].mxu0
  %v5364 = vadd.f32 0.0, %v5363
  %v5365 = vpop.f32.mrb[0].mxu0
  %5366 = vmatprep.mubr.f32.mxu0 0.0
  %5367 = vmatmul.mubr.f32.gmra.mrb[0].mxu0 %v5040
  %v5368 = vpop.f32.mrb[0].mxu0
  %v5369 = vadd.f32 0.0, %v5368
  %v5370 = vpop.f32.mrb[0].mxu0
  %5371 = vmatprep.mubr.f32.mxu0 0.0
  %5372 = vmatmul.mubr.f32.gmra.mrb[0].mxu0 %v5043
  %v5373 = vpop.f32.mrb[0].mxu0
  %v5374 = vadd.f32 0.0, %v5373
  %v5375 = vpop.f32.mrb[0].mxu0
  %5376 = vmatprep.mubr.f32.mxu0 0.0
  %5377 = vmatmul.mubr.f32.gmra.mrb[0].mxu0 %v5046
  %v5378 = vpop.f32.mrb[0].mxu0
  %v5379 = vadd.f32 0.0, %v5378
  %v5380 = vpop.f32.mrb[0].mxu0
  %5381 = vmatprep.mubr.f32.mxu0 0.0
  %5382 = vmatmul.mubr.f32.gmra.mrb[0].mxu0 %v5049
  %v5383 = vpop.f32.mrb[0].mxu0
  %v5384 = vadd.f32 0.0, %v5383
  %v5385 = vpop.f32.mrb[0].mxu0
  %5386 = vmatprep.mubr.f32.mxu0 0.0
  %5387 = vmatmul.mubr.f32.gmra.mrb[0].mxu0 %v5052
  %v5388 = vpop.f32.mrb[0].mxu0
  %v5389 = vadd.f32 0.0, %v5388
  %v5390 = vpop.f32.mrb[0].mxu0
  %5391 = vmatprep.mubr.f32.mxu0 0.0
  %5392 = vmatmul.mubr.f32.gmra.mrb[0].mxu0 %v5055
  %v5393 = vpop.f32.mrb[0].mxu0
  %v5394 = vadd.f32 0.0, %v5393
  %v5395 = vpop.f32.mrb[0].mxu0
  %5396 = vmatprep.mubr.f32.mxu0 0.0
  %5397 = vmatmul.mubr.f32.gmra.mrb[0].mxu0 %v5058
  %v5398 = vpop.f32.mrb[0].mxu0
  %v5399 = vadd.f32 0.0, %v5398
  %v5400 = vpop.f32.mrb[0].mxu0
  %5401 = vmatprep.mubr.f32.mxu0 0.0
  %5402 = vmatmul.mubr.f32.gmra.mrb[0].mxu0 %v5061
  %v5403 = vpop.f32.mrb[0].mxu0
  %v5404 = vadd.f32 0.0, %v5403
  %v5405 = vpop.f32.mrb[0].mxu0
  %5406 = vmatprep.mubr.f32.mxu0 0.0
  %5407 = vmatmul.mubr.f32.gmra.mrb[0].mxu0 %v5064
  %v5408 = vpop.f32.mrb[0].mxu0
  %v5409 = vadd.f32 0.0, %v5408
  %v5410 = vpop.f32.mrb[0].mxu0
  %5411 = vmatprep.mubr.f32.mxu0 0.0
  %5412 = vmatmul.mubr.f32.gmra.mrb[0].mxu0 %v5067
  %v5413 = vpop.f32.mrb[0].mxu0
  %v5414 = vadd.f32 0.0, %v5413
  %v5415 = vpop.f32.mrb[0].mxu0
  %5416 = vmatprep.mubr.f32.mxu0 0.0
  %5417 = vmatmul.mubr.f32.gmra.mrb[0].mxu0 %v5070
  %v5418 = vpop.f32.mrb[0].mxu0
  %v5419 = vadd.f32 0.0, %v5418
  %v5420 = vpop.f32.mrb[0].mxu0
  %5421 = vmatprep.mubr.f32.mxu0 0.0
  %5422 = vmatmul.mubr.f32.gmra.mrb[0].mxu0 %v5073
  %v5423 = vpop.f32.mrb[0].mxu0
  %v5424 = vadd.f32 0.0, %v5423
  %v5425 = vpop.f32.mrb[0].mxu0
  %5426 = vmatprep.mubr.f32.mxu0 0.0
  %5427 = vmatmul.mubr.f32.gmra.mrb[0].mxu0 %v5076
  %v5428 = vpop.f32.mrb[0].mxu0
  %v5429 = vadd.f32 0.0, %v5428
  %v5430 = vpop.f32.mrb[0].mxu0
  %5431 = vmatprep.mubr.f32.mxu0 0.0
  %5432 = vmatmul.mubr.f32.gmra.mrb[0].mxu0 %v5079
  %v5433 = vpop.f32.mrb[0].mxu0
  %v5434 = vadd.f32 0.0, %v5433
  %v5435 = vpop.f32.mrb[0].mxu0
  %5436 = vmatprep.mubr.f32.mxu0 0.0
  %5437 = vmatmul.mubr.f32.gmra.mrb[0].mxu0 %v5082
  %v5438 = vpop.f32.mrb[0].mxu0
  %v5439 = vadd.f32 0.0, %v5438
  %v5440 = vpop.f32.mrb[0].mxu0
  %5441 = vmatprep.mubr.f32.mxu0 0.0
  %5442 = vmatmul.mubr.f32.gmra.mrb[0].mxu0 %v5085
  %v5443 = vpop.f32.mrb[0].mxu0
  %v5444 = vadd.f32 0.0, %v5443
  %v5445 = vpop.f32.mrb[0].mxu0
  %5446 = vmatprep.mubr.f32.mxu0 0.0
  %5447 = vmatmul.mubr.f32.gmra.mrb[0].mxu0 %v5088
  %v5448 = vpop.f32.mrb[0].mxu0
  %v5449 = vadd.f32 0.0, %v5448
  %v5450 = vpop.f32.mrb[0].mxu0
  %5451 = vmatprep.mubr.f32.mxu0 0.0
  %5452 = vmatmul.mubr.f32.gmra.mrb[0].mxu0 %v5091
  %v5453 = vpop.f32.mrb[0].mxu0
  %v5454 = vadd.f32 0.0, %v5453
  %v5455 = vpop.f32.mrb[0].mxu0
  %5456 = vmatprep.mubr.f32.mxu0 0.0
  %5457 = vmatmul.mubr.f32.gmra.mrb[0].mxu0 %v5094
  %v5458 = vpop.f32.mrb[0].mxu0
  %v5459 = vadd.f32 0.0, %v5458
  %v5460 = vpop.f32.mrb[0].mxu0
  %5461 = vmatprep.mubr.f32.mxu0 0.0
  %5462 = vmatmul.mubr.f32.gmra.mrb[0].mxu0 %v5097
  %v5463 = vpop.f32.mrb[0].mxu0
  %v5464 = vadd.f32 0.0, %v5463
  %v5465 = vpop.f32.mrb[0].mxu0
  %5466 = vmatprep.mubr.f32.mxu0 0.0
  %5467 = vmatmul.mubr.f32.gmra.mrb[0].mxu0 %v5100
  %v5468 = vpop.f32.mrb[0].mxu0
  %v5469 = vadd.f32 0.0, %v5468
  %v5470 = vpop.f32.mrb[0].mxu0
  %5471 = vmatprep.mubr.f32.mxu0 0.0
  %5472 = vmatmul.mubr.f32.gmra.mrb[0].mxu0 %v5103
  %v5473 = vpop.f32.mrb[0].mxu0
  %v5474 = vadd.f32 0.0, %v5473
  %v5475 = vpop.f32.mrb[0].mxu0
  %5476 = vmatprep.mubr.f32.mxu0 0.0
  %5477 = vmatmul.mubr.f32.gmra.mrb[0].mxu0 %v5106
  %v5478 = vpop.f32.mrb[0].mxu0
  %v5479 = vadd.f32 0.0, %v5478
  %v5480 = vpop.f32.mrb[0].mxu0
  %5481 = vmatprep.mubr.f32.mxu0 0.0
  %5482 = vmatmul.mubr.f32.gmra.mrb[0].mxu0 %v5109
  %v5483 = vpop.f32.mrb[0].mxu0
  %v5484 = vadd.f32 0.0, %v5483
  %v5485 = vpop.f32.mrb[0].mxu0
  %5486 = vmatprep.mubr.f32.mxu0 0.0
  %5487 = vmatmul.mubr.f32.gmra.mrb[0].mxu0 %v5112
  %v5488 = vpop.f32.mrb[0].mxu0
  %v5489 = vadd.f32 0.0, %v5488
  %v5490 = vpop.f32.mrb[0].mxu0
  %5491 = vmatprep.mubr.f32.mxu0 0.0
  %5492 = vmatmul.mubr.f32.gmra.mrb[0].mxu0 %v5115
  %v5493 = vpop.f32.mrb[0].mxu0
  %v5494 = vadd.f32 0.0, %v5493
  %v5495 = vpop.f32.mrb[0].mxu0
  %5496 = vmatprep.mubr.f32.mxu0 0.0
  %5497 = vmatmul.mubr.f32.gmra.mrb[0].mxu0 %v5118
  %v5498 = vpop.f32.mrb[0].mxu0
  %v5499 = vadd.f32 0.0, %v5498
  %v5500 = vpop.f32.mrb[0].mxu0
  %5501 = vmatprep.mubr.f32.mxu0 0.0
  %5502 = vmatmul.mubr.f32.gmra.mrb[0].mxu0 %v5121
  %v5503 = vpop.f32.mrb[0].mxu0
  %v5504 = vadd.f32 0.0, %v5503
  %v5505 = vpop.f32.mrb[0].mxu0
  %5506 = vmatprep.mubr.f32.mxu0 0.0
  %5507 = vmatmul.mubr.f32.gmra.mrb[0].mxu0 %v5124
  %v5508 = vpop.f32.mrb[0].mxu0
  %v5509 = vadd.f32 0.0, %v5508
  %v5510 = vpop.f32.mrb[0].mxu0
  %5511 = vmatprep.mubr.f32.mxu0 0.0
  %5512 = vmatmul.mubr.f32.gmra.mrb[0].mxu0 %v5127
  %v5513 = vpop.f32.mrb[0].mxu0
  %v5514 = vadd.f32 0.0, %v5513
  %v5515 = vpop.f32.mrb[0].mxu0
  %5516 = vdwg.mxu0
  %v5517 = vadd.f32 %v4807, %v5199
  %v5518 = vadd.f32 %v4808, %v5204
  %v5519 = vadd.f32 %v4809, %v5209
  %v5520 = vadd.f32 %v4810, %v5214
  %v5521 = vadd.f32 %v4811, %v5219
  %v5522 = vadd.f32 %v4812, %v5224
  %v5523 = vadd.f32 %v4813, %v5229
  %v5524 = vadd.f32 %v4814, %v5234
  %v5525 = vadd.f32 %v4815, %v5239
  %v5526 = vadd.f32 %v4816, %v5244
  %v5527 = vadd.f32 %v4817, %v5249
  %v5528 = vadd.f32 %v4818, %v5254
  %v5529 = vadd.f32 %v4819, %v5259
  %v5530 = vadd.f32 %v4820, %v5264
  %v5531 = vadd.f32 %v4821, %v5269
  %v5532 = vadd.f32 %v4822, %v5274
  %v5533 = vadd.f32 %v4823, %v5279
  %v5534 = vadd.f32 %v4824, %v5284
  %v5535 = vadd.f32 %v4825, %v5289
  %v5536 = vadd.f32 %v4826, %v5294
  %v5537 = vadd.f32 %v4827, %v5299
  %v5538 = vadd.f32 %v4828, %v5304
  %v5539 = vadd.f32 %v4829, %v5309
  %v5540 = vadd.f32 %v4830, %v5314
  %v5541 = vadd.f32 %v4831, %v5319
  %v5542 = vadd.f32 %v4832, %v5324
  %v5543 = vadd.f32 %v4833, %v5329
  %v5544 = vadd.f32 %v4834, %v5334
  %v5545 = vadd.f32 %v4835, %v5339
  %v5546 = vadd.f32 %v4836, %v5344
  %v5547 = vadd.f32 %v4837, %v5349
  %v5548 = vadd.f32 %v4838, %v5354
  %v5549 = vadd.f32 %v4839, %v5359
  %v5550 = vadd.f32 %v4840, %v5364
  %v5551 = vadd.f32 %v4841, %v5369
  %v5552 = vadd.f32 %v4842, %v5374
  %v5553 = vadd.f32 %v4843, %v5379
  %v5554 = vadd.f32 %v4844, %v5384
  %v5555 = vadd.f32 %v4845, %v5389
  %v5556 = vadd.f32 %v4846, %v5394
  %v5557 = vadd.f32 %v4847, %v5399
  %v5558 = vadd.f32 %v4848, %v5404
  %v5559 = vadd.f32 %v4849, %v5409
  %v5560 = vadd.f32 %v4850, %v5414
  %v5561 = vadd.f32 %v4851, %v5419
  %v5562 = vadd.f32 %v4852, %v5424
  %v5563 = vadd.f32 %v4853, %v5429
  %v5564 = vadd.f32 %v4854, %v5434
  %v5565 = vadd.f32 %v4855, %v5439
  %v5566 = vadd.f32 %v4856, %v5444
  %v5567 = vadd.f32 %v4857, %v5449
  %v5568 = vadd.f32 %v4858, %v5454
  %v5569 = vadd.f32 %v4859, %v5459
  %v5570 = vadd.f32 %v4860, %v5464
  %v5571 = vadd.f32 %v4861, %v5469
  %v5572 = vadd.f32 %v4862, %v5474
  %v5573 = vadd.f32 %v4863, %v5479
  %v5574 = vadd.f32 %v4864, %v5484
  %v5575 = vadd.f32 %v4865, %v5489
  %v5576 = vadd.f32 %v4866, %v5494
  %v5577 = vadd.f32 %v4867, %v5499
  %v5578 = vadd.f32 %v4868, %v5504
  %v5579 = vadd.f32 %v4869, %v5509
  %v5580 = vadd.f32 %v4870, %v5514
  %v5581 = vld [vmem:[%s4160 + $0x2] sm:$0xff]
  %v5582 = vld [vmem:[%s4160 + $0xa] sm:$0xff]
  %v5583 = vld [vmem:[%s4160 + $0x1a] sm:$0xff]
  %v5584 = vld [vmem:[%s4160 + $0x22] sm:$0xff]
  %v5585 = vld [vmem:[%s4160 + $0x32] sm:$0xff]
  %v5586 = vld [vmem:[%s4160 + $0x3a] sm:$0xff]
  %v5587 = vld [vmem:[%s4160 + $0x4a] sm:$0xff]
  %v5588 = vld [vmem:[%s4160 + $0x52] sm:$0xff]
  %v5589 = vld [vmem:[%s4160 + $0x62] sm:$0xff]
  %v5590 = vld [vmem:[%s4160 + $0x6a] sm:$0xff]
  %v5591 = vld [vmem:[%s4160 + $0x7a] sm:$0xff]
  %v5592 = vld [vmem:[%s4160 + $0x82] sm:$0xff]
  %v5593 = vld [vmem:[%s4160 + $0x92] sm:$0xff]
  %v5594 = vld [vmem:[%s4160 + $0x9a] sm:$0xff]
  %v5595 = vld [vmem:[%s4160 + $0xaa] sm:$0xff]
  %v5596 = vld [vmem:[%s4160 + $0xb2] sm:$0xff]
  %v5597 = vld [vmem:[%s4160 + $0xc2] sm:$0xff]
  %v5598 = vld [vmem:[%s4160 + $0xca] sm:$0xff]
  %v5599 = vld [vmem:[%s4160 + $0xda] sm:$0xff]
  %v5600 = vld [vmem:[%s4160 + $0xe2] sm:$0xff]
  %v5601 = vld [vmem:[%s4160 + $0xf2] sm:$0xff]
  %v5602 = vld [vmem:[%s4160 + $0xfa] sm:$0xff]
  %v5603 = vld [vmem:[%s4160 + $0x10a] sm:$0xff]
  %v5604 = vld [vmem:[%s4160 + $0x112] sm:$0xff]
  %v5605 = vld [vmem:[%s4160 + $0x122] sm:$0xff]
  %v5606 = vld [vmem:[%s4160 + $0x12a] sm:$0xff]
  %v5607 = vld [vmem:[%s4160 + $0x13a] sm:$0xff]
  %v5608 = vld [vmem:[%s4160 + $0x142] sm:$0xff]
  %v5609 = vld [vmem:[%s4160 + $0x152] sm:$0xff]
  %v5610 = vld [vmem:[%s4160 + $0x15a] sm:$0xff]
  %v5611 = vld [vmem:[%s4160 + $0x16a] sm:$0xff]
  %v5612 = vld [vmem:[%s4160 + $0x172] sm:$0xff]
  %v5613 = vld [vmem:[%s4160 + $0x1b2] sm:$0xff]
  %v5614 = vld [vmem:[%s4160 + $0x1ba] sm:$0xff]
  %v5615 = vld [vmem:[%s4160 + $0x1ca] sm:$0xff]
  %v5616 = vld [vmem:[%s4160 + $0x1d2] sm:$0xff]
  %v5617 = vld [vmem:[%s4160 + $0x1e2] sm:$0xff]
  %v5618 = vld [vmem:[%s4160 + $0x1ea] sm:$0xff]
  %v5619 = vld [vmem:[%s4160 + $0x1fa] sm:$0xff]
  %v5620 = vld [vmem:[%s4160 + $0x202] sm:$0xff]
  %v5621 = vld [vmem:[%s4160 + $0x212] sm:$0xff]
  %v5622 = vld [vmem:[%s4160 + $0x21a] sm:$0xff]
  %v5623 = vld [vmem:[%s4160 + $0x22a] sm:$0xff]
  %v5624 = vld [vmem:[%s4160 + $0x232] sm:$0xff]
  %v5625 = vld [vmem:[%s4160 + $0x242] sm:$0xff]
  %v5626 = vld [vmem:[%s4160 + $0x24a] sm:$0xff]
  %v5627 = vld [vmem:[%s4160 + $0x25a] sm:$0xff]
  %v5628 = vld [vmem:[%s4160 + $0x262] sm:$0xff]
  %v5629 = vld [vmem:[%s4160 + $0x272] sm:$0xff]
  %v5630 = vld [vmem:[%s4160 + $0x27a] sm:$0xff]
  %v5631 = vld [vmem:[%s4160 + $0x28a] sm:$0xff]
  %v5632 = vld [vmem:[%s4160 + $0x292] sm:$0xff]
  %v5633 = vld [vmem:[%s4160 + $0x2a2] sm:$0xff]
  %v5634 = vld [vmem:[%s4160 + $0x2aa] sm:$0xff]
  %v5635 = vld [vmem:[%s4160 + $0x2ba] sm:$0xff]
  %v5636 = vld [vmem:[%s4160 + $0x2c2] sm:$0xff]
  %v5637 = vld [vmem:[%s4160 + $0x2d2] sm:$0xff]
  %v5638 = vld [vmem:[%s4160 + $0x2da] sm:$0xff]
  %v5639 = vld [vmem:[%s4160 + $0x2ea] sm:$0xff]
  %v5640 = vld [vmem:[%s4160 + $0x2f2] sm:$0xff]
  %v5641 = vld [vmem:[%s4160 + $0x302] sm:$0xff]
  %v5642 = vld [vmem:[%s4160 + $0x30a] sm:$0xff]
  %v5643 = vld [vmem:[%s4160 + $0x31a] sm:$0xff]
  %v5644 = vld [vmem:[%s4160 + $0x322] sm:$0xff]
  %s5645 = scalar_lea.vmem %s1, 32
  %v5646 = vld [vmem:[%s5645] sm:$0xf]
  %v5648 = vsel %vm157, %v5581, 0
  %v5651 = vsel %vm157, %v5582, 0
  %v5654 = vsel %vm157, %v5583, 0
  %v5657 = vsel %vm157, %v5584, 0
  %v5660 = vsel %vm157, %v5585, 0
  %v5663 = vsel %vm157, %v5586, 0
  %v5666 = vsel %vm157, %v5587, 0
  %v5669 = vsel %vm157, %v5588, 0
  %v5672 = vsel %vm157, %v5589, 0
  %v5675 = vsel %vm157, %v5590, 0
  %v5678 = vsel %vm157, %v5591, 0
  %v5681 = vsel %vm157, %v5592, 0
  %v5684 = vsel %vm157, %v5593, 0
  %v5687 = vsel %vm157, %v5594, 0
  %v5690 = vsel %vm157, %v5595, 0
  %v5693 = vsel %vm157, %v5596, 0
  %v5696 = vsel %vm157, %v5597, 0
  %v5699 = vsel %vm157, %v5598, 0
  %v5702 = vsel %vm157, %v5599, 0
  %v5705 = vsel %vm157, %v5600, 0
  %v5708 = vsel %vm157, %v5601, 0
  %v5711 = vsel %vm157, %v5602, 0
  %v5714 = vsel %vm157, %v5603, 0
  %v5717 = vsel %vm157, %v5604, 0
  %v5720 = vsel %vm157, %v5605, 0
  %v5723 = vsel %vm157, %v5606, 0
  %v5726 = vsel %vm157, %v5607, 0
  %v5729 = vsel %vm157, %v5608, 0
  %v5732 = vsel %vm157, %v5609, 0
  %v5735 = vsel %vm157, %v5610, 0
  %v5738 = vsel %vm157, %v5611, 0
  %v5741 = vsel %vm157, %v5612, 0
  %v5744 = vsel %vm157, %v5613, 0
  %v5747 = vsel %vm157, %v5614, 0
  %v5750 = vsel %vm157, %v5615, 0
  %v5753 = vsel %vm157, %v5616, 0
  %v5756 = vsel %vm157, %v5617, 0
  %v5759 = vsel %vm157, %v5618, 0
  %v5762 = vsel %vm157, %v5619, 0
  %v5765 = vsel %vm157, %v5620, 0
  %v5768 = vsel %vm157, %v5621, 0
  %v5771 = vsel %vm157, %v5622, 0
  %v5774 = vsel %vm157, %v5623, 0
  %v5777 = vsel %vm157, %v5624, 0
  %v5780 = vsel %vm157, %v5625, 0
  %v5783 = vsel %vm157, %v5626, 0
  %v5786 = vsel %vm157, %v5627, 0
  %v5789 = vsel %vm157, %v5628, 0
  %v5792 = vsel %vm157, %v5629, 0
  %v5795 = vsel %vm157, %v5630, 0
  %v5798 = vsel %vm157, %v5631, 0
  %v5801 = vsel %vm157, %v5632, 0
  %v5804 = vsel %vm157, %v5633, 0
  %v5807 = vsel %vm157, %v5634, 0
  %v5810 = vsel %vm157, %v5635, 0
  %v5813 = vsel %vm157, %v5636, 0
  %v5816 = vsel %vm157, %v5637, 0
  %v5819 = vsel %vm157, %v5638, 0
  %v5822 = vsel %vm157, %v5639, 0
  %v5825 = vsel %vm157, %v5640, 0
  %v5828 = vsel %vm157, %v5641, 0
  %v5831 = vsel %vm157, %v5642, 0
  %v5834 = vsel %vm157, %v5643, 0
  %v5837 = vsel %vm157, %v5644, 0
  %v5840 = vsel %vm350, %v5646, 0
  %5842 = vmatprep.subr.mxu0 0.0
  %5843 = vmatpush1.msra.mxu0 %v5840
  %5844 = vmatprep.subr.mxu0 0.0
  %5845 = vmatpush1.msra.mxu0 0.0
  %5846 = vmatprep.subr.mxu0 0.0
  %5847 = vmatpush1.msra.mxu0 0.0
  %5848 = vmatprep.subr.mxu0 0.0
  %5849 = vmatpush1.msra.mxu0 0.0
  %5850 = vmatprep.subr.mxu0 0.0
  %5851 = vmatpush1.msra.mxu0 0.0
  %5852 = vmatprep.subr.mxu0 0.0
  %5853 = vmatpush1.msra.mxu0 0.0
  %5854 = vmatprep.subr.mxu0 0.0
  %5855 = vmatpush1.msra.mxu0 0.0
  %5856 = vmatprep.subr.mxu0 0.0
  %5857 = vmatpush1.msra.mxu0 0.0
  %5858 = vmatprep.subr.mxu0 0.0
  %5859 = vmatpush1.msra.mxu0 0.0
  %5860 = vmatprep.subr.mxu0 0.0
  %5861 = vmatpush1.msra.mxu0 0.0
  %5862 = vmatprep.subr.mxu0 0.0
  %5863 = vmatpush1.msra.mxu0 0.0
  %5864 = vmatprep.subr.mxu0 0.0
  %5865 = vmatpush1.msra.mxu0 0.0
  %5866 = vmatprep.subr.mxu0 0.0
  %5867 = vmatpush1.msra.mxu0 0.0
  %5868 = vmatprep.subr.mxu0 0.0
  %5869 = vmatpush1.msra.mxu0 0.0
  %5870 = vmatprep.subr.mxu0 0.0
  %5871 = vmatpush1.msra.mxu0 0.0
  %5872 = vmatprep.subr.mxu0 0.0
  %5873 = vmatpush1.msra.mxu0 0.0
  %5874 = vmatprep.subr.mxu0 0.0
  %5875 = vmatpush1.msra.mxu0 0.0
  %5876 = vmatprep.subr.mxu0 0.0
  %5877 = vmatpush1.msra.mxu0 0.0
  %5878 = vmatprep.subr.mxu0 0.0
  %5879 = vmatpush1.msra.mxu0 0.0
  %5880 = vmatprep.subr.mxu0 0.0
  %5881 = vmatpush1.msra.mxu0 0.0
  %5882 = vmatprep.subr.mxu0 0.0
  %5883 = vmatpush1.msra.mxu0 0.0
  %5884 = vmatprep.subr.mxu0 0.0
  %5885 = vmatpush1.msra.mxu0 0.0
  %5886 = vmatprep.subr.mxu0 0.0
  %5887 = vmatpush1.msra.mxu0 0.0
  %5888 = vmatprep.subr.mxu0 0.0
  %5889 = vmatpush1.msra.mxu0 0.0
  %5890 = vmatprep.subr.mxu0 0.0
  %5891 = vmatpush1.msra.mxu0 0.0
  %5892 = vmatprep.subr.mxu0 0.0
  %5893 = vmatpush1.msra.mxu0 0.0
  %5894 = vmatprep.subr.mxu0 0.0
  %5895 = vmatpush1.msra.mxu0 0.0
  %5896 = vmatprep.subr.mxu0 0.0
  %5897 = vmatpush1.msra.mxu0 0.0
  %5898 = vmatprep.subr.mxu0 0.0
  %5899 = vmatpush1.msra.mxu0 0.0
  %5900 = vmatprep.subr.mxu0 0.0
  %5901 = vmatpush1.msra.mxu0 0.0
  %5902 = vmatprep.subr.mxu0 0.0
  %5903 = vmatpush1.msra.mxu0 0.0
  %5904 = vmatprep.subr.mxu0 0.0
  %5905 = vmatpush1.msra.mxu0 0.0
  %5906 = vmatprep.mubr.f32.mxu0 0.0
  %5907 = vmatmul.mubr.f32.gmra.mrb[0].mxu0 %v5648
  %v5908 = vpop.f32.mrb[0].mxu0
  %v5909 = vadd.f32 0.0, %v5908
  %v5910 = vpop.f32.mrb[0].mxu0
  %5911 = vmatprep.mubr.f32.mxu0 0.0
  %5912 = vmatmul.mubr.f32.gmra.mrb[0].mxu0 %v5651
  %v5913 = vpop.f32.mrb[0].mxu0
  %v5914 = vadd.f32 0.0, %v5913
  %v5915 = vpop.f32.mrb[0].mxu0
  %5916 = vmatprep.mubr.f32.mxu0 0.0
  %5917 = vmatmul.mubr.f32.gmra.mrb[0].mxu0 %v5654
  %v5918 = vpop.f32.mrb[0].mxu0
  %v5919 = vadd.f32 0.0, %v5918
  %v5920 = vpop.f32.mrb[0].mxu0
  %5921 = vmatprep.mubr.f32.mxu0 0.0
  %5922 = vmatmul.mubr.f32.gmra.mrb[0].mxu0 %v5657
  %v5923 = vpop.f32.mrb[0].mxu0
  %v5924 = vadd.f32 0.0, %v5923
  %v5925 = vpop.f32.mrb[0].mxu0
  %5926 = vmatprep.mubr.f32.mxu0 0.0
  %5927 = vmatmul.mubr.f32.gmra.mrb[0].mxu0 %v5660
  %v5928 = vpop.f32.mrb[0].mxu0
  %v5929 = vadd.f32 0.0, %v5928
  %v5930 = vpop.f32.mrb[0].mxu0
  %5931 = vmatprep.mubr.f32.mxu0 0.0
  %5932 = vmatmul.mubr.f32.gmra.mrb[0].mxu0 %v5663
  %v5933 = vpop.f32.mrb[0].mxu0
  %v5934 = vadd.f32 0.0, %v5933
  %v5935 = vpop.f32.mrb[0].mxu0
  %5936 = vmatprep.mubr.f32.mxu0 0.0
  %5937 = vmatmul.mubr.f32.gmra.mrb[0].mxu0 %v5666
  %v5938 = vpop.f32.mrb[0].mxu0
  %v5939 = vadd.f32 0.0, %v5938
  %v5940 = vpop.f32.mrb[0].mxu0
  %5941 = vmatprep.mubr.f32.mxu0 0.0
  %5942 = vmatmul.mubr.f32.gmra.mrb[0].mxu0 %v5669
  %v5943 = vpop.f32.mrb[0].mxu0
  %v5944 = vadd.f32 0.0, %v5943
  %v5945 = vpop.f32.mrb[0].mxu0
  %5946 = vmatprep.mubr.f32.mxu0 0.0
  %5947 = vmatmul.mubr.f32.gmra.mrb[0].mxu0 %v5672
  %v5948 = vpop.f32.mrb[0].mxu0
  %v5949 = vadd.f32 0.0, %v5948
  %v5950 = vpop.f32.mrb[0].mxu0
  %5951 = vmatprep.mubr.f32.mxu0 0.0
  %5952 = vmatmul.mubr.f32.gmra.mrb[0].mxu0 %v5675
  %v5953 = vpop.f32.mrb[0].mxu0
  %v5954 = vadd.f32 0.0, %v5953
  %v5955 = vpop.f32.mrb[0].mxu0
  %5956 = vmatprep.mubr.f32.mxu0 0.0
  %5957 = vmatmul.mubr.f32.gmra.mrb[0].mxu0 %v5678
  %v5958 = vpop.f32.mrb[0].mxu0
  %v5959 = vadd.f32 0.0, %v5958
  %v5960 = vpop.f32.mrb[0].mxu0
  %5961 = vmatprep.mubr.f32.mxu0 0.0
  %5962 = vmatmul.mubr.f32.gmra.mrb[0].mxu0 %v5681
  %v5963 = vpop.f32.mrb[0].mxu0
  %v5964 = vadd.f32 0.0, %v5963
  %v5965 = vpop.f32.mrb[0].mxu0
  %5966 = vmatprep.mubr.f32.mxu0 0.0
  %5967 = vmatmul.mubr.f32.gmra.mrb[0].mxu0 %v5684
  %v5968 = vpop.f32.mrb[0].mxu0
  %v5969 = vadd.f32 0.0, %v5968
  %v5970 = vpop.f32.mrb[0].mxu0
  %5971 = vmatprep.mubr.f32.mxu0 0.0
  %5972 = vmatmul.mubr.f32.gmra.mrb[0].mxu0 %v5687
  %v5973 = vpop.f32.mrb[0].mxu0
  %v5974 = vadd.f32 0.0, %v5973
  %v5975 = vpop.f32.mrb[0].mxu0
  %5976 = vmatprep.mubr.f32.mxu0 0.0
  %5977 = vmatmul.mubr.f32.gmra.mrb[0].mxu0 %v5690
  %v5978 = vpop.f32.mrb[0].mxu0
  %v5979 = vadd.f32 0.0, %v5978
  %v5980 = vpop.f32.mrb[0].mxu0
  %5981 = vmatprep.mubr.f32.mxu0 0.0
  %5982 = vmatmul.mubr.f32.gmra.mrb[0].mxu0 %v5693
  %v5983 = vpop.f32.mrb[0].mxu0
  %v5984 = vadd.f32 0.0, %v5983
  %v5985 = vpop.f32.mrb[0].mxu0
  %5986 = vmatprep.mubr.f32.mxu0 0.0
  %5987 = vmatmul.mubr.f32.gmra.mrb[0].mxu0 %v5696
  %v5988 = vpop.f32.mrb[0].mxu0
  %v5989 = vadd.f32 0.0, %v5988
  %v5990 = vpop.f32.mrb[0].mxu0
  %5991 = vmatprep.mubr.f32.mxu0 0.0
  %5992 = vmatmul.mubr.f32.gmra.mrb[0].mxu0 %v5699
  %v5993 = vpop.f32.mrb[0].mxu0
  %v5994 = vadd.f32 0.0, %v5993
  %v5995 = vpop.f32.mrb[0].mxu0
  %5996 = vmatprep.mubr.f32.mxu0 0.0
  %5997 = vmatmul.mubr.f32.gmra.mrb[0].mxu0 %v5702
  %v5998 = vpop.f32.mrb[0].mxu0
  %v5999 = vadd.f32 0.0, %v5998
  %v6000 = vpop.f32.mrb[0].mxu0
  %6001 = vmatprep.mubr.f32.mxu0 0.0
  %6002 = vmatmul.mubr.f32.gmra.mrb[0].mxu0 %v5705
  %v6003 = vpop.f32.mrb[0].mxu0
  %v6004 = vadd.f32 0.0, %v6003
  %v6005 = vpop.f32.mrb[0].mxu0
  %6006 = vmatprep.mubr.f32.mxu0 0.0
  %6007 = vmatmul.mubr.f32.gmra.mrb[0].mxu0 %v5708
  %v6008 = vpop.f32.mrb[0].mxu0
  %v6009 = vadd.f32 0.0, %v6008
  %v6010 = vpop.f32.mrb[0].mxu0
  %6011 = vmatprep.mubr.f32.mxu0 0.0
  %6012 = vmatmul.mubr.f32.gmra.mrb[0].mxu0 %v5711
  %v6013 = vpop.f32.mrb[0].mxu0
  %v6014 = vadd.f32 0.0, %v6013
  %v6015 = vpop.f32.mrb[0].mxu0
  %6016 = vmatprep.mubr.f32.mxu0 0.0
  %6017 = vmatmul.mubr.f32.gmra.mrb[0].mxu0 %v5714
  %v6018 = vpop.f32.mrb[0].mxu0
  %v6019 = vadd.f32 0.0, %v6018
  %v6020 = vpop.f32.mrb[0].mxu0
  %6021 = vmatprep.mubr.f32.mxu0 0.0
  %6022 = vmatmul.mubr.f32.gmra.mrb[0].mxu0 %v5717
  %v6023 = vpop.f32.mrb[0].mxu0
  %v6024 = vadd.f32 0.0, %v6023
  %v6025 = vpop.f32.mrb[0].mxu0
  %6026 = vmatprep.mubr.f32.mxu0 0.0
  %6027 = vmatmul.mubr.f32.gmra.mrb[0].mxu0 %v5720
  %v6028 = vpop.f32.mrb[0].mxu0
  %v6029 = vadd.f32 0.0, %v6028
  %v6030 = vpop.f32.mrb[0].mxu0
  %6031 = vmatprep.mubr.f32.mxu0 0.0
  %6032 = vmatmul.mubr.f32.gmra.mrb[0].mxu0 %v5723
  %v6033 = vpop.f32.mrb[0].mxu0
  %v6034 = vadd.f32 0.0, %v6033
  %v6035 = vpop.f32.mrb[0].mxu0
  %6036 = vmatprep.mubr.f32.mxu0 0.0
  %6037 = vmatmul.mubr.f32.gmra.mrb[0].mxu0 %v5726
  %v6038 = vpop.f32.mrb[0].mxu0
  %v6039 = vadd.f32 0.0, %v6038
  %v6040 = vpop.f32.mrb[0].mxu0
  %6041 = vmatprep.mubr.f32.mxu0 0.0
  %6042 = vmatmul.mubr.f32.gmra.mrb[0].mxu0 %v5729
  %v6043 = vpop.f32.mrb[0].mxu0
  %v6044 = vadd.f32 0.0, %v6043
  %v6045 = vpop.f32.mrb[0].mxu0
  %6046 = vmatprep.mubr.f32.mxu0 0.0
  %6047 = vmatmul.mubr.f32.gmra.mrb[0].mxu0 %v5732
  %v6048 = vpop.f32.mrb[0].mxu0
  %v6049 = vadd.f32 0.0, %v6048
  %v6050 = vpop.f32.mrb[0].mxu0
  %6051 = vmatprep.mubr.f32.mxu0 0.0
  %6052 = vmatmul.mubr.f32.gmra.mrb[0].mxu0 %v5735
  %v6053 = vpop.f32.mrb[0].mxu0
  %v6054 = vadd.f32 0.0, %v6053
  %v6055 = vpop.f32.mrb[0].mxu0
  %6056 = vmatprep.mubr.f32.mxu0 0.0
  %6057 = vmatmul.mubr.f32.gmra.mrb[0].mxu0 %v5738
  %v6058 = vpop.f32.mrb[0].mxu0
  %v6059 = vadd.f32 0.0, %v6058
  %v6060 = vpop.f32.mrb[0].mxu0
  %6061 = vmatprep.mubr.f32.mxu0 0.0
  %6062 = vmatmul.mubr.f32.gmra.mrb[0].mxu0 %v5741
  %v6063 = vpop.f32.mrb[0].mxu0
  %v6064 = vadd.f32 0.0, %v6063
  %v6065 = vpop.f32.mrb[0].mxu0
  %6066 = vmatprep.mubr.f32.mxu0 0.0
  %6067 = vmatmul.mubr.f32.gmra.mrb[0].mxu0 %v5744
  %v6068 = vpop.f32.mrb[0].mxu0
  %v6069 = vadd.f32 0.0, %v6068
  %v6070 = vpop.f32.mrb[0].mxu0
  %6071 = vmatprep.mubr.f32.mxu0 0.0
  %6072 = vmatmul.mubr.f32.gmra.mrb[0].mxu0 %v5747
  %v6073 = vpop.f32.mrb[0].mxu0
  %v6074 = vadd.f32 0.0, %v6073
  %v6075 = vpop.f32.mrb[0].mxu0
  %6076 = vmatprep.mubr.f32.mxu0 0.0
  %6077 = vmatmul.mubr.f32.gmra.mrb[0].mxu0 %v5750
  %v6078 = vpop.f32.mrb[0].mxu0
  %v6079 = vadd.f32 0.0, %v6078
  %v6080 = vpop.f32.mrb[0].mxu0
  %6081 = vmatprep.mubr.f32.mxu0 0.0
  %6082 = vmatmul.mubr.f32.gmra.mrb[0].mxu0 %v5753
  %v6083 = vpop.f32.mrb[0].mxu0
  %v6084 = vadd.f32 0.0, %v6083
  %v6085 = vpop.f32.mrb[0].mxu0
  %6086 = vmatprep.mubr.f32.mxu0 0.0
  %6087 = vmatmul.mubr.f32.gmra.mrb[0].mxu0 %v5756
  %v6088 = vpop.f32.mrb[0].mxu0
  %v6089 = vadd.f32 0.0, %v6088
  %v6090 = vpop.f32.mrb[0].mxu0
  %6091 = vmatprep.mubr.f32.mxu0 0.0
  %6092 = vmatmul.mubr.f32.gmra.mrb[0].mxu0 %v5759
  %v6093 = vpop.f32.mrb[0].mxu0
  %v6094 = vadd.f32 0.0, %v6093
  %v6095 = vpop.f32.mrb[0].mxu0
  %6096 = vmatprep.mubr.f32.mxu0 0.0
  %6097 = vmatmul.mubr.f32.gmra.mrb[0].mxu0 %v5762
  %v6098 = vpop.f32.mrb[0].mxu0
  %v6099 = vadd.f32 0.0, %v6098
  %v6100 = vpop.f32.mrb[0].mxu0
  %6101 = vmatprep.mubr.f32.mxu0 0.0
  %6102 = vmatmul.mubr.f32.gmra.mrb[0].mxu0 %v5765
  %v6103 = vpop.f32.mrb[0].mxu0
  %v6104 = vadd.f32 0.0, %v6103
  %v6105 = vpop.f32.mrb[0].mxu0
  %6106 = vmatprep.mubr.f32.mxu0 0.0
  %6107 = vmatmul.mubr.f32.gmra.mrb[0].mxu0 %v5768
  %v6108 = vpop.f32.mrb[0].mxu0
  %v6109 = vadd.f32 0.0, %v6108
  %v6110 = vpop.f32.mrb[0].mxu0
  %6111 = vmatprep.mubr.f32.mxu0 0.0
  %6112 = vmatmul.mubr.f32.gmra.mrb[0].mxu0 %v5771
  %v6113 = vpop.f32.mrb[0].mxu0
  %v6114 = vadd.f32 0.0, %v6113
  %v6115 = vpop.f32.mrb[0].mxu0
  %6116 = vmatprep.mubr.f32.mxu0 0.0
  %6117 = vmatmul.mubr.f32.gmra.mrb[0].mxu0 %v5774
  %v6118 = vpop.f32.mrb[0].mxu0
  %v6119 = vadd.f32 0.0, %v6118
  %v6120 = vpop.f32.mrb[0].mxu0
  %6121 = vmatprep.mubr.f32.mxu0 0.0
  %6122 = vmatmul.mubr.f32.gmra.mrb[0].mxu0 %v5777
  %v6123 = vpop.f32.mrb[0].mxu0
  %v6124 = vadd.f32 0.0, %v6123
  %v6125 = vpop.f32.mrb[0].mxu0
  %6126 = vmatprep.mubr.f32.mxu0 0.0
  %6127 = vmatmul.mubr.f32.gmra.mrb[0].mxu0 %v5780
  %v6128 = vpop.f32.mrb[0].mxu0
  %v6129 = vadd.f32 0.0, %v6128
  %v6130 = vpop.f32.mrb[0].mxu0
  %6131 = vmatprep.mubr.f32.mxu0 0.0
  %6132 = vmatmul.mubr.f32.gmra.mrb[0].mxu0 %v5783
  %v6133 = vpop.f32.mrb[0].mxu0
  %v6134 = vadd.f32 0.0, %v6133
  %v6135 = vpop.f32.mrb[0].mxu0
  %6136 = vmatprep.mubr.f32.mxu0 0.0
  %6137 = vmatmul.mubr.f32.gmra.mrb[0].mxu0 %v5786
  %v6138 = vpop.f32.mrb[0].mxu0
  %v6139 = vadd.f32 0.0, %v6138
  %v6140 = vpop.f32.mrb[0].mxu0
  %6141 = vmatprep.mubr.f32.mxu0 0.0
  %6142 = vmatmul.mubr.f32.gmra.mrb[0].mxu0 %v5789
  %v6143 = vpop.f32.mrb[0].mxu0
  %v6144 = vadd.f32 0.0, %v6143
  %v6145 = vpop.f32.mrb[0].mxu0
  %6146 = vmatprep.mubr.f32.mxu0 0.0
  %6147 = vmatmul.mubr.f32.gmra.mrb[0].mxu0 %v5792
  %v6148 = vpop.f32.mrb[0].mxu0
  %v6149 = vadd.f32 0.0, %v6148
  %v6150 = vpop.f32.mrb[0].mxu0
  %6151 = vmatprep.mubr.f32.mxu0 0.0
  %6152 = vmatmul.mubr.f32.gmra.mrb[0].mxu0 %v5795
  %v6153 = vpop.f32.mrb[0].mxu0
  %v6154 = vadd.f32 0.0, %v6153
  %v6155 = vpop.f32.mrb[0].mxu0
  %6156 = vmatprep.mubr.f32.mxu0 0.0
  %6157 = vmatmul.mubr.f32.gmra.mrb[0].mxu0 %v5798
  %v6158 = vpop.f32.mrb[0].mxu0
  %v6159 = vadd.f32 0.0, %v6158
  %v6160 = vpop.f32.mrb[0].mxu0
  %6161 = vmatprep.mubr.f32.mxu0 0.0
  %6162 = vmatmul.mubr.f32.gmra.mrb[0].mxu0 %v5801
  %v6163 = vpop.f32.mrb[0].mxu0
  %v6164 = vadd.f32 0.0, %v6163
  %v6165 = vpop.f32.mrb[0].mxu0
  %6166 = vmatprep.mubr.f32.mxu0 0.0
  %6167 = vmatmul.mubr.f32.gmra.mrb[0].mxu0 %v5804
  %v6168 = vpop.f32.mrb[0].mxu0
  %v6169 = vadd.f32 0.0, %v6168
  %v6170 = vpop.f32.mrb[0].mxu0
  %6171 = vmatprep.mubr.f32.mxu0 0.0
  %6172 = vmatmul.mubr.f32.gmra.mrb[0].mxu0 %v5807
  %v6173 = vpop.f32.mrb[0].mxu0
  %v6174 = vadd.f32 0.0, %v6173
  %v6175 = vpop.f32.mrb[0].mxu0
  %6176 = vmatprep.mubr.f32.mxu0 0.0
  %6177 = vmatmul.mubr.f32.gmra.mrb[0].mxu0 %v5810
  %v6178 = vpop.f32.mrb[0].mxu0
  %v6179 = vadd.f32 0.0, %v6178
  %v6180 = vpop.f32.mrb[0].mxu0
  %6181 = vmatprep.mubr.f32.mxu0 0.0
  %6182 = vmatmul.mubr.f32.gmra.mrb[0].mxu0 %v5813
  %v6183 = vpop.f32.mrb[0].mxu0
  %v6184 = vadd.f32 0.0, %v6183
  %v6185 = vpop.f32.mrb[0].mxu0
  %6186 = vmatprep.mubr.f32.mxu0 0.0
  %6187 = vmatmul.mubr.f32.gmra.mrb[0].mxu0 %v5816
  %v6188 = vpop.f32.mrb[0].mxu0
  %v6189 = vadd.f32 0.0, %v6188
  %v6190 = vpop.f32.mrb[0].mxu0
  %6191 = vmatprep.mubr.f32.mxu0 0.0
  %6192 = vmatmul.mubr.f32.gmra.mrb[0].mxu0 %v5819
  %v6193 = vpop.f32.mrb[0].mxu0
  %v6194 = vadd.f32 0.0, %v6193
  %v6195 = vpop.f32.mrb[0].mxu0
  %6196 = vmatprep.mubr.f32.mxu0 0.0
  %6197 = vmatmul.mubr.f32.gmra.mrb[0].mxu0 %v5822
  %v6198 = vpop.f32.mrb[0].mxu0
  %v6199 = vadd.f32 0.0, %v6198
  %v6200 = vpop.f32.mrb[0].mxu0
  %6201 = vmatprep.mubr.f32.mxu0 0.0
  %6202 = vmatmul.mubr.f32.gmra.mrb[0].mxu0 %v5825
  %v6203 = vpop.f32.mrb[0].mxu0
  %v6204 = vadd.f32 0.0, %v6203
  %v6205 = vpop.f32.mrb[0].mxu0
  %6206 = vmatprep.mubr.f32.mxu0 0.0
  %6207 = vmatmul.mubr.f32.gmra.mrb[0].mxu0 %v5828
  %v6208 = vpop.f32.mrb[0].mxu0
  %v6209 = vadd.f32 0.0, %v6208
  %v6210 = vpop.f32.mrb[0].mxu0
  %6211 = vmatprep.mubr.f32.mxu0 0.0
  %6212 = vmatmul.mubr.f32.gmra.mrb[0].mxu0 %v5831
  %v6213 = vpop.f32.mrb[0].mxu0
  %v6214 = vadd.f32 0.0, %v6213
  %v6215 = vpop.f32.mrb[0].mxu0
  %6216 = vmatprep.mubr.f32.mxu0 0.0
  %6217 = vmatmul.mubr.f32.gmra.mrb[0].mxu0 %v5834
  %v6218 = vpop.f32.mrb[0].mxu0
  %v6219 = vadd.f32 0.0, %v6218
  %v6220 = vpop.f32.mrb[0].mxu0
  %6221 = vmatprep.mubr.f32.mxu0 0.0
  %6222 = vmatmul.mubr.f32.gmra.mrb[0].mxu0 %v5837
  %v6223 = vpop.f32.mrb[0].mxu0
  %v6224 = vadd.f32 0.0, %v6223
  %v6225 = vpop.f32.mrb[0].mxu0
  %6226 = vdwg.mxu0
  %v6227 = vadd.f32 %v5517, %v5909
  %v6228 = vadd.f32 %v5518, %v5914
  %v6229 = vadd.f32 %v5519, %v5919
  %v6230 = vadd.f32 %v5520, %v5924
  %v6231 = vadd.f32 %v5521, %v5929
  %v6232 = vadd.f32 %v5522, %v5934
  %v6233 = vadd.f32 %v5523, %v5939
  %v6234 = vadd.f32 %v5524, %v5944
  %v6235 = vadd.f32 %v5525, %v5949
  %v6236 = vadd.f32 %v5526, %v5954
  %v6237 = vadd.f32 %v5527, %v5959
  %v6238 = vadd.f32 %v5528, %v5964
  %v6239 = vadd.f32 %v5529, %v5969
  %v6240 = vadd.f32 %v5530, %v5974
  %v6241 = vadd.f32 %v5531, %v5979
  %v6242 = vadd.f32 %v5532, %v5984
  %v6243 = vadd.f32 %v5533, %v5989
  %v6244 = vadd.f32 %v5534, %v5994
  %v6245 = vadd.f32 %v5535, %v5999
  %v6246 = vadd.f32 %v5536, %v6004
  %v6247 = vadd.f32 %v5537, %v6009
  %v6248 = vadd.f32 %v5538, %v6014
  %v6249 = vadd.f32 %v5539, %v6019
  %v6250 = vadd.f32 %v5540, %v6024
  %v6251 = vadd.f32 %v5541, %v6029
  %v6252 = vadd.f32 %v5542, %v6034
  %v6253 = vadd.f32 %v5543, %v6039
  %v6254 = vadd.f32 %v5544, %v6044
  %v6255 = vadd.f32 %v5545, %v6049
  %v6256 = vadd.f32 %v5546, %v6054
  %v6257 = vadd.f32 %v5547, %v6059
  %v6258 = vadd.f32 %v5548, %v6064
  %v6259 = vadd.f32 %v5549, %v6069
  %v6260 = vadd.f32 %v5550, %v6074
  %v6261 = vadd.f32 %v5551, %v6079
  %v6262 = vadd.f32 %v5552, %v6084
  %v6263 = vadd.f32 %v5553, %v6089
  %v6264 = vadd.f32 %v5554, %v6094
  %v6265 = vadd.f32 %v5555, %v6099
  %v6266 = vadd.f32 %v5556, %v6104
  %v6267 = vadd.f32 %v5557, %v6109
  %v6268 = vadd.f32 %v5558, %v6114
  %v6269 = vadd.f32 %v5559, %v6119
  %v6270 = vadd.f32 %v5560, %v6124
  %v6271 = vadd.f32 %v5561, %v6129
  %v6272 = vadd.f32 %v5562, %v6134
  %v6273 = vadd.f32 %v5563, %v6139
  %v6274 = vadd.f32 %v5564, %v6144
  %v6275 = vadd.f32 %v5565, %v6149
  %v6276 = vadd.f32 %v5566, %v6154
  %v6277 = vadd.f32 %v5567, %v6159
  %v6278 = vadd.f32 %v5568, %v6164
  %v6279 = vadd.f32 %v5569, %v6169
  %v6280 = vadd.f32 %v5570, %v6174
  %v6281 = vadd.f32 %v5571, %v6179
  %v6282 = vadd.f32 %v5572, %v6184
  %v6283 = vadd.f32 %v5573, %v6189
  %v6284 = vadd.f32 %v5574, %v6194
  %v6285 = vadd.f32 %v5575, %v6199
  %v6286 = vadd.f32 %v5576, %v6204
  %v6287 = vadd.f32 %v5577, %v6209
  %v6288 = vadd.f32 %v5578, %v6214
  %v6289 = vadd.f32 %v5579, %v6219
  %v6290 = vadd.f32 %v5580, %v6224
  %v6291 = vld [vmem:[%s2] sm:$0x1]
  %v6293 = vlaneseq
  %v6294 = vshrl.u32 %v6293, 7
  %v6295 = vsub.s32 0, %v6294
  %v6296 = vrot.slane %v6291, %v6295
  %v6298 = vadd.f32 %v6227, %v6296
  %v6299 = vadd.f32 %v6228, %v6296
  %v6300 = vadd.f32 %v6229, %v6296
  %v6301 = vadd.f32 %v6230, %v6296
  %v6302 = vadd.f32 %v6231, %v6296
  %v6303 = vadd.f32 %v6232, %v6296
  %v6304 = vadd.f32 %v6233, %v6296
  %v6305 = vadd.f32 %v6234, %v6296
  %v6306 = vadd.f32 %v6235, %v6296
  %v6307 = vadd.f32 %v6236, %v6296
  %v6308 = vadd.f32 %v6237, %v6296
  %v6309 = vadd.f32 %v6238, %v6296
  %v6310 = vadd.f32 %v6239, %v6296
  %v6311 = vadd.f32 %v6240, %v6296
  %v6312 = vadd.f32 %v6241, %v6296
  %v6313 = vadd.f32 %v6242, %v6296
  %v6314 = vadd.f32 %v6243, %v6296
  %v6315 = vadd.f32 %v6244, %v6296
  %v6316 = vadd.f32 %v6245, %v6296
  %v6317 = vadd.f32 %v6246, %v6296
  %v6318 = vadd.f32 %v6247, %v6296
  %v6319 = vadd.f32 %v6248, %v6296
  %v6320 = vadd.f32 %v6249, %v6296
  %v6321 = vadd.f32 %v6250, %v6296
  %v6322 = vadd.f32 %v6251, %v6296
  %v6323 = vadd.f32 %v6252, %v6296
  %v6324 = vadd.f32 %v6253, %v6296
  %v6325 = vadd.f32 %v6254, %v6296
  %v6326 = vadd.f32 %v6255, %v6296
  %v6327 = vadd.f32 %v6256, %v6296
  %v6328 = vadd.f32 %v6257, %v6296
  %v6329 = vadd.f32 %v6258, %v6296
  %v6330 = vadd.f32 %v6259, %v6296
  %v6331 = vadd.f32 %v6260, %v6296
  %v6332 = vadd.f32 %v6261, %v6296
  %v6333 = vadd.f32 %v6262, %v6296
  %v6334 = vadd.f32 %v6263, %v6296
  %v6335 = vadd.f32 %v6264, %v6296
  %v6336 = vadd.f32 %v6265, %v6296
  %v6337 = vadd.f32 %v6266, %v6296
  %v6338 = vadd.f32 %v6267, %v6296
  %v6339 = vadd.f32 %v6268, %v6296
  %v6340 = vadd.f32 %v6269, %v6296
  %v6341 = vadd.f32 %v6270, %v6296
  %v6342 = vadd.f32 %v6271, %v6296
  %v6343 = vadd.f32 %v6272, %v6296
  %v6344 = vadd.f32 %v6273, %v6296
  %v6345 = vadd.f32 %v6274, %v6296
  %v6346 = vadd.f32 %v6275, %v6296
  %v6347 = vadd.f32 %v6276, %v6296
  %v6348 = vadd.f32 %v6277, %v6296
  %v6349 = vadd.f32 %v6278, %v6296
  %v6350 = vadd.f32 %v6279, %v6296
  %v6351 = vadd.f32 %v6280, %v6296
  %v6352 = vadd.f32 %v6281, %v6296
  %v6353 = vadd.f32 %v6282, %v6296
  %v6354 = vadd.f32 %v6283, %v6296
  %v6355 = vadd.f32 %v6284, %v6296
  %v6356 = vadd.f32 %v6285, %v6296
  %v6357 = vadd.f32 %v6286, %v6296
  %v6358 = vadd.f32 %v6287, %v6296
  %v6359 = vadd.f32 %v6288, %v6296
  %v6360 = vadd.f32 %v6289, %v6296
  %v6361 = vadd.f32 %v6290, %v6296
  %v6362 = vmax.f32 %v6298, 0.0
  %v6363 = vmax.f32 %v6299, 0.0
  %v6364 = vmax.f32 %v6300, 0.0
  %v6365 = vmax.f32 %v6301, 0.0
  %v6366 = vmax.f32 %v6302, 0.0
  %v6367 = vmax.f32 %v6303, 0.0
  %v6368 = vmax.f32 %v6304, 0.0
  %v6369 = vmax.f32 %v6305, 0.0
  %v6370 = vmax.f32 %v6306, 0.0
  %v6371 = vmax.f32 %v6307, 0.0
  %v6372 = vmax.f32 %v6308, 0.0
  %v6373 = vmax.f32 %v6309, 0.0
  %v6374 = vmax.f32 %v6310, 0.0
  %v6375 = vmax.f32 %v6311, 0.0
  %v6376 = vmax.f32 %v6312, 0.0
  %v6377 = vmax.f32 %v6313, 0.0
  %v6378 = vmax.f32 %v6314, 0.0
  %v6379 = vmax.f32 %v6315, 0.0
  %v6380 = vmax.f32 %v6316, 0.0
  %v6381 = vmax.f32 %v6317, 0.0
  %v6382 = vmax.f32 %v6318, 0.0
  %v6383 = vmax.f32 %v6319, 0.0
  %v6384 = vmax.f32 %v6320, 0.0
  %v6385 = vmax.f32 %v6321, 0.0
  %v6386 = vmax.f32 %v6322, 0.0
  %v6387 = vmax.f32 %v6323, 0.0
  %v6388 = vmax.f32 %v6324, 0.0
  %v6389 = vmax.f32 %v6325, 0.0
  %v6390 = vmax.f32 %v6326, 0.0
  %v6391 = vmax.f32 %v6327, 0.0
  %v6392 = vmax.f32 %v6328, 0.0
  %v6393 = vmax.f32 %v6329, 0.0
  %v6394 = vmax.f32 %v6330, 0.0
  %v6395 = vmax.f32 %v6331, 0.0
  %v6396 = vmax.f32 %v6332, 0.0
  %v6397 = vmax.f32 %v6333, 0.0
  %v6398 = vmax.f32 %v6334, 0.0
  %v6399 = vmax.f32 %v6335, 0.0
  %v6400 = vmax.f32 %v6336, 0.0
  %v6401 = vmax.f32 %v6337, 0.0
  %v6402 = vmax.f32 %v6338, 0.0
  %v6403 = vmax.f32 %v6339, 0.0
  %v6404 = vmax.f32 %v6340, 0.0
  %v6405 = vmax.f32 %v6341, 0.0
  %v6406 = vmax.f32 %v6342, 0.0
  %v6407 = vmax.f32 %v6343, 0.0
  %v6408 = vmax.f32 %v6344, 0.0
  %v6409 = vmax.f32 %v6345, 0.0
  %v6410 = vmax.f32 %v6346, 0.0
  %v6411 = vmax.f32 %v6347, 0.0
  %v6412 = vmax.f32 %v6348, 0.0
  %v6413 = vmax.f32 %v6349, 0.0
  %v6414 = vmax.f32 %v6350, 0.0
  %v6415 = vmax.f32 %v6351, 0.0
  %v6416 = vmax.f32 %v6352, 0.0
  %v6417 = vmax.f32 %v6353, 0.0
  %v6418 = vmax.f32 %v6354, 0.0
  %v6419 = vmax.f32 %v6355, 0.0
  %v6420 = vmax.f32 %v6356, 0.0
  %v6421 = vmax.f32 %v6357, 0.0
  %v6422 = vmax.f32 %v6358, 0.0
  %v6423 = vmax.f32 %v6359, 0.0
  %v6424 = vmax.f32 %v6360, 0.0
  %v6425 = vmax.f32 %v6361, 0.0
  %vm6426 = vcmask 261120
  %6427 = vst.msk [vmem:[#allocation2] sm:$0xff] %vm6426, 0.0
  %6428 = vst.msk [vmem:[#allocation2 + $0x8] sm:$0xff] %vm6426, 0.0
  %vm6429 = vcmask 254976
  %6430 = vst.msk [vmem:[#allocation2 + $0x10] sm:$0x3] %vm6429, 0.0
  %6431 = vst.msk [vmem:[#allocation2 + $0x1b0] sm:$0xff] %vm6426, 0.0
  %6432 = vst.msk [vmem:[#allocation2 + $0x1b8] sm:$0xff] %vm6426, 0.0
  %6433 = vst.msk [vmem:[#allocation2 + $0x1c0] sm:$0x3] %vm6429, 0.0
  %s6434 = scalar_lea.vmem [#allocation2], 408
  %6435 = vst.msk [vmem:[%s6434] sm:$0xff] %vm6426, 0.0
  %6436 = vst.msk [vmem:[%s6434 + $0x8] sm:$0xff] %vm6426, 0.0
  %6437 = vst.msk [vmem:[%s6434 + $0x10] sm:$0x3] %vm6429, 0.0
  %6438 = vst.msk [vmem:[%s6434 + $0x1b0] sm:$0xff] %vm6426, 0.0
  %6439 = vst.msk [vmem:[%s6434 + $0x1b8] sm:$0xff] %vm6426, 0.0
  %6440 = vst.msk [vmem:[%s6434 + $0x1c0] sm:$0x3] %vm6429, 0.0
  %vm6441 = vcmask 253952
  %6442 = vst.msk [vmem:[#allocation2] sm:$0x1] %vm6441, 0.0
  %6443 = vst.msk [vmem:[#allocation2 + $0x18] sm:$0x1] %vm6441, 0.0
  %6444 = vst.msk [vmem:[#allocation2 + $0x30] sm:$0x1] %vm6441, 0.0
  %6445 = vst.msk [vmem:[#allocation2 + $0x48] sm:$0x1] %vm6441, 0.0
  %6446 = vst.msk [vmem:[#allocation2 + $0x60] sm:$0x1] %vm6441, 0.0
  %6447 = vst.msk [vmem:[#allocation2 + $0x78] sm:$0x1] %vm6441, 0.0
  %6448 = vst.msk [vmem:[#allocation2 + $0x90] sm:$0x1] %vm6441, 0.0
  %6449 = vst.msk [vmem:[#allocation2 + $0xa8] sm:$0x1] %vm6441, 0.0
  %6450 = vst.msk [vmem:[#allocation2 + $0xc0] sm:$0x1] %vm6441, 0.0
  %6451 = vst.msk [vmem:[#allocation2 + $0xd8] sm:$0x1] %vm6441, 0.0
  %6452 = vst.msk [vmem:[#allocation2 + $0xf0] sm:$0x1] %vm6441, 0.0
  %6453 = vst.msk [vmem:[#allocation2 + $0x108] sm:$0x1] %vm6441, 0.0
  %6454 = vst.msk [vmem:[#allocation2 + $0x120] sm:$0x1] %vm6441, 0.0
  %6455 = vst.msk [vmem:[#allocation2 + $0x138] sm:$0x1] %vm6441, 0.0
  %6456 = vst.msk [vmem:[#allocation2 + $0x150] sm:$0x1] %vm6441, 0.0
  %6457 = vst.msk [vmem:[#allocation2 + $0x168] sm:$0x1] %vm6441, 0.0
  %6458 = vst.msk [vmem:[#allocation2 + $0x180] sm:$0x1] %vm6441, 0.0
  %6459 = vst.msk [vmem:[#allocation2 + $0x198] sm:$0x1] %vm6441, 0.0
  %6460 = vst.msk [vmem:[#allocation2 + $0x1b0] sm:$0x1] %vm6441, 0.0
  %6461 = vst.msk [vmem:[#allocation2 + $0x1c8] sm:$0x1] %vm6441, 0.0
  %6462 = vst.msk [vmem:[#allocation2 + $0x1e0] sm:$0x1] %vm6441, 0.0
  %6463 = vst.msk [vmem:[#allocation2 + $0x1f8] sm:$0x1] %vm6441, 0.0
  %6464 = vst.msk [vmem:[#allocation2 + $0x210] sm:$0x1] %vm6441, 0.0
  %6465 = vst.msk [vmem:[#allocation2 + $0x228] sm:$0x1] %vm6441, 0.0
  %6466 = vst.msk [vmem:[#allocation2 + $0x240] sm:$0x1] %vm6441, 0.0
  %6467 = vst.msk [vmem:[#allocation2 + $0x258] sm:$0x1] %vm6441, 0.0
  %6468 = vst.msk [vmem:[#allocation2 + $0x270] sm:$0x1] %vm6441, 0.0
  %6469 = vst.msk [vmem:[#allocation2 + $0x288] sm:$0x1] %vm6441, 0.0
  %6470 = vst.msk [vmem:[#allocation2 + $0x2a0] sm:$0x1] %vm6441, 0.0
  %6471 = vst.msk [vmem:[#allocation2 + $0x2b8] sm:$0x1] %vm6441, 0.0
  %6472 = vst.msk [vmem:[#allocation2 + $0x2d0] sm:$0x1] %vm6441, 0.0
  %6473 = vst.msk [vmem:[#allocation2 + $0x2e8] sm:$0x1] %vm6441, 0.0
  %6474 = vst.msk [vmem:[#allocation2 + $0x300] sm:$0x1] %vm6441, 0.0
  %6475 = vst.msk [vmem:[#allocation2 + $0x318] sm:$0x1] %vm6441, 0.0
  %6476 = vst.msk [vmem:[#allocation2 + $0x330] sm:$0x1] %vm6441, 0.0
  %6477 = vst.msk [vmem:[#allocation2 + $0x348] sm:$0x1] %vm6441, 0.0
  %6478 = vst.msk [vmem:[#allocation2 + $0x11] sm:$0x1] %vm6441, 0.0
  %6479 = vst.msk [vmem:[#allocation2 + $0x29] sm:$0x1] %vm6441, 0.0
  %6480 = vst.msk [vmem:[#allocation2 + $0x41] sm:$0x1] %vm6441, 0.0
  %6481 = vst.msk [vmem:[#allocation2 + $0x59] sm:$0x1] %vm6441, 0.0
  %6482 = vst.msk [vmem:[#allocation2 + $0x71] sm:$0x1] %vm6441, 0.0
  %6483 = vst.msk [vmem:[#allocation2 + $0x89] sm:$0x1] %vm6441, 0.0
  %6484 = vst.msk [vmem:[#allocation2 + $0xa1] sm:$0x1] %vm6441, 0.0
  %6485 = vst.msk [vmem:[#allocation2 + $0xb9] sm:$0x1] %vm6441, 0.0
  %6486 = vst.msk [vmem:[#allocation2 + $0xd1] sm:$0x1] %vm6441, 0.0
  %6487 = vst.msk [vmem:[#allocation2 + $0xe9] sm:$0x1] %vm6441, 0.0
  %6488 = vst.msk [vmem:[#allocation2 + $0x101] sm:$0x1] %vm6441, 0.0
  %6489 = vst.msk [vmem:[#allocation2 + $0x119] sm:$0x1] %vm6441, 0.0
  %6490 = vst.msk [vmem:[#allocation2 + $0x131] sm:$0x1] %vm6441, 0.0
  %6491 = vst.msk [vmem:[#allocation2 + $0x149] sm:$0x1] %vm6441, 0.0
  %6492 = vst.msk [vmem:[#allocation2 + $0x161] sm:$0x1] %vm6441, 0.0
  %6493 = vst.msk [vmem:[#allocation2 + $0x179] sm:$0x1] %vm6441, 0.0
  %6494 = vst.msk [vmem:[#allocation2 + $0x191] sm:$0x1] %vm6441, 0.0
  %6495 = vst.msk [vmem:[#allocation2 + $0x1a9] sm:$0x1] %vm6441, 0.0
  %6496 = vst.msk [vmem:[#allocation2 + $0x1c1] sm:$0x1] %vm6441, 0.0
  %6497 = vst.msk [vmem:[#allocation2 + $0x1d9] sm:$0x1] %vm6441, 0.0
  %6498 = vst.msk [vmem:[#allocation2 + $0x1f1] sm:$0x1] %vm6441, 0.0
  %6499 = vst.msk [vmem:[#allocation2 + $0x209] sm:$0x1] %vm6441, 0.0
  %6500 = vst.msk [vmem:[#allocation2 + $0x221] sm:$0x1] %vm6441, 0.0
  %6501 = vst.msk [vmem:[#allocation2 + $0x239] sm:$0x1] %vm6441, 0.0
  %6502 = vst.msk [vmem:[#allocation2 + $0x251] sm:$0x1] %vm6441, 0.0
  %6503 = vst.msk [vmem:[#allocation2 + $0x269] sm:$0x1] %vm6441, 0.0
  %6504 = vst.msk [vmem:[#allocation2 + $0x281] sm:$0x1] %vm6441, 0.0
  %6505 = vst.msk [vmem:[#allocation2 + $0x299] sm:$0x1] %vm6441, 0.0
  %6506 = vst.msk [vmem:[#allocation2 + $0x2b1] sm:$0x1] %vm6441, 0.0
  %6507 = vst.msk [vmem:[#allocation2 + $0x2c9] sm:$0x1] %vm6441, 0.0
  %6508 = vst.msk [vmem:[#allocation2 + $0x2e1] sm:$0x1] %vm6441, 0.0
  %6509 = vst.msk [vmem:[#allocation2 + $0x2f9] sm:$0x1] %vm6441, 0.0
  %6510 = vst.msk [vmem:[#allocation2 + $0x311] sm:$0x1] %vm6441, 0.0
  %6511 = vst.msk [vmem:[#allocation2 + $0x329] sm:$0x1] %vm6441, 0.0
  %6512 = vst.msk [vmem:[#allocation2 + $0x341] sm:$0x1] %vm6441, 0.0
  %6513 = vst.msk [vmem:[#allocation2 + $0x359] sm:$0x1] %vm6441, 0.0
  %s6514 = scalar_lea.vmem [#allocation2], 24
  %6515 = vst.msk [vmem:[%s6514 + $0x1] sm:$0xff] %vm6426, %v6362
  %6516 = vst.msk [vmem:[%s6514 + $0x9] sm:$0xff] %vm6426, %v6363
  %6517 = vst.msk [vmem:[%s6514 + $0x19] sm:$0xff] %vm6426, %v6364
  %6518 = vst.msk [vmem:[%s6514 + $0x21] sm:$0xff] %vm6426, %v6365
  %6519 = vst.msk [vmem:[%s6514 + $0x31] sm:$0xff] %vm6426, %v6366
  %6520 = vst.msk [vmem:[%s6514 + $0x39] sm:$0xff] %vm6426, %v6367
  %6521 = vst.msk [vmem:[%s6514 + $0x49] sm:$0xff] %vm6426, %v6368
  %6522 = vst.msk [vmem:[%s6514 + $0x51] sm:$0xff] %vm6426, %v6369
  %6523 = vst.msk [vmem:[%s6514 + $0x61] sm:$0xff] %vm6426, %v6370
  %6524 = vst.msk [vmem:[%s6514 + $0x69] sm:$0xff] %vm6426, %v6371
  %6525 = vst.msk [vmem:[%s6514 + $0x79] sm:$0xff] %vm6426, %v6372
  %6526 = vst.msk [vmem:[%s6514 + $0x81] sm:$0xff] %vm6426, %v6373
  %6527 = vst.msk [vmem:[%s6514 + $0x91] sm:$0xff] %vm6426, %v6374
  %6528 = vst.msk [vmem:[%s6514 + $0x99] sm:$0xff] %vm6426, %v6375
  %6529 = vst.msk [vmem:[%s6514 + $0xa9] sm:$0xff] %vm6426, %v6376
  %6530 = vst.msk [vmem:[%s6514 + $0xb1] sm:$0xff] %vm6426, %v6377
  %6531 = vst.msk [vmem:[%s6514 + $0xc1] sm:$0xff] %vm6426, %v6378
  %6532 = vst.msk [vmem:[%s6514 + $0xc9] sm:$0xff] %vm6426, %v6379
  %6533 = vst.msk [vmem:[%s6514 + $0xd9] sm:$0xff] %vm6426, %v6380
  %6534 = vst.msk [vmem:[%s6514 + $0xe1] sm:$0xff] %vm6426, %v6381
  %6535 = vst.msk [vmem:[%s6514 + $0xf1] sm:$0xff] %vm6426, %v6382
  %6536 = vst.msk [vmem:[%s6514 + $0xf9] sm:$0xff] %vm6426, %v6383
  %6537 = vst.msk [vmem:[%s6514 + $0x109] sm:$0xff] %vm6426, %v6384
  %6538 = vst.msk [vmem:[%s6514 + $0x111] sm:$0xff] %vm6426, %v6385
  %6539 = vst.msk [vmem:[%s6514 + $0x121] sm:$0xff] %vm6426, %v6386
  %6540 = vst.msk [vmem:[%s6514 + $0x129] sm:$0xff] %vm6426, %v6387
  %6541 = vst.msk [vmem:[%s6514 + $0x139] sm:$0xff] %vm6426, %v6388
  %6542 = vst.msk [vmem:[%s6514 + $0x141] sm:$0xff] %vm6426, %v6389
  %6543 = vst.msk [vmem:[%s6514 + $0x151] sm:$0xff] %vm6426, %v6390
  %6544 = vst.msk [vmem:[%s6514 + $0x159] sm:$0xff] %vm6426, %v6391
  %6545 = vst.msk [vmem:[%s6514 + $0x169] sm:$0xff] %vm6426, %v6392
  %6546 = vst.msk [vmem:[%s6514 + $0x171] sm:$0xff] %vm6426, %v6393
  %6547 = vst.msk [vmem:[%s6514 + $0x1b1] sm:$0xff] %vm6426, %v6394
  %6548 = vst.msk [vmem:[%s6514 + $0x1b9] sm:$0xff] %vm6426, %v6395
  %6549 = vst.msk [vmem:[%s6514 + $0x1c9] sm:$0xff] %vm6426, %v6396
  %6550 = vst.msk [vmem:[%s6514 + $0x1d1] sm:$0xff] %vm6426, %v6397
  %6551 = vst.msk [vmem:[%s6514 + $0x1e1] sm:$0xff] %vm6426, %v6398
  %6552 = vst.msk [vmem:[%s6514 + $0x1e9] sm:$0xff] %vm6426, %v6399
  %6553 = vst.msk [vmem:[%s6514 + $0x1f9] sm:$0xff] %vm6426, %v6400
  %6554 = vst.msk [vmem:[%s6514 + $0x201] sm:$0xff] %vm6426, %v6401
  %6555 = vst.msk [vmem:[%s6514 + $0x211] sm:$0xff] %vm6426, %v6402
  %6556 = vst.msk [vmem:[%s6514 + $0x219] sm:$0xff] %vm6426, %v6403
  %6557 = vst.msk [vmem:[%s6514 + $0x229] sm:$0xff] %vm6426, %v6404
  %6558 = vst.msk [vmem:[%s6514 + $0x231] sm:$0xff] %vm6426, %v6405
  %6559 = vst.msk [vmem:[%s6514 + $0x241] sm:$0xff] %vm6426, %v6406
  %6560 = vst.msk [vmem:[%s6514 + $0x249] sm:$0xff] %vm6426, %v6407
  %6561 = vst.msk [vmem:[%s6514 + $0x259] sm:$0xff] %vm6426, %v6408
  %6562 = vst.msk [vmem:[%s6514 + $0x261] sm:$0xff] %vm6426, %v6409
  %6563 = vst.msk [vmem:[%s6514 + $0x271] sm:$0xff] %vm6426, %v6410
  %6564 = vst.msk [vmem:[%s6514 + $0x279] sm:$0xff] %vm6426, %v6411
  %6565 = vst.msk [vmem:[%s6514 + $0x289] sm:$0xff] %vm6426, %v6412
  %6566 = vst.msk [vmem:[%s6514 + $0x291] sm:$0xff] %vm6426, %v6413
  %6567 = vst.msk [vmem:[%s6514 + $0x2a1] sm:$0xff] %vm6426, %v6414
  %6568 = vst.msk [vmem:[%s6514 + $0x2a9] sm:$0xff] %vm6426, %v6415
  %6569 = vst.msk [vmem:[%s6514 + $0x2b9] sm:$0xff] %vm6426, %v6416
  %6570 = vst.msk [vmem:[%s6514 + $0x2c1] sm:$0xff] %vm6426, %v6417
  %6571 = vst.msk [vmem:[%s6514 + $0x2d1] sm:$0xff] %vm6426, %v6418
  %6572 = vst.msk [vmem:[%s6514 + $0x2d9] sm:$0xff] %vm6426, %v6419
  %6573 = vst.msk [vmem:[%s6514 + $0x2e9] sm:$0xff] %vm6426, %v6420
  %6574 = vst.msk [vmem:[%s6514 + $0x2f1] sm:$0xff] %vm6426, %v6421
  %6575 = vst.msk [vmem:[%s6514 + $0x301] sm:$0xff] %vm6426, %v6422
  %6576 = vst.msk [vmem:[%s6514 + $0x309] sm:$0xff] %vm6426, %v6423
  %6577 = vst.msk [vmem:[%s6514 + $0x319] sm:$0xff] %vm6426, %v6424
  %6578 = vst.msk [vmem:[%s6514 + $0x321] sm:$0xff] %vm6426, %v6425
  %v6579 = vld [vmem:[#allocation2] sm:$0xff]
  %v6580 = vld [vmem:[#allocation2 + $0x8] sm:$0xff]
  %v6581 = vld [vmem:[#allocation2 + $0x18] sm:$0xff]
  %v6582 = vld [vmem:[#allocation2 + $0x20] sm:$0xff]
  %v6583 = vld [vmem:[#allocation2 + $0x30] sm:$0xff]
  %v6584 = vld [vmem:[#allocation2 + $0x38] sm:$0xff]
  %v6585 = vld [vmem:[#allocation2 + $0x48] sm:$0xff]
  %v6586 = vld [vmem:[#allocation2 + $0x50] sm:$0xff]
  %v6587 = vld [vmem:[#allocation2 + $0x60] sm:$0xff]
  %v6588 = vld [vmem:[#allocation2 + $0x68] sm:$0xff]
  %v6589 = vld [vmem:[#allocation2 + $0x78] sm:$0xff]
  %v6590 = vld [vmem:[#allocation2 + $0x80] sm:$0xff]
  %v6591 = vld [vmem:[#allocation2 + $0x90] sm:$0xff]
  %v6592 = vld [vmem:[#allocation2 + $0x98] sm:$0xff]
  %v6593 = vld [vmem:[#allocation2 + $0xa8] sm:$0xff]
  %v6594 = vld [vmem:[#allocation2 + $0xb0] sm:$0xff]
  %v6595 = vld [vmem:[#allocation2 + $0xc0] sm:$0xff]
  %v6596 = vld [vmem:[#allocation2 + $0xc8] sm:$0xff]
  %v6597 = vld [vmem:[#allocation2 + $0xd8] sm:$0xff]
  %v6598 = vld [vmem:[#allocation2 + $0xe0] sm:$0xff]
  %v6599 = vld [vmem:[#allocation2 + $0xf0] sm:$0xff]
  %v6600 = vld [vmem:[#allocation2 + $0xf8] sm:$0xff]
  %v6601 = vld [vmem:[#allocation2 + $0x108] sm:$0xff]
  %v6602 = vld [vmem:[#allocation2 + $0x110] sm:$0xff]
  %v6603 = vld [vmem:[#allocation2 + $0x120] sm:$0xff]
  %v6604 = vld [vmem:[#allocation2 + $0x128] sm:$0xff]
  %v6605 = vld [vmem:[#allocation2 + $0x138] sm:$0xff]
  %v6606 = vld [vmem:[#allocation2 + $0x140] sm:$0xff]
  %v6607 = vld [vmem:[#allocation2 + $0x150] sm:$0xff]
  %v6608 = vld [vmem:[#allocation2 + $0x158] sm:$0xff]
  %v6609 = vld [vmem:[#allocation2 + $0x168] sm:$0xff]
  %v6610 = vld [vmem:[#allocation2 + $0x170] sm:$0xff]
  %v6611 = vld [vmem:[#allocation2 + $0x1b0] sm:$0xff]
  %v6612 = vld [vmem:[#allocation2 + $0x1b8] sm:$0xff]
  %v6613 = vld [vmem:[#allocation2 + $0x1c8] sm:$0xff]
  %v6614 = vld [vmem:[#allocation2 + $0x1d0] sm:$0xff]
  %v6615 = vld [vmem:[#allocation2 + $0x1e0] sm:$0xff]
  %v6616 = vld [vmem:[#allocation2 + $0x1e8] sm:$0xff]
  %v6617 = vld [vmem:[#allocation2 + $0x1f8] sm:$0xff]
  %v6618 = vld [vmem:[#allocation2 + $0x200] sm:$0xff]
  %v6619 = vld [vmem:[#allocation2 + $0x210] sm:$0xff]
  %v6620 = vld [vmem:[#allocation2 + $0x218] sm:$0xff]
  %v6621 = vld [vmem:[#allocation2 + $0x228] sm:$0xff]
  %v6622 = vld [vmem:[#allocation2 + $0x230] sm:$0xff]
  %v6623 = vld [vmem:[#allocation2 + $0x240] sm:$0xff]
  %v6624 = vld [vmem:[#allocation2 + $0x248] sm:$0xff]
  %v6625 = vld [vmem:[#allocation2 + $0x258] sm:$0xff]
  %v6626 = vld [vmem:[#allocation2 + $0x260] sm:$0xff]
  %v6627 = vld [vmem:[#allocation2 + $0x270] sm:$0xff]
  %v6628 = vld [vmem:[#allocation2 + $0x278] sm:$0xff]
  %v6629 = vld [vmem:[#allocation2 + $0x288] sm:$0xff]
  %v6630 = vld [vmem:[#allocation2 + $0x290] sm:$0xff]
  %v6631 = vld [vmem:[#allocation2 + $0x2a0] sm:$0xff]
  %v6632 = vld [vmem:[#allocation2 + $0x2a8] sm:$0xff]
  %v6633 = vld [vmem:[#allocation2 + $0x2b8] sm:$0xff]
  %v6634 = vld [vmem:[#allocation2 + $0x2c0] sm:$0xff]
  %v6635 = vld [vmem:[#allocation2 + $0x2d0] sm:$0xff]
  %v6636 = vld [vmem:[#allocation2 + $0x2d8] sm:$0xff]
  %v6637 = vld [vmem:[#allocation2 + $0x2e8] sm:$0xff]
  %v6638 = vld [vmem:[#allocation2 + $0x2f0] sm:$0xff]
  %v6639 = vld [vmem:[#allocation2 + $0x300] sm:$0xff]
  %v6640 = vld [vmem:[#allocation2 + $0x308] sm:$0xff]
  %v6641 = vld [vmem:[#allocation2 + $0x318] sm:$0xff]
  %v6642 = vld [vmem:[#allocation2 + $0x320] sm:$0xff]
  %v6643 = vld [vmem:[%s3] sm:$0xff]
  %v6644 = vld [vmem:[%s3 + $0x8] sm:$0xff]
  %v6645 = vld [vmem:[%s3 + $0x10] sm:$0xff]
  %v6646 = vld [vmem:[%s3 + $0x18] sm:$0xff]
  %v6647 = vld [vmem:[#allocation2 + $0x1] sm:$0xff]
  %v6648 = vld [vmem:[#allocation2 + $0x9] sm:$0xff]
  %v6649 = vld [vmem:[#allocation2 + $0x19] sm:$0xff]
  %v6650 = vld [vmem:[#allocation2 + $0x21] sm:$0xff]
  %v6651 = vld [vmem:[#allocation2 + $0x31] sm:$0xff]
  %v6652 = vld [vmem:[#allocation2 + $0x39] sm:$0xff]
  %v6653 = vld [vmem:[#allocation2 + $0x49] sm:$0xff]
  %v6654 = vld [vmem:[#allocation2 + $0x51] sm:$0xff]
  %v6655 = vld [vmem:[#allocation2 + $0x61] sm:$0xff]
  %v6656 = vld [vmem:[#allocation2 + $0x69] sm:$0xff]
  %v6657 = vld [vmem:[#allocation2 + $0x79] sm:$0xff]
  %v6658 = vld [vmem:[#allocation2 + $0x81] sm:$0xff]
  %v6659 = vld [vmem:[#allocation2 + $0x91] sm:$0xff]
  %v6660 = vld [vmem:[#allocation2 + $0x99] sm:$0xff]
  %v6661 = vld [vmem:[#allocation2 + $0xa9] sm:$0xff]
  %v6662 = vld [vmem:[#allocation2 + $0xb1] sm:$0xff]
  %v6663 = vld [vmem:[#allocation2 + $0xc1] sm:$0xff]
  %v6664 = vld [vmem:[#allocation2 + $0xc9] sm:$0xff]
  %v6665 = vld [vmem:[#allocation2 + $0xd9] sm:$0xff]
  %v6666 = vld [vmem:[#allocation2 + $0xe1] sm:$0xff]
  %v6667 = vld [vmem:[#allocation2 + $0xf1] sm:$0xff]
  %v6668 = vld [vmem:[#allocation2 + $0xf9] sm:$0xff]
  %v6669 = vld [vmem:[#allocation2 + $0x109] sm:$0xff]
  %v6670 = vld [vmem:[#allocation2 + $0x111] sm:$0xff]
  %v6671 = vld [vmem:[#allocation2 + $0x121] sm:$0xff]
  %v6672 = vld [vmem:[#allocation2 + $0x129] sm:$0xff]
  %v6673 = vld [vmem:[#allocation2 + $0x139] sm:$0xff]
  %v6674 = vld [vmem:[#allocation2 + $0x141] sm:$0xff]
  %v6675 = vld [vmem:[#allocation2 + $0x151] sm:$0xff]
  %v6676 = vld [vmem:[#allocation2 + $0x159] sm:$0xff]
  %v6677 = vld [vmem:[#allocation2 + $0x169] sm:$0xff]
  %v6678 = vld [vmem:[#allocation2 + $0x171] sm:$0xff]
  %v6679 = vld [vmem:[#allocation2 + $0x1b1] sm:$0xff]
  %v6680 = vld [vmem:[#allocation2 + $0x1b9] sm:$0xff]
  %v6681 = vld [vmem:[#allocation2 + $0x1c9] sm:$0xff]
  %v6682 = vld [vmem:[#allocation2 + $0x1d1] sm:$0xff]
  %v6683 = vld [vmem:[#allocation2 + $0x1e1] sm:$0xff]
  %v6684 = vld [vmem:[#allocation2 + $0x1e9] sm:$0xff]
  %v6685 = vld [vmem:[#allocation2 + $0x1f9] sm:$0xff]
  %v6686 = vld [vmem:[#allocation2 + $0x201] sm:$0xff]
  %v6687 = vld [vmem:[#allocation2 + $0x211] sm:$0xff]
  %v6688 = vld [vmem:[#allocation2 + $0x219] sm:$0xff]
  %v6689 = vld [vmem:[#allocation2 + $0x229] sm:$0xff]
  %v6690 = vld [vmem:[#allocation2 + $0x231] sm:$0xff]
  %v6691 = vld [vmem:[#allocation2 + $0x241] sm:$0xff]
  %v6692 = vld [vmem:[#allocation2 + $0x249] sm:$0xff]
  %v6693 = vld [vmem:[#allocation2 + $0x259] sm:$0xff]
  %v6694 = vld [vmem:[#allocation2 + $0x261] sm:$0xff]
  %v6695 = vld [vmem:[#allocation2 + $0x271] sm:$0xff]
  %v6696 = vld [vmem:[#allocation2 + $0x279] sm:$0xff]
  %v6697 = vld [vmem:[#allocation2 + $0x289] sm:$0xff]
  %v6698 = vld [vmem:[#allocation2 + $0x291] sm:$0xff]
  %v6699 = vld [vmem:[#allocation2 + $0x2a1] sm:$0xff]
  %v6700 = vld [vmem:[#allocation2 + $0x2a9] sm:$0xff]
  %v6701 = vld [vmem:[#allocation2 + $0x2b9] sm:$0xff]
  %v6702 = vld [vmem:[#allocation2 + $0x2c1] sm:$0xff]
  %v6703 = vld [vmem:[#allocation2 + $0x2d1] sm:$0xff]
  %v6704 = vld [vmem:[#allocation2 + $0x2d9] sm:$0xff]
  %v6705 = vld [vmem:[#allocation2 + $0x2e9] sm:$0xff]
  %v6706 = vld [vmem:[#allocation2 + $0x2f1] sm:$0xff]
  %v6707 = vld [vmem:[#allocation2 + $0x301] sm:$0xff]
  %v6708 = vld [vmem:[#allocation2 + $0x309] sm:$0xff]
  %v6709 = vld [vmem:[#allocation2 + $0x319] sm:$0xff]
  %v6710 = vld [vmem:[#allocation2 + $0x321] sm:$0xff]
  %s6711 = scalar_lea.vmem %s3, 32
  %v6712 = vld [vmem:[%s6711] sm:$0xff]
  %v6713 = vld [vmem:[%s6711 + $0x8] sm:$0xff]
  %v6714 = vld [vmem:[%s6711 + $0x10] sm:$0xff]
  %v6715 = vld [vmem:[%s6711 + $0x18] sm:$0xff]
  %v6717 = vsel %vm6426, %v6647, 0
  %v6720 = vsel %vm6426, %v6648, 0
  %v6723 = vsel %vm6426, %v6649, 0
  %v6726 = vsel %vm6426, %v6650, 0
  %v6729 = vsel %vm6426, %v6651, 0
  %v6732 = vsel %vm6426, %v6652, 0
  %v6735 = vsel %vm6426, %v6653, 0
  %v6738 = vsel %vm6426, %v6654, 0
  %v6741 = vsel %vm6426, %v6655, 0
  %v6744 = vsel %vm6426, %v6656, 0
  %v6747 = vsel %vm6426, %v6657, 0
  %v6750 = vsel %vm6426, %v6658, 0
  %v6753 = vsel %vm6426, %v6659, 0
  %v6756 = vsel %vm6426, %v6660, 0
  %v6759 = vsel %vm6426, %v6661, 0
  %v6762 = vsel %vm6426, %v6662, 0
  %v6765 = vsel %vm6426, %v6663, 0
  %v6768 = vsel %vm6426, %v6664, 0
  %v6771 = vsel %vm6426, %v6665, 0
  %v6774 = vsel %vm6426, %v6666, 0
  %v6777 = vsel %vm6426, %v6667, 0
  %v6780 = vsel %vm6426, %v6668, 0
  %v6783 = vsel %vm6426, %v6669, 0
  %v6786 = vsel %vm6426, %v6670, 0
  %v6789 = vsel %vm6426, %v6671, 0
  %v6792 = vsel %vm6426, %v6672, 0
  %v6795 = vsel %vm6426, %v6673, 0
  %v6798 = vsel %vm6426, %v6674, 0
  %v6801 = vsel %vm6426, %v6675, 0
  %v6804 = vsel %vm6426, %v6676, 0
  %v6807 = vsel %vm6426, %v6677, 0
  %v6810 = vsel %vm6426, %v6678, 0
  %v6813 = vsel %vm6426, %v6679, 0
  %v6816 = vsel %vm6426, %v6680, 0
  %v6819 = vsel %vm6426, %v6681, 0
  %v6822 = vsel %vm6426, %v6682, 0
  %v6825 = vsel %vm6426, %v6683, 0
  %v6828 = vsel %vm6426, %v6684, 0
  %v6831 = vsel %vm6426, %v6685, 0
  %v6834 = vsel %vm6426, %v6686, 0
  %v6837 = vsel %vm6426, %v6687, 0
  %v6840 = vsel %vm6426, %v6688, 0
  %v6843 = vsel %vm6426, %v6689, 0
  %v6846 = vsel %vm6426, %v6690, 0
  %v6849 = vsel %vm6426, %v6691, 0
  %v6852 = vsel %vm6426, %v6692, 0
  %v6855 = vsel %vm6426, %v6693, 0
  %v6858 = vsel %vm6426, %v6694, 0
  %v6861 = vsel %vm6426, %v6695, 0
  %v6864 = vsel %vm6426, %v6696, 0
  %v6867 = vsel %vm6426, %v6697, 0
  %v6870 = vsel %vm6426, %v6698, 0
  %v6873 = vsel %vm6426, %v6699, 0
  %v6876 = vsel %vm6426, %v6700, 0
  %v6879 = vsel %vm6426, %v6701, 0
  %v6882 = vsel %vm6426, %v6702, 0
  %v6885 = vsel %vm6426, %v6703, 0
  %v6888 = vsel %vm6426, %v6704, 0
  %v6891 = vsel %vm6426, %v6705, 0
  %v6894 = vsel %vm6426, %v6706, 0
  %v6897 = vsel %vm6426, %v6707, 0
  %v6900 = vsel %vm6426, %v6708, 0
  %v6903 = vsel %vm6426, %v6709, 0
  %v6906 = vsel %vm6426, %v6710, 0
  %6908 = vmatprep.subr.mxu0 0.0
  %6909 = vmatpush1.msra.mxu0 %v6712
  %6910 = vmatprep.subr.mxu0 0.0
  %6911 = vmatpush1.msra.mxu0 %v6713
  %6912 = vmatprep.subr.mxu0 0.0
  %6913 = vmatpush1.msra.mxu0 %v6714
  %6914 = vmatprep.subr.mxu0 0.0
  %6915 = vmatpush1.msra.mxu0 %v6715
  %6916 = vmatprep.subr.mxu0 0.0
  %6917 = vmatpush1.msra.mxu0 0.0
  %6918 = vmatprep.subr.mxu0 0.0
  %6919 = vmatpush1.msra.mxu0 0.0
  %6920 = vmatprep.subr.mxu0 0.0
  %6921 = vmatpush1.msra.mxu0 0.0
  %6922 = vmatprep.subr.mxu0 0.0
  %6923 = vmatpush1.msra.mxu0 0.0
  %6924 = vmatprep.subr.mxu0 0.0
  %6925 = vmatpush1.msra.mxu0 0.0
  %6926 = vmatprep.subr.mxu0 0.0
  %6927 = vmatpush1.msra.mxu0 0.0
  %6928 = vmatprep.subr.mxu0 0.0
  %6929 = vmatpush1.msra.mxu0 0.0
  %6930 = vmatprep.subr.mxu0 0.0
  %6931 = vmatpush1.msra.mxu0 0.0
  %6932 = vmatprep.subr.mxu0 0.0
  %6933 = vmatpush1.msra.mxu0 0.0
  %6934 = vmatprep.subr.mxu0 0.0
  %6935 = vmatpush1.msra.mxu0 0.0
  %6936 = vmatprep.subr.mxu0 0.0
  %6937 = vmatpush1.msra.mxu0 0.0
  %6938 = vmatprep.subr.mxu0 0.0
  %6939 = vmatpush1.msra.mxu0 0.0
  %6940 = vmatprep.subr.mxu0 0.0
  %6941 = vmatpush1.msra.mxu0 0.0
  %6942 = vmatprep.subr.mxu0 0.0
  %6943 = vmatpush1.msra.mxu0 0.0
  %6944 = vmatprep.subr.mxu0 0.0
  %6945 = vmatpush1.msra.mxu0 0.0
  %6946 = vmatprep.subr.mxu0 0.0
  %6947 = vmatpush1.msra.mxu0 0.0
  %6948 = vmatprep.subr.mxu0 0.0
  %6949 = vmatpush1.msra.mxu0 0.0
  %6950 = vmatprep.subr.mxu0 0.0
  %6951 = vmatpush1.msra.mxu0 0.0
  %6952 = vmatprep.subr.mxu0 0.0
  %6953 = vmatpush1.msra.mxu0 0.0
  %6954 = vmatprep.subr.mxu0 0.0
  %6955 = vmatpush1.msra.mxu0 0.0
  %6956 = vmatprep.subr.mxu0 0.0
  %6957 = vmatpush1.msra.mxu0 0.0
  %6958 = vmatprep.subr.mxu0 0.0
  %6959 = vmatpush1.msra.mxu0 0.0
  %6960 = vmatprep.subr.mxu0 0.0
  %6961 = vmatpush1.msra.mxu0 0.0
  %6962 = vmatprep.subr.mxu0 0.0
  %6963 = vmatpush1.msra.mxu0 0.0
  %6964 = vmatprep.subr.mxu0 0.0
  %6965 = vmatpush1.msra.mxu0 0.0
  %6966 = vmatprep.subr.mxu0 0.0
  %6967 = vmatpush1.msra.mxu0 0.0
  %6968 = vmatprep.subr.mxu0 0.0
  %6969 = vmatpush1.msra.mxu0 0.0
  %6970 = vmatprep.subr.mxu0 0.0
  %6971 = vmatpush1.msra.mxu0 0.0
  %6972 = vmatprep.mubr.f32.mxu0 0.0
  %6973 = vmatmul.mubr.f32.gmra.mrb[0].mxu0 %v6717
  %v6974 = vpop.f32.mrb[0].mxu0
  %v6975 = vadd.f32 0.0, %v6974
  %v6976 = vpop.f32.mrb[0].mxu0
  %6977 = vmatprep.mubr.f32.mxu0 0.0
  %6978 = vmatmul.mubr.f32.gmra.mrb[0].mxu0 %v6720
  %v6979 = vpop.f32.mrb[0].mxu0
  %v6980 = vadd.f32 0.0, %v6979
  %v6981 = vpop.f32.mrb[0].mxu0
  %6982 = vmatprep.mubr.f32.mxu0 0.0
  %6983 = vmatmul.mubr.f32.gmra.mrb[0].mxu0 %v6723
  %v6984 = vpop.f32.mrb[0].mxu0
  %v6985 = vadd.f32 0.0, %v6984
  %v6986 = vpop.f32.mrb[0].mxu0
  %6987 = vmatprep.mubr.f32.mxu0 0.0
  %6988 = vmatmul.mubr.f32.gmra.mrb[0].mxu0 %v6726
  %v6989 = vpop.f32.mrb[0].mxu0
  %v6990 = vadd.f32 0.0, %v6989
  %v6991 = vpop.f32.mrb[0].mxu0
  %6992 = vmatprep.mubr.f32.mxu0 0.0
  %6993 = vmatmul.mubr.f32.gmra.mrb[0].mxu0 %v6729
  %v6994 = vpop.f32.mrb[0].mxu0
  %v6995 = vadd.f32 0.0, %v6994
  %v6996 = vpop.f32.mrb[0].mxu0
  %6997 = vmatprep.mubr.f32.mxu0 0.0
  %6998 = vmatmul.mubr.f32.gmra.mrb[0].mxu0 %v6732
  %v6999 = vpop.f32.mrb[0].mxu0
  %v7000 = vadd.f32 0.0, %v6999
  %v7001 = vpop.f32.mrb[0].mxu0
  %7002 = vmatprep.mubr.f32.mxu0 0.0
  %7003 = vmatmul.mubr.f32.gmra.mrb[0].mxu0 %v6735
  %v7004 = vpop.f32.mrb[0].mxu0
  %v7005 = vadd.f32 0.0, %v7004
  %v7006 = vpop.f32.mrb[0].mxu0
  %7007 = vmatprep.mubr.f32.mxu0 0.0
  %7008 = vmatmul.mubr.f32.gmra.mrb[0].mxu0 %v6738
  %v7009 = vpop.f32.mrb[0].mxu0
  %v7010 = vadd.f32 0.0, %v7009
  %v7011 = vpop.f32.mrb[0].mxu0
  %7012 = vmatprep.mubr.f32.mxu0 0.0
  %7013 = vmatmul.mubr.f32.gmra.mrb[0].mxu0 %v6741
  %v7014 = vpop.f32.mrb[0].mxu0
  %v7015 = vadd.f32 0.0, %v7014
  %v7016 = vpop.f32.mrb[0].mxu0
  %7017 = vmatprep.mubr.f32.mxu0 0.0
  %7018 = vmatmul.mubr.f32.gmra.mrb[0].mxu0 %v6744
  %v7019 = vpop.f32.mrb[0].mxu0
  %v7020 = vadd.f32 0.0, %v7019
  %v7021 = vpop.f32.mrb[0].mxu0
  %7022 = vmatprep.mubr.f32.mxu0 0.0
  %7023 = vmatmul.mubr.f32.gmra.mrb[0].mxu0 %v6747
  %v7024 = vpop.f32.mrb[0].mxu0
  %v7025 = vadd.f32 0.0, %v7024
  %v7026 = vpop.f32.mrb[0].mxu0
  %7027 = vmatprep.mubr.f32.mxu0 0.0
  %7028 = vmatmul.mubr.f32.gmra.mrb[0].mxu0 %v6750
  %v7029 = vpop.f32.mrb[0].mxu0
  %v7030 = vadd.f32 0.0, %v7029
  %v7031 = vpop.f32.mrb[0].mxu0
  %7032 = vmatprep.mubr.f32.mxu0 0.0
  %7033 = vmatmul.mubr.f32.gmra.mrb[0].mxu0 %v6753
  %v7034 = vpop.f32.mrb[0].mxu0
  %v7035 = vadd.f32 0.0, %v7034
  %v7036 = vpop.f32.mrb[0].mxu0
  %7037 = vmatprep.mubr.f32.mxu0 0.0
  %7038 = vmatmul.mubr.f32.gmra.mrb[0].mxu0 %v6756
  %v7039 = vpop.f32.mrb[0].mxu0
  %v7040 = vadd.f32 0.0, %v7039
  %v7041 = vpop.f32.mrb[0].mxu0
  %7042 = vmatprep.mubr.f32.mxu0 0.0
  %7043 = vmatmul.mubr.f32.gmra.mrb[0].mxu0 %v6759
  %v7044 = vpop.f32.mrb[0].mxu0
  %v7045 = vadd.f32 0.0, %v7044
  %v7046 = vpop.f32.mrb[0].mxu0
  %7047 = vmatprep.mubr.f32.mxu0 0.0
  %7048 = vmatmul.mubr.f32.gmra.mrb[0].mxu0 %v6762
  %v7049 = vpop.f32.mrb[0].mxu0
  %v7050 = vadd.f32 0.0, %v7049
  %v7051 = vpop.f32.mrb[0].mxu0
  %7052 = vmatprep.mubr.f32.mxu0 0.0
  %7053 = vmatmul.mubr.f32.gmra.mrb[0].mxu0 %v6765
  %v7054 = vpop.f32.mrb[0].mxu0
  %v7055 = vadd.f32 0.0, %v7054
  %v7056 = vpop.f32.mrb[0].mxu0
  %7057 = vmatprep.mubr.f32.mxu0 0.0
  %7058 = vmatmul.mubr.f32.gmra.mrb[0].mxu0 %v6768
  %v7059 = vpop.f32.mrb[0].mxu0
  %v7060 = vadd.f32 0.0, %v7059
  %v7061 = vpop.f32.mrb[0].mxu0
  %7062 = vmatprep.mubr.f32.mxu0 0.0
  %7063 = vmatmul.mubr.f32.gmra.mrb[0].mxu0 %v6771
  %v7064 = vpop.f32.mrb[0].mxu0
  %v7065 = vadd.f32 0.0, %v7064
  %v7066 = vpop.f32.mrb[0].mxu0
  %7067 = vmatprep.mubr.f32.mxu0 0.0
  %7068 = vmatmul.mubr.f32.gmra.mrb[0].mxu0 %v6774
  %v7069 = vpop.f32.mrb[0].mxu0
  %v7070 = vadd.f32 0.0, %v7069
  %v7071 = vpop.f32.mrb[0].mxu0
  %7072 = vmatprep.mubr.f32.mxu0 0.0
  %7073 = vmatmul.mubr.f32.gmra.mrb[0].mxu0 %v6777
  %v7074 = vpop.f32.mrb[0].mxu0
  %v7075 = vadd.f32 0.0, %v7074
  %v7076 = vpop.f32.mrb[0].mxu0
  %7077 = vmatprep.mubr.f32.mxu0 0.0
  %7078 = vmatmul.mubr.f32.gmra.mrb[0].mxu0 %v6780
  %v7079 = vpop.f32.mrb[0].mxu0
  %v7080 = vadd.f32 0.0, %v7079
  %v7081 = vpop.f32.mrb[0].mxu0
  %7082 = vmatprep.mubr.f32.mxu0 0.0
  %7083 = vmatmul.mubr.f32.gmra.mrb[0].mxu0 %v6783
  %v7084 = vpop.f32.mrb[0].mxu0
  %v7085 = vadd.f32 0.0, %v7084
  %v7086 = vpop.f32.mrb[0].mxu0
  %7087 = vmatprep.mubr.f32.mxu0 0.0
  %7088 = vmatmul.mubr.f32.gmra.mrb[0].mxu0 %v6786
  %v7089 = vpop.f32.mrb[0].mxu0
  %v7090 = vadd.f32 0.0, %v7089
  %v7091 = vpop.f32.mrb[0].mxu0
  %7092 = vmatprep.mubr.f32.mxu0 0.0
  %7093 = vmatmul.mubr.f32.gmra.mrb[0].mxu0 %v6789
  %v7094 = vpop.f32.mrb[0].mxu0
  %v7095 = vadd.f32 0.0, %v7094
  %v7096 = vpop.f32.mrb[0].mxu0
  %7097 = vmatprep.mubr.f32.mxu0 0.0
  %7098 = vmatmul.mubr.f32.gmra.mrb[0].mxu0 %v6792
  %v7099 = vpop.f32.mrb[0].mxu0
  %v7100 = vadd.f32 0.0, %v7099
  %v7101 = vpop.f32.mrb[0].mxu0
  %7102 = vmatprep.mubr.f32.mxu0 0.0
  %7103 = vmatmul.mubr.f32.gmra.mrb[0].mxu0 %v6795
  %v7104 = vpop.f32.mrb[0].mxu0
  %v7105 = vadd.f32 0.0, %v7104
  %v7106 = vpop.f32.mrb[0].mxu0
  %7107 = vmatprep.mubr.f32.mxu0 0.0
  %7108 = vmatmul.mubr.f32.gmra.mrb[0].mxu0 %v6798
  %v7109 = vpop.f32.mrb[0].mxu0
  %v7110 = vadd.f32 0.0, %v7109
  %v7111 = vpop.f32.mrb[0].mxu0
  %7112 = vmatprep.mubr.f32.mxu0 0.0
  %7113 = vmatmul.mubr.f32.gmra.mrb[0].mxu0 %v6801
  %v7114 = vpop.f32.mrb[0].mxu0
  %v7115 = vadd.f32 0.0, %v7114
  %v7116 = vpop.f32.mrb[0].mxu0
  %7117 = vmatprep.mubr.f32.mxu0 0.0
  %7118 = vmatmul.mubr.f32.gmra.mrb[0].mxu0 %v6804
  %v7119 = vpop.f32.mrb[0].mxu0
  %v7120 = vadd.f32 0.0, %v7119
  %v7121 = vpop.f32.mrb[0].mxu0
  %7122 = vmatprep.mubr.f32.mxu0 0.0
  %7123 = vmatmul.mubr.f32.gmra.mrb[0].mxu0 %v6807
  %v7124 = vpop.f32.mrb[0].mxu0
  %v7125 = vadd.f32 0.0, %v7124
  %v7126 = vpop.f32.mrb[0].mxu0
  %7127 = vmatprep.mubr.f32.mxu0 0.0
  %7128 = vmatmul.mubr.f32.gmra.mrb[0].mxu0 %v6810
  %v7129 = vpop.f32.mrb[0].mxu0
  %v7130 = vadd.f32 0.0, %v7129
  %v7131 = vpop.f32.mrb[0].mxu0
  %7132 = vmatprep.mubr.f32.mxu0 0.0
  %7133 = vmatmul.mubr.f32.gmra.mrb[0].mxu0 %v6813
  %v7134 = vpop.f32.mrb[0].mxu0
  %v7135 = vadd.f32 0.0, %v7134
  %v7136 = vpop.f32.mrb[0].mxu0
  %7137 = vmatprep.mubr.f32.mxu0 0.0
  %7138 = vmatmul.mubr.f32.gmra.mrb[0].mxu0 %v6816
  %v7139 = vpop.f32.mrb[0].mxu0
  %v7140 = vadd.f32 0.0, %v7139
  %v7141 = vpop.f32.mrb[0].mxu0
  %7142 = vmatprep.mubr.f32.mxu0 0.0
  %7143 = vmatmul.mubr.f32.gmra.mrb[0].mxu0 %v6819
  %v7144 = vpop.f32.mrb[0].mxu0
  %v7145 = vadd.f32 0.0, %v7144
  %v7146 = vpop.f32.mrb[0].mxu0
  %7147 = vmatprep.mubr.f32.mxu0 0.0
  %7148 = vmatmul.mubr.f32.gmra.mrb[0].mxu0 %v6822
  %v7149 = vpop.f32.mrb[0].mxu0
  %v7150 = vadd.f32 0.0, %v7149
  %v7151 = vpop.f32.mrb[0].mxu0
  %7152 = vmatprep.mubr.f32.mxu0 0.0
  %7153 = vmatmul.mubr.f32.gmra.mrb[0].mxu0 %v6825
  %v7154 = vpop.f32.mrb[0].mxu0
  %v7155 = vadd.f32 0.0, %v7154
  %v7156 = vpop.f32.mrb[0].mxu0
  %7157 = vmatprep.mubr.f32.mxu0 0.0
  %7158 = vmatmul.mubr.f32.gmra.mrb[0].mxu0 %v6828
  %v7159 = vpop.f32.mrb[0].mxu0
  %v7160 = vadd.f32 0.0, %v7159
  %v7161 = vpop.f32.mrb[0].mxu0
  %7162 = vmatprep.mubr.f32.mxu0 0.0
  %7163 = vmatmul.mubr.f32.gmra.mrb[0].mxu0 %v6831
  %v7164 = vpop.f32.mrb[0].mxu0
  %v7165 = vadd.f32 0.0, %v7164
  %v7166 = vpop.f32.mrb[0].mxu0
  %7167 = vmatprep.mubr.f32.mxu0 0.0
  %7168 = vmatmul.mubr.f32.gmra.mrb[0].mxu0 %v6834
  %v7169 = vpop.f32.mrb[0].mxu0
  %v7170 = vadd.f32 0.0, %v7169
  %v7171 = vpop.f32.mrb[0].mxu0
  %7172 = vmatprep.mubr.f32.mxu0 0.0
  %7173 = vmatmul.mubr.f32.gmra.mrb[0].mxu0 %v6837
  %v7174 = vpop.f32.mrb[0].mxu0
  %v7175 = vadd.f32 0.0, %v7174
  %v7176 = vpop.f32.mrb[0].mxu0
  %7177 = vmatprep.mubr.f32.mxu0 0.0
  %7178 = vmatmul.mubr.f32.gmra.mrb[0].mxu0 %v6840
  %v7179 = vpop.f32.mrb[0].mxu0
  %v7180 = vadd.f32 0.0, %v7179
  %v7181 = vpop.f32.mrb[0].mxu0
  %7182 = vmatprep.mubr.f32.mxu0 0.0
  %7183 = vmatmul.mubr.f32.gmra.mrb[0].mxu0 %v6843
  %v7184 = vpop.f32.mrb[0].mxu0
  %v7185 = vadd.f32 0.0, %v7184
  %v7186 = vpop.f32.mrb[0].mxu0
  %7187 = vmatprep.mubr.f32.mxu0 0.0
  %7188 = vmatmul.mubr.f32.gmra.mrb[0].mxu0 %v6846
  %v7189 = vpop.f32.mrb[0].mxu0
  %v7190 = vadd.f32 0.0, %v7189
  %v7191 = vpop.f32.mrb[0].mxu0
  %7192 = vmatprep.mubr.f32.mxu0 0.0
  %7193 = vmatmul.mubr.f32.gmra.mrb[0].mxu0 %v6849
  %v7194 = vpop.f32.mrb[0].mxu0
  %v7195 = vadd.f32 0.0, %v7194
  %v7196 = vpop.f32.mrb[0].mxu0
  %7197 = vmatprep.mubr.f32.mxu0 0.0
  %7198 = vmatmul.mubr.f32.gmra.mrb[0].mxu0 %v6852
  %v7199 = vpop.f32.mrb[0].mxu0
  %v7200 = vadd.f32 0.0, %v7199
  %v7201 = vpop.f32.mrb[0].mxu0
  %7202 = vmatprep.mubr.f32.mxu0 0.0
  %7203 = vmatmul.mubr.f32.gmra.mrb[0].mxu0 %v6855
  %v7204 = vpop.f32.mrb[0].mxu0
  %v7205 = vadd.f32 0.0, %v7204
  %v7206 = vpop.f32.mrb[0].mxu0
  %7207 = vmatprep.mubr.f32.mxu0 0.0
  %7208 = vmatmul.mubr.f32.gmra.mrb[0].mxu0 %v6858
  %v7209 = vpop.f32.mrb[0].mxu0
  %v7210 = vadd.f32 0.0, %v7209
  %v7211 = vpop.f32.mrb[0].mxu0
  %7212 = vmatprep.mubr.f32.mxu0 0.0
  %7213 = vmatmul.mubr.f32.gmra.mrb[0].mxu0 %v6861
  %v7214 = vpop.f32.mrb[0].mxu0
  %v7215 = vadd.f32 0.0, %v7214
  %v7216 = vpop.f32.mrb[0].mxu0
  %7217 = vmatprep.mubr.f32.mxu0 0.0
  %7218 = vmatmul.mubr.f32.gmra.mrb[0].mxu0 %v6864
  %v7219 = vpop.f32.mrb[0].mxu0
  %v7220 = vadd.f32 0.0, %v7219
  %v7221 = vpop.f32.mrb[0].mxu0
  %7222 = vmatprep.mubr.f32.mxu0 0.0
  %7223 = vmatmul.mubr.f32.gmra.mrb[0].mxu0 %v6867
  %v7224 = vpop.f32.mrb[0].mxu0
  %v7225 = vadd.f32 0.0, %v7224
  %v7226 = vpop.f32.mrb[0].mxu0
  %7227 = vmatprep.mubr.f32.mxu0 0.0
  %7228 = vmatmul.mubr.f32.gmra.mrb[0].mxu0 %v6870
  %v7229 = vpop.f32.mrb[0].mxu0
  %v7230 = vadd.f32 0.0, %v7229
  %v7231 = vpop.f32.mrb[0].mxu0
  %7232 = vmatprep.mubr.f32.mxu0 0.0
  %7233 = vmatmul.mubr.f32.gmra.mrb[0].mxu0 %v6873
  %v7234 = vpop.f32.mrb[0].mxu0
  %v7235 = vadd.f32 0.0, %v7234
  %v7236 = vpop.f32.mrb[0].mxu0
  %7237 = vmatprep.mubr.f32.mxu0 0.0
  %7238 = vmatmul.mubr.f32.gmra.mrb[0].mxu0 %v6876
  %v7239 = vpop.f32.mrb[0].mxu0
  %v7240 = vadd.f32 0.0, %v7239
  %v7241 = vpop.f32.mrb[0].mxu0
  %7242 = vmatprep.mubr.f32.mxu0 0.0
  %7243 = vmatmul.mubr.f32.gmra.mrb[0].mxu0 %v6879
  %v7244 = vpop.f32.mrb[0].mxu0
  %v7245 = vadd.f32 0.0, %v7244
  %v7246 = vpop.f32.mrb[0].mxu0
  %7247 = vmatprep.mubr.f32.mxu0 0.0
  %7248 = vmatmul.mubr.f32.gmra.mrb[0].mxu0 %v6882
  %v7249 = vpop.f32.mrb[0].mxu0
  %v7250 = vadd.f32 0.0, %v7249
  %v7251 = vpop.f32.mrb[0].mxu0
  %7252 = vmatprep.mubr.f32.mxu0 0.0
  %7253 = vmatmul.mubr.f32.gmra.mrb[0].mxu0 %v6885
  %v7254 = vpop.f32.mrb[0].mxu0
  %v7255 = vadd.f32 0.0, %v7254
  %v7256 = vpop.f32.mrb[0].mxu0
  %7257 = vmatprep.mubr.f32.mxu0 0.0
  %7258 = vmatmul.mubr.f32.gmra.mrb[0].mxu0 %v6888
  %v7259 = vpop.f32.mrb[0].mxu0
  %v7260 = vadd.f32 0.0, %v7259
  %v7261 = vpop.f32.mrb[0].mxu0
  %7262 = vmatprep.mubr.f32.mxu0 0.0
  %7263 = vmatmul.mubr.f32.gmra.mrb[0].mxu0 %v6891
  %v7264 = vpop.f32.mrb[0].mxu0
  %v7265 = vadd.f32 0.0, %v7264
  %v7266 = vpop.f32.mrb[0].mxu0
  %7267 = vmatprep.mubr.f32.mxu0 0.0
  %7268 = vmatmul.mubr.f32.gmra.mrb[0].mxu0 %v6894
  %v7269 = vpop.f32.mrb[0].mxu0
  %v7270 = vadd.f32 0.0, %v7269
  %v7271 = vpop.f32.mrb[0].mxu0
  %7272 = vmatprep.mubr.f32.mxu0 0.0
  %7273 = vmatmul.mubr.f32.gmra.mrb[0].mxu0 %v6897
  %v7274 = vpop.f32.mrb[0].mxu0
  %v7275 = vadd.f32 0.0, %v7274
  %v7276 = vpop.f32.mrb[0].mxu0
  %7277 = vmatprep.mubr.f32.mxu0 0.0
  %7278 = vmatmul.mubr.f32.gmra.mrb[0].mxu0 %v6900
  %v7279 = vpop.f32.mrb[0].mxu0
  %v7280 = vadd.f32 0.0, %v7279
  %v7281 = vpop.f32.mrb[0].mxu0
  %7282 = vmatprep.mubr.f32.mxu0 0.0
  %7283 = vmatmul.mubr.f32.gmra.mrb[0].mxu0 %v6903
  %v7284 = vpop.f32.mrb[0].mxu0
  %v7285 = vadd.f32 0.0, %v7284
  %v7286 = vpop.f32.mrb[0].mxu0
  %7287 = vmatprep.mubr.f32.mxu0 0.0
  %7288 = vmatmul.mubr.f32.gmra.mrb[0].mxu0 %v6906
  %v7289 = vpop.f32.mrb[0].mxu0
  %v7290 = vadd.f32 0.0, %v7289
  %v7291 = vpop.f32.mrb[0].mxu0
  %7292 = vdwg.mxu0
  %v7294 = vsel %vm6426, %v6579, 0
  %v7297 = vsel %vm6426, %v6580, 0
  %v7300 = vsel %vm6426, %v6581, 0
  %v7303 = vsel %vm6426, %v6582, 0
  %v7306 = vsel %vm6426, %v6583, 0
  %v7309 = vsel %vm6426, %v6584, 0
  %v7312 = vsel %vm6426, %v6585, 0
  %v7315 = vsel %vm6426, %v6586, 0
  %v7318 = vsel %vm6426, %v6587, 0
  %v7321 = vsel %vm6426, %v6588, 0
  %v7324 = vsel %vm6426, %v6589, 0
  %v7327 = vsel %vm6426, %v6590, 0
  %v7330 = vsel %vm6426, %v6591, 0
  %v7333 = vsel %vm6426, %v6592, 0
  %v7336 = vsel %vm6426, %v6593, 0
  %v7339 = vsel %vm6426, %v6594, 0
  %v7342 = vsel %vm6426, %v6595, 0
  %v7345 = vsel %vm6426, %v6596, 0
  %v7348 = vsel %vm6426, %v6597, 0
  %v7351 = vsel %vm6426, %v6598, 0
  %v7354 = vsel %vm6426, %v6599, 0
  %v7357 = vsel %vm6426, %v6600, 0
  %v7360 = vsel %vm6426, %v6601, 0
  %v7363 = vsel %vm6426, %v6602, 0
  %v7366 = vsel %vm6426, %v6603, 0
  %v7369 = vsel %vm6426, %v6604, 0
  %v7372 = vsel %vm6426, %v6605, 0
  %v7375 = vsel %vm6426, %v6606, 0
  %v7378 = vsel %vm6426, %v6607, 0
  %v7381 = vsel %vm6426, %v6608, 0
  %v7384 = vsel %vm6426, %v6609, 0
  %v7387 = vsel %vm6426, %v6610, 0
  %v7390 = vsel %vm6426, %v6611, 0
  %v7393 = vsel %vm6426, %v6612, 0
  %v7396 = vsel %vm6426, %v6613, 0
  %v7399 = vsel %vm6426, %v6614, 0
  %v7402 = vsel %vm6426, %v6615, 0
  %v7405 = vsel %vm6426, %v6616, 0
  %v7408 = vsel %vm6426, %v6617, 0
  %v7411 = vsel %vm6426, %v6618, 0
  %v7414 = vsel %vm6426, %v6619, 0
  %v7417 = vsel %vm6426, %v6620, 0
  %v7420 = vsel %vm6426, %v6621, 0
  %v7423 = vsel %vm6426, %v6622, 0
  %v7426 = vsel %vm6426, %v6623, 0
  %v7429 = vsel %vm6426, %v6624, 0
  %v7432 = vsel %vm6426, %v6625, 0
  %v7435 = vsel %vm6426, %v6626, 0
  %v7438 = vsel %vm6426, %v6627, 0
  %v7441 = vsel %vm6426, %v6628, 0
  %v7444 = vsel %vm6426, %v6629, 0
  %v7447 = vsel %vm6426, %v6630, 0
  %v7450 = vsel %vm6426, %v6631, 0
  %v7453 = vsel %vm6426, %v6632, 0
  %v7456 = vsel %vm6426, %v6633, 0
  %v7459 = vsel %vm6426, %v6634, 0
  %v7462 = vsel %vm6426, %v6635, 0
  %v7465 = vsel %vm6426, %v6636, 0
  %v7468 = vsel %vm6426, %v6637, 0
  %v7471 = vsel %vm6426, %v6638, 0
  %v7474 = vsel %vm6426, %v6639, 0
  %v7477 = vsel %vm6426, %v6640, 0
  %v7480 = vsel %vm6426, %v6641, 0
  %v7483 = vsel %vm6426, %v6642, 0
  %7485 = vmatprep.subr.mxu0 0.0
  %7486 = vmatpush1.msra.mxu0 %v6643
  %7487 = vmatprep.subr.mxu0 0.0
  %7488 = vmatpush1.msra.mxu0 %v6644
  %7489 = vmatprep.subr.mxu0 0.0
  %7490 = vmatpush1.msra.mxu0 %v6645
  %7491 = vmatprep.subr.mxu0 0.0
  %7492 = vmatpush1.msra.mxu0 %v6646
  %7493 = vmatprep.subr.mxu0 0.0
  %7494 = vmatpush1.msra.mxu0 0.0
  %7495 = vmatprep.subr.mxu0 0.0
  %7496 = vmatpush1.msra.mxu0 0.0
  %7497 = vmatprep.subr.mxu0 0.0
  %7498 = vmatpush1.msra.mxu0 0.0
  %7499 = vmatprep.subr.mxu0 0.0
  %7500 = vmatpush1.msra.mxu0 0.0
  %7501 = vmatprep.subr.mxu0 0.0
  %7502 = vmatpush1.msra.mxu0 0.0
  %7503 = vmatprep.subr.mxu0 0.0
  %7504 = vmatpush1.msra.mxu0 0.0
  %7505 = vmatprep.subr.mxu0 0.0
  %7506 = vmatpush1.msra.mxu0 0.0
  %7507 = vmatprep.subr.mxu0 0.0
  %7508 = vmatpush1.msra.mxu0 0.0
  %7509 = vmatprep.subr.mxu0 0.0
  %7510 = vmatpush1.msra.mxu0 0.0
  %7511 = vmatprep.subr.mxu0 0.0
  %7512 = vmatpush1.msra.mxu0 0.0
  %7513 = vmatprep.subr.mxu0 0.0
  %7514 = vmatpush1.msra.mxu0 0.0
  %7515 = vmatprep.subr.mxu0 0.0
  %7516 = vmatpush1.msra.mxu0 0.0
  %7517 = vmatprep.subr.mxu0 0.0
  %7518 = vmatpush1.msra.mxu0 0.0
  %7519 = vmatprep.subr.mxu0 0.0
  %7520 = vmatpush1.msra.mxu0 0.0
  %7521 = vmatprep.subr.mxu0 0.0
  %7522 = vmatpush1.msra.mxu0 0.0
  %7523 = vmatprep.subr.mxu0 0.0
  %7524 = vmatpush1.msra.mxu0 0.0
  %7525 = vmatprep.subr.mxu0 0.0
  %7526 = vmatpush1.msra.mxu0 0.0
  %7527 = vmatprep.subr.mxu0 0.0
  %7528 = vmatpush1.msra.mxu0 0.0
  %7529 = vmatprep.subr.mxu0 0.0
  %7530 = vmatpush1.msra.mxu0 0.0
  %7531 = vmatprep.subr.mxu0 0.0
  %7532 = vmatpush1.msra.mxu0 0.0
  %7533 = vmatprep.subr.mxu0 0.0
  %7534 = vmatpush1.msra.mxu0 0.0
  %7535 = vmatprep.subr.mxu0 0.0
  %7536 = vmatpush1.msra.mxu0 0.0
  %7537 = vmatprep.subr.mxu0 0.0
  %7538 = vmatpush1.msra.mxu0 0.0
  %7539 = vmatprep.subr.mxu0 0.0
  %7540 = vmatpush1.msra.mxu0 0.0
  %7541 = vmatprep.subr.mxu0 0.0
  %7542 = vmatpush1.msra.mxu0 0.0
  %7543 = vmatprep.subr.mxu0 0.0
  %7544 = vmatpush1.msra.mxu0 0.0
  %7545 = vmatprep.subr.mxu0 0.0
  %7546 = vmatpush1.msra.mxu0 0.0
  %7547 = vmatprep.subr.mxu0 0.0
  %7548 = vmatpush1.msra.mxu0 0.0
  %7549 = vmatprep.mubr.f32.mxu0 0.0
  %7550 = vmatmul.mubr.f32.gmra.mrb[0].mxu0 %v7294
  %v7551 = vpop.f32.mrb[0].mxu0
  %v7552 = vadd.f32 %v6975, %v7551
  %v7553 = vpop.f32.mrb[0].mxu0
  %7554 = vmatprep.mubr.f32.mxu0 0.0
  %7555 = vmatmul.mubr.f32.gmra.mrb[0].mxu0 %v7297
  %v7556 = vpop.f32.mrb[0].mxu0
  %v7557 = vadd.f32 %v6980, %v7556
  %v7558 = vpop.f32.mrb[0].mxu0
  %7559 = vmatprep.mubr.f32.mxu0 0.0
  %7560 = vmatmul.mubr.f32.gmra.mrb[0].mxu0 %v7300
  %v7561 = vpop.f32.mrb[0].mxu0
  %v7562 = vadd.f32 %v6985, %v7561
  %v7563 = vpop.f32.mrb[0].mxu0
  %7564 = vmatprep.mubr.f32.mxu0 0.0
  %7565 = vmatmul.mubr.f32.gmra.mrb[0].mxu0 %v7303
  %v7566 = vpop.f32.mrb[0].mxu0
  %v7567 = vadd.f32 %v6990, %v7566
  %v7568 = vpop.f32.mrb[0].mxu0
  %7569 = vmatprep.mubr.f32.mxu0 0.0
  %7570 = vmatmul.mubr.f32.gmra.mrb[0].mxu0 %v7306
  %v7571 = vpop.f32.mrb[0].mxu0
  %v7572 = vadd.f32 %v6995, %v7571
  %v7573 = vpop.f32.mrb[0].mxu0
  %7574 = vmatprep.mubr.f32.mxu0 0.0
  %7575 = vmatmul.mubr.f32.gmra.mrb[0].mxu0 %v7309
  %v7576 = vpop.f32.mrb[0].mxu0
  %v7577 = vadd.f32 %v7000, %v7576
  %v7578 = vpop.f32.mrb[0].mxu0
  %7579 = vmatprep.mubr.f32.mxu0 0.0
  %7580 = vmatmul.mubr.f32.gmra.mrb[0].mxu0 %v7312
  %v7581 = vpop.f32.mrb[0].mxu0
  %v7582 = vadd.f32 %v7005, %v7581
  %v7583 = vpop.f32.mrb[0].mxu0
  %7584 = vmatprep.mubr.f32.mxu0 0.0
  %7585 = vmatmul.mubr.f32.gmra.mrb[0].mxu0 %v7315
  %v7586 = vpop.f32.mrb[0].mxu0
  %v7587 = vadd.f32 %v7010, %v7586
  %v7588 = vpop.f32.mrb[0].mxu0
  %7589 = vmatprep.mubr.f32.mxu0 0.0
  %7590 = vmatmul.mubr.f32.gmra.mrb[0].mxu0 %v7318
  %v7591 = vpop.f32.mrb[0].mxu0
  %v7592 = vadd.f32 %v7015, %v7591
  %v7593 = vpop.f32.mrb[0].mxu0
  %7594 = vmatprep.mubr.f32.mxu0 0.0
  %7595 = vmatmul.mubr.f32.gmra.mrb[0].mxu0 %v7321
  %v7596 = vpop.f32.mrb[0].mxu0
  %v7597 = vadd.f32 %v7020, %v7596
  %v7598 = vpop.f32.mrb[0].mxu0
  %7599 = vmatprep.mubr.f32.mxu0 0.0
  %7600 = vmatmul.mubr.f32.gmra.mrb[0].mxu0 %v7324
  %v7601 = vpop.f32.mrb[0].mxu0
  %v7602 = vadd.f32 %v7025, %v7601
  %v7603 = vpop.f32.mrb[0].mxu0
  %7604 = vmatprep.mubr.f32.mxu0 0.0
  %7605 = vmatmul.mubr.f32.gmra.mrb[0].mxu0 %v7327
  %v7606 = vpop.f32.mrb[0].mxu0
  %v7607 = vadd.f32 %v7030, %v7606
  %v7608 = vpop.f32.mrb[0].mxu0
  %7609 = vmatprep.mubr.f32.mxu0 0.0
  %7610 = vmatmul.mubr.f32.gmra.mrb[0].mxu0 %v7330
  %v7611 = vpop.f32.mrb[0].mxu0
  %v7612 = vadd.f32 %v7035, %v7611
  %v7613 = vpop.f32.mrb[0].mxu0
  %7614 = vmatprep.mubr.f32.mxu0 0.0
  %7615 = vmatmul.mubr.f32.gmra.mrb[0].mxu0 %v7333
  %v7616 = vpop.f32.mrb[0].mxu0
  %v7617 = vadd.f32 %v7040, %v7616
  %v7618 = vpop.f32.mrb[0].mxu0
  %7619 = vmatprep.mubr.f32.mxu0 0.0
  %7620 = vmatmul.mubr.f32.gmra.mrb[0].mxu0 %v7336
  %v7621 = vpop.f32.mrb[0].mxu0
  %v7622 = vadd.f32 %v7045, %v7621
  %v7623 = vpop.f32.mrb[0].mxu0
  %7624 = vmatprep.mubr.f32.mxu0 0.0
  %7625 = vmatmul.mubr.f32.gmra.mrb[0].mxu0 %v7339
  %v7626 = vpop.f32.mrb[0].mxu0
  %v7627 = vadd.f32 %v7050, %v7626
  %v7628 = vpop.f32.mrb[0].mxu0
  %7629 = vmatprep.mubr.f32.mxu0 0.0
  %7630 = vmatmul.mubr.f32.gmra.mrb[0].mxu0 %v7342
  %v7631 = vpop.f32.mrb[0].mxu0
  %v7632 = vadd.f32 %v7055, %v7631
  %v7633 = vpop.f32.mrb[0].mxu0
  %7634 = vmatprep.mubr.f32.mxu0 0.0
  %7635 = vmatmul.mubr.f32.gmra.mrb[0].mxu0 %v7345
  %v7636 = vpop.f32.mrb[0].mxu0
  %v7637 = vadd.f32 %v7060, %v7636
  %v7638 = vpop.f32.mrb[0].mxu0
  %7639 = vmatprep.mubr.f32.mxu0 0.0
  %7640 = vmatmul.mubr.f32.gmra.mrb[0].mxu0 %v7348
  %v7641 = vpop.f32.mrb[0].mxu0
  %v7642 = vadd.f32 %v7065, %v7641
  %v7643 = vpop.f32.mrb[0].mxu0
  %7644 = vmatprep.mubr.f32.mxu0 0.0
  %7645 = vmatmul.mubr.f32.gmra.mrb[0].mxu0 %v7351
  %v7646 = vpop.f32.mrb[0].mxu0
  %v7647 = vadd.f32 %v7070, %v7646
  %v7648 = vpop.f32.mrb[0].mxu0
  %7649 = vmatprep.mubr.f32.mxu0 0.0
  %7650 = vmatmul.mubr.f32.gmra.mrb[0].mxu0 %v7354
  %v7651 = vpop.f32.mrb[0].mxu0
  %v7652 = vadd.f32 %v7075, %v7651
  %v7653 = vpop.f32.mrb[0].mxu0
  %7654 = vmatprep.mubr.f32.mxu0 0.0
  %7655 = vmatmul.mubr.f32.gmra.mrb[0].mxu0 %v7357
  %v7656 = vpop.f32.mrb[0].mxu0
  %v7657 = vadd.f32 %v7080, %v7656
  %v7658 = vpop.f32.mrb[0].mxu0
  %7659 = vmatprep.mubr.f32.mxu0 0.0
  %7660 = vmatmul.mubr.f32.gmra.mrb[0].mxu0 %v7360
  %v7661 = vpop.f32.mrb[0].mxu0
  %v7662 = vadd.f32 %v7085, %v7661
  %v7663 = vpop.f32.mrb[0].mxu0
  %7664 = vmatprep.mubr.f32.mxu0 0.0
  %7665 = vmatmul.mubr.f32.gmra.mrb[0].mxu0 %v7363
  %v7666 = vpop.f32.mrb[0].mxu0
  %v7667 = vadd.f32 %v7090, %v7666
  %v7668 = vpop.f32.mrb[0].mxu0
  %7669 = vmatprep.mubr.f32.mxu0 0.0
  %7670 = vmatmul.mubr.f32.gmra.mrb[0].mxu0 %v7366
  %v7671 = vpop.f32.mrb[0].mxu0
  %v7672 = vadd.f32 %v7095, %v7671
  %v7673 = vpop.f32.mrb[0].mxu0
  %7674 = vmatprep.mubr.f32.mxu0 0.0
  %7675 = vmatmul.mubr.f32.gmra.mrb[0].mxu0 %v7369
  %v7676 = vpop.f32.mrb[0].mxu0
  %v7677 = vadd.f32 %v7100, %v7676
  %v7678 = vpop.f32.mrb[0].mxu0
  %7679 = vmatprep.mubr.f32.mxu0 0.0
  %7680 = vmatmul.mubr.f32.gmra.mrb[0].mxu0 %v7372
  %v7681 = vpop.f32.mrb[0].mxu0
  %v7682 = vadd.f32 %v7105, %v7681
  %v7683 = vpop.f32.mrb[0].mxu0
  %7684 = vmatprep.mubr.f32.mxu0 0.0
  %7685 = vmatmul.mubr.f32.gmra.mrb[0].mxu0 %v7375
  %v7686 = vpop.f32.mrb[0].mxu0
  %v7687 = vadd.f32 %v7110, %v7686
  %v7688 = vpop.f32.mrb[0].mxu0
  %7689 = vmatprep.mubr.f32.mxu0 0.0
  %7690 = vmatmul.mubr.f32.gmra.mrb[0].mxu0 %v7378
  %v7691 = vpop.f32.mrb[0].mxu0
  %v7692 = vadd.f32 %v7115, %v7691
  %v7693 = vpop.f32.mrb[0].mxu0
  %7694 = vmatprep.mubr.f32.mxu0 0.0
  %7695 = vmatmul.mubr.f32.gmra.mrb[0].mxu0 %v7381
  %v7696 = vpop.f32.mrb[0].mxu0
  %v7697 = vadd.f32 %v7120, %v7696
  %v7698 = vpop.f32.mrb[0].mxu0
  %7699 = vmatprep.mubr.f32.mxu0 0.0
  %7700 = vmatmul.mubr.f32.gmra.mrb[0].mxu0 %v7384
  %v7701 = vpop.f32.mrb[0].mxu0
  %v7702 = vadd.f32 %v7125, %v7701
  %v7703 = vpop.f32.mrb[0].mxu0
  %7704 = vmatprep.mubr.f32.mxu0 0.0
  %7705 = vmatmul.mubr.f32.gmra.mrb[0].mxu0 %v7387
  %v7706 = vpop.f32.mrb[0].mxu0
  %v7707 = vadd.f32 %v7130, %v7706
  %v7708 = vpop.f32.mrb[0].mxu0
  %7709 = vmatprep.mubr.f32.mxu0 0.0
  %7710 = vmatmul.mubr.f32.gmra.mrb[0].mxu0 %v7390
  %v7711 = vpop.f32.mrb[0].mxu0
  %v7712 = vadd.f32 %v7135, %v7711
  %v7713 = vpop.f32.mrb[0].mxu0
  %7714 = vmatprep.mubr.f32.mxu0 0.0
  %7715 = vmatmul.mubr.f32.gmra.mrb[0].mxu0 %v7393
  %v7716 = vpop.f32.mrb[0].mxu0
  %v7717 = vadd.f32 %v7140, %v7716
  %v7718 = vpop.f32.mrb[0].mxu0
  %7719 = vmatprep.mubr.f32.mxu0 0.0
  %7720 = vmatmul.mubr.f32.gmra.mrb[0].mxu0 %v7396
  %v7721 = vpop.f32.mrb[0].mxu0
  %v7722 = vadd.f32 %v7145, %v7721
  %v7723 = vpop.f32.mrb[0].mxu0
  %7724 = vmatprep.mubr.f32.mxu0 0.0
  %7725 = vmatmul.mubr.f32.gmra.mrb[0].mxu0 %v7399
  %v7726 = vpop.f32.mrb[0].mxu0
  %v7727 = vadd.f32 %v7150, %v7726
  %v7728 = vpop.f32.mrb[0].mxu0
  %7729 = vmatprep.mubr.f32.mxu0 0.0
  %7730 = vmatmul.mubr.f32.gmra.mrb[0].mxu0 %v7402
  %v7731 = vpop.f32.mrb[0].mxu0
  %v7732 = vadd.f32 %v7155, %v7731
  %v7733 = vpop.f32.mrb[0].mxu0
  %7734 = vmatprep.mubr.f32.mxu0 0.0
  %7735 = vmatmul.mubr.f32.gmra.mrb[0].mxu0 %v7405
  %v7736 = vpop.f32.mrb[0].mxu0
  %v7737 = vadd.f32 %v7160, %v7736
  %v7738 = vpop.f32.mrb[0].mxu0
  %7739 = vmatprep.mubr.f32.mxu0 0.0
  %7740 = vmatmul.mubr.f32.gmra.mrb[0].mxu0 %v7408
  %v7741 = vpop.f32.mrb[0].mxu0
  %v7742 = vadd.f32 %v7165, %v7741
  %v7743 = vpop.f32.mrb[0].mxu0
  %7744 = vmatprep.mubr.f32.mxu0 0.0
  %7745 = vmatmul.mubr.f32.gmra.mrb[0].mxu0 %v7411
  %v7746 = vpop.f32.mrb[0].mxu0
  %v7747 = vadd.f32 %v7170, %v7746
  %v7748 = vpop.f32.mrb[0].mxu0
  %7749 = vmatprep.mubr.f32.mxu0 0.0
  %7750 = vmatmul.mubr.f32.gmra.mrb[0].mxu0 %v7414
  %v7751 = vpop.f32.mrb[0].mxu0
  %v7752 = vadd.f32 %v7175, %v7751
  %v7753 = vpop.f32.mrb[0].mxu0
  %7754 = vmatprep.mubr.f32.mxu0 0.0
  %7755 = vmatmul.mubr.f32.gmra.mrb[0].mxu0 %v7417
  %v7756 = vpop.f32.mrb[0].mxu0
  %v7757 = vadd.f32 %v7180, %v7756
  %v7758 = vpop.f32.mrb[0].mxu0
  %7759 = vmatprep.mubr.f32.mxu0 0.0
  %7760 = vmatmul.mubr.f32.gmra.mrb[0].mxu0 %v7420
  %v7761 = vpop.f32.mrb[0].mxu0
  %v7762 = vadd.f32 %v7185, %v7761
  %v7763 = vpop.f32.mrb[0].mxu0
  %7764 = vmatprep.mubr.f32.mxu0 0.0
  %7765 = vmatmul.mubr.f32.gmra.mrb[0].mxu0 %v7423
  %v7766 = vpop.f32.mrb[0].mxu0
  %v7767 = vadd.f32 %v7190, %v7766
  %v7768 = vpop.f32.mrb[0].mxu0
  %7769 = vmatprep.mubr.f32.mxu0 0.0
  %7770 = vmatmul.mubr.f32.gmra.mrb[0].mxu0 %v7426
  %v7771 = vpop.f32.mrb[0].mxu0
  %v7772 = vadd.f32 %v7195, %v7771
  %v7773 = vpop.f32.mrb[0].mxu0
  %7774 = vmatprep.mubr.f32.mxu0 0.0
  %7775 = vmatmul.mubr.f32.gmra.mrb[0].mxu0 %v7429
  %v7776 = vpop.f32.mrb[0].mxu0
  %v7777 = vadd.f32 %v7200, %v7776
  %v7778 = vpop.f32.mrb[0].mxu0
  %7779 = vmatprep.mubr.f32.mxu0 0.0
  %7780 = vmatmul.mubr.f32.gmra.mrb[0].mxu0 %v7432
  %v7781 = vpop.f32.mrb[0].mxu0
  %v7782 = vadd.f32 %v7205, %v7781
  %v7783 = vpop.f32.mrb[0].mxu0
  %7784 = vmatprep.mubr.f32.mxu0 0.0
  %7785 = vmatmul.mubr.f32.gmra.mrb[0].mxu0 %v7435
  %v7786 = vpop.f32.mrb[0].mxu0
  %v7787 = vadd.f32 %v7210, %v7786
  %v7788 = vpop.f32.mrb[0].mxu0
  %7789 = vmatprep.mubr.f32.mxu0 0.0
  %7790 = vmatmul.mubr.f32.gmra.mrb[0].mxu0 %v7438
  %v7791 = vpop.f32.mrb[0].mxu0
  %v7792 = vadd.f32 %v7215, %v7791
  %v7793 = vpop.f32.mrb[0].mxu0
  %7794 = vmatprep.mubr.f32.mxu0 0.0
  %7795 = vmatmul.mubr.f32.gmra.mrb[0].mxu0 %v7441
  %v7796 = vpop.f32.mrb[0].mxu0
  %v7797 = vadd.f32 %v7220, %v7796
  %v7798 = vpop.f32.mrb[0].mxu0
  %7799 = vmatprep.mubr.f32.mxu0 0.0
  %7800 = vmatmul.mubr.f32.gmra.mrb[0].mxu0 %v7444
  %v7801 = vpop.f32.mrb[0].mxu0
  %v7802 = vadd.f32 %v7225, %v7801
  %v7803 = vpop.f32.mrb[0].mxu0
  %7804 = vmatprep.mubr.f32.mxu0 0.0
  %7805 = vmatmul.mubr.f32.gmra.mrb[0].mxu0 %v7447
  %v7806 = vpop.f32.mrb[0].mxu0
  %v7807 = vadd.f32 %v7230, %v7806
  %v7808 = vpop.f32.mrb[0].mxu0
  %7809 = vmatprep.mubr.f32.mxu0 0.0
  %7810 = vmatmul.mubr.f32.gmra.mrb[0].mxu0 %v7450
  %v7811 = vpop.f32.mrb[0].mxu0
  %v7812 = vadd.f32 %v7235, %v7811
  %v7813 = vpop.f32.mrb[0].mxu0
  %7814 = vmatprep.mubr.f32.mxu0 0.0
  %7815 = vmatmul.mubr.f32.gmra.mrb[0].mxu0 %v7453
  %v7816 = vpop.f32.mrb[0].mxu0
  %v7817 = vadd.f32 %v7240, %v7816
  %v7818 = vpop.f32.mrb[0].mxu0
  %7819 = vmatprep.mubr.f32.mxu0 0.0
  %7820 = vmatmul.mubr.f32.gmra.mrb[0].mxu0 %v7456
  %v7821 = vpop.f32.mrb[0].mxu0
  %v7822 = vadd.f32 %v7245, %v7821
  %v7823 = vpop.f32.mrb[0].mxu0
  %7824 = vmatprep.mubr.f32.mxu0 0.0
  %7825 = vmatmul.mubr.f32.gmra.mrb[0].mxu0 %v7459
  %v7826 = vpop.f32.mrb[0].mxu0
  %v7827 = vadd.f32 %v7250, %v7826
  %v7828 = vpop.f32.mrb[0].mxu0
  %7829 = vmatprep.mubr.f32.mxu0 0.0
  %7830 = vmatmul.mubr.f32.gmra.mrb[0].mxu0 %v7462
  %v7831 = vpop.f32.mrb[0].mxu0
  %v7832 = vadd.f32 %v7255, %v7831
  %v7833 = vpop.f32.mrb[0].mxu0
  %7834 = vmatprep.mubr.f32.mxu0 0.0
  %7835 = vmatmul.mubr.f32.gmra.mrb[0].mxu0 %v7465
  %v7836 = vpop.f32.mrb[0].mxu0
  %v7837 = vadd.f32 %v7260, %v7836
  %v7838 = vpop.f32.mrb[0].mxu0
  %7839 = vmatprep.mubr.f32.mxu0 0.0
  %7840 = vmatmul.mubr.f32.gmra.mrb[0].mxu0 %v7468
  %v7841 = vpop.f32.mrb[0].mxu0
  %v7842 = vadd.f32 %v7265, %v7841
  %v7843 = vpop.f32.mrb[0].mxu0
  %7844 = vmatprep.mubr.f32.mxu0 0.0
  %7845 = vmatmul.mubr.f32.gmra.mrb[0].mxu0 %v7471
  %v7846 = vpop.f32.mrb[0].mxu0
  %v7847 = vadd.f32 %v7270, %v7846
  %v7848 = vpop.f32.mrb[0].mxu0
  %7849 = vmatprep.mubr.f32.mxu0 0.0
  %7850 = vmatmul.mubr.f32.gmra.mrb[0].mxu0 %v7474
  %v7851 = vpop.f32.mrb[0].mxu0
  %v7852 = vadd.f32 %v7275, %v7851
  %v7853 = vpop.f32.mrb[0].mxu0
  %7854 = vmatprep.mubr.f32.mxu0 0.0
  %7855 = vmatmul.mubr.f32.gmra.mrb[0].mxu0 %v7477
  %v7856 = vpop.f32.mrb[0].mxu0
  %v7857 = vadd.f32 %v7280, %v7856
  %v7858 = vpop.f32.mrb[0].mxu0
  %7859 = vmatprep.mubr.f32.mxu0 0.0
  %7860 = vmatmul.mubr.f32.gmra.mrb[0].mxu0 %v7480
  %v7861 = vpop.f32.mrb[0].mxu0
  %v7862 = vadd.f32 %v7285, %v7861
  %v7863 = vpop.f32.mrb[0].mxu0
  %7864 = vmatprep.mubr.f32.mxu0 0.0
  %7865 = vmatmul.mubr.f32.gmra.mrb[0].mxu0 %v7483
  %v7866 = vpop.f32.mrb[0].mxu0
  %v7867 = vadd.f32 %v7290, %v7866
  %v7868 = vpop.f32.mrb[0].mxu0
  %7869 = vdwg.mxu0
  %v7870 = vld [vmem:[#allocation2 + $0x2] sm:$0xff]
  %v7871 = vld [vmem:[#allocation2 + $0xa] sm:$0xff]
  %v7872 = vld [vmem:[#allocation2 + $0x1a] sm:$0xff]
  %v7873 = vld [vmem:[#allocation2 + $0x22] sm:$0xff]
  %v7874 = vld [vmem:[#allocation2 + $0x32] sm:$0xff]
  %v7875 = vld [vmem:[#allocation2 + $0x3a] sm:$0xff]
  %v7876 = vld [vmem:[#allocation2 + $0x4a] sm:$0xff]
  %v7877 = vld [vmem:[#allocation2 + $0x52] sm:$0xff]
  %v7878 = vld [vmem:[#allocation2 + $0x62] sm:$0xff]
  %v7879 = vld [vmem:[#allocation2 + $0x6a] sm:$0xff]
  %v7880 = vld [vmem:[#allocation2 + $0x7a] sm:$0xff]
  %v7881 = vld [vmem:[#allocation2 + $0x82] sm:$0xff]
  %v7882 = vld [vmem:[#allocation2 + $0x92] sm:$0xff]
  %v7883 = vld [vmem:[#allocation2 + $0x9a] sm:$0xff]
  %v7884 = vld [vmem:[#allocation2 + $0xaa] sm:$0xff]
  %v7885 = vld [vmem:[#allocation2 + $0xb2] sm:$0xff]
  %v7886 = vld [vmem:[#allocation2 + $0xc2] sm:$0xff]
  %v7887 = vld [vmem:[#allocation2 + $0xca] sm:$0xff]
  %v7888 = vld [vmem:[#allocation2 + $0xda] sm:$0xff]
  %v7889 = vld [vmem:[#allocation2 + $0xe2] sm:$0xff]
  %v7890 = vld [vmem:[#allocation2 + $0xf2] sm:$0xff]
  %v7891 = vld [vmem:[#allocation2 + $0xfa] sm:$0xff]
  %v7892 = vld [vmem:[#allocation2 + $0x10a] sm:$0xff]
  %v7893 = vld [vmem:[#allocation2 + $0x112] sm:$0xff]
  %v7894 = vld [vmem:[#allocation2 + $0x122] sm:$0xff]
  %v7895 = vld [vmem:[#allocation2 + $0x12a] sm:$0xff]
  %v7896 = vld [vmem:[#allocation2 + $0x13a] sm:$0xff]
  %v7897 = vld [vmem:[#allocation2 + $0x142] sm:$0xff]
  %v7898 = vld [vmem:[#allocation2 + $0x152] sm:$0xff]
  %v7899 = vld [vmem:[#allocation2 + $0x15a] sm:$0xff]
  %v7900 = vld [vmem:[#allocation2 + $0x16a] sm:$0xff]
  %v7901 = vld [vmem:[#allocation2 + $0x172] sm:$0xff]
  %v7902 = vld [vmem:[#allocation2 + $0x1b2] sm:$0xff]
  %v7903 = vld [vmem:[#allocation2 + $0x1ba] sm:$0xff]
  %v7904 = vld [vmem:[#allocation2 + $0x1ca] sm:$0xff]
  %v7905 = vld [vmem:[#allocation2 + $0x1d2] sm:$0xff]
  %v7906 = vld [vmem:[#allocation2 + $0x1e2] sm:$0xff]
  %v7907 = vld [vmem:[#allocation2 + $0x1ea] sm:$0xff]
  %v7908 = vld [vmem:[#allocation2 + $0x1fa] sm:$0xff]
  %v7909 = vld [vmem:[#allocation2 + $0x202] sm:$0xff]
  %v7910 = vld [vmem:[#allocation2 + $0x212] sm:$0xff]
  %v7911 = vld [vmem:[#allocation2 + $0x21a] sm:$0xff]
  %v7912 = vld [vmem:[#allocation2 + $0x22a] sm:$0xff]
  %v7913 = vld [vmem:[#allocation2 + $0x232] sm:$0xff]
  %v7914 = vld [vmem:[#allocation2 + $0x242] sm:$0xff]
  %v7915 = vld [vmem:[#allocation2 + $0x24a] sm:$0xff]
  %v7916 = vld [vmem:[#allocation2 + $0x25a] sm:$0xff]
  %v7917 = vld [vmem:[#allocation2 + $0x262] sm:$0xff]
  %v7918 = vld [vmem:[#allocation2 + $0x272] sm:$0xff]
  %v7919 = vld [vmem:[#allocation2 + $0x27a] sm:$0xff]
  %v7920 = vld [vmem:[#allocation2 + $0x28a] sm:$0xff]
  %v7921 = vld [vmem:[#allocation2 + $0x292] sm:$0xff]
  %v7922 = vld [vmem:[#allocation2 + $0x2a2] sm:$0xff]
  %v7923 = vld [vmem:[#allocation2 + $0x2aa] sm:$0xff]
  %v7924 = vld [vmem:[#allocation2 + $0x2ba] sm:$0xff]
  %v7925 = vld [vmem:[#allocation2 + $0x2c2] sm:$0xff]
  %v7926 = vld [vmem:[#allocation2 + $0x2d2] sm:$0xff]
  %v7927 = vld [vmem:[#allocation2 + $0x2da] sm:$0xff]
  %v7928 = vld [vmem:[#allocation2 + $0x2ea] sm:$0xff]
  %v7929 = vld [vmem:[#allocation2 + $0x2f2] sm:$0xff]
  %v7930 = vld [vmem:[#allocation2 + $0x302] sm:$0xff]
  %v7931 = vld [vmem:[#allocation2 + $0x30a] sm:$0xff]
  %v7932 = vld [vmem:[#allocation2 + $0x31a] sm:$0xff]
  %v7933 = vld [vmem:[#allocation2 + $0x322] sm:$0xff]
  %s7934 = scalar_lea.vmem %s3, 64
  %v7935 = vld [vmem:[%s7934] sm:$0xff]
  %v7936 = vld [vmem:[%s7934 + $0x8] sm:$0xff]
  %v7937 = vld [vmem:[%s7934 + $0x10] sm:$0xff]
  %v7938 = vld [vmem:[%s7934 + $0x18] sm:$0xff]
  %v7940 = vsel %vm6426, %v7870, 0
  %v7943 = vsel %vm6426, %v7871, 0
  %v7946 = vsel %vm6426, %v7872, 0
  %v7949 = vsel %vm6426, %v7873, 0
  %v7952 = vsel %vm6426, %v7874, 0
  %v7955 = vsel %vm6426, %v7875, 0
  %v7958 = vsel %vm6426, %v7876, 0
  %v7961 = vsel %vm6426, %v7877, 0
  %v7964 = vsel %vm6426, %v7878, 0
  %v7967 = vsel %vm6426, %v7879, 0
  %v7970 = vsel %vm6426, %v7880, 0
  %v7973 = vsel %vm6426, %v7881, 0
  %v7976 = vsel %vm6426, %v7882, 0
  %v7979 = vsel %vm6426, %v7883, 0
  %v7982 = vsel %vm6426, %v7884, 0
  %v7985 = vsel %vm6426, %v7885, 0
  %v7988 = vsel %vm6426, %v7886, 0
  %v7991 = vsel %vm6426, %v7887, 0
  %v7994 = vsel %vm6426, %v7888, 0
  %v7997 = vsel %vm6426, %v7889, 0
  %v8000 = vsel %vm6426, %v7890, 0
  %v8003 = vsel %vm6426, %v7891, 0
  %v8006 = vsel %vm6426, %v7892, 0
  %v8009 = vsel %vm6426, %v7893, 0
  %v8012 = vsel %vm6426, %v7894, 0
  %v8015 = vsel %vm6426, %v7895, 0
  %v8018 = vsel %vm6426, %v7896, 0
  %v8021 = vsel %vm6426, %v7897, 0
  %v8024 = vsel %vm6426, %v7898, 0
  %v8027 = vsel %vm6426, %v7899, 0
  %v8030 = vsel %vm6426, %v7900, 0
  %v8033 = vsel %vm6426, %v7901, 0
  %v8036 = vsel %vm6426, %v7902, 0
  %v8039 = vsel %vm6426, %v7903, 0
  %v8042 = vsel %vm6426, %v7904, 0
  %v8045 = vsel %vm6426, %v7905, 0
  %v8048 = vsel %vm6426, %v7906, 0
  %v8051 = vsel %vm6426, %v7907, 0
  %v8054 = vsel %vm6426, %v7908, 0
  %v8057 = vsel %vm6426, %v7909, 0
  %v8060 = vsel %vm6426, %v7910, 0
  %v8063 = vsel %vm6426, %v7911, 0
  %v8066 = vsel %vm6426, %v7912, 0
  %v8069 = vsel %vm6426, %v7913, 0
  %v8072 = vsel %vm6426, %v7914, 0
  %v8075 = vsel %vm6426, %v7915, 0
  %v8078 = vsel %vm6426, %v7916, 0
  %v8081 = vsel %vm6426, %v7917, 0
  %v8084 = vsel %vm6426, %v7918, 0
  %v8087 = vsel %vm6426, %v7919, 0
  %v8090 = vsel %vm6426, %v7920, 0
  %v8093 = vsel %vm6426, %v7921, 0
  %v8096 = vsel %vm6426, %v7922, 0
  %v8099 = vsel %vm6426, %v7923, 0
  %v8102 = vsel %vm6426, %v7924, 0
  %v8105 = vsel %vm6426, %v7925, 0
  %v8108 = vsel %vm6426, %v7926, 0
  %v8111 = vsel %vm6426, %v7927, 0
  %v8114 = vsel %vm6426, %v7928, 0
  %v8117 = vsel %vm6426, %v7929, 0
  %v8120 = vsel %vm6426, %v7930, 0
  %v8123 = vsel %vm6426, %v7931, 0
  %v8126 = vsel %vm6426, %v7932, 0
  %v8129 = vsel %vm6426, %v7933, 0
  %8131 = vmatprep.subr.mxu0 0.0
  %8132 = vmatpush1.msra.mxu0 %v7935
  %8133 = vmatprep.subr.mxu0 0.0
  %8134 = vmatpush1.msra.mxu0 %v7936
  %8135 = vmatprep.subr.mxu0 0.0
  %8136 = vmatpush1.msra.mxu0 %v7937
  %8137 = vmatprep.subr.mxu0 0.0
  %8138 = vmatpush1.msra.mxu0 %v7938
  %8139 = vmatprep.subr.mxu0 0.0
  %8140 = vmatpush1.msra.mxu0 0.0
  %8141 = vmatprep.subr.mxu0 0.0
  %8142 = vmatpush1.msra.mxu0 0.0
  %8143 = vmatprep.subr.mxu0 0.0
  %8144 = vmatpush1.msra.mxu0 0.0
  %8145 = vmatprep.subr.mxu0 0.0
  %8146 = vmatpush1.msra.mxu0 0.0
  %8147 = vmatprep.subr.mxu0 0.0
  %8148 = vmatpush1.msra.mxu0 0.0
  %8149 = vmatprep.subr.mxu0 0.0
  %8150 = vmatpush1.msra.mxu0 0.0
  %8151 = vmatprep.subr.mxu0 0.0
  %8152 = vmatpush1.msra.mxu0 0.0
  %8153 = vmatprep.subr.mxu0 0.0
  %8154 = vmatpush1.msra.mxu0 0.0
  %8155 = vmatprep.subr.mxu0 0.0
  %8156 = vmatpush1.msra.mxu0 0.0
  %8157 = vmatprep.subr.mxu0 0.0
  %8158 = vmatpush1.msra.mxu0 0.0
  %8159 = vmatprep.subr.mxu0 0.0
  %8160 = vmatpush1.msra.mxu0 0.0
  %8161 = vmatprep.subr.mxu0 0.0
  %8162 = vmatpush1.msra.mxu0 0.0
  %8163 = vmatprep.subr.mxu0 0.0
  %8164 = vmatpush1.msra.mxu0 0.0
  %8165 = vmatprep.subr.mxu0 0.0
  %8166 = vmatpush1.msra.mxu0 0.0
  %8167 = vmatprep.subr.mxu0 0.0
  %8168 = vmatpush1.msra.mxu0 0.0
  %8169 = vmatprep.subr.mxu0 0.0
  %8170 = vmatpush1.msra.mxu0 0.0
  %8171 = vmatprep.subr.mxu0 0.0
  %8172 = vmatpush1.msra.mxu0 0.0
  %8173 = vmatprep.subr.mxu0 0.0
  %8174 = vmatpush1.msra.mxu0 0.0
  %8175 = vmatprep.subr.mxu0 0.0
  %8176 = vmatpush1.msra.mxu0 0.0
  %8177 = vmatprep.subr.mxu0 0.0
  %8178 = vmatpush1.msra.mxu0 0.0
  %8179 = vmatprep.subr.mxu0 0.0
  %8180 = vmatpush1.msra.mxu0 0.0
  %8181 = vmatprep.subr.mxu0 0.0
  %8182 = vmatpush1.msra.mxu0 0.0
  %8183 = vmatprep.subr.mxu0 0.0
  %8184 = vmatpush1.msra.mxu0 0.0
  %8185 = vmatprep.subr.mxu0 0.0
  %8186 = vmatpush1.msra.mxu0 0.0
  %8187 = vmatprep.subr.mxu0 0.0
  %8188 = vmatpush1.msra.mxu0 0.0
  %8189 = vmatprep.subr.mxu0 0.0
  %8190 = vmatpush1.msra.mxu0 0.0
  %8191 = vmatprep.subr.mxu0 0.0
  %8192 = vmatpush1.msra.mxu0 0.0
  %8193 = vmatprep.subr.mxu0 0.0
  %8194 = vmatpush1.msra.mxu0 0.0
  %8195 = vmatprep.mubr.f32.mxu0 0.0
  %8196 = vmatmul.mubr.f32.gmra.mrb[0].mxu0 %v7940
  %v8197 = vpop.f32.mrb[0].mxu0
  %v8198 = vadd.f32 0.0, %v8197
  %v8199 = vpop.f32.mrb[0].mxu0
  %8200 = vmatprep.mubr.f32.mxu0 0.0
  %8201 = vmatmul.mubr.f32.gmra.mrb[0].mxu0 %v7943
  %v8202 = vpop.f32.mrb[0].mxu0
  %v8203 = vadd.f32 0.0, %v8202
  %v8204 = vpop.f32.mrb[0].mxu0
  %8205 = vmatprep.mubr.f32.mxu0 0.0
  %8206 = vmatmul.mubr.f32.gmra.mrb[0].mxu0 %v7946
  %v8207 = vpop.f32.mrb[0].mxu0
  %v8208 = vadd.f32 0.0, %v8207
  %v8209 = vpop.f32.mrb[0].mxu0
  %8210 = vmatprep.mubr.f32.mxu0 0.0
  %8211 = vmatmul.mubr.f32.gmra.mrb[0].mxu0 %v7949
  %v8212 = vpop.f32.mrb[0].mxu0
  %v8213 = vadd.f32 0.0, %v8212
  %v8214 = vpop.f32.mrb[0].mxu0
  %8215 = vmatprep.mubr.f32.mxu0 0.0
  %8216 = vmatmul.mubr.f32.gmra.mrb[0].mxu0 %v7952
  %v8217 = vpop.f32.mrb[0].mxu0
  %v8218 = vadd.f32 0.0, %v8217
  %v8219 = vpop.f32.mrb[0].mxu0
  %8220 = vmatprep.mubr.f32.mxu0 0.0
  %8221 = vmatmul.mubr.f32.gmra.mrb[0].mxu0 %v7955
  %v8222 = vpop.f32.mrb[0].mxu0
  %v8223 = vadd.f32 0.0, %v8222
  %v8224 = vpop.f32.mrb[0].mxu0
  %8225 = vmatprep.mubr.f32.mxu0 0.0
  %8226 = vmatmul.mubr.f32.gmra.mrb[0].mxu0 %v7958
  %v8227 = vpop.f32.mrb[0].mxu0
  %v8228 = vadd.f32 0.0, %v8227
  %v8229 = vpop.f32.mrb[0].mxu0
  %8230 = vmatprep.mubr.f32.mxu0 0.0
  %8231 = vmatmul.mubr.f32.gmra.mrb[0].mxu0 %v7961
  %v8232 = vpop.f32.mrb[0].mxu0
  %v8233 = vadd.f32 0.0, %v8232
  %v8234 = vpop.f32.mrb[0].mxu0
  %8235 = vmatprep.mubr.f32.mxu0 0.0
  %8236 = vmatmul.mubr.f32.gmra.mrb[0].mxu0 %v7964
  %v8237 = vpop.f32.mrb[0].mxu0
  %v8238 = vadd.f32 0.0, %v8237
  %v8239 = vpop.f32.mrb[0].mxu0
  %8240 = vmatprep.mubr.f32.mxu0 0.0
  %8241 = vmatmul.mubr.f32.gmra.mrb[0].mxu0 %v7967
  %v8242 = vpop.f32.mrb[0].mxu0
  %v8243 = vadd.f32 0.0, %v8242
  %v8244 = vpop.f32.mrb[0].mxu0
  %8245 = vmatprep.mubr.f32.mxu0 0.0
  %8246 = vmatmul.mubr.f32.gmra.mrb[0].mxu0 %v7970
  %v8247 = vpop.f32.mrb[0].mxu0
  %v8248 = vadd.f32 0.0, %v8247
  %v8249 = vpop.f32.mrb[0].mxu0
  %8250 = vmatprep.mubr.f32.mxu0 0.0
  %8251 = vmatmul.mubr.f32.gmra.mrb[0].mxu0 %v7973
  %v8252 = vpop.f32.mrb[0].mxu0
  %v8253 = vadd.f32 0.0, %v8252
  %v8254 = vpop.f32.mrb[0].mxu0
  %8255 = vmatprep.mubr.f32.mxu0 0.0
  %8256 = vmatmul.mubr.f32.gmra.mrb[0].mxu0 %v7976
  %v8257 = vpop.f32.mrb[0].mxu0
  %v8258 = vadd.f32 0.0, %v8257
  %v8259 = vpop.f32.mrb[0].mxu0
  %8260 = vmatprep.mubr.f32.mxu0 0.0
  %8261 = vmatmul.mubr.f32.gmra.mrb[0].mxu0 %v7979
  %v8262 = vpop.f32.mrb[0].mxu0
  %v8263 = vadd.f32 0.0, %v8262
  %v8264 = vpop.f32.mrb[0].mxu0
  %8265 = vmatprep.mubr.f32.mxu0 0.0
  %8266 = vmatmul.mubr.f32.gmra.mrb[0].mxu0 %v7982
  %v8267 = vpop.f32.mrb[0].mxu0
  %v8268 = vadd.f32 0.0, %v8267
  %v8269 = vpop.f32.mrb[0].mxu0
  %8270 = vmatprep.mubr.f32.mxu0 0.0
  %8271 = vmatmul.mubr.f32.gmra.mrb[0].mxu0 %v7985
  %v8272 = vpop.f32.mrb[0].mxu0
  %v8273 = vadd.f32 0.0, %v8272
  %v8274 = vpop.f32.mrb[0].mxu0
  %8275 = vmatprep.mubr.f32.mxu0 0.0
  %8276 = vmatmul.mubr.f32.gmra.mrb[0].mxu0 %v7988
  %v8277 = vpop.f32.mrb[0].mxu0
  %v8278 = vadd.f32 0.0, %v8277
  %v8279 = vpop.f32.mrb[0].mxu0
  %8280 = vmatprep.mubr.f32.mxu0 0.0
  %8281 = vmatmul.mubr.f32.gmra.mrb[0].mxu0 %v7991
  %v8282 = vpop.f32.mrb[0].mxu0
  %v8283 = vadd.f32 0.0, %v8282
  %v8284 = vpop.f32.mrb[0].mxu0
  %8285 = vmatprep.mubr.f32.mxu0 0.0
  %8286 = vmatmul.mubr.f32.gmra.mrb[0].mxu0 %v7994
  %v8287 = vpop.f32.mrb[0].mxu0
  %v8288 = vadd.f32 0.0, %v8287
  %v8289 = vpop.f32.mrb[0].mxu0
  %8290 = vmatprep.mubr.f32.mxu0 0.0
  %8291 = vmatmul.mubr.f32.gmra.mrb[0].mxu0 %v7997
  %v8292 = vpop.f32.mrb[0].mxu0
  %v8293 = vadd.f32 0.0, %v8292
  %v8294 = vpop.f32.mrb[0].mxu0
  %8295 = vmatprep.mubr.f32.mxu0 0.0
  %8296 = vmatmul.mubr.f32.gmra.mrb[0].mxu0 %v8000
  %v8297 = vpop.f32.mrb[0].mxu0
  %v8298 = vadd.f32 0.0, %v8297
  %v8299 = vpop.f32.mrb[0].mxu0
  %8300 = vmatprep.mubr.f32.mxu0 0.0
  %8301 = vmatmul.mubr.f32.gmra.mrb[0].mxu0 %v8003
  %v8302 = vpop.f32.mrb[0].mxu0
  %v8303 = vadd.f32 0.0, %v8302
  %v8304 = vpop.f32.mrb[0].mxu0
  %8305 = vmatprep.mubr.f32.mxu0 0.0
  %8306 = vmatmul.mubr.f32.gmra.mrb[0].mxu0 %v8006
  %v8307 = vpop.f32.mrb[0].mxu0
  %v8308 = vadd.f32 0.0, %v8307
  %v8309 = vpop.f32.mrb[0].mxu0
  %8310 = vmatprep.mubr.f32.mxu0 0.0
  %8311 = vmatmul.mubr.f32.gmra.mrb[0].mxu0 %v8009
  %v8312 = vpop.f32.mrb[0].mxu0
  %v8313 = vadd.f32 0.0, %v8312
  %v8314 = vpop.f32.mrb[0].mxu0
  %8315 = vmatprep.mubr.f32.mxu0 0.0
  %8316 = vmatmul.mubr.f32.gmra.mrb[0].mxu0 %v8012
  %v8317 = vpop.f32.mrb[0].mxu0
  %v8318 = vadd.f32 0.0, %v8317
  %v8319 = vpop.f32.mrb[0].mxu0
  %8320 = vmatprep.mubr.f32.mxu0 0.0
  %8321 = vmatmul.mubr.f32.gmra.mrb[0].mxu0 %v8015
  %v8322 = vpop.f32.mrb[0].mxu0
  %v8323 = vadd.f32 0.0, %v8322
  %v8324 = vpop.f32.mrb[0].mxu0
  %8325 = vmatprep.mubr.f32.mxu0 0.0
  %8326 = vmatmul.mubr.f32.gmra.mrb[0].mxu0 %v8018
  %v8327 = vpop.f32.mrb[0].mxu0
  %v8328 = vadd.f32 0.0, %v8327
  %v8329 = vpop.f32.mrb[0].mxu0
  %8330 = vmatprep.mubr.f32.mxu0 0.0
  %8331 = vmatmul.mubr.f32.gmra.mrb[0].mxu0 %v8021
  %v8332 = vpop.f32.mrb[0].mxu0
  %v8333 = vadd.f32 0.0, %v8332
  %v8334 = vpop.f32.mrb[0].mxu0
  %8335 = vmatprep.mubr.f32.mxu0 0.0
  %8336 = vmatmul.mubr.f32.gmra.mrb[0].mxu0 %v8024
  %v8337 = vpop.f32.mrb[0].mxu0
  %v8338 = vadd.f32 0.0, %v8337
  %v8339 = vpop.f32.mrb[0].mxu0
  %8340 = vmatprep.mubr.f32.mxu0 0.0
  %8341 = vmatmul.mubr.f32.gmra.mrb[0].mxu0 %v8027
  %v8342 = vpop.f32.mrb[0].mxu0
  %v8343 = vadd.f32 0.0, %v8342
  %v8344 = vpop.f32.mrb[0].mxu0
  %8345 = vmatprep.mubr.f32.mxu0 0.0
  %8346 = vmatmul.mubr.f32.gmra.mrb[0].mxu0 %v8030
  %v8347 = vpop.f32.mrb[0].mxu0
  %v8348 = vadd.f32 0.0, %v8347
  %v8349 = vpop.f32.mrb[0].mxu0
  %8350 = vmatprep.mubr.f32.mxu0 0.0
  %8351 = vmatmul.mubr.f32.gmra.mrb[0].mxu0 %v8033
  %v8352 = vpop.f32.mrb[0].mxu0
  %v8353 = vadd.f32 0.0, %v8352
  %v8354 = vpop.f32.mrb[0].mxu0
  %8355 = vmatprep.mubr.f32.mxu0 0.0
  %8356 = vmatmul.mubr.f32.gmra.mrb[0].mxu0 %v8036
  %v8357 = vpop.f32.mrb[0].mxu0
  %v8358 = vadd.f32 0.0, %v8357
  %v8359 = vpop.f32.mrb[0].mxu0
  %8360 = vmatprep.mubr.f32.mxu0 0.0
  %8361 = vmatmul.mubr.f32.gmra.mrb[0].mxu0 %v8039
  %v8362 = vpop.f32.mrb[0].mxu0
  %v8363 = vadd.f32 0.0, %v8362
  %v8364 = vpop.f32.mrb[0].mxu0
  %8365 = vmatprep.mubr.f32.mxu0 0.0
  %8366 = vmatmul.mubr.f32.gmra.mrb[0].mxu0 %v8042
  %v8367 = vpop.f32.mrb[0].mxu0
  %v8368 = vadd.f32 0.0, %v8367
  %v8369 = vpop.f32.mrb[0].mxu0
  %8370 = vmatprep.mubr.f32.mxu0 0.0
  %8371 = vmatmul.mubr.f32.gmra.mrb[0].mxu0 %v8045
  %v8372 = vpop.f32.mrb[0].mxu0
  %v8373 = vadd.f32 0.0, %v8372
  %v8374 = vpop.f32.mrb[0].mxu0
  %8375 = vmatprep.mubr.f32.mxu0 0.0
  %8376 = vmatmul.mubr.f32.gmra.mrb[0].mxu0 %v8048
  %v8377 = vpop.f32.mrb[0].mxu0
  %v8378 = vadd.f32 0.0, %v8377
  %v8379 = vpop.f32.mrb[0].mxu0
  %8380 = vmatprep.mubr.f32.mxu0 0.0
  %8381 = vmatmul.mubr.f32.gmra.mrb[0].mxu0 %v8051
  %v8382 = vpop.f32.mrb[0].mxu0
  %v8383 = vadd.f32 0.0, %v8382
  %v8384 = vpop.f32.mrb[0].mxu0
  %8385 = vmatprep.mubr.f32.mxu0 0.0
  %8386 = vmatmul.mubr.f32.gmra.mrb[0].mxu0 %v8054
  %v8387 = vpop.f32.mrb[0].mxu0
  %v8388 = vadd.f32 0.0, %v8387
  %v8389 = vpop.f32.mrb[0].mxu0
  %8390 = vmatprep.mubr.f32.mxu0 0.0
  %8391 = vmatmul.mubr.f32.gmra.mrb[0].mxu0 %v8057
  %v8392 = vpop.f32.mrb[0].mxu0
  %v8393 = vadd.f32 0.0, %v8392
  %v8394 = vpop.f32.mrb[0].mxu0
  %8395 = vmatprep.mubr.f32.mxu0 0.0
  %8396 = vmatmul.mubr.f32.gmra.mrb[0].mxu0 %v8060
  %v8397 = vpop.f32.mrb[0].mxu0
  %v8398 = vadd.f32 0.0, %v8397
  %v8399 = vpop.f32.mrb[0].mxu0
  %8400 = vmatprep.mubr.f32.mxu0 0.0
  %8401 = vmatmul.mubr.f32.gmra.mrb[0].mxu0 %v8063
  %v8402 = vpop.f32.mrb[0].mxu0
  %v8403 = vadd.f32 0.0, %v8402
  %v8404 = vpop.f32.mrb[0].mxu0
  %8405 = vmatprep.mubr.f32.mxu0 0.0
  %8406 = vmatmul.mubr.f32.gmra.mrb[0].mxu0 %v8066
  %v8407 = vpop.f32.mrb[0].mxu0
  %v8408 = vadd.f32 0.0, %v8407
  %v8409 = vpop.f32.mrb[0].mxu0
  %8410 = vmatprep.mubr.f32.mxu0 0.0
  %8411 = vmatmul.mubr.f32.gmra.mrb[0].mxu0 %v8069
  %v8412 = vpop.f32.mrb[0].mxu0
  %v8413 = vadd.f32 0.0, %v8412
  %v8414 = vpop.f32.mrb[0].mxu0
  %8415 = vmatprep.mubr.f32.mxu0 0.0
  %8416 = vmatmul.mubr.f32.gmra.mrb[0].mxu0 %v8072
  %v8417 = vpop.f32.mrb[0].mxu0
  %v8418 = vadd.f32 0.0, %v8417
  %v8419 = vpop.f32.mrb[0].mxu0
  %8420 = vmatprep.mubr.f32.mxu0 0.0
  %8421 = vmatmul.mubr.f32.gmra.mrb[0].mxu0 %v8075
  %v8422 = vpop.f32.mrb[0].mxu0
  %v8423 = vadd.f32 0.0, %v8422
  %v8424 = vpop.f32.mrb[0].mxu0
  %8425 = vmatprep.mubr.f32.mxu0 0.0
  %8426 = vmatmul.mubr.f32.gmra.mrb[0].mxu0 %v8078
  %v8427 = vpop.f32.mrb[0].mxu0
  %v8428 = vadd.f32 0.0, %v8427
  %v8429 = vpop.f32.mrb[0].mxu0
  %8430 = vmatprep.mubr.f32.mxu0 0.0
  %8431 = vmatmul.mubr.f32.gmra.mrb[0].mxu0 %v8081
  %v8432 = vpop.f32.mrb[0].mxu0
  %v8433 = vadd.f32 0.0, %v8432
  %v8434 = vpop.f32.mrb[0].mxu0
  %8435 = vmatprep.mubr.f32.mxu0 0.0
  %8436 = vmatmul.mubr.f32.gmra.mrb[0].mxu0 %v8084
  %v8437 = vpop.f32.mrb[0].mxu0
  %v8438 = vadd.f32 0.0, %v8437
  %v8439 = vpop.f32.mrb[0].mxu0
  %8440 = vmatprep.mubr.f32.mxu0 0.0
  %8441 = vmatmul.mubr.f32.gmra.mrb[0].mxu0 %v8087
  %v8442 = vpop.f32.mrb[0].mxu0
  %v8443 = vadd.f32 0.0, %v8442
  %v8444 = vpop.f32.mrb[0].mxu0
  %8445 = vmatprep.mubr.f32.mxu0 0.0
  %8446 = vmatmul.mubr.f32.gmra.mrb[0].mxu0 %v8090
  %v8447 = vpop.f32.mrb[0].mxu0
  %v8448 = vadd.f32 0.0, %v8447
  %v8449 = vpop.f32.mrb[0].mxu0
  %8450 = vmatprep.mubr.f32.mxu0 0.0
  %8451 = vmatmul.mubr.f32.gmra.mrb[0].mxu0 %v8093
  %v8452 = vpop.f32.mrb[0].mxu0
  %v8453 = vadd.f32 0.0, %v8452
  %v8454 = vpop.f32.mrb[0].mxu0
  %8455 = vmatprep.mubr.f32.mxu0 0.0
  %8456 = vmatmul.mubr.f32.gmra.mrb[0].mxu0 %v8096
  %v8457 = vpop.f32.mrb[0].mxu0
  %v8458 = vadd.f32 0.0, %v8457
  %v8459 = vpop.f32.mrb[0].mxu0
  %8460 = vmatprep.mubr.f32.mxu0 0.0
  %8461 = vmatmul.mubr.f32.gmra.mrb[0].mxu0 %v8099
  %v8462 = vpop.f32.mrb[0].mxu0
  %v8463 = vadd.f32 0.0, %v8462
  %v8464 = vpop.f32.mrb[0].mxu0
  %8465 = vmatprep.mubr.f32.mxu0 0.0
  %8466 = vmatmul.mubr.f32.gmra.mrb[0].mxu0 %v8102
  %v8467 = vpop.f32.mrb[0].mxu0
  %v8468 = vadd.f32 0.0, %v8467
  %v8469 = vpop.f32.mrb[0].mxu0
  %8470 = vmatprep.mubr.f32.mxu0 0.0
  %8471 = vmatmul.mubr.f32.gmra.mrb[0].mxu0 %v8105
  %v8472 = vpop.f32.mrb[0].mxu0
  %v8473 = vadd.f32 0.0, %v8472
  %v8474 = vpop.f32.mrb[0].mxu0
  %8475 = vmatprep.mubr.f32.mxu0 0.0
  %8476 = vmatmul.mubr.f32.gmra.mrb[0].mxu0 %v8108
  %v8477 = vpop.f32.mrb[0].mxu0
  %v8478 = vadd.f32 0.0, %v8477
  %v8479 = vpop.f32.mrb[0].mxu0
  %8480 = vmatprep.mubr.f32.mxu0 0.0
  %8481 = vmatmul.mubr.f32.gmra.mrb[0].mxu0 %v8111
  %v8482 = vpop.f32.mrb[0].mxu0
  %v8483 = vadd.f32 0.0, %v8482
  %v8484 = vpop.f32.mrb[0].mxu0
  %8485 = vmatprep.mubr.f32.mxu0 0.0
  %8486 = vmatmul.mubr.f32.gmra.mrb[0].mxu0 %v8114
  %v8487 = vpop.f32.mrb[0].mxu0
  %v8488 = vadd.f32 0.0, %v8487
  %v8489 = vpop.f32.mrb[0].mxu0
  %8490 = vmatprep.mubr.f32.mxu0 0.0
  %8491 = vmatmul.mubr.f32.gmra.mrb[0].mxu0 %v8117
  %v8492 = vpop.f32.mrb[0].mxu0
  %v8493 = vadd.f32 0.0, %v8492
  %v8494 = vpop.f32.mrb[0].mxu0
  %8495 = vmatprep.mubr.f32.mxu0 0.0
  %8496 = vmatmul.mubr.f32.gmra.mrb[0].mxu0 %v8120
  %v8497 = vpop.f32.mrb[0].mxu0
  %v8498 = vadd.f32 0.0, %v8497
  %v8499 = vpop.f32.mrb[0].mxu0
  %8500 = vmatprep.mubr.f32.mxu0 0.0
  %8501 = vmatmul.mubr.f32.gmra.mrb[0].mxu0 %v8123
  %v8502 = vpop.f32.mrb[0].mxu0
  %v8503 = vadd.f32 0.0, %v8502
  %v8504 = vpop.f32.mrb[0].mxu0
  %8505 = vmatprep.mubr.f32.mxu0 0.0
  %8506 = vmatmul.mubr.f32.gmra.mrb[0].mxu0 %v8126
  %v8507 = vpop.f32.mrb[0].mxu0
  %v8508 = vadd.f32 0.0, %v8507
  %v8509 = vpop.f32.mrb[0].mxu0
  %8510 = vmatprep.mubr.f32.mxu0 0.0
  %8511 = vmatmul.mubr.f32.gmra.mrb[0].mxu0 %v8129
  %v8512 = vpop.f32.mrb[0].mxu0
  %v8513 = vadd.f32 0.0, %v8512
  %v8514 = vpop.f32.mrb[0].mxu0
  %8515 = vdwg.mxu0
  %v8516 = vadd.f32 %v7552, %v8198
  %v8517 = vadd.f32 %v7557, %v8203
  %v8518 = vadd.f32 %v7562, %v8208
  %v8519 = vadd.f32 %v7567, %v8213
  %v8520 = vadd.f32 %v7572, %v8218
  %v8521 = vadd.f32 %v7577, %v8223
  %v8522 = vadd.f32 %v7582, %v8228
  %v8523 = vadd.f32 %v7587, %v8233
  %v8524 = vadd.f32 %v7592, %v8238
  %v8525 = vadd.f32 %v7597, %v8243
  %v8526 = vadd.f32 %v7602, %v8248
  %v8527 = vadd.f32 %v7607, %v8253
  %v8528 = vadd.f32 %v7612, %v8258
  %v8529 = vadd.f32 %v7617, %v8263
  %v8530 = vadd.f32 %v7622, %v8268
  %v8531 = vadd.f32 %v7627, %v8273
  %v8532 = vadd.f32 %v7632, %v8278
  %v8533 = vadd.f32 %v7637, %v8283
  %v8534 = vadd.f32 %v7642, %v8288
  %v8535 = vadd.f32 %v7647, %v8293
  %v8536 = vadd.f32 %v7652, %v8298
  %v8537 = vadd.f32 %v7657, %v8303
  %v8538 = vadd.f32 %v7662, %v8308
  %v8539 = vadd.f32 %v7667, %v8313
  %v8540 = vadd.f32 %v7672, %v8318
  %v8541 = vadd.f32 %v7677, %v8323
  %v8542 = vadd.f32 %v7682, %v8328
  %v8543 = vadd.f32 %v7687, %v8333
  %v8544 = vadd.f32 %v7692, %v8338
  %v8545 = vadd.f32 %v7697, %v8343
  %v8546 = vadd.f32 %v7702, %v8348
  %v8547 = vadd.f32 %v7707, %v8353
  %v8548 = vadd.f32 %v7712, %v8358
  %v8549 = vadd.f32 %v7717, %v8363
  %v8550 = vadd.f32 %v7722, %v8368
  %v8551 = vadd.f32 %v7727, %v8373
  %v8552 = vadd.f32 %v7732, %v8378
  %v8553 = vadd.f32 %v7737, %v8383
  %v8554 = vadd.f32 %v7742, %v8388
  %v8555 = vadd.f32 %v7747, %v8393
  %v8556 = vadd.f32 %v7752, %v8398
  %v8557 = vadd.f32 %v7757, %v8403
  %v8558 = vadd.f32 %v7762, %v8408
  %v8559 = vadd.f32 %v7767, %v8413
  %v8560 = vadd.f32 %v7772, %v8418
  %v8561 = vadd.f32 %v7777, %v8423
  %v8562 = vadd.f32 %v7782, %v8428
  %v8563 = vadd.f32 %v7787, %v8433
  %v8564 = vadd.f32 %v7792, %v8438
  %v8565 = vadd.f32 %v7797, %v8443
  %v8566 = vadd.f32 %v7802, %v8448
  %v8567 = vadd.f32 %v7807, %v8453
  %v8568 = vadd.f32 %v7812, %v8458
  %v8569 = vadd.f32 %v7817, %v8463
  %v8570 = vadd.f32 %v7822, %v8468
  %v8571 = vadd.f32 %v7827, %v8473
  %v8572 = vadd.f32 %v7832, %v8478
  %v8573 = vadd.f32 %v7837, %v8483
  %v8574 = vadd.f32 %v7842, %v8488
  %v8575 = vadd.f32 %v7847, %v8493
  %v8576 = vadd.f32 %v7852, %v8498
  %v8577 = vadd.f32 %v7857, %v8503
  %v8578 = vadd.f32 %v7862, %v8508
  %v8579 = vadd.f32 %v7867, %v8513
  %v8580 = vld [vmem:[%s6514] sm:$0xff]
  %v8581 = vld [vmem:[%s6514 + $0x8] sm:$0xff]
  %v8582 = vld [vmem:[%s6514 + $0x18] sm:$0xff]
  %v8583 = vld [vmem:[%s6514 + $0x20] sm:$0xff]
  %v8584 = vld [vmem:[%s6514 + $0x30] sm:$0xff]
  %v8585 = vld [vmem:[%s6514 + $0x38] sm:$0xff]
  %v8586 = vld [vmem:[%s6514 + $0x48] sm:$0xff]
  %v8587 = vld [vmem:[%s6514 + $0x50] sm:$0xff]
  %v8588 = vld [vmem:[%s6514 + $0x60] sm:$0xff]
  %v8589 = vld [vmem:[%s6514 + $0x68] sm:$0xff]
  %v8590 = vld [vmem:[%s6514 + $0x78] sm:$0xff]
  %v8591 = vld [vmem:[%s6514 + $0x80] sm:$0xff]
  %v8592 = vld [vmem:[%s6514 + $0x90] sm:$0xff]
  %v8593 = vld [vmem:[%s6514 + $0x98] sm:$0xff]
  %v8594 = vld [vmem:[%s6514 + $0xa8] sm:$0xff]
  %v8595 = vld [vmem:[%s6514 + $0xb0] sm:$0xff]
  %v8596 = vld [vmem:[%s6514 + $0xc0] sm:$0xff]
  %v8597 = vld [vmem:[%s6514 + $0xc8] sm:$0xff]
  %v8598 = vld [vmem:[%s6514 + $0xd8] sm:$0xff]
  %v8599 = vld [vmem:[%s6514 + $0xe0] sm:$0xff]
  %v8600 = vld [vmem:[%s6514 + $0xf0] sm:$0xff]
  %v8601 = vld [vmem:[%s6514 + $0xf8] sm:$0xff]
  %v8602 = vld [vmem:[%s6514 + $0x108] sm:$0xff]
  %v8603 = vld [vmem:[%s6514 + $0x110] sm:$0xff]
  %v8604 = vld [vmem:[%s6514 + $0x120] sm:$0xff]
  %v8605 = vld [vmem:[%s6514 + $0x128] sm:$0xff]
  %v8606 = vld [vmem:[%s6514 + $0x138] sm:$0xff]
  %v8607 = vld [vmem:[%s6514 + $0x140] sm:$0xff]
  %v8608 = vld [vmem:[%s6514 + $0x150] sm:$0xff]
  %v8609 = vld [vmem:[%s6514 + $0x158] sm:$0xff]
  %v8610 = vld [vmem:[%s6514 + $0x168] sm:$0xff]
  %v8611 = vld [vmem:[%s6514 + $0x170] sm:$0xff]
  %v8612 = vld [vmem:[%s6514 + $0x1b0] sm:$0xff]
  %v8613 = vld [vmem:[%s6514 + $0x1b8] sm:$0xff]
  %v8614 = vld [vmem:[%s6514 + $0x1c8] sm:$0xff]
  %v8615 = vld [vmem:[%s6514 + $0x1d0] sm:$0xff]
  %v8616 = vld [vmem:[%s6514 + $0x1e0] sm:$0xff]
  %v8617 = vld [vmem:[%s6514 + $0x1e8] sm:$0xff]
  %v8618 = vld [vmem:[%s6514 + $0x1f8] sm:$0xff]
  %v8619 = vld [vmem:[%s6514 + $0x200] sm:$0xff]
  %v8620 = vld [vmem:[%s6514 + $0x210] sm:$0xff]
  %v8621 = vld [vmem:[%s6514 + $0x218] sm:$0xff]
  %v8622 = vld [vmem:[%s6514 + $0x228] sm:$0xff]
  %v8623 = vld [vmem:[%s6514 + $0x230] sm:$0xff]
  %v8624 = vld [vmem:[%s6514 + $0x240] sm:$0xff]
  %v8625 = vld [vmem:[%s6514 + $0x248] sm:$0xff]
  %v8626 = vld [vmem:[%s6514 + $0x258] sm:$0xff]
  %v8627 = vld [vmem:[%s6514 + $0x260] sm:$0xff]
  %v8628 = vld [vmem:[%s6514 + $0x270] sm:$0xff]
  %v8629 = vld [vmem:[%s6514 + $0x278] sm:$0xff]
  %v8630 = vld [vmem:[%s6514 + $0x288] sm:$0xff]
  %v8631 = vld [vmem:[%s6514 + $0x290] sm:$0xff]
  %v8632 = vld [vmem:[%s6514 + $0x2a0] sm:$0xff]
  %v8633 = vld [vmem:[%s6514 + $0x2a8] sm:$0xff]
  %v8634 = vld [vmem:[%s6514 + $0x2b8] sm:$0xff]
  %v8635 = vld [vmem:[%s6514 + $0x2c0] sm:$0xff]
  %v8636 = vld [vmem:[%s6514 + $0x2d0] sm:$0xff]
  %v8637 = vld [vmem:[%s6514 + $0x2d8] sm:$0xff]
  %v8638 = vld [vmem:[%s6514 + $0x2e8] sm:$0xff]
  %v8639 = vld [vmem:[%s6514 + $0x2f0] sm:$0xff]
  %v8640 = vld [vmem:[%s6514 + $0x300] sm:$0xff]
  %v8641 = vld [vmem:[%s6514 + $0x308] sm:$0xff]
  %v8642 = vld [vmem:[%s6514 + $0x318] sm:$0xff]
  %v8643 = vld [vmem:[%s6514 + $0x320] sm:$0xff]
  %s8644 = scalar_lea.vmem %s3, 96
  %v8645 = vld [vmem:[%s8644] sm:$0xff]
  %v8646 = vld [vmem:[%s8644 + $0x8] sm:$0xff]
  %v8647 = vld [vmem:[%s8644 + $0x10] sm:$0xff]
  %v8648 = vld [vmem:[%s8644 + $0x18] sm:$0xff]
  %v8650 = vsel %vm6426, %v8580, 0
  %v8653 = vsel %vm6426, %v8581, 0
  %v8656 = vsel %vm6426, %v8582, 0
  %v8659 = vsel %vm6426, %v8583, 0
  %v8662 = vsel %vm6426, %v8584, 0
  %v8665 = vsel %vm6426, %v8585, 0
  %v8668 = vsel %vm6426, %v8586, 0
  %v8671 = vsel %vm6426, %v8587, 0
  %v8674 = vsel %vm6426, %v8588, 0
  %v8677 = vsel %vm6426, %v8589, 0
  %v8680 = vsel %vm6426, %v8590, 0
  %v8683 = vsel %vm6426, %v8591, 0
  %v8686 = vsel %vm6426, %v8592, 0
  %v8689 = vsel %vm6426, %v8593, 0
  %v8692 = vsel %vm6426, %v8594, 0
  %v8695 = vsel %vm6426, %v8595, 0
  %v8698 = vsel %vm6426, %v8596, 0
  %v8701 = vsel %vm6426, %v8597, 0
  %v8704 = vsel %vm6426, %v8598, 0
  %v8707 = vsel %vm6426, %v8599, 0
  %v8710 = vsel %vm6426, %v8600, 0
  %v8713 = vsel %vm6426, %v8601, 0
  %v8716 = vsel %vm6426, %v8602, 0
  %v8719 = vsel %vm6426, %v8603, 0
  %v8722 = vsel %vm6426, %v8604, 0
  %v8725 = vsel %vm6426, %v8605, 0
  %v8728 = vsel %vm6426, %v8606, 0
  %v8731 = vsel %vm6426, %v8607, 0
  %v8734 = vsel %vm6426, %v8608, 0
  %v8737 = vsel %vm6426, %v8609, 0
  %v8740 = vsel %vm6426, %v8610, 0
  %v8743 = vsel %vm6426, %v8611, 0
  %v8746 = vsel %vm6426, %v8612, 0
  %v8749 = vsel %vm6426, %v8613, 0
  %v8752 = vsel %vm6426, %v8614, 0
  %v8755 = vsel %vm6426, %v8615, 0
  %v8758 = vsel %vm6426, %v8616, 0
  %v8761 = vsel %vm6426, %v8617, 0
  %v8764 = vsel %vm6426, %v8618, 0
  %v8767 = vsel %vm6426, %v8619, 0
  %v8770 = vsel %vm6426, %v8620, 0
  %v8773 = vsel %vm6426, %v8621, 0
  %v8776 = vsel %vm6426, %v8622, 0
  %v8779 = vsel %vm6426, %v8623, 0
  %v8782 = vsel %vm6426, %v8624, 0
  %v8785 = vsel %vm6426, %v8625, 0
  %v8788 = vsel %vm6426, %v8626, 0
  %v8791 = vsel %vm6426, %v8627, 0
  %v8794 = vsel %vm6426, %v8628, 0
  %v8797 = vsel %vm6426, %v8629, 0
  %v8800 = vsel %vm6426, %v8630, 0
  %v8803 = vsel %vm6426, %v8631, 0
  %v8806 = vsel %vm6426, %v8632, 0
  %v8809 = vsel %vm6426, %v8633, 0
  %v8812 = vsel %vm6426, %v8634, 0
  %v8815 = vsel %vm6426, %v8635, 0
  %v8818 = vsel %vm6426, %v8636, 0
  %v8821 = vsel %vm6426, %v8637, 0
  %v8824 = vsel %vm6426, %v8638, 0
  %v8827 = vsel %vm6426, %v8639, 0
  %v8830 = vsel %vm6426, %v8640, 0
  %v8833 = vsel %vm6426, %v8641, 0
  %v8836 = vsel %vm6426, %v8642, 0
  %v8839 = vsel %vm6426, %v8643, 0
  %8841 = vmatprep.subr.mxu0 0.0
  %8842 = vmatpush1.msra.mxu0 %v8645
  %8843 = vmatprep.subr.mxu0 0.0
  %8844 = vmatpush1.msra.mxu0 %v8646
  %8845 = vmatprep.subr.mxu0 0.0
  %8846 = vmatpush1.msra.mxu0 %v8647
  %8847 = vmatprep.subr.mxu0 0.0
  %8848 = vmatpush1.msra.mxu0 %v8648
  %8849 = vmatprep.subr.mxu0 0.0
  %8850 = vmatpush1.msra.mxu0 0.0
  %8851 = vmatprep.subr.mxu0 0.0
  %8852 = vmatpush1.msra.mxu0 0.0
  %8853 = vmatprep.subr.mxu0 0.0
  %8854 = vmatpush1.msra.mxu0 0.0
  %8855 = vmatprep.subr.mxu0 0.0
  %8856 = vmatpush1.msra.mxu0 0.0
  %8857 = vmatprep.subr.mxu0 0.0
  %8858 = vmatpush1.msra.mxu0 0.0
  %8859 = vmatprep.subr.mxu0 0.0
  %8860 = vmatpush1.msra.mxu0 0.0
  %8861 = vmatprep.subr.mxu0 0.0
  %8862 = vmatpush1.msra.mxu0 0.0
  %8863 = vmatprep.subr.mxu0 0.0
  %8864 = vmatpush1.msra.mxu0 0.0
  %8865 = vmatprep.subr.mxu0 0.0
  %8866 = vmatpush1.msra.mxu0 0.0
  %8867 = vmatprep.subr.mxu0 0.0
  %8868 = vmatpush1.msra.mxu0 0.0
  %8869 = vmatprep.subr.mxu0 0.0
  %8870 = vmatpush1.msra.mxu0 0.0
  %8871 = vmatprep.subr.mxu0 0.0
  %8872 = vmatpush1.msra.mxu0 0.0
  %8873 = vmatprep.subr.mxu0 0.0
  %8874 = vmatpush1.msra.mxu0 0.0
  %8875 = vmatprep.subr.mxu0 0.0
  %8876 = vmatpush1.msra.mxu0 0.0
  %8877 = vmatprep.subr.mxu0 0.0
  %8878 = vmatpush1.msra.mxu0 0.0
  %8879 = vmatprep.subr.mxu0 0.0
  %8880 = vmatpush1.msra.mxu0 0.0
  %8881 = vmatprep.subr.mxu0 0.0
  %8882 = vmatpush1.msra.mxu0 0.0
  %8883 = vmatprep.subr.mxu0 0.0
  %8884 = vmatpush1.msra.mxu0 0.0
  %8885 = vmatprep.subr.mxu0 0.0
  %8886 = vmatpush1.msra.mxu0 0.0
  %8887 = vmatprep.subr.mxu0 0.0
  %8888 = vmatpush1.msra.mxu0 0.0
  %8889 = vmatprep.subr.mxu0 0.0
  %8890 = vmatpush1.msra.mxu0 0.0
  %8891 = vmatprep.subr.mxu0 0.0
  %8892 = vmatpush1.msra.mxu0 0.0
  %8893 = vmatprep.subr.mxu0 0.0
  %8894 = vmatpush1.msra.mxu0 0.0
  %8895 = vmatprep.subr.mxu0 0.0
  %8896 = vmatpush1.msra.mxu0 0.0
  %8897 = vmatprep.subr.mxu0 0.0
  %8898 = vmatpush1.msra.mxu0 0.0
  %8899 = vmatprep.subr.mxu0 0.0
  %8900 = vmatpush1.msra.mxu0 0.0
  %8901 = vmatprep.subr.mxu0 0.0
  %8902 = vmatpush1.msra.mxu0 0.0
  %8903 = vmatprep.subr.mxu0 0.0
  %8904 = vmatpush1.msra.mxu0 0.0
  %8905 = vmatprep.mubr.f32.mxu0 0.0
  %8906 = vmatmul.mubr.f32.gmra.mrb[0].mxu0 %v8650
  %v8907 = vpop.f32.mrb[0].mxu0
  %v8908 = vadd.f32 0.0, %v8907
  %v8909 = vpop.f32.mrb[0].mxu0
  %8910 = vmatprep.mubr.f32.mxu0 0.0
  %8911 = vmatmul.mubr.f32.gmra.mrb[0].mxu0 %v8653
  %v8912 = vpop.f32.mrb[0].mxu0
  %v8913 = vadd.f32 0.0, %v8912
  %v8914 = vpop.f32.mrb[0].mxu0
  %8915 = vmatprep.mubr.f32.mxu0 0.0
  %8916 = vmatmul.mubr.f32.gmra.mrb[0].mxu0 %v8656
  %v8917 = vpop.f32.mrb[0].mxu0
  %v8918 = vadd.f32 0.0, %v8917
  %v8919 = vpop.f32.mrb[0].mxu0
  %8920 = vmatprep.mubr.f32.mxu0 0.0
  %8921 = vmatmul.mubr.f32.gmra.mrb[0].mxu0 %v8659
  %v8922 = vpop.f32.mrb[0].mxu0
  %v8923 = vadd.f32 0.0, %v8922
  %v8924 = vpop.f32.mrb[0].mxu0
  %8925 = vmatprep.mubr.f32.mxu0 0.0
  %8926 = vmatmul.mubr.f32.gmra.mrb[0].mxu0 %v8662
  %v8927 = vpop.f32.mrb[0].mxu0
  %v8928 = vadd.f32 0.0, %v8927
  %v8929 = vpop.f32.mrb[0].mxu0
  %8930 = vmatprep.mubr.f32.mxu0 0.0
  %8931 = vmatmul.mubr.f32.gmra.mrb[0].mxu0 %v8665
  %v8932 = vpop.f32.mrb[0].mxu0
  %v8933 = vadd.f32 0.0, %v8932
  %v8934 = vpop.f32.mrb[0].mxu0
  %8935 = vmatprep.mubr.f32.mxu0 0.0
  %8936 = vmatmul.mubr.f32.gmra.mrb[0].mxu0 %v8668
  %v8937 = vpop.f32.mrb[0].mxu0
  %v8938 = vadd.f32 0.0, %v8937
  %v8939 = vpop.f32.mrb[0].mxu0
  %8940 = vmatprep.mubr.f32.mxu0 0.0
  %8941 = vmatmul.mubr.f32.gmra.mrb[0].mxu0 %v8671
  %v8942 = vpop.f32.mrb[0].mxu0
  %v8943 = vadd.f32 0.0, %v8942
  %v8944 = vpop.f32.mrb[0].mxu0
  %8945 = vmatprep.mubr.f32.mxu0 0.0
  %8946 = vmatmul.mubr.f32.gmra.mrb[0].mxu0 %v8674
  %v8947 = vpop.f32.mrb[0].mxu0
  %v8948 = vadd.f32 0.0, %v8947
  %v8949 = vpop.f32.mrb[0].mxu0
  %8950 = vmatprep.mubr.f32.mxu0 0.0
  %8951 = vmatmul.mubr.f32.gmra.mrb[0].mxu0 %v8677
  %v8952 = vpop.f32.mrb[0].mxu0
  %v8953 = vadd.f32 0.0, %v8952
  %v8954 = vpop.f32.mrb[0].mxu0
  %8955 = vmatprep.mubr.f32.mxu0 0.0
  %8956 = vmatmul.mubr.f32.gmra.mrb[0].mxu0 %v8680
  %v8957 = vpop.f32.mrb[0].mxu0
  %v8958 = vadd.f32 0.0, %v8957
  %v8959 = vpop.f32.mrb[0].mxu0
  %8960 = vmatprep.mubr.f32.mxu0 0.0
  %8961 = vmatmul.mubr.f32.gmra.mrb[0].mxu0 %v8683
  %v8962 = vpop.f32.mrb[0].mxu0
  %v8963 = vadd.f32 0.0, %v8962
  %v8964 = vpop.f32.mrb[0].mxu0
  %8965 = vmatprep.mubr.f32.mxu0 0.0
  %8966 = vmatmul.mubr.f32.gmra.mrb[0].mxu0 %v8686
  %v8967 = vpop.f32.mrb[0].mxu0
  %v8968 = vadd.f32 0.0, %v8967
  %v8969 = vpop.f32.mrb[0].mxu0
  %8970 = vmatprep.mubr.f32.mxu0 0.0
  %8971 = vmatmul.mubr.f32.gmra.mrb[0].mxu0 %v8689
  %v8972 = vpop.f32.mrb[0].mxu0
  %v8973 = vadd.f32 0.0, %v8972
  %v8974 = vpop.f32.mrb[0].mxu0
  %8975 = vmatprep.mubr.f32.mxu0 0.0
  %8976 = vmatmul.mubr.f32.gmra.mrb[0].mxu0 %v8692
  %v8977 = vpop.f32.mrb[0].mxu0
  %v8978 = vadd.f32 0.0, %v8977
  %v8979 = vpop.f32.mrb[0].mxu0
  %8980 = vmatprep.mubr.f32.mxu0 0.0
  %8981 = vmatmul.mubr.f32.gmra.mrb[0].mxu0 %v8695
  %v8982 = vpop.f32.mrb[0].mxu0
  %v8983 = vadd.f32 0.0, %v8982
  %v8984 = vpop.f32.mrb[0].mxu0
  %8985 = vmatprep.mubr.f32.mxu0 0.0
  %8986 = vmatmul.mubr.f32.gmra.mrb[0].mxu0 %v8698
  %v8987 = vpop.f32.mrb[0].mxu0
  %v8988 = vadd.f32 0.0, %v8987
  %v8989 = vpop.f32.mrb[0].mxu0
  %8990 = vmatprep.mubr.f32.mxu0 0.0
  %8991 = vmatmul.mubr.f32.gmra.mrb[0].mxu0 %v8701
  %v8992 = vpop.f32.mrb[0].mxu0
  %v8993 = vadd.f32 0.0, %v8992
  %v8994 = vpop.f32.mrb[0].mxu0
  %8995 = vmatprep.mubr.f32.mxu0 0.0
  %8996 = vmatmul.mubr.f32.gmra.mrb[0].mxu0 %v8704
  %v8997 = vpop.f32.mrb[0].mxu0
  %v8998 = vadd.f32 0.0, %v8997
  %v8999 = vpop.f32.mrb[0].mxu0
  %9000 = vmatprep.mubr.f32.mxu0 0.0
  %9001 = vmatmul.mubr.f32.gmra.mrb[0].mxu0 %v8707
  %v9002 = vpop.f32.mrb[0].mxu0
  %v9003 = vadd.f32 0.0, %v9002
  %v9004 = vpop.f32.mrb[0].mxu0
  %9005 = vmatprep.mubr.f32.mxu0 0.0
  %9006 = vmatmul.mubr.f32.gmra.mrb[0].mxu0 %v8710
  %v9007 = vpop.f32.mrb[0].mxu0
  %v9008 = vadd.f32 0.0, %v9007
  %v9009 = vpop.f32.mrb[0].mxu0
  %9010 = vmatprep.mubr.f32.mxu0 0.0
  %9011 = vmatmul.mubr.f32.gmra.mrb[0].mxu0 %v8713
  %v9012 = vpop.f32.mrb[0].mxu0
  %v9013 = vadd.f32 0.0, %v9012
  %v9014 = vpop.f32.mrb[0].mxu0
  %9015 = vmatprep.mubr.f32.mxu0 0.0
  %9016 = vmatmul.mubr.f32.gmra.mrb[0].mxu0 %v8716
  %v9017 = vpop.f32.mrb[0].mxu0
  %v9018 = vadd.f32 0.0, %v9017
  %v9019 = vpop.f32.mrb[0].mxu0
  %9020 = vmatprep.mubr.f32.mxu0 0.0
  %9021 = vmatmul.mubr.f32.gmra.mrb[0].mxu0 %v8719
  %v9022 = vpop.f32.mrb[0].mxu0
  %v9023 = vadd.f32 0.0, %v9022
  %v9024 = vpop.f32.mrb[0].mxu0
  %9025 = vmatprep.mubr.f32.mxu0 0.0
  %9026 = vmatmul.mubr.f32.gmra.mrb[0].mxu0 %v8722
  %v9027 = vpop.f32.mrb[0].mxu0
  %v9028 = vadd.f32 0.0, %v9027
  %v9029 = vpop.f32.mrb[0].mxu0
  %9030 = vmatprep.mubr.f32.mxu0 0.0
  %9031 = vmatmul.mubr.f32.gmra.mrb[0].mxu0 %v8725
  %v9032 = vpop.f32.mrb[0].mxu0
  %v9033 = vadd.f32 0.0, %v9032
  %v9034 = vpop.f32.mrb[0].mxu0
  %9035 = vmatprep.mubr.f32.mxu0 0.0
  %9036 = vmatmul.mubr.f32.gmra.mrb[0].mxu0 %v8728
  %v9037 = vpop.f32.mrb[0].mxu0
  %v9038 = vadd.f32 0.0, %v9037
  %v9039 = vpop.f32.mrb[0].mxu0
  %9040 = vmatprep.mubr.f32.mxu0 0.0
  %9041 = vmatmul.mubr.f32.gmra.mrb[0].mxu0 %v8731
  %v9042 = vpop.f32.mrb[0].mxu0
  %v9043 = vadd.f32 0.0, %v9042
  %v9044 = vpop.f32.mrb[0].mxu0
  %9045 = vmatprep.mubr.f32.mxu0 0.0
  %9046 = vmatmul.mubr.f32.gmra.mrb[0].mxu0 %v8734
  %v9047 = vpop.f32.mrb[0].mxu0
  %v9048 = vadd.f32 0.0, %v9047
  %v9049 = vpop.f32.mrb[0].mxu0
  %9050 = vmatprep.mubr.f32.mxu0 0.0
  %9051 = vmatmul.mubr.f32.gmra.mrb[0].mxu0 %v8737
  %v9052 = vpop.f32.mrb[0].mxu0
  %v9053 = vadd.f32 0.0, %v9052
  %v9054 = vpop.f32.mrb[0].mxu0
  %9055 = vmatprep.mubr.f32.mxu0 0.0
  %9056 = vmatmul.mubr.f32.gmra.mrb[0].mxu0 %v8740
  %v9057 = vpop.f32.mrb[0].mxu0
  %v9058 = vadd.f32 0.0, %v9057
  %v9059 = vpop.f32.mrb[0].mxu0
  %9060 = vmatprep.mubr.f32.mxu0 0.0
  %9061 = vmatmul.mubr.f32.gmra.mrb[0].mxu0 %v8743
  %v9062 = vpop.f32.mrb[0].mxu0
  %v9063 = vadd.f32 0.0, %v9062
  %v9064 = vpop.f32.mrb[0].mxu0
  %9065 = vmatprep.mubr.f32.mxu0 0.0
  %9066 = vmatmul.mubr.f32.gmra.mrb[0].mxu0 %v8746
  %v9067 = vpop.f32.mrb[0].mxu0
  %v9068 = vadd.f32 0.0, %v9067
  %v9069 = vpop.f32.mrb[0].mxu0
  %9070 = vmatprep.mubr.f32.mxu0 0.0
  %9071 = vmatmul.mubr.f32.gmra.mrb[0].mxu0 %v8749
  %v9072 = vpop.f32.mrb[0].mxu0
  %v9073 = vadd.f32 0.0, %v9072
  %v9074 = vpop.f32.mrb[0].mxu0
  %9075 = vmatprep.mubr.f32.mxu0 0.0
  %9076 = vmatmul.mubr.f32.gmra.mrb[0].mxu0 %v8752
  %v9077 = vpop.f32.mrb[0].mxu0
  %v9078 = vadd.f32 0.0, %v9077
  %v9079 = vpop.f32.mrb[0].mxu0
  %9080 = vmatprep.mubr.f32.mxu0 0.0
  %9081 = vmatmul.mubr.f32.gmra.mrb[0].mxu0 %v8755
  %v9082 = vpop.f32.mrb[0].mxu0
  %v9083 = vadd.f32 0.0, %v9082
  %v9084 = vpop.f32.mrb[0].mxu0
  %9085 = vmatprep.mubr.f32.mxu0 0.0
  %9086 = vmatmul.mubr.f32.gmra.mrb[0].mxu0 %v8758
  %v9087 = vpop.f32.mrb[0].mxu0
  %v9088 = vadd.f32 0.0, %v9087
  %v9089 = vpop.f32.mrb[0].mxu0
  %9090 = vmatprep.mubr.f32.mxu0 0.0
  %9091 = vmatmul.mubr.f32.gmra.mrb[0].mxu0 %v8761
  %v9092 = vpop.f32.mrb[0].mxu0
  %v9093 = vadd.f32 0.0, %v9092
  %v9094 = vpop.f32.mrb[0].mxu0
  %9095 = vmatprep.mubr.f32.mxu0 0.0
  %9096 = vmatmul.mubr.f32.gmra.mrb[0].mxu0 %v8764
  %v9097 = vpop.f32.mrb[0].mxu0
  %v9098 = vadd.f32 0.0, %v9097
  %v9099 = vpop.f32.mrb[0].mxu0
  %9100 = vmatprep.mubr.f32.mxu0 0.0
  %9101 = vmatmul.mubr.f32.gmra.mrb[0].mxu0 %v8767
  %v9102 = vpop.f32.mrb[0].mxu0
  %v9103 = vadd.f32 0.0, %v9102
  %v9104 = vpop.f32.mrb[0].mxu0
  %9105 = vmatprep.mubr.f32.mxu0 0.0
  %9106 = vmatmul.mubr.f32.gmra.mrb[0].mxu0 %v8770
  %v9107 = vpop.f32.mrb[0].mxu0
  %v9108 = vadd.f32 0.0, %v9107
  %v9109 = vpop.f32.mrb[0].mxu0
  %9110 = vmatprep.mubr.f32.mxu0 0.0
  %9111 = vmatmul.mubr.f32.gmra.mrb[0].mxu0 %v8773
  %v9112 = vpop.f32.mrb[0].mxu0
  %v9113 = vadd.f32 0.0, %v9112
  %v9114 = vpop.f32.mrb[0].mxu0
  %9115 = vmatprep.mubr.f32.mxu0 0.0
  %9116 = vmatmul.mubr.f32.gmra.mrb[0].mxu0 %v8776
  %v9117 = vpop.f32.mrb[0].mxu0
  %v9118 = vadd.f32 0.0, %v9117
  %v9119 = vpop.f32.mrb[0].mxu0
  %9120 = vmatprep.mubr.f32.mxu0 0.0
  %9121 = vmatmul.mubr.f32.gmra.mrb[0].mxu0 %v8779
  %v9122 = vpop.f32.mrb[0].mxu0
  %v9123 = vadd.f32 0.0, %v9122
  %v9124 = vpop.f32.mrb[0].mxu0
  %9125 = vmatprep.mubr.f32.mxu0 0.0
  %9126 = vmatmul.mubr.f32.gmra.mrb[0].mxu0 %v8782
  %v9127 = vpop.f32.mrb[0].mxu0
  %v9128 = vadd.f32 0.0, %v9127
  %v9129 = vpop.f32.mrb[0].mxu0
  %9130 = vmatprep.mubr.f32.mxu0 0.0
  %9131 = vmatmul.mubr.f32.gmra.mrb[0].mxu0 %v8785
  %v9132 = vpop.f32.mrb[0].mxu0
  %v9133 = vadd.f32 0.0, %v9132
  %v9134 = vpop.f32.mrb[0].mxu0
  %9135 = vmatprep.mubr.f32.mxu0 0.0
  %9136 = vmatmul.mubr.f32.gmra.mrb[0].mxu0 %v8788
  %v9137 = vpop.f32.mrb[0].mxu0
  %v9138 = vadd.f32 0.0, %v9137
  %v9139 = vpop.f32.mrb[0].mxu0
  %9140 = vmatprep.mubr.f32.mxu0 0.0
  %9141 = vmatmul.mubr.f32.gmra.mrb[0].mxu0 %v8791
  %v9142 = vpop.f32.mrb[0].mxu0
  %v9143 = vadd.f32 0.0, %v9142
  %v9144 = vpop.f32.mrb[0].mxu0
  %9145 = vmatprep.mubr.f32.mxu0 0.0
  %9146 = vmatmul.mubr.f32.gmra.mrb[0].mxu0 %v8794
  %v9147 = vpop.f32.mrb[0].mxu0
  %v9148 = vadd.f32 0.0, %v9147
  %v9149 = vpop.f32.mrb[0].mxu0
  %9150 = vmatprep.mubr.f32.mxu0 0.0
  %9151 = vmatmul.mubr.f32.gmra.mrb[0].mxu0 %v8797
  %v9152 = vpop.f32.mrb[0].mxu0
  %v9153 = vadd.f32 0.0, %v9152
  %v9154 = vpop.f32.mrb[0].mxu0
  %9155 = vmatprep.mubr.f32.mxu0 0.0
  %9156 = vmatmul.mubr.f32.gmra.mrb[0].mxu0 %v8800
  %v9157 = vpop.f32.mrb[0].mxu0
  %v9158 = vadd.f32 0.0, %v9157
  %v9159 = vpop.f32.mrb[0].mxu0
  %9160 = vmatprep.mubr.f32.mxu0 0.0
  %9161 = vmatmul.mubr.f32.gmra.mrb[0].mxu0 %v8803
  %v9162 = vpop.f32.mrb[0].mxu0
  %v9163 = vadd.f32 0.0, %v9162
  %v9164 = vpop.f32.mrb[0].mxu0
  %9165 = vmatprep.mubr.f32.mxu0 0.0
  %9166 = vmatmul.mubr.f32.gmra.mrb[0].mxu0 %v8806
  %v9167 = vpop.f32.mrb[0].mxu0
  %v9168 = vadd.f32 0.0, %v9167
  %v9169 = vpop.f32.mrb[0].mxu0
  %9170 = vmatprep.mubr.f32.mxu0 0.0
  %9171 = vmatmul.mubr.f32.gmra.mrb[0].mxu0 %v8809
  %v9172 = vpop.f32.mrb[0].mxu0
  %v9173 = vadd.f32 0.0, %v9172
  %v9174 = vpop.f32.mrb[0].mxu0
  %9175 = vmatprep.mubr.f32.mxu0 0.0
  %9176 = vmatmul.mubr.f32.gmra.mrb[0].mxu0 %v8812
  %v9177 = vpop.f32.mrb[0].mxu0
  %v9178 = vadd.f32 0.0, %v9177
  %v9179 = vpop.f32.mrb[0].mxu0
  %9180 = vmatprep.mubr.f32.mxu0 0.0
  %9181 = vmatmul.mubr.f32.gmra.mrb[0].mxu0 %v8815
  %v9182 = vpop.f32.mrb[0].mxu0
  %v9183 = vadd.f32 0.0, %v9182
  %v9184 = vpop.f32.mrb[0].mxu0
  %9185 = vmatprep.mubr.f32.mxu0 0.0
  %9186 = vmatmul.mubr.f32.gmra.mrb[0].mxu0 %v8818
  %v9187 = vpop.f32.mrb[0].mxu0
  %v9188 = vadd.f32 0.0, %v9187
  %v9189 = vpop.f32.mrb[0].mxu0
  %9190 = vmatprep.mubr.f32.mxu0 0.0
  %9191 = vmatmul.mubr.f32.gmra.mrb[0].mxu0 %v8821
  %v9192 = vpop.f32.mrb[0].mxu0
  %v9193 = vadd.f32 0.0, %v9192
  %v9194 = vpop.f32.mrb[0].mxu0
  %9195 = vmatprep.mubr.f32.mxu0 0.0
  %9196 = vmatmul.mubr.f32.gmra.mrb[0].mxu0 %v8824
  %v9197 = vpop.f32.mrb[0].mxu0
  %v9198 = vadd.f32 0.0, %v9197
  %v9199 = vpop.f32.mrb[0].mxu0
  %9200 = vmatprep.mubr.f32.mxu0 0.0
  %9201 = vmatmul.mubr.f32.gmra.mrb[0].mxu0 %v8827
  %v9202 = vpop.f32.mrb[0].mxu0
  %v9203 = vadd.f32 0.0, %v9202
  %v9204 = vpop.f32.mrb[0].mxu0
  %9205 = vmatprep.mubr.f32.mxu0 0.0
  %9206 = vmatmul.mubr.f32.gmra.mrb[0].mxu0 %v8830
  %v9207 = vpop.f32.mrb[0].mxu0
  %v9208 = vadd.f32 0.0, %v9207
  %v9209 = vpop.f32.mrb[0].mxu0
  %9210 = vmatprep.mubr.f32.mxu0 0.0
  %9211 = vmatmul.mubr.f32.gmra.mrb[0].mxu0 %v8833
  %v9212 = vpop.f32.mrb[0].mxu0
  %v9213 = vadd.f32 0.0, %v9212
  %v9214 = vpop.f32.mrb[0].mxu0
  %9215 = vmatprep.mubr.f32.mxu0 0.0
  %9216 = vmatmul.mubr.f32.gmra.mrb[0].mxu0 %v8836
  %v9217 = vpop.f32.mrb[0].mxu0
  %v9218 = vadd.f32 0.0, %v9217
  %v9219 = vpop.f32.mrb[0].mxu0
  %9220 = vmatprep.mubr.f32.mxu0 0.0
  %9221 = vmatmul.mubr.f32.gmra.mrb[0].mxu0 %v8839
  %v9222 = vpop.f32.mrb[0].mxu0
  %v9223 = vadd.f32 0.0, %v9222
  %v9224 = vpop.f32.mrb[0].mxu0
  %9225 = vdwg.mxu0
  %v9226 = vadd.f32 %v8516, %v8908
  %v9227 = vadd.f32 %v8517, %v8913
  %v9228 = vadd.f32 %v8518, %v8918
  %v9229 = vadd.f32 %v8519, %v8923
  %v9230 = vadd.f32 %v8520, %v8928
  %v9231 = vadd.f32 %v8521, %v8933
  %v9232 = vadd.f32 %v8522, %v8938
  %v9233 = vadd.f32 %v8523, %v8943
  %v9234 = vadd.f32 %v8524, %v8948
  %v9235 = vadd.f32 %v8525, %v8953
  %v9236 = vadd.f32 %v8526, %v8958
  %v9237 = vadd.f32 %v8527, %v8963
  %v9238 = vadd.f32 %v8528, %v8968
  %v9239 = vadd.f32 %v8529, %v8973
  %v9240 = vadd.f32 %v8530, %v8978
  %v9241 = vadd.f32 %v8531, %v8983
  %v9242 = vadd.f32 %v8532, %v8988
  %v9243 = vadd.f32 %v8533, %v8993
  %v9244 = vadd.f32 %v8534, %v8998
  %v9245 = vadd.f32 %v8535, %v9003
  %v9246 = vadd.f32 %v8536, %v9008
  %v9247 = vadd.f32 %v8537, %v9013
  %v9248 = vadd.f32 %v8538, %v9018
  %v9249 = vadd.f32 %v8539, %v9023
  %v9250 = vadd.f32 %v8540, %v9028
  %v9251 = vadd.f32 %v8541, %v9033
  %v9252 = vadd.f32 %v8542, %v9038
  %v9253 = vadd.f32 %v8543, %v9043
  %v9254 = vadd.f32 %v8544, %v9048
  %v9255 = vadd.f32 %v8545, %v9053
  %v9256 = vadd.f32 %v8546, %v9058
  %v9257 = vadd.f32 %v8547, %v9063
  %v9258 = vadd.f32 %v8548, %v9068
  %v9259 = vadd.f32 %v8549, %v9073
  %v9260 = vadd.f32 %v8550, %v9078
  %v9261 = vadd.f32 %v8551, %v9083
  %v9262 = vadd.f32 %v8552, %v9088
  %v9263 = vadd.f32 %v8553, %v9093
  %v9264 = vadd.f32 %v8554, %v9098
  %v9265 = vadd.f32 %v8555, %v9103
  %v9266 = vadd.f32 %v8556, %v9108
  %v9267 = vadd.f32 %v8557, %v9113
  %v9268 = vadd.f32 %v8558, %v9118
  %v9269 = vadd.f32 %v8559, %v9123
  %v9270 = vadd.f32 %v8560, %v9128
  %v9271 = vadd.f32 %v8561, %v9133
  %v9272 = vadd.f32 %v8562, %v9138
  %v9273 = vadd.f32 %v8563, %v9143
  %v9274 = vadd.f32 %v8564, %v9148
  %v9275 = vadd.f32 %v8565, %v9153
  %v9276 = vadd.f32 %v8566, %v9158
  %v9277 = vadd.f32 %v8567, %v9163
  %v9278 = vadd.f32 %v8568, %v9168
  %v9279 = vadd.f32 %v8569, %v9173
  %v9280 = vadd.f32 %v8570, %v9178
  %v9281 = vadd.f32 %v8571, %v9183
  %v9282 = vadd.f32 %v8572, %v9188
  %v9283 = vadd.f32 %v8573, %v9193
  %v9284 = vadd.f32 %v8574, %v9198
  %v9285 = vadd.f32 %v8575, %v9203
  %v9286 = vadd.f32 %v8576, %v9208
  %v9287 = vadd.f32 %v8577, %v9213
  %v9288 = vadd.f32 %v8578, %v9218
  %v9289 = vadd.f32 %v8579, %v9223
  %v9290 = vld [vmem:[%s6514 + $0x1] sm:$0xff]
  %v9291 = vld [vmem:[%s6514 + $0x9] sm:$0xff]
  %v9292 = vld [vmem:[%s6514 + $0x19] sm:$0xff]
  %v9293 = vld [vmem:[%s6514 + $0x21] sm:$0xff]
  %v9294 = vld [vmem:[%s6514 + $0x31] sm:$0xff]
  %v9295 = vld [vmem:[%s6514 + $0x39] sm:$0xff]
  %v9296 = vld [vmem:[%s6514 + $0x49] sm:$0xff]
  %v9297 = vld [vmem:[%s6514 + $0x51] sm:$0xff]
  %v9298 = vld [vmem:[%s6514 + $0x61] sm:$0xff]
  %v9299 = vld [vmem:[%s6514 + $0x69] sm:$0xff]
  %v9300 = vld [vmem:[%s6514 + $0x79] sm:$0xff]
  %v9301 = vld [vmem:[%s6514 + $0x81] sm:$0xff]
  %v9302 = vld [vmem:[%s6514 + $0x91] sm:$0xff]
  %v9303 = vld [vmem:[%s6514 + $0x99] sm:$0xff]
  %v9304 = vld [vmem:[%s6514 + $0xa9] sm:$0xff]
  %v9305 = vld [vmem:[%s6514 + $0xb1] sm:$0xff]
  %v9306 = vld [vmem:[%s6514 + $0xc1] sm:$0xff]
  %v9307 = vld [vmem:[%s6514 + $0xc9] sm:$0xff]
  %v9308 = vld [vmem:[%s6514 + $0xd9] sm:$0xff]
  %v9309 = vld [vmem:[%s6514 + $0xe1] sm:$0xff]
  %v9310 = vld [vmem:[%s6514 + $0xf1] sm:$0xff]
  %v9311 = vld [vmem:[%s6514 + $0xf9] sm:$0xff]
  %v9312 = vld [vmem:[%s6514 + $0x109] sm:$0xff]
  %v9313 = vld [vmem:[%s6514 + $0x111] sm:$0xff]
  %v9314 = vld [vmem:[%s6514 + $0x121] sm:$0xff]
  %v9315 = vld [vmem:[%s6514 + $0x129] sm:$0xff]
  %v9316 = vld [vmem:[%s6514 + $0x139] sm:$0xff]
  %v9317 = vld [vmem:[%s6514 + $0x141] sm:$0xff]
  %v9318 = vld [vmem:[%s6514 + $0x151] sm:$0xff]
  %v9319 = vld [vmem:[%s6514 + $0x159] sm:$0xff]
  %v9320 = vld [vmem:[%s6514 + $0x169] sm:$0xff]
  %v9321 = vld [vmem:[%s6514 + $0x171] sm:$0xff]
  %v9322 = vld [vmem:[%s6514 + $0x1b1] sm:$0xff]
  %v9323 = vld [vmem:[%s6514 + $0x1b9] sm:$0xff]
  %v9324 = vld [vmem:[%s6514 + $0x1c9] sm:$0xff]
  %v9325 = vld [vmem:[%s6514 + $0x1d1] sm:$0xff]
  %v9326 = vld [vmem:[%s6514 + $0x1e1] sm:$0xff]
  %v9327 = vld [vmem:[%s6514 + $0x1e9] sm:$0xff]
  %v9328 = vld [vmem:[%s6514 + $0x1f9] sm:$0xff]
  %v9329 = vld [vmem:[%s6514 + $0x201] sm:$0xff]
  %v9330 = vld [vmem:[%s6514 + $0x211] sm:$0xff]
  %v9331 = vld [vmem:[%s6514 + $0x219] sm:$0xff]
  %v9332 = vld [vmem:[%s6514 + $0x229] sm:$0xff]
  %v9333 = vld [vmem:[%s6514 + $0x231] sm:$0xff]
  %v9334 = vld [vmem:[%s6514 + $0x241] sm:$0xff]
  %v9335 = vld [vmem:[%s6514 + $0x249] sm:$0xff]
  %v9336 = vld [vmem:[%s6514 + $0x259] sm:$0xff]
  %v9337 = vld [vmem:[%s6514 + $0x261] sm:$0xff]
  %v9338 = vld [vmem:[%s6514 + $0x271] sm:$0xff]
  %v9339 = vld [vmem:[%s6514 + $0x279] sm:$0xff]
  %v9340 = vld [vmem:[%s6514 + $0x289] sm:$0xff]
  %v9341 = vld [vmem:[%s6514 + $0x291] sm:$0xff]
  %v9342 = vld [vmem:[%s6514 + $0x2a1] sm:$0xff]
  %v9343 = vld [vmem:[%s6514 + $0x2a9] sm:$0xff]
  %v9344 = vld [vmem:[%s6514 + $0x2b9] sm:$0xff]
  %v9345 = vld [vmem:[%s6514 + $0x2c1] sm:$0xff]
  %v9346 = vld [vmem:[%s6514 + $0x2d1] sm:$0xff]
  %v9347 = vld [vmem:[%s6514 + $0x2d9] sm:$0xff]
  %v9348 = vld [vmem:[%s6514 + $0x2e9] sm:$0xff]
  %v9349 = vld [vmem:[%s6514 + $0x2f1] sm:$0xff]
  %v9350 = vld [vmem:[%s6514 + $0x301] sm:$0xff]
  %v9351 = vld [vmem:[%s6514 + $0x309] sm:$0xff]
  %v9352 = vld [vmem:[%s6514 + $0x319] sm:$0xff]
  %v9353 = vld [vmem:[%s6514 + $0x321] sm:$0xff]
  %s9354 = scalar_lea.vmem %s3, 128
  %v9355 = vld [vmem:[%s9354] sm:$0xff]
  %v9356 = vld [vmem:[%s9354 + $0x8] sm:$0xff]
  %v9357 = vld [vmem:[%s9354 + $0x10] sm:$0xff]
  %v9358 = vld [vmem:[%s9354 + $0x18] sm:$0xff]
  %v9360 = vsel %vm6426, %v9290, 0
  %v9363 = vsel %vm6426, %v9291, 0
  %v9366 = vsel %vm6426, %v9292, 0
  %v9369 = vsel %vm6426, %v9293, 0
  %v9372 = vsel %vm6426, %v9294, 0
  %v9375 = vsel %vm6426, %v9295, 0
  %v9378 = vsel %vm6426, %v9296, 0
  %v9381 = vsel %vm6426, %v9297, 0
  %v9384 = vsel %vm6426, %v9298, 0
  %v9387 = vsel %vm6426, %v9299, 0
  %v9390 = vsel %vm6426, %v9300, 0
  %v9393 = vsel %vm6426, %v9301, 0
  %v9396 = vsel %vm6426, %v9302, 0
  %v9399 = vsel %vm6426, %v9303, 0
  %v9402 = vsel %vm6426, %v9304, 0
  %v9405 = vsel %vm6426, %v9305, 0
  %v9408 = vsel %vm6426, %v9306, 0
  %v9411 = vsel %vm6426, %v9307, 0
  %v9414 = vsel %vm6426, %v9308, 0
  %v9417 = vsel %vm6426, %v9309, 0
  %v9420 = vsel %vm6426, %v9310, 0
  %v9423 = vsel %vm6426, %v9311, 0
  %v9426 = vsel %vm6426, %v9312, 0
  %v9429 = vsel %vm6426, %v9313, 0
  %v9432 = vsel %vm6426, %v9314, 0
  %v9435 = vsel %vm6426, %v9315, 0
  %v9438 = vsel %vm6426, %v9316, 0
  %v9441 = vsel %vm6426, %v9317, 0
  %v9444 = vsel %vm6426, %v9318, 0
  %v9447 = vsel %vm6426, %v9319, 0
  %v9450 = vsel %vm6426, %v9320, 0
  %v9453 = vsel %vm6426, %v9321, 0
  %v9456 = vsel %vm6426, %v9322, 0
  %v9459 = vsel %vm6426, %v9323, 0
  %v9462 = vsel %vm6426, %v9324, 0
  %v9465 = vsel %vm6426, %v9325, 0
  %v9468 = vsel %vm6426, %v9326, 0
  %v9471 = vsel %vm6426, %v9327, 0
  %v9474 = vsel %vm6426, %v9328, 0
  %v9477 = vsel %vm6426, %v9329, 0
  %v9480 = vsel %vm6426, %v9330, 0
  %v9483 = vsel %vm6426, %v9331, 0
  %v9486 = vsel %vm6426, %v9332, 0
  %v9489 = vsel %vm6426, %v9333, 0
  %v9492 = vsel %vm6426, %v9334, 0
  %v9495 = vsel %vm6426, %v9335, 0
  %v9498 = vsel %vm6426, %v9336, 0
  %v9501 = vsel %vm6426, %v9337, 0
  %v9504 = vsel %vm6426, %v9338, 0
  %v9507 = vsel %vm6426, %v9339, 0
  %v9510 = vsel %vm6426, %v9340, 0
  %v9513 = vsel %vm6426, %v9341, 0
  %v9516 = vsel %vm6426, %v9342, 0
  %v9519 = vsel %vm6426, %v9343, 0
  %v9522 = vsel %vm6426, %v9344, 0
  %v9525 = vsel %vm6426, %v9345, 0
  %v9528 = vsel %vm6426, %v9346, 0
  %v9531 = vsel %vm6426, %v9347, 0
  %v9534 = vsel %vm6426, %v9348, 0
  %v9537 = vsel %vm6426, %v9349, 0
  %v9540 = vsel %vm6426, %v9350, 0
  %v9543 = vsel %vm6426, %v9351, 0
  %v9546 = vsel %vm6426, %v9352, 0
  %v9549 = vsel %vm6426, %v9353, 0
  %9551 = vmatprep.subr.mxu0 0.0
  %9552 = vmatpush1.msra.mxu0 %v9355
  %9553 = vmatprep.subr.mxu0 0.0
  %9554 = vmatpush1.msra.mxu0 %v9356
  %9555 = vmatprep.subr.mxu0 0.0
  %9556 = vmatpush1.msra.mxu0 %v9357
  %9557 = vmatprep.subr.mxu0 0.0
  %9558 = vmatpush1.msra.mxu0 %v9358
  %9559 = vmatprep.subr.mxu0 0.0
  %9560 = vmatpush1.msra.mxu0 0.0
  %9561 = vmatprep.subr.mxu0 0.0
  %9562 = vmatpush1.msra.mxu0 0.0
  %9563 = vmatprep.subr.mxu0 0.0
  %9564 = vmatpush1.msra.mxu0 0.0
  %9565 = vmatprep.subr.mxu0 0.0
  %9566 = vmatpush1.msra.mxu0 0.0
  %9567 = vmatprep.subr.mxu0 0.0
  %9568 = vmatpush1.msra.mxu0 0.0
  %9569 = vmatprep.subr.mxu0 0.0
  %9570 = vmatpush1.msra.mxu0 0.0
  %9571 = vmatprep.subr.mxu0 0.0
  %9572 = vmatpush1.msra.mxu0 0.0
  %9573 = vmatprep.subr.mxu0 0.0
  %9574 = vmatpush1.msra.mxu0 0.0
  %9575 = vmatprep.subr.mxu0 0.0
  %9576 = vmatpush1.msra.mxu0 0.0
  %9577 = vmatprep.subr.mxu0 0.0
  %9578 = vmatpush1.msra.mxu0 0.0
  %9579 = vmatprep.subr.mxu0 0.0
  %9580 = vmatpush1.msra.mxu0 0.0
  %9581 = vmatprep.subr.mxu0 0.0
  %9582 = vmatpush1.msra.mxu0 0.0
  %9583 = vmatprep.subr.mxu0 0.0
  %9584 = vmatpush1.msra.mxu0 0.0
  %9585 = vmatprep.subr.mxu0 0.0
  %9586 = vmatpush1.msra.mxu0 0.0
  %9587 = vmatprep.subr.mxu0 0.0
  %9588 = vmatpush1.msra.mxu0 0.0
  %9589 = vmatprep.subr.mxu0 0.0
  %9590 = vmatpush1.msra.mxu0 0.0
  %9591 = vmatprep.subr.mxu0 0.0
  %9592 = vmatpush1.msra.mxu0 0.0
  %9593 = vmatprep.subr.mxu0 0.0
  %9594 = vmatpush1.msra.mxu0 0.0
  %9595 = vmatprep.subr.mxu0 0.0
  %9596 = vmatpush1.msra.mxu0 0.0
  %9597 = vmatprep.subr.mxu0 0.0
  %9598 = vmatpush1.msra.mxu0 0.0
  %9599 = vmatprep.subr.mxu0 0.0
  %9600 = vmatpush1.msra.mxu0 0.0
  %9601 = vmatprep.subr.mxu0 0.0
  %9602 = vmatpush1.msra.mxu0 0.0
  %9603 = vmatprep.subr.mxu0 0.0
  %9604 = vmatpush1.msra.mxu0 0.0
  %9605 = vmatprep.subr.mxu0 0.0
  %9606 = vmatpush1.msra.mxu0 0.0
  %9607 = vmatprep.subr.mxu0 0.0
  %9608 = vmatpush1.msra.mxu0 0.0
  %9609 = vmatprep.subr.mxu0 0.0
  %9610 = vmatpush1.msra.mxu0 0.0
  %9611 = vmatprep.subr.mxu0 0.0
  %9612 = vmatpush1.msra.mxu0 0.0
  %9613 = vmatprep.subr.mxu0 0.0
  %9614 = vmatpush1.msra.mxu0 0.0
  %9615 = vmatprep.mubr.f32.mxu0 0.0
  %9616 = vmatmul.mubr.f32.gmra.mrb[0].mxu0 %v9360
  %v9617 = vpop.f32.mrb[0].mxu0
  %v9618 = vadd.f32 0.0, %v9617
  %v9619 = vpop.f32.mrb[0].mxu0
  %9620 = vmatprep.mubr.f32.mxu0 0.0
  %9621 = vmatmul.mubr.f32.gmra.mrb[0].mxu0 %v9363
  %v9622 = vpop.f32.mrb[0].mxu0
  %v9623 = vadd.f32 0.0, %v9622
  %v9624 = vpop.f32.mrb[0].mxu0
  %9625 = vmatprep.mubr.f32.mxu0 0.0
  %9626 = vmatmul.mubr.f32.gmra.mrb[0].mxu0 %v9366
  %v9627 = vpop.f32.mrb[0].mxu0
  %v9628 = vadd.f32 0.0, %v9627
  %v9629 = vpop.f32.mrb[0].mxu0
  %9630 = vmatprep.mubr.f32.mxu0 0.0
  %9631 = vmatmul.mubr.f32.gmra.mrb[0].mxu0 %v9369
  %v9632 = vpop.f32.mrb[0].mxu0
  %v9633 = vadd.f32 0.0, %v9632
  %v9634 = vpop.f32.mrb[0].mxu0
  %9635 = vmatprep.mubr.f32.mxu0 0.0
  %9636 = vmatmul.mubr.f32.gmra.mrb[0].mxu0 %v9372
  %v9637 = vpop.f32.mrb[0].mxu0
  %v9638 = vadd.f32 0.0, %v9637
  %v9639 = vpop.f32.mrb[0].mxu0
  %9640 = vmatprep.mubr.f32.mxu0 0.0
  %9641 = vmatmul.mubr.f32.gmra.mrb[0].mxu0 %v9375
  %v9642 = vpop.f32.mrb[0].mxu0
  %v9643 = vadd.f32 0.0, %v9642
  %v9644 = vpop.f32.mrb[0].mxu0
  %9645 = vmatprep.mubr.f32.mxu0 0.0
  %9646 = vmatmul.mubr.f32.gmra.mrb[0].mxu0 %v9378
  %v9647 = vpop.f32.mrb[0].mxu0
  %v9648 = vadd.f32 0.0, %v9647
  %v9649 = vpop.f32.mrb[0].mxu0
  %9650 = vmatprep.mubr.f32.mxu0 0.0
  %9651 = vmatmul.mubr.f32.gmra.mrb[0].mxu0 %v9381
  %v9652 = vpop.f32.mrb[0].mxu0
  %v9653 = vadd.f32 0.0, %v9652
  %v9654 = vpop.f32.mrb[0].mxu0
  %9655 = vmatprep.mubr.f32.mxu0 0.0
  %9656 = vmatmul.mubr.f32.gmra.mrb[0].mxu0 %v9384
  %v9657 = vpop.f32.mrb[0].mxu0
  %v9658 = vadd.f32 0.0, %v9657
  %v9659 = vpop.f32.mrb[0].mxu0
  %9660 = vmatprep.mubr.f32.mxu0 0.0
  %9661 = vmatmul.mubr.f32.gmra.mrb[0].mxu0 %v9387
  %v9662 = vpop.f32.mrb[0].mxu0
  %v9663 = vadd.f32 0.0, %v9662
  %v9664 = vpop.f32.mrb[0].mxu0
  %9665 = vmatprep.mubr.f32.mxu0 0.0
  %9666 = vmatmul.mubr.f32.gmra.mrb[0].mxu0 %v9390
  %v9667 = vpop.f32.mrb[0].mxu0
  %v9668 = vadd.f32 0.0, %v9667
  %v9669 = vpop.f32.mrb[0].mxu0
  %9670 = vmatprep.mubr.f32.mxu0 0.0
  %9671 = vmatmul.mubr.f32.gmra.mrb[0].mxu0 %v9393
  %v9672 = vpop.f32.mrb[0].mxu0
  %v9673 = vadd.f32 0.0, %v9672
  %v9674 = vpop.f32.mrb[0].mxu0
  %9675 = vmatprep.mubr.f32.mxu0 0.0
  %9676 = vmatmul.mubr.f32.gmra.mrb[0].mxu0 %v9396
  %v9677 = vpop.f32.mrb[0].mxu0
  %v9678 = vadd.f32 0.0, %v9677
  %v9679 = vpop.f32.mrb[0].mxu0
  %9680 = vmatprep.mubr.f32.mxu0 0.0
  %9681 = vmatmul.mubr.f32.gmra.mrb[0].mxu0 %v9399
  %v9682 = vpop.f32.mrb[0].mxu0
  %v9683 = vadd.f32 0.0, %v9682
  %v9684 = vpop.f32.mrb[0].mxu0
  %9685 = vmatprep.mubr.f32.mxu0 0.0
  %9686 = vmatmul.mubr.f32.gmra.mrb[0].mxu0 %v9402
  %v9687 = vpop.f32.mrb[0].mxu0
  %v9688 = vadd.f32 0.0, %v9687
  %v9689 = vpop.f32.mrb[0].mxu0
  %9690 = vmatprep.mubr.f32.mxu0 0.0
  %9691 = vmatmul.mubr.f32.gmra.mrb[0].mxu0 %v9405
  %v9692 = vpop.f32.mrb[0].mxu0
  %v9693 = vadd.f32 0.0, %v9692
  %v9694 = vpop.f32.mrb[0].mxu0
  %9695 = vmatprep.mubr.f32.mxu0 0.0
  %9696 = vmatmul.mubr.f32.gmra.mrb[0].mxu0 %v9408
  %v9697 = vpop.f32.mrb[0].mxu0
  %v9698 = vadd.f32 0.0, %v9697
  %v9699 = vpop.f32.mrb[0].mxu0
  %9700 = vmatprep.mubr.f32.mxu0 0.0
  %9701 = vmatmul.mubr.f32.gmra.mrb[0].mxu0 %v9411
  %v9702 = vpop.f32.mrb[0].mxu0
  %v9703 = vadd.f32 0.0, %v9702
  %v9704 = vpop.f32.mrb[0].mxu0
  %9705 = vmatprep.mubr.f32.mxu0 0.0
  %9706 = vmatmul.mubr.f32.gmra.mrb[0].mxu0 %v9414
  %v9707 = vpop.f32.mrb[0].mxu0
  %v9708 = vadd.f32 0.0, %v9707
  %v9709 = vpop.f32.mrb[0].mxu0
  %9710 = vmatprep.mubr.f32.mxu0 0.0
  %9711 = vmatmul.mubr.f32.gmra.mrb[0].mxu0 %v9417
  %v9712 = vpop.f32.mrb[0].mxu0
  %v9713 = vadd.f32 0.0, %v9712
  %v9714 = vpop.f32.mrb[0].mxu0
  %9715 = vmatprep.mubr.f32.mxu0 0.0
  %9716 = vmatmul.mubr.f32.gmra.mrb[0].mxu0 %v9420
  %v9717 = vpop.f32.mrb[0].mxu0
  %v9718 = vadd.f32 0.0, %v9717
  %v9719 = vpop.f32.mrb[0].mxu0
  %9720 = vmatprep.mubr.f32.mxu0 0.0
  %9721 = vmatmul.mubr.f32.gmra.mrb[0].mxu0 %v9423
  %v9722 = vpop.f32.mrb[0].mxu0
  %v9723 = vadd.f32 0.0, %v9722
  %v9724 = vpop.f32.mrb[0].mxu0
  %9725 = vmatprep.mubr.f32.mxu0 0.0
  %9726 = vmatmul.mubr.f32.gmra.mrb[0].mxu0 %v9426
  %v9727 = vpop.f32.mrb[0].mxu0
  %v9728 = vadd.f32 0.0, %v9727
  %v9729 = vpop.f32.mrb[0].mxu0
  %9730 = vmatprep.mubr.f32.mxu0 0.0
  %9731 = vmatmul.mubr.f32.gmra.mrb[0].mxu0 %v9429
  %v9732 = vpop.f32.mrb[0].mxu0
  %v9733 = vadd.f32 0.0, %v9732
  %v9734 = vpop.f32.mrb[0].mxu0
  %9735 = vmatprep.mubr.f32.mxu0 0.0
  %9736 = vmatmul.mubr.f32.gmra.mrb[0].mxu0 %v9432
  %v9737 = vpop.f32.mrb[0].mxu0
  %v9738 = vadd.f32 0.0, %v9737
  %v9739 = vpop.f32.mrb[0].mxu0
  %9740 = vmatprep.mubr.f32.mxu0 0.0
  %9741 = vmatmul.mubr.f32.gmra.mrb[0].mxu0 %v9435
  %v9742 = vpop.f32.mrb[0].mxu0
  %v9743 = vadd.f32 0.0, %v9742
  %v9744 = vpop.f32.mrb[0].mxu0
  %9745 = vmatprep.mubr.f32.mxu0 0.0
  %9746 = vmatmul.mubr.f32.gmra.mrb[0].mxu0 %v9438
  %v9747 = vpop.f32.mrb[0].mxu0
  %v9748 = vadd.f32 0.0, %v9747
  %v9749 = vpop.f32.mrb[0].mxu0
  %9750 = vmatprep.mubr.f32.mxu0 0.0
  %9751 = vmatmul.mubr.f32.gmra.mrb[0].mxu0 %v9441
  %v9752 = vpop.f32.mrb[0].mxu0
  %v9753 = vadd.f32 0.0, %v9752
  %v9754 = vpop.f32.mrb[0].mxu0
  %9755 = vmatprep.mubr.f32.mxu0 0.0
  %9756 = vmatmul.mubr.f32.gmra.mrb[0].mxu0 %v9444
  %v9757 = vpop.f32.mrb[0].mxu0
  %v9758 = vadd.f32 0.0, %v9757
  %v9759 = vpop.f32.mrb[0].mxu0
  %9760 = vmatprep.mubr.f32.mxu0 0.0
  %9761 = vmatmul.mubr.f32.gmra.mrb[0].mxu0 %v9447
  %v9762 = vpop.f32.mrb[0].mxu0
  %v9763 = vadd.f32 0.0, %v9762
  %v9764 = vpop.f32.mrb[0].mxu0
  %9765 = vmatprep.mubr.f32.mxu0 0.0
  %9766 = vmatmul.mubr.f32.gmra.mrb[0].mxu0 %v9450
  %v9767 = vpop.f32.mrb[0].mxu0
  %v9768 = vadd.f32 0.0, %v9767
  %v9769 = vpop.f32.mrb[0].mxu0
  %9770 = vmatprep.mubr.f32.mxu0 0.0
  %9771 = vmatmul.mubr.f32.gmra.mrb[0].mxu0 %v9453
  %v9772 = vpop.f32.mrb[0].mxu0
  %v9773 = vadd.f32 0.0, %v9772
  %v9774 = vpop.f32.mrb[0].mxu0
  %9775 = vmatprep.mubr.f32.mxu0 0.0
  %9776 = vmatmul.mubr.f32.gmra.mrb[0].mxu0 %v9456
  %v9777 = vpop.f32.mrb[0].mxu0
  %v9778 = vadd.f32 0.0, %v9777
  %v9779 = vpop.f32.mrb[0].mxu0
  %9780 = vmatprep.mubr.f32.mxu0 0.0
  %9781 = vmatmul.mubr.f32.gmra.mrb[0].mxu0 %v9459
  %v9782 = vpop.f32.mrb[0].mxu0
  %v9783 = vadd.f32 0.0, %v9782
  %v9784 = vpop.f32.mrb[0].mxu0
  %9785 = vmatprep.mubr.f32.mxu0 0.0
  %9786 = vmatmul.mubr.f32.gmra.mrb[0].mxu0 %v9462
  %v9787 = vpop.f32.mrb[0].mxu0
  %v9788 = vadd.f32 0.0, %v9787
  %v9789 = vpop.f32.mrb[0].mxu0
  %9790 = vmatprep.mubr.f32.mxu0 0.0
  %9791 = vmatmul.mubr.f32.gmra.mrb[0].mxu0 %v9465
  %v9792 = vpop.f32.mrb[0].mxu0
  %v9793 = vadd.f32 0.0, %v9792
  %v9794 = vpop.f32.mrb[0].mxu0
  %9795 = vmatprep.mubr.f32.mxu0 0.0
  %9796 = vmatmul.mubr.f32.gmra.mrb[0].mxu0 %v9468
  %v9797 = vpop.f32.mrb[0].mxu0
  %v9798 = vadd.f32 0.0, %v9797
  %v9799 = vpop.f32.mrb[0].mxu0
  %9800 = vmatprep.mubr.f32.mxu0 0.0
  %9801 = vmatmul.mubr.f32.gmra.mrb[0].mxu0 %v9471
  %v9802 = vpop.f32.mrb[0].mxu0
  %v9803 = vadd.f32 0.0, %v9802
  %v9804 = vpop.f32.mrb[0].mxu0
  %9805 = vmatprep.mubr.f32.mxu0 0.0
  %9806 = vmatmul.mubr.f32.gmra.mrb[0].mxu0 %v9474
  %v9807 = vpop.f32.mrb[0].mxu0
  %v9808 = vadd.f32 0.0, %v9807
  %v9809 = vpop.f32.mrb[0].mxu0
  %9810 = vmatprep.mubr.f32.mxu0 0.0
  %9811 = vmatmul.mubr.f32.gmra.mrb[0].mxu0 %v9477
  %v9812 = vpop.f32.mrb[0].mxu0
  %v9813 = vadd.f32 0.0, %v9812
  %v9814 = vpop.f32.mrb[0].mxu0
  %9815 = vmatprep.mubr.f32.mxu0 0.0
  %9816 = vmatmul.mubr.f32.gmra.mrb[0].mxu0 %v9480
  %v9817 = vpop.f32.mrb[0].mxu0
  %v9818 = vadd.f32 0.0, %v9817
  %v9819 = vpop.f32.mrb[0].mxu0
  %9820 = vmatprep.mubr.f32.mxu0 0.0
  %9821 = vmatmul.mubr.f32.gmra.mrb[0].mxu0 %v9483
  %v9822 = vpop.f32.mrb[0].mxu0
  %v9823 = vadd.f32 0.0, %v9822
  %v9824 = vpop.f32.mrb[0].mxu0
  %9825 = vmatprep.mubr.f32.mxu0 0.0
  %9826 = vmatmul.mubr.f32.gmra.mrb[0].mxu0 %v9486
  %v9827 = vpop.f32.mrb[0].mxu0
  %v9828 = vadd.f32 0.0, %v9827
  %v9829 = vpop.f32.mrb[0].mxu0
  %9830 = vmatprep.mubr.f32.mxu0 0.0
  %9831 = vmatmul.mubr.f32.gmra.mrb[0].mxu0 %v9489
  %v9832 = vpop.f32.mrb[0].mxu0
  %v9833 = vadd.f32 0.0, %v9832
  %v9834 = vpop.f32.mrb[0].mxu0
  %9835 = vmatprep.mubr.f32.mxu0 0.0
  %9836 = vmatmul.mubr.f32.gmra.mrb[0].mxu0 %v9492
  %v9837 = vpop.f32.mrb[0].mxu0
  %v9838 = vadd.f32 0.0, %v9837
  %v9839 = vpop.f32.mrb[0].mxu0
  %9840 = vmatprep.mubr.f32.mxu0 0.0
  %9841 = vmatmul.mubr.f32.gmra.mrb[0].mxu0 %v9495
  %v9842 = vpop.f32.mrb[0].mxu0
  %v9843 = vadd.f32 0.0, %v9842
  %v9844 = vpop.f32.mrb[0].mxu0
  %9845 = vmatprep.mubr.f32.mxu0 0.0
  %9846 = vmatmul.mubr.f32.gmra.mrb[0].mxu0 %v9498
  %v9847 = vpop.f32.mrb[0].mxu0
  %v9848 = vadd.f32 0.0, %v9847
  %v9849 = vpop.f32.mrb[0].mxu0
  %9850 = vmatprep.mubr.f32.mxu0 0.0
  %9851 = vmatmul.mubr.f32.gmra.mrb[0].mxu0 %v9501
  %v9852 = vpop.f32.mrb[0].mxu0
  %v9853 = vadd.f32 0.0, %v9852
  %v9854 = vpop.f32.mrb[0].mxu0
  %9855 = vmatprep.mubr.f32.mxu0 0.0
  %9856 = vmatmul.mubr.f32.gmra.mrb[0].mxu0 %v9504
  %v9857 = vpop.f32.mrb[0].mxu0
  %v9858 = vadd.f32 0.0, %v9857
  %v9859 = vpop.f32.mrb[0].mxu0
  %9860 = vmatprep.mubr.f32.mxu0 0.0
  %9861 = vmatmul.mubr.f32.gmra.mrb[0].mxu0 %v9507
  %v9862 = vpop.f32.mrb[0].mxu0
  %v9863 = vadd.f32 0.0, %v9862
  %v9864 = vpop.f32.mrb[0].mxu0
  %9865 = vmatprep.mubr.f32.mxu0 0.0
  %9866 = vmatmul.mubr.f32.gmra.mrb[0].mxu0 %v9510
  %v9867 = vpop.f32.mrb[0].mxu0
  %v9868 = vadd.f32 0.0, %v9867
  %v9869 = vpop.f32.mrb[0].mxu0
  %9870 = vmatprep.mubr.f32.mxu0 0.0
  %9871 = vmatmul.mubr.f32.gmra.mrb[0].mxu0 %v9513
  %v9872 = vpop.f32.mrb[0].mxu0
  %v9873 = vadd.f32 0.0, %v9872
  %v9874 = vpop.f32.mrb[0].mxu0
  %9875 = vmatprep.mubr.f32.mxu0 0.0
  %9876 = vmatmul.mubr.f32.gmra.mrb[0].mxu0 %v9516
  %v9877 = vpop.f32.mrb[0].mxu0
  %v9878 = vadd.f32 0.0, %v9877
  %v9879 = vpop.f32.mrb[0].mxu0
  %9880 = vmatprep.mubr.f32.mxu0 0.0
  %9881 = vmatmul.mubr.f32.gmra.mrb[0].mxu0 %v9519
  %v9882 = vpop.f32.mrb[0].mxu0
  %v9883 = vadd.f32 0.0, %v9882
  %v9884 = vpop.f32.mrb[0].mxu0
  %9885 = vmatprep.mubr.f32.mxu0 0.0
  %9886 = vmatmul.mubr.f32.gmra.mrb[0].mxu0 %v9522
  %v9887 = vpop.f32.mrb[0].mxu0
  %v9888 = vadd.f32 0.0, %v9887
  %v9889 = vpop.f32.mrb[0].mxu0
  %9890 = vmatprep.mubr.f32.mxu0 0.0
  %9891 = vmatmul.mubr.f32.gmra.mrb[0].mxu0 %v9525
  %v9892 = vpop.f32.mrb[0].mxu0
  %v9893 = vadd.f32 0.0, %v9892
  %v9894 = vpop.f32.mrb[0].mxu0
  %9895 = vmatprep.mubr.f32.mxu0 0.0
  %9896 = vmatmul.mubr.f32.gmra.mrb[0].mxu0 %v9528
  %v9897 = vpop.f32.mrb[0].mxu0
  %v9898 = vadd.f32 0.0, %v9897
  %v9899 = vpop.f32.mrb[0].mxu0
  %9900 = vmatprep.mubr.f32.mxu0 0.0
  %9901 = vmatmul.mubr.f32.gmra.mrb[0].mxu0 %v9531
  %v9902 = vpop.f32.mrb[0].mxu0
  %v9903 = vadd.f32 0.0, %v9902
  %v9904 = vpop.f32.mrb[0].mxu0
  %9905 = vmatprep.mubr.f32.mxu0 0.0
  %9906 = vmatmul.mubr.f32.gmra.mrb[0].mxu0 %v9534
  %v9907 = vpop.f32.mrb[0].mxu0
  %v9908 = vadd.f32 0.0, %v9907
  %v9909 = vpop.f32.mrb[0].mxu0
  %9910 = vmatprep.mubr.f32.mxu0 0.0
  %9911 = vmatmul.mubr.f32.gmra.mrb[0].mxu0 %v9537
  %v9912 = vpop.f32.mrb[0].mxu0
  %v9913 = vadd.f32 0.0, %v9912
  %v9914 = vpop.f32.mrb[0].mxu0
  %9915 = vmatprep.mubr.f32.mxu0 0.0
  %9916 = vmatmul.mubr.f32.gmra.mrb[0].mxu0 %v9540
  %v9917 = vpop.f32.mrb[0].mxu0
  %v9918 = vadd.f32 0.0, %v9917
  %v9919 = vpop.f32.mrb[0].mxu0
  %9920 = vmatprep.mubr.f32.mxu0 0.0
  %9921 = vmatmul.mubr.f32.gmra.mrb[0].mxu0 %v9543
  %v9922 = vpop.f32.mrb[0].mxu0
  %v9923 = vadd.f32 0.0, %v9922
  %v9924 = vpop.f32.mrb[0].mxu0
  %9925 = vmatprep.mubr.f32.mxu0 0.0
  %9926 = vmatmul.mubr.f32.gmra.mrb[0].mxu0 %v9546
  %v9927 = vpop.f32.mrb[0].mxu0
  %v9928 = vadd.f32 0.0, %v9927
  %v9929 = vpop.f32.mrb[0].mxu0
  %9930 = vmatprep.mubr.f32.mxu0 0.0
  %9931 = vmatmul.mubr.f32.gmra.mrb[0].mxu0 %v9549
  %v9932 = vpop.f32.mrb[0].mxu0
  %v9933 = vadd.f32 0.0, %v9932
  %v9934 = vpop.f32.mrb[0].mxu0
  %9935 = vdwg.mxu0
  %v9936 = vadd.f32 %v9226, %v9618
  %v9937 = vadd.f32 %v9227, %v9623
  %v9938 = vadd.f32 %v9228, %v9628
  %v9939 = vadd.f32 %v9229, %v9633
  %v9940 = vadd.f32 %v9230, %v9638
  %v9941 = vadd.f32 %v9231, %v9643
  %v9942 = vadd.f32 %v9232, %v9648
  %v9943 = vadd.f32 %v9233, %v9653
  %v9944 = vadd.f32 %v9234, %v9658
  %v9945 = vadd.f32 %v9235, %v9663
  %v9946 = vadd.f32 %v9236, %v9668
  %v9947 = vadd.f32 %v9237, %v9673
  %v9948 = vadd.f32 %v9238, %v9678
  %v9949 = vadd.f32 %v9239, %v9683
  %v9950 = vadd.f32 %v9240, %v9688
  %v9951 = vadd.f32 %v9241, %v9693
  %v9952 = vadd.f32 %v9242, %v9698
  %v9953 = vadd.f32 %v9243, %v9703
  %v9954 = vadd.f32 %v9244, %v9708
  %v9955 = vadd.f32 %v9245, %v9713
  %v9956 = vadd.f32 %v9246, %v9718
  %v9957 = vadd.f32 %v9247, %v9723
  %v9958 = vadd.f32 %v9248, %v9728
  %v9959 = vadd.f32 %v9249, %v9733
  %v9960 = vadd.f32 %v9250, %v9738
  %v9961 = vadd.f32 %v9251, %v9743
  %v9962 = vadd.f32 %v9252, %v9748
  %v9963 = vadd.f32 %v9253, %v9753
  %v9964 = vadd.f32 %v9254, %v9758
  %v9965 = vadd.f32 %v9255, %v9763
  %v9966 = vadd.f32 %v9256, %v9768
  %v9967 = vadd.f32 %v9257, %v9773
  %v9968 = vadd.f32 %v9258, %v9778
  %v9969 = vadd.f32 %v9259, %v9783
  %v9970 = vadd.f32 %v9260, %v9788
  %v9971 = vadd.f32 %v9261, %v9793
  %v9972 = vadd.f32 %v9262, %v9798
  %v9973 = vadd.f32 %v9263, %v9803
  %v9974 = vadd.f32 %v9264, %v9808
  %v9975 = vadd.f32 %v9265, %v9813
  %v9976 = vadd.f32 %v9266, %v9818
  %v9977 = vadd.f32 %v9267, %v9823
  %v9978 = vadd.f32 %v9268, %v9828
  %v9979 = vadd.f32 %v9269, %v9833
  %v9980 = vadd.f32 %v9270, %v9838
  %v9981 = vadd.f32 %v9271, %v9843
  %v9982 = vadd.f32 %v9272, %v9848
  %v9983 = vadd.f32 %v9273, %v9853
  %v9984 = vadd.f32 %v9274, %v9858
  %v9985 = vadd.f32 %v9275, %v9863
  %v9986 = vadd.f32 %v9276, %v9868
  %v9987 = vadd.f32 %v9277, %v9873
  %v9988 = vadd.f32 %v9278, %v9878
  %v9989 = vadd.f32 %v9279, %v9883
  %v9990 = vadd.f32 %v9280, %v9888
  %v9991 = vadd.f32 %v9281, %v9893
  %v9992 = vadd.f32 %v9282, %v9898
  %v9993 = vadd.f32 %v9283, %v9903
  %v9994 = vadd.f32 %v9284, %v9908
  %v9995 = vadd.f32 %v9285, %v9913
  %v9996 = vadd.f32 %v9286, %v9918
  %v9997 = vadd.f32 %v9287, %v9923
  %v9998 = vadd.f32 %v9288, %v9928
  %v9999 = vadd.f32 %v9289, %v9933
  %v10000 = vld [vmem:[%s6514 + $0x2] sm:$0xff]
  %v10001 = vld [vmem:[%s6514 + $0xa] sm:$0xff]
  %v10002 = vld [vmem:[%s6514 + $0x1a] sm:$0xff]
  %v10003 = vld [vmem:[%s6514 + $0x22] sm:$0xff]
  %v10004 = vld [vmem:[%s6514 + $0x32] sm:$0xff]
  %v10005 = vld [vmem:[%s6514 + $0x3a] sm:$0xff]
  %v10006 = vld [vmem:[%s6514 + $0x4a] sm:$0xff]
  %v10007 = vld [vmem:[%s6514 + $0x52] sm:$0xff]
  %v10008 = vld [vmem:[%s6514 + $0x62] sm:$0xff]
  %v10009 = vld [vmem:[%s6514 + $0x6a] sm:$0xff]
  %v10010 = vld [vmem:[%s6514 + $0x7a] sm:$0xff]
  %v10011 = vld [vmem:[%s6514 + $0x82] sm:$0xff]
  %v10012 = vld [vmem:[%s6514 + $0x92] sm:$0xff]
  %v10013 = vld [vmem:[%s6514 + $0x9a] sm:$0xff]
  %v10014 = vld [vmem:[%s6514 + $0xaa] sm:$0xff]
  %v10015 = vld [vmem:[%s6514 + $0xb2] sm:$0xff]
  %v10016 = vld [vmem:[%s6514 + $0xc2] sm:$0xff]
  %v10017 = vld [vmem:[%s6514 + $0xca] sm:$0xff]
  %v10018 = vld [vmem:[%s6514 + $0xda] sm:$0xff]
  %v10019 = vld [vmem:[%s6514 + $0xe2] sm:$0xff]
  %v10020 = vld [vmem:[%s6514 + $0xf2] sm:$0xff]
  %v10021 = vld [vmem:[%s6514 + $0xfa] sm:$0xff]
  %v10022 = vld [vmem:[%s6514 + $0x10a] sm:$0xff]
  %v10023 = vld [vmem:[%s6514 + $0x112] sm:$0xff]
  %v10024 = vld [vmem:[%s6514 + $0x122] sm:$0xff]
  %v10025 = vld [vmem:[%s6514 + $0x12a] sm:$0xff]
  %v10026 = vld [vmem:[%s6514 + $0x13a] sm:$0xff]
  %v10027 = vld [vmem:[%s6514 + $0x142] sm:$0xff]
  %v10028 = vld [vmem:[%s6514 + $0x152] sm:$0xff]
  %v10029 = vld [vmem:[%s6514 + $0x15a] sm:$0xff]
  %v10030 = vld [vmem:[%s6514 + $0x16a] sm:$0xff]
  %v10031 = vld [vmem:[%s6514 + $0x172] sm:$0xff]
  %v10032 = vld [vmem:[%s6514 + $0x1b2] sm:$0xff]
  %v10033 = vld [vmem:[%s6514 + $0x1ba] sm:$0xff]
  %v10034 = vld [vmem:[%s6514 + $0x1ca] sm:$0xff]
  %v10035 = vld [vmem:[%s6514 + $0x1d2] sm:$0xff]
  %v10036 = vld [vmem:[%s6514 + $0x1e2] sm:$0xff]
  %v10037 = vld [vmem:[%s6514 + $0x1ea] sm:$0xff]
  %v10038 = vld [vmem:[%s6514 + $0x1fa] sm:$0xff]
  %v10039 = vld [vmem:[%s6514 + $0x202] sm:$0xff]
  %v10040 = vld [vmem:[%s6514 + $0x212] sm:$0xff]
  %v10041 = vld [vmem:[%s6514 + $0x21a] sm:$0xff]
  %v10042 = vld [vmem:[%s6514 + $0x22a] sm:$0xff]
  %v10043 = vld [vmem:[%s6514 + $0x232] sm:$0xff]
  %v10044 = vld [vmem:[%s6514 + $0x242] sm:$0xff]
  %v10045 = vld [vmem:[%s6514 + $0x24a] sm:$0xff]
  %v10046 = vld [vmem:[%s6514 + $0x25a] sm:$0xff]
  %v10047 = vld [vmem:[%s6514 + $0x262] sm:$0xff]
  %v10048 = vld [vmem:[%s6514 + $0x272] sm:$0xff]
  %v10049 = vld [vmem:[%s6514 + $0x27a] sm:$0xff]
  %v10050 = vld [vmem:[%s6514 + $0x28a] sm:$0xff]
  %v10051 = vld [vmem:[%s6514 + $0x292] sm:$0xff]
  %v10052 = vld [vmem:[%s6514 + $0x2a2] sm:$0xff]
  %v10053 = vld [vmem:[%s6514 + $0x2aa] sm:$0xff]
  %v10054 = vld [vmem:[%s6514 + $0x2ba] sm:$0xff]
  %v10055 = vld [vmem:[%s6514 + $0x2c2] sm:$0xff]
  %v10056 = vld [vmem:[%s6514 + $0x2d2] sm:$0xff]
  %v10057 = vld [vmem:[%s6514 + $0x2da] sm:$0xff]
  %v10058 = vld [vmem:[%s6514 + $0x2ea] sm:$0xff]
  %v10059 = vld [vmem:[%s6514 + $0x2f2] sm:$0xff]
  %v10060 = vld [vmem:[%s6514 + $0x302] sm:$0xff]
  %v10061 = vld [vmem:[%s6514 + $0x30a] sm:$0xff]
  %v10062 = vld [vmem:[%s6514 + $0x31a] sm:$0xff]
  %v10063 = vld [vmem:[%s6514 + $0x322] sm:$0xff]
  %s10064 = scalar_lea.vmem %s3, 160
  %v10065 = vld [vmem:[%s10064] sm:$0xff]
  %v10066 = vld [vmem:[%s10064 + $0x8] sm:$0xff]
  %v10067 = vld [vmem:[%s10064 + $0x10] sm:$0xff]
  %v10068 = vld [vmem:[%s10064 + $0x18] sm:$0xff]
  %v10070 = vsel %vm6426, %v10000, 0
  %v10073 = vsel %vm6426, %v10001, 0
  %v10076 = vsel %vm6426, %v10002, 0
  %v10079 = vsel %vm6426, %v10003, 0
  %v10082 = vsel %vm6426, %v10004, 0
  %v10085 = vsel %vm6426, %v10005, 0
  %v10088 = vsel %vm6426, %v10006, 0
  %v10091 = vsel %vm6426, %v10007, 0
  %v10094 = vsel %vm6426, %v10008, 0
  %v10097 = vsel %vm6426, %v10009, 0
  %v10100 = vsel %vm6426, %v10010, 0
  %v10103 = vsel %vm6426, %v10011, 0
  %v10106 = vsel %vm6426, %v10012, 0
  %v10109 = vsel %vm6426, %v10013, 0
  %v10112 = vsel %vm6426, %v10014, 0
  %v10115 = vsel %vm6426, %v10015, 0
  %v10118 = vsel %vm6426, %v10016, 0
  %v10121 = vsel %vm6426, %v10017, 0
  %v10124 = vsel %vm6426, %v10018, 0
  %v10127 = vsel %vm6426, %v10019, 0
  %v10130 = vsel %vm6426, %v10020, 0
  %v10133 = vsel %vm6426, %v10021, 0
  %v10136 = vsel %vm6426, %v10022, 0
  %v10139 = vsel %vm6426, %v10023, 0
  %v10142 = vsel %vm6426, %v10024, 0
  %v10145 = vsel %vm6426, %v10025, 0
  %v10148 = vsel %vm6426, %v10026, 0
  %v10151 = vsel %vm6426, %v10027, 0
  %v10154 = vsel %vm6426, %v10028, 0
  %v10157 = vsel %vm6426, %v10029, 0
  %v10160 = vsel %vm6426, %v10030, 0
  %v10163 = vsel %vm6426, %v10031, 0
  %v10166 = vsel %vm6426, %v10032, 0
  %v10169 = vsel %vm6426, %v10033, 0
  %v10172 = vsel %vm6426, %v10034, 0
  %v10175 = vsel %vm6426, %v10035, 0
  %v10178 = vsel %vm6426, %v10036, 0
  %v10181 = vsel %vm6426, %v10037, 0
  %v10184 = vsel %vm6426, %v10038, 0
  %v10187 = vsel %vm6426, %v10039, 0
  %v10190 = vsel %vm6426, %v10040, 0
  %v10193 = vsel %vm6426, %v10041, 0
  %v10196 = vsel %vm6426, %v10042, 0
  %v10199 = vsel %vm6426, %v10043, 0
  %v10202 = vsel %vm6426, %v10044, 0
  %v10205 = vsel %vm6426, %v10045, 0
  %v10208 = vsel %vm6426, %v10046, 0
  %v10211 = vsel %vm6426, %v10047, 0
  %v10214 = vsel %vm6426, %v10048, 0
  %v10217 = vsel %vm6426, %v10049, 0
  %v10220 = vsel %vm6426, %v10050, 0
  %v10223 = vsel %vm6426, %v10051, 0
  %v10226 = vsel %vm6426, %v10052, 0
  %v10229 = vsel %vm6426, %v10053, 0
  %v10232 = vsel %vm6426, %v10054, 0
  %v10235 = vsel %vm6426, %v10055, 0
  %v10238 = vsel %vm6426, %v10056, 0
  %v10241 = vsel %vm6426, %v10057, 0
  %v10244 = vsel %vm6426, %v10058, 0
  %v10247 = vsel %vm6426, %v10059, 0
  %v10250 = vsel %vm6426, %v10060, 0
  %v10253 = vsel %vm6426, %v10061, 0
  %v10256 = vsel %vm6426, %v10062, 0
  %v10259 = vsel %vm6426, %v10063, 0
  %10261 = vmatprep.subr.mxu0 0.0
  %10262 = vmatpush1.msra.mxu0 %v10065
  %10263 = vmatprep.subr.mxu0 0.0
  %10264 = vmatpush1.msra.mxu0 %v10066
  %10265 = vmatprep.subr.mxu0 0.0
  %10266 = vmatpush1.msra.mxu0 %v10067
  %10267 = vmatprep.subr.mxu0 0.0
  %10268 = vmatpush1.msra.mxu0 %v10068
  %10269 = vmatprep.subr.mxu0 0.0
  %10270 = vmatpush1.msra.mxu0 0.0
  %10271 = vmatprep.subr.mxu0 0.0
  %10272 = vmatpush1.msra.mxu0 0.0
  %10273 = vmatprep.subr.mxu0 0.0
  %10274 = vmatpush1.msra.mxu0 0.0
  %10275 = vmatprep.subr.mxu0 0.0
  %10276 = vmatpush1.msra.mxu0 0.0
  %10277 = vmatprep.subr.mxu0 0.0
  %10278 = vmatpush1.msra.mxu0 0.0
  %10279 = vmatprep.subr.mxu0 0.0
  %10280 = vmatpush1.msra.mxu0 0.0
  %10281 = vmatprep.subr.mxu0 0.0
  %10282 = vmatpush1.msra.mxu0 0.0
  %10283 = vmatprep.subr.mxu0 0.0
  %10284 = vmatpush1.msra.mxu0 0.0
  %10285 = vmatprep.subr.mxu0 0.0
  %10286 = vmatpush1.msra.mxu0 0.0
  %10287 = vmatprep.subr.mxu0 0.0
  %10288 = vmatpush1.msra.mxu0 0.0
  %10289 = vmatprep.subr.mxu0 0.0
  %10290 = vmatpush1.msra.mxu0 0.0
  %10291 = vmatprep.subr.mxu0 0.0
  %10292 = vmatpush1.msra.mxu0 0.0
  %10293 = vmatprep.subr.mxu0 0.0
  %10294 = vmatpush1.msra.mxu0 0.0
  %10295 = vmatprep.subr.mxu0 0.0
  %10296 = vmatpush1.msra.mxu0 0.0
  %10297 = vmatprep.subr.mxu0 0.0
  %10298 = vmatpush1.msra.mxu0 0.0
  %10299 = vmatprep.subr.mxu0 0.0
  %10300 = vmatpush1.msra.mxu0 0.0
  %10301 = vmatprep.subr.mxu0 0.0
  %10302 = vmatpush1.msra.mxu0 0.0
  %10303 = vmatprep.subr.mxu0 0.0
  %10304 = vmatpush1.msra.mxu0 0.0
  %10305 = vmatprep.subr.mxu0 0.0
  %10306 = vmatpush1.msra.mxu0 0.0
  %10307 = vmatprep.subr.mxu0 0.0
  %10308 = vmatpush1.msra.mxu0 0.0
  %10309 = vmatprep.subr.mxu0 0.0
  %10310 = vmatpush1.msra.mxu0 0.0
  %10311 = vmatprep.subr.mxu0 0.0
  %10312 = vmatpush1.msra.mxu0 0.0
  %10313 = vmatprep.subr.mxu0 0.0
  %10314 = vmatpush1.msra.mxu0 0.0
  %10315 = vmatprep.subr.mxu0 0.0
  %10316 = vmatpush1.msra.mxu0 0.0
  %10317 = vmatprep.subr.mxu0 0.0
  %10318 = vmatpush1.msra.mxu0 0.0
  %10319 = vmatprep.subr.mxu0 0.0
  %10320 = vmatpush1.msra.mxu0 0.0
  %10321 = vmatprep.subr.mxu0 0.0
  %10322 = vmatpush1.msra.mxu0 0.0
  %10323 = vmatprep.subr.mxu0 0.0
  %10324 = vmatpush1.msra.mxu0 0.0
  %10325 = vmatprep.mubr.f32.mxu0 0.0
  %10326 = vmatmul.mubr.f32.gmra.mrb[0].mxu0 %v10070
  %v10327 = vpop.f32.mrb[0].mxu0
  %v10328 = vadd.f32 0.0, %v10327
  %v10329 = vpop.f32.mrb[0].mxu0
  %10330 = vmatprep.mubr.f32.mxu0 0.0
  %10331 = vmatmul.mubr.f32.gmra.mrb[0].mxu0 %v10073
  %v10332 = vpop.f32.mrb[0].mxu0
  %v10333 = vadd.f32 0.0, %v10332
  %v10334 = vpop.f32.mrb[0].mxu0
  %10335 = vmatprep.mubr.f32.mxu0 0.0
  %10336 = vmatmul.mubr.f32.gmra.mrb[0].mxu0 %v10076
  %v10337 = vpop.f32.mrb[0].mxu0
  %v10338 = vadd.f32 0.0, %v10337
  %v10339 = vpop.f32.mrb[0].mxu0
  %10340 = vmatprep.mubr.f32.mxu0 0.0
  %10341 = vmatmul.mubr.f32.gmra.mrb[0].mxu0 %v10079
  %v10342 = vpop.f32.mrb[0].mxu0
  %v10343 = vadd.f32 0.0, %v10342
  %v10344 = vpop.f32.mrb[0].mxu0
  %10345 = vmatprep.mubr.f32.mxu0 0.0
  %10346 = vmatmul.mubr.f32.gmra.mrb[0].mxu0 %v10082
  %v10347 = vpop.f32.mrb[0].mxu0
  %v10348 = vadd.f32 0.0, %v10347
  %v10349 = vpop.f32.mrb[0].mxu0
  %10350 = vmatprep.mubr.f32.mxu0 0.0
  %10351 = vmatmul.mubr.f32.gmra.mrb[0].mxu0 %v10085
  %v10352 = vpop.f32.mrb[0].mxu0
  %v10353 = vadd.f32 0.0, %v10352
  %v10354 = vpop.f32.mrb[0].mxu0
  %10355 = vmatprep.mubr.f32.mxu0 0.0
  %10356 = vmatmul.mubr.f32.gmra.mrb[0].mxu0 %v10088
  %v10357 = vpop.f32.mrb[0].mxu0
  %v10358 = vadd.f32 0.0, %v10357
  %v10359 = vpop.f32.mrb[0].mxu0
  %10360 = vmatprep.mubr.f32.mxu0 0.0
  %10361 = vmatmul.mubr.f32.gmra.mrb[0].mxu0 %v10091
  %v10362 = vpop.f32.mrb[0].mxu0
  %v10363 = vadd.f32 0.0, %v10362
  %v10364 = vpop.f32.mrb[0].mxu0
  %10365 = vmatprep.mubr.f32.mxu0 0.0
  %10366 = vmatmul.mubr.f32.gmra.mrb[0].mxu0 %v10094
  %v10367 = vpop.f32.mrb[0].mxu0
  %v10368 = vadd.f32 0.0, %v10367
  %v10369 = vpop.f32.mrb[0].mxu0
  %10370 = vmatprep.mubr.f32.mxu0 0.0
  %10371 = vmatmul.mubr.f32.gmra.mrb[0].mxu0 %v10097
  %v10372 = vpop.f32.mrb[0].mxu0
  %v10373 = vadd.f32 0.0, %v10372
  %v10374 = vpop.f32.mrb[0].mxu0
  %10375 = vmatprep.mubr.f32.mxu0 0.0
  %10376 = vmatmul.mubr.f32.gmra.mrb[0].mxu0 %v10100
  %v10377 = vpop.f32.mrb[0].mxu0
  %v10378 = vadd.f32 0.0, %v10377
  %v10379 = vpop.f32.mrb[0].mxu0
  %10380 = vmatprep.mubr.f32.mxu0 0.0
  %10381 = vmatmul.mubr.f32.gmra.mrb[0].mxu0 %v10103
  %v10382 = vpop.f32.mrb[0].mxu0
  %v10383 = vadd.f32 0.0, %v10382
  %v10384 = vpop.f32.mrb[0].mxu0
  %10385 = vmatprep.mubr.f32.mxu0 0.0
  %10386 = vmatmul.mubr.f32.gmra.mrb[0].mxu0 %v10106
  %v10387 = vpop.f32.mrb[0].mxu0
  %v10388 = vadd.f32 0.0, %v10387
  %v10389 = vpop.f32.mrb[0].mxu0
  %10390 = vmatprep.mubr.f32.mxu0 0.0
  %10391 = vmatmul.mubr.f32.gmra.mrb[0].mxu0 %v10109
  %v10392 = vpop.f32.mrb[0].mxu0
  %v10393 = vadd.f32 0.0, %v10392
  %v10394 = vpop.f32.mrb[0].mxu0
  %10395 = vmatprep.mubr.f32.mxu0 0.0
  %10396 = vmatmul.mubr.f32.gmra.mrb[0].mxu0 %v10112
  %v10397 = vpop.f32.mrb[0].mxu0
  %v10398 = vadd.f32 0.0, %v10397
  %v10399 = vpop.f32.mrb[0].mxu0
  %10400 = vmatprep.mubr.f32.mxu0 0.0
  %10401 = vmatmul.mubr.f32.gmra.mrb[0].mxu0 %v10115
  %v10402 = vpop.f32.mrb[0].mxu0
  %v10403 = vadd.f32 0.0, %v10402
  %v10404 = vpop.f32.mrb[0].mxu0
  %10405 = vmatprep.mubr.f32.mxu0 0.0
  %10406 = vmatmul.mubr.f32.gmra.mrb[0].mxu0 %v10118
  %v10407 = vpop.f32.mrb[0].mxu0
  %v10408 = vadd.f32 0.0, %v10407
  %v10409 = vpop.f32.mrb[0].mxu0
  %10410 = vmatprep.mubr.f32.mxu0 0.0
  %10411 = vmatmul.mubr.f32.gmra.mrb[0].mxu0 %v10121
  %v10412 = vpop.f32.mrb[0].mxu0
  %v10413 = vadd.f32 0.0, %v10412
  %v10414 = vpop.f32.mrb[0].mxu0
  %10415 = vmatprep.mubr.f32.mxu0 0.0
  %10416 = vmatmul.mubr.f32.gmra.mrb[0].mxu0 %v10124
  %v10417 = vpop.f32.mrb[0].mxu0
  %v10418 = vadd.f32 0.0, %v10417
  %v10419 = vpop.f32.mrb[0].mxu0
  %10420 = vmatprep.mubr.f32.mxu0 0.0
  %10421 = vmatmul.mubr.f32.gmra.mrb[0].mxu0 %v10127
  %v10422 = vpop.f32.mrb[0].mxu0
  %v10423 = vadd.f32 0.0, %v10422
  %v10424 = vpop.f32.mrb[0].mxu0
  %10425 = vmatprep.mubr.f32.mxu0 0.0
  %10426 = vmatmul.mubr.f32.gmra.mrb[0].mxu0 %v10130
  %v10427 = vpop.f32.mrb[0].mxu0
  %v10428 = vadd.f32 0.0, %v10427
  %v10429 = vpop.f32.mrb[0].mxu0
  %10430 = vmatprep.mubr.f32.mxu0 0.0
  %10431 = vmatmul.mubr.f32.gmra.mrb[0].mxu0 %v10133
  %v10432 = vpop.f32.mrb[0].mxu0
  %v10433 = vadd.f32 0.0, %v10432
  %v10434 = vpop.f32.mrb[0].mxu0
  %10435 = vmatprep.mubr.f32.mxu0 0.0
  %10436 = vmatmul.mubr.f32.gmra.mrb[0].mxu0 %v10136
  %v10437 = vpop.f32.mrb[0].mxu0
  %v10438 = vadd.f32 0.0, %v10437
  %v10439 = vpop.f32.mrb[0].mxu0
  %10440 = vmatprep.mubr.f32.mxu0 0.0
  %10441 = vmatmul.mubr.f32.gmra.mrb[0].mxu0 %v10139
  %v10442 = vpop.f32.mrb[0].mxu0
  %v10443 = vadd.f32 0.0, %v10442
  %v10444 = vpop.f32.mrb[0].mxu0
  %10445 = vmatprep.mubr.f32.mxu0 0.0
  %10446 = vmatmul.mubr.f32.gmra.mrb[0].mxu0 %v10142
  %v10447 = vpop.f32.mrb[0].mxu0
  %v10448 = vadd.f32 0.0, %v10447
  %v10449 = vpop.f32.mrb[0].mxu0
  %10450 = vmatprep.mubr.f32.mxu0 0.0
  %10451 = vmatmul.mubr.f32.gmra.mrb[0].mxu0 %v10145
  %v10452 = vpop.f32.mrb[0].mxu0
  %v10453 = vadd.f32 0.0, %v10452
  %v10454 = vpop.f32.mrb[0].mxu0
  %10455 = vmatprep.mubr.f32.mxu0 0.0
  %10456 = vmatmul.mubr.f32.gmra.mrb[0].mxu0 %v10148
  %v10457 = vpop.f32.mrb[0].mxu0
  %v10458 = vadd.f32 0.0, %v10457
  %v10459 = vpop.f32.mrb[0].mxu0
  %10460 = vmatprep.mubr.f32.mxu0 0.0
  %10461 = vmatmul.mubr.f32.gmra.mrb[0].mxu0 %v10151
  %v10462 = vpop.f32.mrb[0].mxu0
  %v10463 = vadd.f32 0.0, %v10462
  %v10464 = vpop.f32.mrb[0].mxu0
  %10465 = vmatprep.mubr.f32.mxu0 0.0
  %10466 = vmatmul.mubr.f32.gmra.mrb[0].mxu0 %v10154
  %v10467 = vpop.f32.mrb[0].mxu0
  %v10468 = vadd.f32 0.0, %v10467
  %v10469 = vpop.f32.mrb[0].mxu0
  %10470 = vmatprep.mubr.f32.mxu0 0.0
  %10471 = vmatmul.mubr.f32.gmra.mrb[0].mxu0 %v10157
  %v10472 = vpop.f32.mrb[0].mxu0
  %v10473 = vadd.f32 0.0, %v10472
  %v10474 = vpop.f32.mrb[0].mxu0
  %10475 = vmatprep.mubr.f32.mxu0 0.0
  %10476 = vmatmul.mubr.f32.gmra.mrb[0].mxu0 %v10160
  %v10477 = vpop.f32.mrb[0].mxu0
  %v10478 = vadd.f32 0.0, %v10477
  %v10479 = vpop.f32.mrb[0].mxu0
  %10480 = vmatprep.mubr.f32.mxu0 0.0
  %10481 = vmatmul.mubr.f32.gmra.mrb[0].mxu0 %v10163
  %v10482 = vpop.f32.mrb[0].mxu0
  %v10483 = vadd.f32 0.0, %v10482
  %v10484 = vpop.f32.mrb[0].mxu0
  %10485 = vmatprep.mubr.f32.mxu0 0.0
  %10486 = vmatmul.mubr.f32.gmra.mrb[0].mxu0 %v10166
  %v10487 = vpop.f32.mrb[0].mxu0
  %v10488 = vadd.f32 0.0, %v10487
  %v10489 = vpop.f32.mrb[0].mxu0
  %10490 = vmatprep.mubr.f32.mxu0 0.0
  %10491 = vmatmul.mubr.f32.gmra.mrb[0].mxu0 %v10169
  %v10492 = vpop.f32.mrb[0].mxu0
  %v10493 = vadd.f32 0.0, %v10492
  %v10494 = vpop.f32.mrb[0].mxu0
  %10495 = vmatprep.mubr.f32.mxu0 0.0
  %10496 = vmatmul.mubr.f32.gmra.mrb[0].mxu0 %v10172
  %v10497 = vpop.f32.mrb[0].mxu0
  %v10498 = vadd.f32 0.0, %v10497
  %v10499 = vpop.f32.mrb[0].mxu0
  %10500 = vmatprep.mubr.f32.mxu0 0.0
  %10501 = vmatmul.mubr.f32.gmra.mrb[0].mxu0 %v10175
  %v10502 = vpop.f32.mrb[0].mxu0
  %v10503 = vadd.f32 0.0, %v10502
  %v10504 = vpop.f32.mrb[0].mxu0
  %10505 = vmatprep.mubr.f32.mxu0 0.0
  %10506 = vmatmul.mubr.f32.gmra.mrb[0].mxu0 %v10178
  %v10507 = vpop.f32.mrb[0].mxu0
  %v10508 = vadd.f32 0.0, %v10507
  %v10509 = vpop.f32.mrb[0].mxu0
  %10510 = vmatprep.mubr.f32.mxu0 0.0
  %10511 = vmatmul.mubr.f32.gmra.mrb[0].mxu0 %v10181
  %v10512 = vpop.f32.mrb[0].mxu0
  %v10513 = vadd.f32 0.0, %v10512
  %v10514 = vpop.f32.mrb[0].mxu0
  %10515 = vmatprep.mubr.f32.mxu0 0.0
  %10516 = vmatmul.mubr.f32.gmra.mrb[0].mxu0 %v10184
  %v10517 = vpop.f32.mrb[0].mxu0
  %v10518 = vadd.f32 0.0, %v10517
  %v10519 = vpop.f32.mrb[0].mxu0
  %10520 = vmatprep.mubr.f32.mxu0 0.0
  %10521 = vmatmul.mubr.f32.gmra.mrb[0].mxu0 %v10187
  %v10522 = vpop.f32.mrb[0].mxu0
  %v10523 = vadd.f32 0.0, %v10522
  %v10524 = vpop.f32.mrb[0].mxu0
  %10525 = vmatprep.mubr.f32.mxu0 0.0
  %10526 = vmatmul.mubr.f32.gmra.mrb[0].mxu0 %v10190
  %v10527 = vpop.f32.mrb[0].mxu0
  %v10528 = vadd.f32 0.0, %v10527
  %v10529 = vpop.f32.mrb[0].mxu0
  %10530 = vmatprep.mubr.f32.mxu0 0.0
  %10531 = vmatmul.mubr.f32.gmra.mrb[0].mxu0 %v10193
  %v10532 = vpop.f32.mrb[0].mxu0
  %v10533 = vadd.f32 0.0, %v10532
  %v10534 = vpop.f32.mrb[0].mxu0
  %10535 = vmatprep.mubr.f32.mxu0 0.0
  %10536 = vmatmul.mubr.f32.gmra.mrb[0].mxu0 %v10196
  %v10537 = vpop.f32.mrb[0].mxu0
  %v10538 = vadd.f32 0.0, %v10537
  %v10539 = vpop.f32.mrb[0].mxu0
  %10540 = vmatprep.mubr.f32.mxu0 0.0
  %10541 = vmatmul.mubr.f32.gmra.mrb[0].mxu0 %v10199
  %v10542 = vpop.f32.mrb[0].mxu0
  %v10543 = vadd.f32 0.0, %v10542
  %v10544 = vpop.f32.mrb[0].mxu0
  %10545 = vmatprep.mubr.f32.mxu0 0.0
  %10546 = vmatmul.mubr.f32.gmra.mrb[0].mxu0 %v10202
  %v10547 = vpop.f32.mrb[0].mxu0
  %v10548 = vadd.f32 0.0, %v10547
  %v10549 = vpop.f32.mrb[0].mxu0
  %10550 = vmatprep.mubr.f32.mxu0 0.0
  %10551 = vmatmul.mubr.f32.gmra.mrb[0].mxu0 %v10205
  %v10552 = vpop.f32.mrb[0].mxu0
  %v10553 = vadd.f32 0.0, %v10552
  %v10554 = vpop.f32.mrb[0].mxu0
  %10555 = vmatprep.mubr.f32.mxu0 0.0
  %10556 = vmatmul.mubr.f32.gmra.mrb[0].mxu0 %v10208
  %v10557 = vpop.f32.mrb[0].mxu0
  %v10558 = vadd.f32 0.0, %v10557
  %v10559 = vpop.f32.mrb[0].mxu0
  %10560 = vmatprep.mubr.f32.mxu0 0.0
  %10561 = vmatmul.mubr.f32.gmra.mrb[0].mxu0 %v10211
  %v10562 = vpop.f32.mrb[0].mxu0
  %v10563 = vadd.f32 0.0, %v10562
  %v10564 = vpop.f32.mrb[0].mxu0
  %10565 = vmatprep.mubr.f32.mxu0 0.0
  %10566 = vmatmul.mubr.f32.gmra.mrb[0].mxu0 %v10214
  %v10567 = vpop.f32.mrb[0].mxu0
  %v10568 = vadd.f32 0.0, %v10567
  %v10569 = vpop.f32.mrb[0].mxu0
  %10570 = vmatprep.mubr.f32.mxu0 0.0
  %10571 = vmatmul.mubr.f32.gmra.mrb[0].mxu0 %v10217
  %v10572 = vpop.f32.mrb[0].mxu0
  %v10573 = vadd.f32 0.0, %v10572
  %v10574 = vpop.f32.mrb[0].mxu0
  %10575 = vmatprep.mubr.f32.mxu0 0.0
  %10576 = vmatmul.mubr.f32.gmra.mrb[0].mxu0 %v10220
  %v10577 = vpop.f32.mrb[0].mxu0
  %v10578 = vadd.f32 0.0, %v10577
  %v10579 = vpop.f32.mrb[0].mxu0
  %10580 = vmatprep.mubr.f32.mxu0 0.0
  %10581 = vmatmul.mubr.f32.gmra.mrb[0].mxu0 %v10223
  %v10582 = vpop.f32.mrb[0].mxu0
  %v10583 = vadd.f32 0.0, %v10582
  %v10584 = vpop.f32.mrb[0].mxu0
  %10585 = vmatprep.mubr.f32.mxu0 0.0
  %10586 = vmatmul.mubr.f32.gmra.mrb[0].mxu0 %v10226
  %v10587 = vpop.f32.mrb[0].mxu0
  %v10588 = vadd.f32 0.0, %v10587
  %v10589 = vpop.f32.mrb[0].mxu0
  %10590 = vmatprep.mubr.f32.mxu0 0.0
  %10591 = vmatmul.mubr.f32.gmra.mrb[0].mxu0 %v10229
  %v10592 = vpop.f32.mrb[0].mxu0
  %v10593 = vadd.f32 0.0, %v10592
  %v10594 = vpop.f32.mrb[0].mxu0
  %10595 = vmatprep.mubr.f32.mxu0 0.0
  %10596 = vmatmul.mubr.f32.gmra.mrb[0].mxu0 %v10232
  %v10597 = vpop.f32.mrb[0].mxu0
  %v10598 = vadd.f32 0.0, %v10597
  %v10599 = vpop.f32.mrb[0].mxu0
  %10600 = vmatprep.mubr.f32.mxu0 0.0
  %10601 = vmatmul.mubr.f32.gmra.mrb[0].mxu0 %v10235
  %v10602 = vpop.f32.mrb[0].mxu0
  %v10603 = vadd.f32 0.0, %v10602
  %v10604 = vpop.f32.mrb[0].mxu0
  %10605 = vmatprep.mubr.f32.mxu0 0.0
  %10606 = vmatmul.mubr.f32.gmra.mrb[0].mxu0 %v10238
  %v10607 = vpop.f32.mrb[0].mxu0
  %v10608 = vadd.f32 0.0, %v10607
  %v10609 = vpop.f32.mrb[0].mxu0
  %10610 = vmatprep.mubr.f32.mxu0 0.0
  %10611 = vmatmul.mubr.f32.gmra.mrb[0].mxu0 %v10241
  %v10612 = vpop.f32.mrb[0].mxu0
  %v10613 = vadd.f32 0.0, %v10612
  %v10614 = vpop.f32.mrb[0].mxu0
  %10615 = vmatprep.mubr.f32.mxu0 0.0
  %10616 = vmatmul.mubr.f32.gmra.mrb[0].mxu0 %v10244
  %v10617 = vpop.f32.mrb[0].mxu0
  %v10618 = vadd.f32 0.0, %v10617
  %v10619 = vpop.f32.mrb[0].mxu0
  %10620 = vmatprep.mubr.f32.mxu0 0.0
  %10621 = vmatmul.mubr.f32.gmra.mrb[0].mxu0 %v10247
  %v10622 = vpop.f32.mrb[0].mxu0
  %v10623 = vadd.f32 0.0, %v10622
  %v10624 = vpop.f32.mrb[0].mxu0
  %10625 = vmatprep.mubr.f32.mxu0 0.0
  %10626 = vmatmul.mubr.f32.gmra.mrb[0].mxu0 %v10250
  %v10627 = vpop.f32.mrb[0].mxu0
  %v10628 = vadd.f32 0.0, %v10627
  %v10629 = vpop.f32.mrb[0].mxu0
  %10630 = vmatprep.mubr.f32.mxu0 0.0
  %10631 = vmatmul.mubr.f32.gmra.mrb[0].mxu0 %v10253
  %v10632 = vpop.f32.mrb[0].mxu0
  %v10633 = vadd.f32 0.0, %v10632
  %v10634 = vpop.f32.mrb[0].mxu0
  %10635 = vmatprep.mubr.f32.mxu0 0.0
  %10636 = vmatmul.mubr.f32.gmra.mrb[0].mxu0 %v10256
  %v10637 = vpop.f32.mrb[0].mxu0
  %v10638 = vadd.f32 0.0, %v10637
  %v10639 = vpop.f32.mrb[0].mxu0
  %10640 = vmatprep.mubr.f32.mxu0 0.0
  %10641 = vmatmul.mubr.f32.gmra.mrb[0].mxu0 %v10259
  %v10642 = vpop.f32.mrb[0].mxu0
  %v10643 = vadd.f32 0.0, %v10642
  %v10644 = vpop.f32.mrb[0].mxu0
  %10645 = vdwg.mxu0
  %v10646 = vadd.f32 %v9936, %v10328
  %v10647 = vadd.f32 %v9937, %v10333
  %v10648 = vadd.f32 %v9938, %v10338
  %v10649 = vadd.f32 %v9939, %v10343
  %v10650 = vadd.f32 %v9940, %v10348
  %v10651 = vadd.f32 %v9941, %v10353
  %v10652 = vadd.f32 %v9942, %v10358
  %v10653 = vadd.f32 %v9943, %v10363
  %v10654 = vadd.f32 %v9944, %v10368
  %v10655 = vadd.f32 %v9945, %v10373
  %v10656 = vadd.f32 %v9946, %v10378
  %v10657 = vadd.f32 %v9947, %v10383
  %v10658 = vadd.f32 %v9948, %v10388
  %v10659 = vadd.f32 %v9949, %v10393
  %v10660 = vadd.f32 %v9950, %v10398
  %v10661 = vadd.f32 %v9951, %v10403
  %v10662 = vadd.f32 %v9952, %v10408
  %v10663 = vadd.f32 %v9953, %v10413
  %v10664 = vadd.f32 %v9954, %v10418
  %v10665 = vadd.f32 %v9955, %v10423
  %v10666 = vadd.f32 %v9956, %v10428
  %v10667 = vadd.f32 %v9957, %v10433
  %v10668 = vadd.f32 %v9958, %v10438
  %v10669 = vadd.f32 %v9959, %v10443
  %v10670 = vadd.f32 %v9960, %v10448
  %v10671 = vadd.f32 %v9961, %v10453
  %v10672 = vadd.f32 %v9962, %v10458
  %v10673 = vadd.f32 %v9963, %v10463
  %v10674 = vadd.f32 %v9964, %v10468
  %v10675 = vadd.f32 %v9965, %v10473
  %v10676 = vadd.f32 %v9966, %v10478
  %v10677 = vadd.f32 %v9967, %v10483
  %v10678 = vadd.f32 %v9968, %v10488
  %v10679 = vadd.f32 %v9969, %v10493
  %v10680 = vadd.f32 %v9970, %v10498
  %v10681 = vadd.f32 %v9971, %v10503
  %v10682 = vadd.f32 %v9972, %v10508
  %v10683 = vadd.f32 %v9973, %v10513
  %v10684 = vadd.f32 %v9974, %v10518
  %v10685 = vadd.f32 %v9975, %v10523
  %v10686 = vadd.f32 %v9976, %v10528
  %v10687 = vadd.f32 %v9977, %v10533
  %v10688 = vadd.f32 %v9978, %v10538
  %v10689 = vadd.f32 %v9979, %v10543
  %v10690 = vadd.f32 %v9980, %v10548
  %v10691 = vadd.f32 %v9981, %v10553
  %v10692 = vadd.f32 %v9982, %v10558
  %v10693 = vadd.f32 %v9983, %v10563
  %v10694 = vadd.f32 %v9984, %v10568
  %v10695 = vadd.f32 %v9985, %v10573
  %v10696 = vadd.f32 %v9986, %v10578
  %v10697 = vadd.f32 %v9987, %v10583
  %v10698 = vadd.f32 %v9988, %v10588
  %v10699 = vadd.f32 %v9989, %v10593
  %v10700 = vadd.f32 %v9990, %v10598
  %v10701 = vadd.f32 %v9991, %v10603
  %v10702 = vadd.f32 %v9992, %v10608
  %v10703 = vadd.f32 %v9993, %v10613
  %v10704 = vadd.f32 %v9994, %v10618
  %v10705 = vadd.f32 %v9995, %v10623
  %v10706 = vadd.f32 %v9996, %v10628
  %v10707 = vadd.f32 %v9997, %v10633
  %v10708 = vadd.f32 %v9998, %v10638
  %v10709 = vadd.f32 %v9999, %v10643
  %s10710 = scalar_lea.vmem [#allocation2], 48
  %v10711 = vld [vmem:[%s10710] sm:$0xff]
  %v10712 = vld [vmem:[%s10710 + $0x8] sm:$0xff]
  %v10713 = vld [vmem:[%s10710 + $0x18] sm:$0xff]
  %v10714 = vld [vmem:[%s10710 + $0x20] sm:$0xff]
  %v10715 = vld [vmem:[%s10710 + $0x30] sm:$0xff]
  %v10716 = vld [vmem:[%s10710 + $0x38] sm:$0xff]
  %v10717 = vld [vmem:[%s10710 + $0x48] sm:$0xff]
  %v10718 = vld [vmem:[%s10710 + $0x50] sm:$0xff]
  %v10719 = vld [vmem:[%s10710 + $0x60] sm:$0xff]
  %v10720 = vld [vmem:[%s10710 + $0x68] sm:$0xff]
  %v10721 = vld [vmem:[%s10710 + $0x78] sm:$0xff]
  %v10722 = vld [vmem:[%s10710 + $0x80] sm:$0xff]
  %v10723 = vld [vmem:[%s10710 + $0x90] sm:$0xff]
  %v10724 = vld [vmem:[%s10710 + $0x98] sm:$0xff]
  %v10725 = vld [vmem:[%s10710 + $0xa8] sm:$0xff]
  %v10726 = vld [vmem:[%s10710 + $0xb0] sm:$0xff]
  %v10727 = vld [vmem:[%s10710 + $0xc0] sm:$0xff]
  %v10728 = vld [vmem:[%s10710 + $0xc8] sm:$0xff]
  %v10729 = vld [vmem:[%s10710 + $0xd8] sm:$0xff]
  %v10730 = vld [vmem:[%s10710 + $0xe0] sm:$0xff]
  %v10731 = vld [vmem:[%s10710 + $0xf0] sm:$0xff]
  %v10732 = vld [vmem:[%s10710 + $0xf8] sm:$0xff]
  %v10733 = vld [vmem:[%s10710 + $0x108] sm:$0xff]
  %v10734 = vld [vmem:[%s10710 + $0x110] sm:$0xff]
  %v10735 = vld [vmem:[%s10710 + $0x120] sm:$0xff]
  %v10736 = vld [vmem:[%s10710 + $0x128] sm:$0xff]
  %v10737 = vld [vmem:[%s10710 + $0x138] sm:$0xff]
  %v10738 = vld [vmem:[%s10710 + $0x140] sm:$0xff]
  %v10739 = vld [vmem:[%s10710 + $0x150] sm:$0xff]
  %v10740 = vld [vmem:[%s10710 + $0x158] sm:$0xff]
  %v10741 = vld [vmem:[%s10710 + $0x168] sm:$0xff]
  %v10742 = vld [vmem:[%s10710 + $0x170] sm:$0xff]
  %v10743 = vld [vmem:[%s10710 + $0x1b0] sm:$0xff]
  %v10744 = vld [vmem:[%s10710 + $0x1b8] sm:$0xff]
  %v10745 = vld [vmem:[%s10710 + $0x1c8] sm:$0xff]
  %v10746 = vld [vmem:[%s10710 + $0x1d0] sm:$0xff]
  %v10747 = vld [vmem:[%s10710 + $0x1e0] sm:$0xff]
  %v10748 = vld [vmem:[%s10710 + $0x1e8] sm:$0xff]
  %v10749 = vld [vmem:[%s10710 + $0x1f8] sm:$0xff]
  %v10750 = vld [vmem:[%s10710 + $0x200] sm:$0xff]
  %v10751 = vld [vmem:[%s10710 + $0x210] sm:$0xff]
  %v10752 = vld [vmem:[%s10710 + $0x218] sm:$0xff]
  %v10753 = vld [vmem:[%s10710 + $0x228] sm:$0xff]
  %v10754 = vld [vmem:[%s10710 + $0x230] sm:$0xff]
  %v10755 = vld [vmem:[%s10710 + $0x240] sm:$0xff]
  %v10756 = vld [vmem:[%s10710 + $0x248] sm:$0xff]
  %v10757 = vld [vmem:[%s10710 + $0x258] sm:$0xff]
  %v10758 = vld [vmem:[%s10710 + $0x260] sm:$0xff]
  %v10759 = vld [vmem:[%s10710 + $0x270] sm:$0xff]
  %v10760 = vld [vmem:[%s10710 + $0x278] sm:$0xff]
  %v10761 = vld [vmem:[%s10710 + $0x288] sm:$0xff]
  %v10762 = vld [vmem:[%s10710 + $0x290] sm:$0xff]
  %v10763 = vld [vmem:[%s10710 + $0x2a0] sm:$0xff]
  %v10764 = vld [vmem:[%s10710 + $0x2a8] sm:$0xff]
  %v10765 = vld [vmem:[%s10710 + $0x2b8] sm:$0xff]
  %v10766 = vld [vmem:[%s10710 + $0x2c0] sm:$0xff]
  %v10767 = vld [vmem:[%s10710 + $0x2d0] sm:$0xff]
  %v10768 = vld [vmem:[%s10710 + $0x2d8] sm:$0xff]
  %v10769 = vld [vmem:[%s10710 + $0x2e8] sm:$0xff]
  %v10770 = vld [vmem:[%s10710 + $0x2f0] sm:$0xff]
  %v10771 = vld [vmem:[%s10710 + $0x300] sm:$0xff]
  %v10772 = vld [vmem:[%s10710 + $0x308] sm:$0xff]
  %v10773 = vld [vmem:[%s10710 + $0x318] sm:$0xff]
  %v10774 = vld [vmem:[%s10710 + $0x320] sm:$0xff]
  %s10775 = scalar_lea.vmem %s3, 192
  %v10776 = vld [vmem:[%s10775] sm:$0xff]
  %v10777 = vld [vmem:[%s10775 + $0x8] sm:$0xff]
  %v10778 = vld [vmem:[%s10775 + $0x10] sm:$0xff]
  %v10779 = vld [vmem:[%s10775 + $0x18] sm:$0xff]
  %v10781 = vsel %vm6426, %v10711, 0
  %v10784 = vsel %vm6426, %v10712, 0
  %v10787 = vsel %vm6426, %v10713, 0
  %v10790 = vsel %vm6426, %v10714, 0
  %v10793 = vsel %vm6426, %v10715, 0
  %v10796 = vsel %vm6426, %v10716, 0
  %v10799 = vsel %vm6426, %v10717, 0
  %v10802 = vsel %vm6426, %v10718, 0
  %v10805 = vsel %vm6426, %v10719, 0
  %v10808 = vsel %vm6426, %v10720, 0
  %v10811 = vsel %vm6426, %v10721, 0
  %v10814 = vsel %vm6426, %v10722, 0
  %v10817 = vsel %vm6426, %v10723, 0
  %v10820 = vsel %vm6426, %v10724, 0
  %v10823 = vsel %vm6426, %v10725, 0
  %v10826 = vsel %vm6426, %v10726, 0
  %v10829 = vsel %vm6426, %v10727, 0
  %v10832 = vsel %vm6426, %v10728, 0
  %v10835 = vsel %vm6426, %v10729, 0
  %v10838 = vsel %vm6426, %v10730, 0
  %v10841 = vsel %vm6426, %v10731, 0
  %v10844 = vsel %vm6426, %v10732, 0
  %v10847 = vsel %vm6426, %v10733, 0
  %v10850 = vsel %vm6426, %v10734, 0
  %v10853 = vsel %vm6426, %v10735, 0
  %v10856 = vsel %vm6426, %v10736, 0
  %v10859 = vsel %vm6426, %v10737, 0
  %v10862 = vsel %vm6426, %v10738, 0
  %v10865 = vsel %vm6426, %v10739, 0
  %v10868 = vsel %vm6426, %v10740, 0
  %v10871 = vsel %vm6426, %v10741, 0
  %v10874 = vsel %vm6426, %v10742, 0
  %v10877 = vsel %vm6426, %v10743, 0
  %v10880 = vsel %vm6426, %v10744, 0
  %v10883 = vsel %vm6426, %v10745, 0
  %v10886 = vsel %vm6426, %v10746, 0
  %v10889 = vsel %vm6426, %v10747, 0
  %v10892 = vsel %vm6426, %v10748, 0
  %v10895 = vsel %vm6426, %v10749, 0
  %v10898 = vsel %vm6426, %v10750, 0
  %v10901 = vsel %vm6426, %v10751, 0
  %v10904 = vsel %vm6426, %v10752, 0
  %v10907 = vsel %vm6426, %v10753, 0
  %v10910 = vsel %vm6426, %v10754, 0
  %v10913 = vsel %vm6426, %v10755, 0
  %v10916 = vsel %vm6426, %v10756, 0
  %v10919 = vsel %vm6426, %v10757, 0
  %v10922 = vsel %vm6426, %v10758, 0
  %v10925 = vsel %vm6426, %v10759, 0
  %v10928 = vsel %vm6426, %v10760, 0
  %v10931 = vsel %vm6426, %v10761, 0
  %v10934 = vsel %vm6426, %v10762, 0
  %v10937 = vsel %vm6426, %v10763, 0
  %v10940 = vsel %vm6426, %v10764, 0
  %v10943 = vsel %vm6426, %v10765, 0
  %v10946 = vsel %vm6426, %v10766, 0
  %v10949 = vsel %vm6426, %v10767, 0
  %v10952 = vsel %vm6426, %v10768, 0
  %v10955 = vsel %vm6426, %v10769, 0
  %v10958 = vsel %vm6426, %v10770, 0
  %v10961 = vsel %vm6426, %v10771, 0
  %v10964 = vsel %vm6426, %v10772, 0
  %v10967 = vsel %vm6426, %v10773, 0
  %v10970 = vsel %vm6426, %v10774, 0
  %10972 = vmatprep.subr.mxu0 0.0
  %10973 = vmatpush1.msra.mxu0 %v10776
  %10974 = vmatprep.subr.mxu0 0.0
  %10975 = vmatpush1.msra.mxu0 %v10777
  %10976 = vmatprep.subr.mxu0 0.0
  %10977 = vmatpush1.msra.mxu0 %v10778
  %10978 = vmatprep.subr.mxu0 0.0
  %10979 = vmatpush1.msra.mxu0 %v10779
  %10980 = vmatprep.subr.mxu0 0.0
  %10981 = vmatpush1.msra.mxu0 0.0
  %10982 = vmatprep.subr.mxu0 0.0
  %10983 = vmatpush1.msra.mxu0 0.0
  %10984 = vmatprep.subr.mxu0 0.0
  %10985 = vmatpush1.msra.mxu0 0.0
  %10986 = vmatprep.subr.mxu0 0.0
  %10987 = vmatpush1.msra.mxu0 0.0
  %10988 = vmatprep.subr.mxu0 0.0
  %10989 = vmatpush1.msra.mxu0 0.0
  %10990 = vmatprep.subr.mxu0 0.0
  %10991 = vmatpush1.msra.mxu0 0.0
  %10992 = vmatprep.subr.mxu0 0.0
  %10993 = vmatpush1.msra.mxu0 0.0
  %10994 = vmatprep.subr.mxu0 0.0
  %10995 = vmatpush1.msra.mxu0 0.0
  %10996 = vmatprep.subr.mxu0 0.0
  %10997 = vmatpush1.msra.mxu0 0.0
  %10998 = vmatprep.subr.mxu0 0.0
  %10999 = vmatpush1.msra.mxu0 0.0
  %11000 = vmatprep.subr.mxu0 0.0
  %11001 = vmatpush1.msra.mxu0 0.0
  %11002 = vmatprep.subr.mxu0 0.0
  %11003 = vmatpush1.msra.mxu0 0.0
  %11004 = vmatprep.subr.mxu0 0.0
  %11005 = vmatpush1.msra.mxu0 0.0
  %11006 = vmatprep.subr.mxu0 0.0
  %11007 = vmatpush1.msra.mxu0 0.0
  %11008 = vmatprep.subr.mxu0 0.0
  %11009 = vmatpush1.msra.mxu0 0.0
  %11010 = vmatprep.subr.mxu0 0.0
  %11011 = vmatpush1.msra.mxu0 0.0
  %11012 = vmatprep.subr.mxu0 0.0
  %11013 = vmatpush1.msra.mxu0 0.0
  %11014 = vmatprep.subr.mxu0 0.0
  %11015 = vmatpush1.msra.mxu0 0.0
  %11016 = vmatprep.subr.mxu0 0.0
  %11017 = vmatpush1.msra.mxu0 0.0
  %11018 = vmatprep.subr.mxu0 0.0
  %11019 = vmatpush1.msra.mxu0 0.0
  %11020 = vmatprep.subr.mxu0 0.0
  %11021 = vmatpush1.msra.mxu0 0.0
  %11022 = vmatprep.subr.mxu0 0.0
  %11023 = vmatpush1.msra.mxu0 0.0
  %11024 = vmatprep.subr.mxu0 0.0
  %11025 = vmatpush1.msra.mxu0 0.0
  %11026 = vmatprep.subr.mxu0 0.0
  %11027 = vmatpush1.msra.mxu0 0.0
  %11028 = vmatprep.subr.mxu0 0.0
  %11029 = vmatpush1.msra.mxu0 0.0
  %11030 = vmatprep.subr.mxu0 0.0
  %11031 = vmatpush1.msra.mxu0 0.0
  %11032 = vmatprep.subr.mxu0 0.0
  %11033 = vmatpush1.msra.mxu0 0.0
  %11034 = vmatprep.subr.mxu0 0.0
  %11035 = vmatpush1.msra.mxu0 0.0
  %11036 = vmatprep.mubr.f32.mxu0 0.0
  %11037 = vmatmul.mubr.f32.gmra.mrb[0].mxu0 %v10781
  %v11038 = vpop.f32.mrb[0].mxu0
  %v11039 = vadd.f32 0.0, %v11038
  %v11040 = vpop.f32.mrb[0].mxu0
  %11041 = vmatprep.mubr.f32.mxu0 0.0
  %11042 = vmatmul.mubr.f32.gmra.mrb[0].mxu0 %v10784
  %v11043 = vpop.f32.mrb[0].mxu0
  %v11044 = vadd.f32 0.0, %v11043
  %v11045 = vpop.f32.mrb[0].mxu0
  %11046 = vmatprep.mubr.f32.mxu0 0.0
  %11047 = vmatmul.mubr.f32.gmra.mrb[0].mxu0 %v10787
  %v11048 = vpop.f32.mrb[0].mxu0
  %v11049 = vadd.f32 0.0, %v11048
  %v11050 = vpop.f32.mrb[0].mxu0
  %11051 = vmatprep.mubr.f32.mxu0 0.0
  %11052 = vmatmul.mubr.f32.gmra.mrb[0].mxu0 %v10790
  %v11053 = vpop.f32.mrb[0].mxu0
  %v11054 = vadd.f32 0.0, %v11053
  %v11055 = vpop.f32.mrb[0].mxu0
  %11056 = vmatprep.mubr.f32.mxu0 0.0
  %11057 = vmatmul.mubr.f32.gmra.mrb[0].mxu0 %v10793
  %v11058 = vpop.f32.mrb[0].mxu0
  %v11059 = vadd.f32 0.0, %v11058
  %v11060 = vpop.f32.mrb[0].mxu0
  %11061 = vmatprep.mubr.f32.mxu0 0.0
  %11062 = vmatmul.mubr.f32.gmra.mrb[0].mxu0 %v10796
  %v11063 = vpop.f32.mrb[0].mxu0
  %v11064 = vadd.f32 0.0, %v11063
  %v11065 = vpop.f32.mrb[0].mxu0
  %11066 = vmatprep.mubr.f32.mxu0 0.0
  %11067 = vmatmul.mubr.f32.gmra.mrb[0].mxu0 %v10799
  %v11068 = vpop.f32.mrb[0].mxu0
  %v11069 = vadd.f32 0.0, %v11068
  %v11070 = vpop.f32.mrb[0].mxu0
  %11071 = vmatprep.mubr.f32.mxu0 0.0
  %11072 = vmatmul.mubr.f32.gmra.mrb[0].mxu0 %v10802
  %v11073 = vpop.f32.mrb[0].mxu0
  %v11074 = vadd.f32 0.0, %v11073
  %v11075 = vpop.f32.mrb[0].mxu0
  %11076 = vmatprep.mubr.f32.mxu0 0.0
  %11077 = vmatmul.mubr.f32.gmra.mrb[0].mxu0 %v10805
  %v11078 = vpop.f32.mrb[0].mxu0
  %v11079 = vadd.f32 0.0, %v11078
  %v11080 = vpop.f32.mrb[0].mxu0
  %11081 = vmatprep.mubr.f32.mxu0 0.0
  %11082 = vmatmul.mubr.f32.gmra.mrb[0].mxu0 %v10808
  %v11083 = vpop.f32.mrb[0].mxu0
  %v11084 = vadd.f32 0.0, %v11083
  %v11085 = vpop.f32.mrb[0].mxu0
  %11086 = vmatprep.mubr.f32.mxu0 0.0
  %11087 = vmatmul.mubr.f32.gmra.mrb[0].mxu0 %v10811
  %v11088 = vpop.f32.mrb[0].mxu0
  %v11089 = vadd.f32 0.0, %v11088
  %v11090 = vpop.f32.mrb[0].mxu0
  %11091 = vmatprep.mubr.f32.mxu0 0.0
  %11092 = vmatmul.mubr.f32.gmra.mrb[0].mxu0 %v10814
  %v11093 = vpop.f32.mrb[0].mxu0
  %v11094 = vadd.f32 0.0, %v11093
  %v11095 = vpop.f32.mrb[0].mxu0
  %11096 = vmatprep.mubr.f32.mxu0 0.0
  %11097 = vmatmul.mubr.f32.gmra.mrb[0].mxu0 %v10817
  %v11098 = vpop.f32.mrb[0].mxu0
  %v11099 = vadd.f32 0.0, %v11098
  %v11100 = vpop.f32.mrb[0].mxu0
  %11101 = vmatprep.mubr.f32.mxu0 0.0
  %11102 = vmatmul.mubr.f32.gmra.mrb[0].mxu0 %v10820
  %v11103 = vpop.f32.mrb[0].mxu0
  %v11104 = vadd.f32 0.0, %v11103
  %v11105 = vpop.f32.mrb[0].mxu0
  %11106 = vmatprep.mubr.f32.mxu0 0.0
  %11107 = vmatmul.mubr.f32.gmra.mrb[0].mxu0 %v10823
  %v11108 = vpop.f32.mrb[0].mxu0
  %v11109 = vadd.f32 0.0, %v11108
  %v11110 = vpop.f32.mrb[0].mxu0
  %11111 = vmatprep.mubr.f32.mxu0 0.0
  %11112 = vmatmul.mubr.f32.gmra.mrb[0].mxu0 %v10826
  %v11113 = vpop.f32.mrb[0].mxu0
  %v11114 = vadd.f32 0.0, %v11113
  %v11115 = vpop.f32.mrb[0].mxu0
  %11116 = vmatprep.mubr.f32.mxu0 0.0
  %11117 = vmatmul.mubr.f32.gmra.mrb[0].mxu0 %v10829
  %v11118 = vpop.f32.mrb[0].mxu0
  %v11119 = vadd.f32 0.0, %v11118
  %v11120 = vpop.f32.mrb[0].mxu0
  %11121 = vmatprep.mubr.f32.mxu0 0.0
  %11122 = vmatmul.mubr.f32.gmra.mrb[0].mxu0 %v10832
  %v11123 = vpop.f32.mrb[0].mxu0
  %v11124 = vadd.f32 0.0, %v11123
  %v11125 = vpop.f32.mrb[0].mxu0
  %11126 = vmatprep.mubr.f32.mxu0 0.0
  %11127 = vmatmul.mubr.f32.gmra.mrb[0].mxu0 %v10835
  %v11128 = vpop.f32.mrb[0].mxu0
  %v11129 = vadd.f32 0.0, %v11128
  %v11130 = vpop.f32.mrb[0].mxu0
  %11131 = vmatprep.mubr.f32.mxu0 0.0
  %11132 = vmatmul.mubr.f32.gmra.mrb[0].mxu0 %v10838
  %v11133 = vpop.f32.mrb[0].mxu0
  %v11134 = vadd.f32 0.0, %v11133
  %v11135 = vpop.f32.mrb[0].mxu0
  %11136 = vmatprep.mubr.f32.mxu0 0.0
  %11137 = vmatmul.mubr.f32.gmra.mrb[0].mxu0 %v10841
  %v11138 = vpop.f32.mrb[0].mxu0
  %v11139 = vadd.f32 0.0, %v11138
  %v11140 = vpop.f32.mrb[0].mxu0
  %11141 = vmatprep.mubr.f32.mxu0 0.0
  %11142 = vmatmul.mubr.f32.gmra.mrb[0].mxu0 %v10844
  %v11143 = vpop.f32.mrb[0].mxu0
  %v11144 = vadd.f32 0.0, %v11143
  %v11145 = vpop.f32.mrb[0].mxu0
  %11146 = vmatprep.mubr.f32.mxu0 0.0
  %11147 = vmatmul.mubr.f32.gmra.mrb[0].mxu0 %v10847
  %v11148 = vpop.f32.mrb[0].mxu0
  %v11149 = vadd.f32 0.0, %v11148
  %v11150 = vpop.f32.mrb[0].mxu0
  %11151 = vmatprep.mubr.f32.mxu0 0.0
  %11152 = vmatmul.mubr.f32.gmra.mrb[0].mxu0 %v10850
  %v11153 = vpop.f32.mrb[0].mxu0
  %v11154 = vadd.f32 0.0, %v11153
  %v11155 = vpop.f32.mrb[0].mxu0
  %11156 = vmatprep.mubr.f32.mxu0 0.0
  %11157 = vmatmul.mubr.f32.gmra.mrb[0].mxu0 %v10853
  %v11158 = vpop.f32.mrb[0].mxu0
  %v11159 = vadd.f32 0.0, %v11158
  %v11160 = vpop.f32.mrb[0].mxu0
  %11161 = vmatprep.mubr.f32.mxu0 0.0
  %11162 = vmatmul.mubr.f32.gmra.mrb[0].mxu0 %v10856
  %v11163 = vpop.f32.mrb[0].mxu0
  %v11164 = vadd.f32 0.0, %v11163
  %v11165 = vpop.f32.mrb[0].mxu0
  %11166 = vmatprep.mubr.f32.mxu0 0.0
  %11167 = vmatmul.mubr.f32.gmra.mrb[0].mxu0 %v10859
  %v11168 = vpop.f32.mrb[0].mxu0
  %v11169 = vadd.f32 0.0, %v11168
  %v11170 = vpop.f32.mrb[0].mxu0
  %11171 = vmatprep.mubr.f32.mxu0 0.0
  %11172 = vmatmul.mubr.f32.gmra.mrb[0].mxu0 %v10862
  %v11173 = vpop.f32.mrb[0].mxu0
  %v11174 = vadd.f32 0.0, %v11173
  %v11175 = vpop.f32.mrb[0].mxu0
  %11176 = vmatprep.mubr.f32.mxu0 0.0
  %11177 = vmatmul.mubr.f32.gmra.mrb[0].mxu0 %v10865
  %v11178 = vpop.f32.mrb[0].mxu0
  %v11179 = vadd.f32 0.0, %v11178
  %v11180 = vpop.f32.mrb[0].mxu0
  %11181 = vmatprep.mubr.f32.mxu0 0.0
  %11182 = vmatmul.mubr.f32.gmra.mrb[0].mxu0 %v10868
  %v11183 = vpop.f32.mrb[0].mxu0
  %v11184 = vadd.f32 0.0, %v11183
  %v11185 = vpop.f32.mrb[0].mxu0
  %11186 = vmatprep.mubr.f32.mxu0 0.0
  %11187 = vmatmul.mubr.f32.gmra.mrb[0].mxu0 %v10871
  %v11188 = vpop.f32.mrb[0].mxu0
  %v11189 = vadd.f32 0.0, %v11188
  %v11190 = vpop.f32.mrb[0].mxu0
  %11191 = vmatprep.mubr.f32.mxu0 0.0
  %11192 = vmatmul.mubr.f32.gmra.mrb[0].mxu0 %v10874
  %v11193 = vpop.f32.mrb[0].mxu0
  %v11194 = vadd.f32 0.0, %v11193
  %v11195 = vpop.f32.mrb[0].mxu0
  %11196 = vmatprep.mubr.f32.mxu0 0.0
  %11197 = vmatmul.mubr.f32.gmra.mrb[0].mxu0 %v10877
  %v11198 = vpop.f32.mrb[0].mxu0
  %v11199 = vadd.f32 0.0, %v11198
  %v11200 = vpop.f32.mrb[0].mxu0
  %11201 = vmatprep.mubr.f32.mxu0 0.0
  %11202 = vmatmul.mubr.f32.gmra.mrb[0].mxu0 %v10880
  %v11203 = vpop.f32.mrb[0].mxu0
  %v11204 = vadd.f32 0.0, %v11203
  %v11205 = vpop.f32.mrb[0].mxu0
  %11206 = vmatprep.mubr.f32.mxu0 0.0
  %11207 = vmatmul.mubr.f32.gmra.mrb[0].mxu0 %v10883
  %v11208 = vpop.f32.mrb[0].mxu0
  %v11209 = vadd.f32 0.0, %v11208
  %v11210 = vpop.f32.mrb[0].mxu0
  %11211 = vmatprep.mubr.f32.mxu0 0.0
  %11212 = vmatmul.mubr.f32.gmra.mrb[0].mxu0 %v10886
  %v11213 = vpop.f32.mrb[0].mxu0
  %v11214 = vadd.f32 0.0, %v11213
  %v11215 = vpop.f32.mrb[0].mxu0
  %11216 = vmatprep.mubr.f32.mxu0 0.0
  %11217 = vmatmul.mubr.f32.gmra.mrb[0].mxu0 %v10889
  %v11218 = vpop.f32.mrb[0].mxu0
  %v11219 = vadd.f32 0.0, %v11218
  %v11220 = vpop.f32.mrb[0].mxu0
  %11221 = vmatprep.mubr.f32.mxu0 0.0
  %11222 = vmatmul.mubr.f32.gmra.mrb[0].mxu0 %v10892
  %v11223 = vpop.f32.mrb[0].mxu0
  %v11224 = vadd.f32 0.0, %v11223
  %v11225 = vpop.f32.mrb[0].mxu0
  %11226 = vmatprep.mubr.f32.mxu0 0.0
  %11227 = vmatmul.mubr.f32.gmra.mrb[0].mxu0 %v10895
  %v11228 = vpop.f32.mrb[0].mxu0
  %v11229 = vadd.f32 0.0, %v11228
  %v11230 = vpop.f32.mrb[0].mxu0
  %11231 = vmatprep.mubr.f32.mxu0 0.0
  %11232 = vmatmul.mubr.f32.gmra.mrb[0].mxu0 %v10898
  %v11233 = vpop.f32.mrb[0].mxu0
  %v11234 = vadd.f32 0.0, %v11233
  %v11235 = vpop.f32.mrb[0].mxu0
  %11236 = vmatprep.mubr.f32.mxu0 0.0
  %11237 = vmatmul.mubr.f32.gmra.mrb[0].mxu0 %v10901
  %v11238 = vpop.f32.mrb[0].mxu0
  %v11239 = vadd.f32 0.0, %v11238
  %v11240 = vpop.f32.mrb[0].mxu0
  %11241 = vmatprep.mubr.f32.mxu0 0.0
  %11242 = vmatmul.mubr.f32.gmra.mrb[0].mxu0 %v10904
  %v11243 = vpop.f32.mrb[0].mxu0
  %v11244 = vadd.f32 0.0, %v11243
  %v11245 = vpop.f32.mrb[0].mxu0
  %11246 = vmatprep.mubr.f32.mxu0 0.0
  %11247 = vmatmul.mubr.f32.gmra.mrb[0].mxu0 %v10907
  %v11248 = vpop.f32.mrb[0].mxu0
  %v11249 = vadd.f32 0.0, %v11248
  %v11250 = vpop.f32.mrb[0].mxu0
  %11251 = vmatprep.mubr.f32.mxu0 0.0
  %11252 = vmatmul.mubr.f32.gmra.mrb[0].mxu0 %v10910
  %v11253 = vpop.f32.mrb[0].mxu0
  %v11254 = vadd.f32 0.0, %v11253
  %v11255 = vpop.f32.mrb[0].mxu0
  %11256 = vmatprep.mubr.f32.mxu0 0.0
  %11257 = vmatmul.mubr.f32.gmra.mrb[0].mxu0 %v10913
  %v11258 = vpop.f32.mrb[0].mxu0
  %v11259 = vadd.f32 0.0, %v11258
  %v11260 = vpop.f32.mrb[0].mxu0
  %11261 = vmatprep.mubr.f32.mxu0 0.0
  %11262 = vmatmul.mubr.f32.gmra.mrb[0].mxu0 %v10916
  %v11263 = vpop.f32.mrb[0].mxu0
  %v11264 = vadd.f32 0.0, %v11263
  %v11265 = vpop.f32.mrb[0].mxu0
  %11266 = vmatprep.mubr.f32.mxu0 0.0
  %11267 = vmatmul.mubr.f32.gmra.mrb[0].mxu0 %v10919
  %v11268 = vpop.f32.mrb[0].mxu0
  %v11269 = vadd.f32 0.0, %v11268
  %v11270 = vpop.f32.mrb[0].mxu0
  %11271 = vmatprep.mubr.f32.mxu0 0.0
  %11272 = vmatmul.mubr.f32.gmra.mrb[0].mxu0 %v10922
  %v11273 = vpop.f32.mrb[0].mxu0
  %v11274 = vadd.f32 0.0, %v11273
  %v11275 = vpop.f32.mrb[0].mxu0
  %11276 = vmatprep.mubr.f32.mxu0 0.0
  %11277 = vmatmul.mubr.f32.gmra.mrb[0].mxu0 %v10925
  %v11278 = vpop.f32.mrb[0].mxu0
  %v11279 = vadd.f32 0.0, %v11278
  %v11280 = vpop.f32.mrb[0].mxu0
  %11281 = vmatprep.mubr.f32.mxu0 0.0
  %11282 = vmatmul.mubr.f32.gmra.mrb[0].mxu0 %v10928
  %v11283 = vpop.f32.mrb[0].mxu0
  %v11284 = vadd.f32 0.0, %v11283
  %v11285 = vpop.f32.mrb[0].mxu0
  %11286 = vmatprep.mubr.f32.mxu0 0.0
  %11287 = vmatmul.mubr.f32.gmra.mrb[0].mxu0 %v10931
  %v11288 = vpop.f32.mrb[0].mxu0
  %v11289 = vadd.f32 0.0, %v11288
  %v11290 = vpop.f32.mrb[0].mxu0
  %11291 = vmatprep.mubr.f32.mxu0 0.0
  %11292 = vmatmul.mubr.f32.gmra.mrb[0].mxu0 %v10934
  %v11293 = vpop.f32.mrb[0].mxu0
  %v11294 = vadd.f32 0.0, %v11293
  %v11295 = vpop.f32.mrb[0].mxu0
  %11296 = vmatprep.mubr.f32.mxu0 0.0
  %11297 = vmatmul.mubr.f32.gmra.mrb[0].mxu0 %v10937
  %v11298 = vpop.f32.mrb[0].mxu0
  %v11299 = vadd.f32 0.0, %v11298
  %v11300 = vpop.f32.mrb[0].mxu0
  %11301 = vmatprep.mubr.f32.mxu0 0.0
  %11302 = vmatmul.mubr.f32.gmra.mrb[0].mxu0 %v10940
  %v11303 = vpop.f32.mrb[0].mxu0
  %v11304 = vadd.f32 0.0, %v11303
  %v11305 = vpop.f32.mrb[0].mxu0
  %11306 = vmatprep.mubr.f32.mxu0 0.0
  %11307 = vmatmul.mubr.f32.gmra.mrb[0].mxu0 %v10943
  %v11308 = vpop.f32.mrb[0].mxu0
  %v11309 = vadd.f32 0.0, %v11308
  %v11310 = vpop.f32.mrb[0].mxu0
  %11311 = vmatprep.mubr.f32.mxu0 0.0
  %11312 = vmatmul.mubr.f32.gmra.mrb[0].mxu0 %v10946
  %v11313 = vpop.f32.mrb[0].mxu0
  %v11314 = vadd.f32 0.0, %v11313
  %v11315 = vpop.f32.mrb[0].mxu0
  %11316 = vmatprep.mubr.f32.mxu0 0.0
  %11317 = vmatmul.mubr.f32.gmra.mrb[0].mxu0 %v10949
  %v11318 = vpop.f32.mrb[0].mxu0
  %v11319 = vadd.f32 0.0, %v11318
  %v11320 = vpop.f32.mrb[0].mxu0
  %11321 = vmatprep.mubr.f32.mxu0 0.0
  %11322 = vmatmul.mubr.f32.gmra.mrb[0].mxu0 %v10952
  %v11323 = vpop.f32.mrb[0].mxu0
  %v11324 = vadd.f32 0.0, %v11323
  %v11325 = vpop.f32.mrb[0].mxu0
  %11326 = vmatprep.mubr.f32.mxu0 0.0
  %11327 = vmatmul.mubr.f32.gmra.mrb[0].mxu0 %v10955
  %v11328 = vpop.f32.mrb[0].mxu0
  %v11329 = vadd.f32 0.0, %v11328
  %v11330 = vpop.f32.mrb[0].mxu0
  %11331 = vmatprep.mubr.f32.mxu0 0.0
  %11332 = vmatmul.mubr.f32.gmra.mrb[0].mxu0 %v10958
  %v11333 = vpop.f32.mrb[0].mxu0
  %v11334 = vadd.f32 0.0, %v11333
  %v11335 = vpop.f32.mrb[0].mxu0
  %11336 = vmatprep.mubr.f32.mxu0 0.0
  %11337 = vmatmul.mubr.f32.gmra.mrb[0].mxu0 %v10961
  %v11338 = vpop.f32.mrb[0].mxu0
  %v11339 = vadd.f32 0.0, %v11338
  %v11340 = vpop.f32.mrb[0].mxu0
  %11341 = vmatprep.mubr.f32.mxu0 0.0
  %11342 = vmatmul.mubr.f32.gmra.mrb[0].mxu0 %v10964
  %v11343 = vpop.f32.mrb[0].mxu0
  %v11344 = vadd.f32 0.0, %v11343
  %v11345 = vpop.f32.mrb[0].mxu0
  %11346 = vmatprep.mubr.f32.mxu0 0.0
  %11347 = vmatmul.mubr.f32.gmra.mrb[0].mxu0 %v10967
  %v11348 = vpop.f32.mrb[0].mxu0
  %v11349 = vadd.f32 0.0, %v11348
  %v11350 = vpop.f32.mrb[0].mxu0
  %11351 = vmatprep.mubr.f32.mxu0 0.0
  %11352 = vmatmul.mubr.f32.gmra.mrb[0].mxu0 %v10970
  %v11353 = vpop.f32.mrb[0].mxu0
  %v11354 = vadd.f32 0.0, %v11353
  %v11355 = vpop.f32.mrb[0].mxu0
  %11356 = vdwg.mxu0
  %v11357 = vadd.f32 %v10646, %v11039
  %v11358 = vadd.f32 %v10647, %v11044
  %v11359 = vadd.f32 %v10648, %v11049
  %v11360 = vadd.f32 %v10649, %v11054
  %v11361 = vadd.f32 %v10650, %v11059
  %v11362 = vadd.f32 %v10651, %v11064
  %v11363 = vadd.f32 %v10652, %v11069
  %v11364 = vadd.f32 %v10653, %v11074
  %v11365 = vadd.f32 %v10654, %v11079
  %v11366 = vadd.f32 %v10655, %v11084
  %v11367 = vadd.f32 %v10656, %v11089
  %v11368 = vadd.f32 %v10657, %v11094
  %v11369 = vadd.f32 %v10658, %v11099
  %v11370 = vadd.f32 %v10659, %v11104
  %v11371 = vadd.f32 %v10660, %v11109
  %v11372 = vadd.f32 %v10661, %v11114
  %v11373 = vadd.f32 %v10662, %v11119
  %v11374 = vadd.f32 %v10663, %v11124
  %v11375 = vadd.f32 %v10664, %v11129
  %v11376 = vadd.f32 %v10665, %v11134
  %v11377 = vadd.f32 %v10666, %v11139
  %v11378 = vadd.f32 %v10667, %v11144
  %v11379 = vadd.f32 %v10668, %v11149
  %v11380 = vadd.f32 %v10669, %v11154
  %v11381 = vadd.f32 %v10670, %v11159
  %v11382 = vadd.f32 %v10671, %v11164
  %v11383 = vadd.f32 %v10672, %v11169
  %v11384 = vadd.f32 %v10673, %v11174
  %v11385 = vadd.f32 %v10674, %v11179
  %v11386 = vadd.f32 %v10675, %v11184
  %v11387 = vadd.f32 %v10676, %v11189
  %v11388 = vadd.f32 %v10677, %v11194
  %v11389 = vadd.f32 %v10678, %v11199
  %v11390 = vadd.f32 %v10679, %v11204
  %v11391 = vadd.f32 %v10680, %v11209
  %v11392 = vadd.f32 %v10681, %v11214
  %v11393 = vadd.f32 %v10682, %v11219
  %v11394 = vadd.f32 %v10683, %v11224
  %v11395 = vadd.f32 %v10684, %v11229
  %v11396 = vadd.f32 %v10685, %v11234
  %v11397 = vadd.f32 %v10686, %v11239
  %v11398 = vadd.f32 %v10687, %v11244
  %v11399 = vadd.f32 %v10688, %v11249
  %v11400 = vadd.f32 %v10689, %v11254
  %v11401 = vadd.f32 %v10690, %v11259
  %v11402 = vadd.f32 %v10691, %v11264
  %v11403 = vadd.f32 %v10692, %v11269
  %v11404 = vadd.f32 %v10693, %v11274
  %v11405 = vadd.f32 %v10694, %v11279
  %v11406 = vadd.f32 %v10695, %v11284
  %v11407 = vadd.f32 %v10696, %v11289
  %v11408 = vadd.f32 %v10697, %v11294
  %v11409 = vadd.f32 %v10698, %v11299
  %v11410 = vadd.f32 %v10699, %v11304
  %v11411 = vadd.f32 %v10700, %v11309
  %v11412 = vadd.f32 %v10701, %v11314
  %v11413 = vadd.f32 %v10702, %v11319
  %v11414 = vadd.f32 %v10703, %v11324
  %v11415 = vadd.f32 %v10704, %v11329
  %v11416 = vadd.f32 %v10705, %v11334
  %v11417 = vadd.f32 %v10706, %v11339
  %v11418 = vadd.f32 %v10707, %v11344
  %v11419 = vadd.f32 %v10708, %v11349
  %v11420 = vadd.f32 %v10709, %v11354
  %v11421 = vld [vmem:[%s10710 + $0x1] sm:$0xff]
  %v11422 = vld [vmem:[%s10710 + $0x9] sm:$0xff]
  %v11423 = vld [vmem:[%s10710 + $0x19] sm:$0xff]
  %v11424 = vld [vmem:[%s10710 + $0x21] sm:$0xff]
  %v11425 = vld [vmem:[%s10710 + $0x31] sm:$0xff]
  %v11426 = vld [vmem:[%s10710 + $0x39] sm:$0xff]
  %v11427 = vld [vmem:[%s10710 + $0x49] sm:$0xff]
  %v11428 = vld [vmem:[%s10710 + $0x51] sm:$0xff]
  %v11429 = vld [vmem:[%s10710 + $0x61] sm:$0xff]
  %v11430 = vld [vmem:[%s10710 + $0x69] sm:$0xff]
  %v11431 = vld [vmem:[%s10710 + $0x79] sm:$0xff]
  %v11432 = vld [vmem:[%s10710 + $0x81] sm:$0xff]
  %v11433 = vld [vmem:[%s10710 + $0x91] sm:$0xff]
  %v11434 = vld [vmem:[%s10710 + $0x99] sm:$0xff]
  %v11435 = vld [vmem:[%s10710 + $0xa9] sm:$0xff]
  %v11436 = vld [vmem:[%s10710 + $0xb1] sm:$0xff]
  %v11437 = vld [vmem:[%s10710 + $0xc1] sm:$0xff]
  %v11438 = vld [vmem:[%s10710 + $0xc9] sm:$0xff]
  %v11439 = vld [vmem:[%s10710 + $0xd9] sm:$0xff]
  %v11440 = vld [vmem:[%s10710 + $0xe1] sm:$0xff]
  %v11441 = vld [vmem:[%s10710 + $0xf1] sm:$0xff]
  %v11442 = vld [vmem:[%s10710 + $0xf9] sm:$0xff]
  %v11443 = vld [vmem:[%s10710 + $0x109] sm:$0xff]
  %v11444 = vld [vmem:[%s10710 + $0x111] sm:$0xff]
  %v11445 = vld [vmem:[%s10710 + $0x121] sm:$0xff]
  %v11446 = vld [vmem:[%s10710 + $0x129] sm:$0xff]
  %v11447 = vld [vmem:[%s10710 + $0x139] sm:$0xff]
  %v11448 = vld [vmem:[%s10710 + $0x141] sm:$0xff]
  %v11449 = vld [vmem:[%s10710 + $0x151] sm:$0xff]
  %v11450 = vld [vmem:[%s10710 + $0x159] sm:$0xff]
  %v11451 = vld [vmem:[%s10710 + $0x169] sm:$0xff]
  %v11452 = vld [vmem:[%s10710 + $0x171] sm:$0xff]
  %v11453 = vld [vmem:[%s10710 + $0x1b1] sm:$0xff]
  %v11454 = vld [vmem:[%s10710 + $0x1b9] sm:$0xff]
  %v11455 = vld [vmem:[%s10710 + $0x1c9] sm:$0xff]
  %v11456 = vld [vmem:[%s10710 + $0x1d1] sm:$0xff]
  %v11457 = vld [vmem:[%s10710 + $0x1e1] sm:$0xff]
  %v11458 = vld [vmem:[%s10710 + $0x1e9] sm:$0xff]
  %v11459 = vld [vmem:[%s10710 + $0x1f9] sm:$0xff]
  %v11460 = vld [vmem:[%s10710 + $0x201] sm:$0xff]
  %v11461 = vld [vmem:[%s10710 + $0x211] sm:$0xff]
  %v11462 = vld [vmem:[%s10710 + $0x219] sm:$0xff]
  %v11463 = vld [vmem:[%s10710 + $0x229] sm:$0xff]
  %v11464 = vld [vmem:[%s10710 + $0x231] sm:$0xff]
  %v11465 = vld [vmem:[%s10710 + $0x241] sm:$0xff]
  %v11466 = vld [vmem:[%s10710 + $0x249] sm:$0xff]
  %v11467 = vld [vmem:[%s10710 + $0x259] sm:$0xff]
  %v11468 = vld [vmem:[%s10710 + $0x261] sm:$0xff]
  %v11469 = vld [vmem:[%s10710 + $0x271] sm:$0xff]
  %v11470 = vld [vmem:[%s10710 + $0x279] sm:$0xff]
  %v11471 = vld [vmem:[%s10710 + $0x289] sm:$0xff]
  %v11472 = vld [vmem:[%s10710 + $0x291] sm:$0xff]
  %v11473 = vld [vmem:[%s10710 + $0x2a1] sm:$0xff]
  %v11474 = vld [vmem:[%s10710 + $0x2a9] sm:$0xff]
  %v11475 = vld [vmem:[%s10710 + $0x2b9] sm:$0xff]
  %v11476 = vld [vmem:[%s10710 + $0x2c1] sm:$0xff]
  %v11477 = vld [vmem:[%s10710 + $0x2d1] sm:$0xff]
  %v11478 = vld [vmem:[%s10710 + $0x2d9] sm:$0xff]
  %v11479 = vld [vmem:[%s10710 + $0x2e9] sm:$0xff]
  %v11480 = vld [vmem:[%s10710 + $0x2f1] sm:$0xff]
  %v11481 = vld [vmem:[%s10710 + $0x301] sm:$0xff]
  %v11482 = vld [vmem:[%s10710 + $0x309] sm:$0xff]
  %v11483 = vld [vmem:[%s10710 + $0x319] sm:$0xff]
  %v11484 = vld [vmem:[%s10710 + $0x321] sm:$0xff]
  %s11485 = scalar_lea.vmem %s3, 224
  %v11486 = vld [vmem:[%s11485] sm:$0xff]
  %v11487 = vld [vmem:[%s11485 + $0x8] sm:$0xff]
  %v11488 = vld [vmem:[%s11485 + $0x10] sm:$0xff]
  %v11489 = vld [vmem:[%s11485 + $0x18] sm:$0xff]
  %v11491 = vsel %vm6426, %v11421, 0
  %v11494 = vsel %vm6426, %v11422, 0
  %v11497 = vsel %vm6426, %v11423, 0
  %v11500 = vsel %vm6426, %v11424, 0
  %v11503 = vsel %vm6426, %v11425, 0
  %v11506 = vsel %vm6426, %v11426, 0
  %v11509 = vsel %vm6426, %v11427, 0
  %v11512 = vsel %vm6426, %v11428, 0
  %v11515 = vsel %vm6426, %v11429, 0
  %v11518 = vsel %vm6426, %v11430, 0
  %v11521 = vsel %vm6426, %v11431, 0
  %v11524 = vsel %vm6426, %v11432, 0
  %v11527 = vsel %vm6426, %v11433, 0
  %v11530 = vsel %vm6426, %v11434, 0
  %v11533 = vsel %vm6426, %v11435, 0
  %v11536 = vsel %vm6426, %v11436, 0
  %v11539 = vsel %vm6426, %v11437, 0
  %v11542 = vsel %vm6426, %v11438, 0
  %v11545 = vsel %vm6426, %v11439, 0
  %v11548 = vsel %vm6426, %v11440, 0
  %v11551 = vsel %vm6426, %v11441, 0
  %v11554 = vsel %vm6426, %v11442, 0
  %v11557 = vsel %vm6426, %v11443, 0
  %v11560 = vsel %vm6426, %v11444, 0
  %v11563 = vsel %vm6426, %v11445, 0
  %v11566 = vsel %vm6426, %v11446, 0
  %v11569 = vsel %vm6426, %v11447, 0
  %v11572 = vsel %vm6426, %v11448, 0
  %v11575 = vsel %vm6426, %v11449, 0
  %v11578 = vsel %vm6426, %v11450, 0
  %v11581 = vsel %vm6426, %v11451, 0
  %v11584 = vsel %vm6426, %v11452, 0
  %v11587 = vsel %vm6426, %v11453, 0
  %v11590 = vsel %vm6426, %v11454, 0
  %v11593 = vsel %vm6426, %v11455, 0
  %v11596 = vsel %vm6426, %v11456, 0
  %v11599 = vsel %vm6426, %v11457, 0
  %v11602 = vsel %vm6426, %v11458, 0
  %v11605 = vsel %vm6426, %v11459, 0
  %v11608 = vsel %vm6426, %v11460, 0
  %v11611 = vsel %vm6426, %v11461, 0
  %v11614 = vsel %vm6426, %v11462, 0
  %v11617 = vsel %vm6426, %v11463, 0
  %v11620 = vsel %vm6426, %v11464, 0
  %v11623 = vsel %vm6426, %v11465, 0
  %v11626 = vsel %vm6426, %v11466, 0
  %v11629 = vsel %vm6426, %v11467, 0
  %v11632 = vsel %vm6426, %v11468, 0
  %v11635 = vsel %vm6426, %v11469, 0
  %v11638 = vsel %vm6426, %v11470, 0
  %v11641 = vsel %vm6426, %v11471, 0
  %v11644 = vsel %vm6426, %v11472, 0
  %v11647 = vsel %vm6426, %v11473, 0
  %v11650 = vsel %vm6426, %v11474, 0
  %v11653 = vsel %vm6426, %v11475, 0
  %v11656 = vsel %vm6426, %v11476, 0
  %v11659 = vsel %vm6426, %v11477, 0
  %v11662 = vsel %vm6426, %v11478, 0
  %v11665 = vsel %vm6426, %v11479, 0
  %v11668 = vsel %vm6426, %v11480, 0
  %v11671 = vsel %vm6426, %v11481, 0
  %v11674 = vsel %vm6426, %v11482, 0
  %v11677 = vsel %vm6426, %v11483, 0
  %v11680 = vsel %vm6426, %v11484, 0
  %11682 = vmatprep.subr.mxu0 0.0
  %11683 = vmatpush1.msra.mxu0 %v11486
  %11684 = vmatprep.subr.mxu0 0.0
  %11685 = vmatpush1.msra.mxu0 %v11487
  %11686 = vmatprep.subr.mxu0 0.0
  %11687 = vmatpush1.msra.mxu0 %v11488
  %11688 = vmatprep.subr.mxu0 0.0
  %11689 = vmatpush1.msra.mxu0 %v11489
  %11690 = vmatprep.subr.mxu0 0.0
  %11691 = vmatpush1.msra.mxu0 0.0
  %11692 = vmatprep.subr.mxu0 0.0
  %11693 = vmatpush1.msra.mxu0 0.0
  %11694 = vmatprep.subr.mxu0 0.0
  %11695 = vmatpush1.msra.mxu0 0.0
  %11696 = vmatprep.subr.mxu0 0.0
  %11697 = vmatpush1.msra.mxu0 0.0
  %11698 = vmatprep.subr.mxu0 0.0
  %11699 = vmatpush1.msra.mxu0 0.0
  %11700 = vmatprep.subr.mxu0 0.0
  %11701 = vmatpush1.msra.mxu0 0.0
  %11702 = vmatprep.subr.mxu0 0.0
  %11703 = vmatpush1.msra.mxu0 0.0
  %11704 = vmatprep.subr.mxu0 0.0
  %11705 = vmatpush1.msra.mxu0 0.0
  %11706 = vmatprep.subr.mxu0 0.0
  %11707 = vmatpush1.msra.mxu0 0.0
  %11708 = vmatprep.subr.mxu0 0.0
  %11709 = vmatpush1.msra.mxu0 0.0
  %11710 = vmatprep.subr.mxu0 0.0
  %11711 = vmatpush1.msra.mxu0 0.0
  %11712 = vmatprep.subr.mxu0 0.0
  %11713 = vmatpush1.msra.mxu0 0.0
  %11714 = vmatprep.subr.mxu0 0.0
  %11715 = vmatpush1.msra.mxu0 0.0
  %11716 = vmatprep.subr.mxu0 0.0
  %11717 = vmatpush1.msra.mxu0 0.0
  %11718 = vmatprep.subr.mxu0 0.0
  %11719 = vmatpush1.msra.mxu0 0.0
  %11720 = vmatprep.subr.mxu0 0.0
  %11721 = vmatpush1.msra.mxu0 0.0
  %11722 = vmatprep.subr.mxu0 0.0
  %11723 = vmatpush1.msra.mxu0 0.0
  %11724 = vmatprep.subr.mxu0 0.0
  %11725 = vmatpush1.msra.mxu0 0.0
  %11726 = vmatprep.subr.mxu0 0.0
  %11727 = vmatpush1.msra.mxu0 0.0
  %11728 = vmatprep.subr.mxu0 0.0
  %11729 = vmatpush1.msra.mxu0 0.0
  %11730 = vmatprep.subr.mxu0 0.0
  %11731 = vmatpush1.msra.mxu0 0.0
  %11732 = vmatprep.subr.mxu0 0.0
  %11733 = vmatpush1.msra.mxu0 0.0
  %11734 = vmatprep.subr.mxu0 0.0
  %11735 = vmatpush1.msra.mxu0 0.0
  %11736 = vmatprep.subr.mxu0 0.0
  %11737 = vmatpush1.msra.mxu0 0.0
  %11738 = vmatprep.subr.mxu0 0.0
  %11739 = vmatpush1.msra.mxu0 0.0
  %11740 = vmatprep.subr.mxu0 0.0
  %11741 = vmatpush1.msra.mxu0 0.0
  %11742 = vmatprep.subr.mxu0 0.0
  %11743 = vmatpush1.msra.mxu0 0.0
  %11744 = vmatprep.subr.mxu0 0.0
  %11745 = vmatpush1.msra.mxu0 0.0
  %11746 = vmatprep.mubr.f32.mxu0 0.0
  %11747 = vmatmul.mubr.f32.gmra.mrb[0].mxu0 %v11491
  %v11748 = vpop.f32.mrb[0].mxu0
  %v11749 = vadd.f32 0.0, %v11748
  %v11750 = vpop.f32.mrb[0].mxu0
  %11751 = vmatprep.mubr.f32.mxu0 0.0
  %11752 = vmatmul.mubr.f32.gmra.mrb[0].mxu0 %v11494
  %v11753 = vpop.f32.mrb[0].mxu0
  %v11754 = vadd.f32 0.0, %v11753
  %v11755 = vpop.f32.mrb[0].mxu0
  %11756 = vmatprep.mubr.f32.mxu0 0.0
  %11757 = vmatmul.mubr.f32.gmra.mrb[0].mxu0 %v11497
  %v11758 = vpop.f32.mrb[0].mxu0
  %v11759 = vadd.f32 0.0, %v11758
  %v11760 = vpop.f32.mrb[0].mxu0
  %11761 = vmatprep.mubr.f32.mxu0 0.0
  %11762 = vmatmul.mubr.f32.gmra.mrb[0].mxu0 %v11500
  %v11763 = vpop.f32.mrb[0].mxu0
  %v11764 = vadd.f32 0.0, %v11763
  %v11765 = vpop.f32.mrb[0].mxu0
  %11766 = vmatprep.mubr.f32.mxu0 0.0
  %11767 = vmatmul.mubr.f32.gmra.mrb[0].mxu0 %v11503
  %v11768 = vpop.f32.mrb[0].mxu0
  %v11769 = vadd.f32 0.0, %v11768
  %v11770 = vpop.f32.mrb[0].mxu0
  %11771 = vmatprep.mubr.f32.mxu0 0.0
  %11772 = vmatmul.mubr.f32.gmra.mrb[0].mxu0 %v11506
  %v11773 = vpop.f32.mrb[0].mxu0
  %v11774 = vadd.f32 0.0, %v11773
  %v11775 = vpop.f32.mrb[0].mxu0
  %11776 = vmatprep.mubr.f32.mxu0 0.0
  %11777 = vmatmul.mubr.f32.gmra.mrb[0].mxu0 %v11509
  %v11778 = vpop.f32.mrb[0].mxu0
  %v11779 = vadd.f32 0.0, %v11778
  %v11780 = vpop.f32.mrb[0].mxu0
  %11781 = vmatprep.mubr.f32.mxu0 0.0
  %11782 = vmatmul.mubr.f32.gmra.mrb[0].mxu0 %v11512
  %v11783 = vpop.f32.mrb[0].mxu0
  %v11784 = vadd.f32 0.0, %v11783
  %v11785 = vpop.f32.mrb[0].mxu0
  %11786 = vmatprep.mubr.f32.mxu0 0.0
  %11787 = vmatmul.mubr.f32.gmra.mrb[0].mxu0 %v11515
  %v11788 = vpop.f32.mrb[0].mxu0
  %v11789 = vadd.f32 0.0, %v11788
  %v11790 = vpop.f32.mrb[0].mxu0
  %11791 = vmatprep.mubr.f32.mxu0 0.0
  %11792 = vmatmul.mubr.f32.gmra.mrb[0].mxu0 %v11518
  %v11793 = vpop.f32.mrb[0].mxu0
  %v11794 = vadd.f32 0.0, %v11793
  %v11795 = vpop.f32.mrb[0].mxu0
  %11796 = vmatprep.mubr.f32.mxu0 0.0
  %11797 = vmatmul.mubr.f32.gmra.mrb[0].mxu0 %v11521
  %v11798 = vpop.f32.mrb[0].mxu0
  %v11799 = vadd.f32 0.0, %v11798
  %v11800 = vpop.f32.mrb[0].mxu0
  %11801 = vmatprep.mubr.f32.mxu0 0.0
  %11802 = vmatmul.mubr.f32.gmra.mrb[0].mxu0 %v11524
  %v11803 = vpop.f32.mrb[0].mxu0
  %v11804 = vadd.f32 0.0, %v11803
  %v11805 = vpop.f32.mrb[0].mxu0
  %11806 = vmatprep.mubr.f32.mxu0 0.0
  %11807 = vmatmul.mubr.f32.gmra.mrb[0].mxu0 %v11527
  %v11808 = vpop.f32.mrb[0].mxu0
  %v11809 = vadd.f32 0.0, %v11808
  %v11810 = vpop.f32.mrb[0].mxu0
  %11811 = vmatprep.mubr.f32.mxu0 0.0
  %11812 = vmatmul.mubr.f32.gmra.mrb[0].mxu0 %v11530
  %v11813 = vpop.f32.mrb[0].mxu0
  %v11814 = vadd.f32 0.0, %v11813
  %v11815 = vpop.f32.mrb[0].mxu0
  %11816 = vmatprep.mubr.f32.mxu0 0.0
  %11817 = vmatmul.mubr.f32.gmra.mrb[0].mxu0 %v11533
  %v11818 = vpop.f32.mrb[0].mxu0
  %v11819 = vadd.f32 0.0, %v11818
  %v11820 = vpop.f32.mrb[0].mxu0
  %11821 = vmatprep.mubr.f32.mxu0 0.0
  %11822 = vmatmul.mubr.f32.gmra.mrb[0].mxu0 %v11536
  %v11823 = vpop.f32.mrb[0].mxu0
  %v11824 = vadd.f32 0.0, %v11823
  %v11825 = vpop.f32.mrb[0].mxu0
  %11826 = vmatprep.mubr.f32.mxu0 0.0
  %11827 = vmatmul.mubr.f32.gmra.mrb[0].mxu0 %v11539
  %v11828 = vpop.f32.mrb[0].mxu0
  %v11829 = vadd.f32 0.0, %v11828
  %v11830 = vpop.f32.mrb[0].mxu0
  %11831 = vmatprep.mubr.f32.mxu0 0.0
  %11832 = vmatmul.mubr.f32.gmra.mrb[0].mxu0 %v11542
  %v11833 = vpop.f32.mrb[0].mxu0
  %v11834 = vadd.f32 0.0, %v11833
  %v11835 = vpop.f32.mrb[0].mxu0
  %11836 = vmatprep.mubr.f32.mxu0 0.0
  %11837 = vmatmul.mubr.f32.gmra.mrb[0].mxu0 %v11545
  %v11838 = vpop.f32.mrb[0].mxu0
  %v11839 = vadd.f32 0.0, %v11838
  %v11840 = vpop.f32.mrb[0].mxu0
  %11841 = vmatprep.mubr.f32.mxu0 0.0
  %11842 = vmatmul.mubr.f32.gmra.mrb[0].mxu0 %v11548
  %v11843 = vpop.f32.mrb[0].mxu0
  %v11844 = vadd.f32 0.0, %v11843
  %v11845 = vpop.f32.mrb[0].mxu0
  %11846 = vmatprep.mubr.f32.mxu0 0.0
  %11847 = vmatmul.mubr.f32.gmra.mrb[0].mxu0 %v11551
  %v11848 = vpop.f32.mrb[0].mxu0
  %v11849 = vadd.f32 0.0, %v11848
  %v11850 = vpop.f32.mrb[0].mxu0
  %11851 = vmatprep.mubr.f32.mxu0 0.0
  %11852 = vmatmul.mubr.f32.gmra.mrb[0].mxu0 %v11554
  %v11853 = vpop.f32.mrb[0].mxu0
  %v11854 = vadd.f32 0.0, %v11853
  %v11855 = vpop.f32.mrb[0].mxu0
  %11856 = vmatprep.mubr.f32.mxu0 0.0
  %11857 = vmatmul.mubr.f32.gmra.mrb[0].mxu0 %v11557
  %v11858 = vpop.f32.mrb[0].mxu0
  %v11859 = vadd.f32 0.0, %v11858
  %v11860 = vpop.f32.mrb[0].mxu0
  %11861 = vmatprep.mubr.f32.mxu0 0.0
  %11862 = vmatmul.mubr.f32.gmra.mrb[0].mxu0 %v11560
  %v11863 = vpop.f32.mrb[0].mxu0
  %v11864 = vadd.f32 0.0, %v11863
  %v11865 = vpop.f32.mrb[0].mxu0
  %11866 = vmatprep.mubr.f32.mxu0 0.0
  %11867 = vmatmul.mubr.f32.gmra.mrb[0].mxu0 %v11563
  %v11868 = vpop.f32.mrb[0].mxu0
  %v11869 = vadd.f32 0.0, %v11868
  %v11870 = vpop.f32.mrb[0].mxu0
  %11871 = vmatprep.mubr.f32.mxu0 0.0
  %11872 = vmatmul.mubr.f32.gmra.mrb[0].mxu0 %v11566
  %v11873 = vpop.f32.mrb[0].mxu0
  %v11874 = vadd.f32 0.0, %v11873
  %v11875 = vpop.f32.mrb[0].mxu0
  %11876 = vmatprep.mubr.f32.mxu0 0.0
  %11877 = vmatmul.mubr.f32.gmra.mrb[0].mxu0 %v11569
  %v11878 = vpop.f32.mrb[0].mxu0
  %v11879 = vadd.f32 0.0, %v11878
  %v11880 = vpop.f32.mrb[0].mxu0
  %11881 = vmatprep.mubr.f32.mxu0 0.0
  %11882 = vmatmul.mubr.f32.gmra.mrb[0].mxu0 %v11572
  %v11883 = vpop.f32.mrb[0].mxu0
  %v11884 = vadd.f32 0.0, %v11883
  %v11885 = vpop.f32.mrb[0].mxu0
  %11886 = vmatprep.mubr.f32.mxu0 0.0
  %11887 = vmatmul.mubr.f32.gmra.mrb[0].mxu0 %v11575
  %v11888 = vpop.f32.mrb[0].mxu0
  %v11889 = vadd.f32 0.0, %v11888
  %v11890 = vpop.f32.mrb[0].mxu0
  %11891 = vmatprep.mubr.f32.mxu0 0.0
  %11892 = vmatmul.mubr.f32.gmra.mrb[0].mxu0 %v11578
  %v11893 = vpop.f32.mrb[0].mxu0
  %v11894 = vadd.f32 0.0, %v11893
  %v11895 = vpop.f32.mrb[0].mxu0
  %11896 = vmatprep.mubr.f32.mxu0 0.0
  %11897 = vmatmul.mubr.f32.gmra.mrb[0].mxu0 %v11581
  %v11898 = vpop.f32.mrb[0].mxu0
  %v11899 = vadd.f32 0.0, %v11898
  %v11900 = vpop.f32.mrb[0].mxu0
  %11901 = vmatprep.mubr.f32.mxu0 0.0
  %11902 = vmatmul.mubr.f32.gmra.mrb[0].mxu0 %v11584
  %v11903 = vpop.f32.mrb[0].mxu0
  %v11904 = vadd.f32 0.0, %v11903
  %v11905 = vpop.f32.mrb[0].mxu0
  %11906 = vmatprep.mubr.f32.mxu0 0.0
  %11907 = vmatmul.mubr.f32.gmra.mrb[0].mxu0 %v11587
  %v11908 = vpop.f32.mrb[0].mxu0
  %v11909 = vadd.f32 0.0, %v11908
  %v11910 = vpop.f32.mrb[0].mxu0
  %11911 = vmatprep.mubr.f32.mxu0 0.0
  %11912 = vmatmul.mubr.f32.gmra.mrb[0].mxu0 %v11590
  %v11913 = vpop.f32.mrb[0].mxu0
  %v11914 = vadd.f32 0.0, %v11913
  %v11915 = vpop.f32.mrb[0].mxu0
  %11916 = vmatprep.mubr.f32.mxu0 0.0
  %11917 = vmatmul.mubr.f32.gmra.mrb[0].mxu0 %v11593
  %v11918 = vpop.f32.mrb[0].mxu0
  %v11919 = vadd.f32 0.0, %v11918
  %v11920 = vpop.f32.mrb[0].mxu0
  %11921 = vmatprep.mubr.f32.mxu0 0.0
  %11922 = vmatmul.mubr.f32.gmra.mrb[0].mxu0 %v11596
  %v11923 = vpop.f32.mrb[0].mxu0
  %v11924 = vadd.f32 0.0, %v11923
  %v11925 = vpop.f32.mrb[0].mxu0
  %11926 = vmatprep.mubr.f32.mxu0 0.0
  %11927 = vmatmul.mubr.f32.gmra.mrb[0].mxu0 %v11599
  %v11928 = vpop.f32.mrb[0].mxu0
  %v11929 = vadd.f32 0.0, %v11928
  %v11930 = vpop.f32.mrb[0].mxu0
  %11931 = vmatprep.mubr.f32.mxu0 0.0
  %11932 = vmatmul.mubr.f32.gmra.mrb[0].mxu0 %v11602
  %v11933 = vpop.f32.mrb[0].mxu0
  %v11934 = vadd.f32 0.0, %v11933
  %v11935 = vpop.f32.mrb[0].mxu0
  %11936 = vmatprep.mubr.f32.mxu0 0.0
  %11937 = vmatmul.mubr.f32.gmra.mrb[0].mxu0 %v11605
  %v11938 = vpop.f32.mrb[0].mxu0
  %v11939 = vadd.f32 0.0, %v11938
  %v11940 = vpop.f32.mrb[0].mxu0
  %11941 = vmatprep.mubr.f32.mxu0 0.0
  %11942 = vmatmul.mubr.f32.gmra.mrb[0].mxu0 %v11608
  %v11943 = vpop.f32.mrb[0].mxu0
  %v11944 = vadd.f32 0.0, %v11943
  %v11945 = vpop.f32.mrb[0].mxu0
  %11946 = vmatprep.mubr.f32.mxu0 0.0
  %11947 = vmatmul.mubr.f32.gmra.mrb[0].mxu0 %v11611
  %v11948 = vpop.f32.mrb[0].mxu0
  %v11949 = vadd.f32 0.0, %v11948
  %v11950 = vpop.f32.mrb[0].mxu0
  %11951 = vmatprep.mubr.f32.mxu0 0.0
  %11952 = vmatmul.mubr.f32.gmra.mrb[0].mxu0 %v11614
  %v11953 = vpop.f32.mrb[0].mxu0
  %v11954 = vadd.f32 0.0, %v11953
  %v11955 = vpop.f32.mrb[0].mxu0
  %11956 = vmatprep.mubr.f32.mxu0 0.0
  %11957 = vmatmul.mubr.f32.gmra.mrb[0].mxu0 %v11617
  %v11958 = vpop.f32.mrb[0].mxu0
  %v11959 = vadd.f32 0.0, %v11958
  %v11960 = vpop.f32.mrb[0].mxu0
  %11961 = vmatprep.mubr.f32.mxu0 0.0
  %11962 = vmatmul.mubr.f32.gmra.mrb[0].mxu0 %v11620
  %v11963 = vpop.f32.mrb[0].mxu0
  %v11964 = vadd.f32 0.0, %v11963
  %v11965 = vpop.f32.mrb[0].mxu0
  %11966 = vmatprep.mubr.f32.mxu0 0.0
  %11967 = vmatmul.mubr.f32.gmra.mrb[0].mxu0 %v11623
  %v11968 = vpop.f32.mrb[0].mxu0
  %v11969 = vadd.f32 0.0, %v11968
  %v11970 = vpop.f32.mrb[0].mxu0
  %11971 = vmatprep.mubr.f32.mxu0 0.0
  %11972 = vmatmul.mubr.f32.gmra.mrb[0].mxu0 %v11626
  %v11973 = vpop.f32.mrb[0].mxu0
  %v11974 = vadd.f32 0.0, %v11973
  %v11975 = vpop.f32.mrb[0].mxu0
  %11976 = vmatprep.mubr.f32.mxu0 0.0
  %11977 = vmatmul.mubr.f32.gmra.mrb[0].mxu0 %v11629
  %v11978 = vpop.f32.mrb[0].mxu0
  %v11979 = vadd.f32 0.0, %v11978
  %v11980 = vpop.f32.mrb[0].mxu0
  %11981 = vmatprep.mubr.f32.mxu0 0.0
  %11982 = vmatmul.mubr.f32.gmra.mrb[0].mxu0 %v11632
  %v11983 = vpop.f32.mrb[0].mxu0
  %v11984 = vadd.f32 0.0, %v11983
  %v11985 = vpop.f32.mrb[0].mxu0
  %11986 = vmatprep.mubr.f32.mxu0 0.0
  %11987 = vmatmul.mubr.f32.gmra.mrb[0].mxu0 %v11635
  %v11988 = vpop.f32.mrb[0].mxu0
  %v11989 = vadd.f32 0.0, %v11988
  %v11990 = vpop.f32.mrb[0].mxu0
  %11991 = vmatprep.mubr.f32.mxu0 0.0
  %11992 = vmatmul.mubr.f32.gmra.mrb[0].mxu0 %v11638
  %v11993 = vpop.f32.mrb[0].mxu0
  %v11994 = vadd.f32 0.0, %v11993
  %v11995 = vpop.f32.mrb[0].mxu0
  %11996 = vmatprep.mubr.f32.mxu0 0.0
  %11997 = vmatmul.mubr.f32.gmra.mrb[0].mxu0 %v11641
  %v11998 = vpop.f32.mrb[0].mxu0
  %v11999 = vadd.f32 0.0, %v11998
  %v12000 = vpop.f32.mrb[0].mxu0
  %12001 = vmatprep.mubr.f32.mxu0 0.0
  %12002 = vmatmul.mubr.f32.gmra.mrb[0].mxu0 %v11644
  %v12003 = vpop.f32.mrb[0].mxu0
  %v12004 = vadd.f32 0.0, %v12003
  %v12005 = vpop.f32.mrb[0].mxu0
  %12006 = vmatprep.mubr.f32.mxu0 0.0
  %12007 = vmatmul.mubr.f32.gmra.mrb[0].mxu0 %v11647
  %v12008 = vpop.f32.mrb[0].mxu0
  %v12009 = vadd.f32 0.0, %v12008
  %v12010 = vpop.f32.mrb[0].mxu0
  %12011 = vmatprep.mubr.f32.mxu0 0.0
  %12012 = vmatmul.mubr.f32.gmra.mrb[0].mxu0 %v11650
  %v12013 = vpop.f32.mrb[0].mxu0
  %v12014 = vadd.f32 0.0, %v12013
  %v12015 = vpop.f32.mrb[0].mxu0
  %12016 = vmatprep.mubr.f32.mxu0 0.0
  %12017 = vmatmul.mubr.f32.gmra.mrb[0].mxu0 %v11653
  %v12018 = vpop.f32.mrb[0].mxu0
  %v12019 = vadd.f32 0.0, %v12018
  %v12020 = vpop.f32.mrb[0].mxu0
  %12021 = vmatprep.mubr.f32.mxu0 0.0
  %12022 = vmatmul.mubr.f32.gmra.mrb[0].mxu0 %v11656
  %v12023 = vpop.f32.mrb[0].mxu0
  %v12024 = vadd.f32 0.0, %v12023
  %v12025 = vpop.f32.mrb[0].mxu0
  %12026 = vmatprep.mubr.f32.mxu0 0.0
  %12027 = vmatmul.mubr.f32.gmra.mrb[0].mxu0 %v11659
  %v12028 = vpop.f32.mrb[0].mxu0
  %v12029 = vadd.f32 0.0, %v12028
  %v12030 = vpop.f32.mrb[0].mxu0
  %12031 = vmatprep.mubr.f32.mxu0 0.0
  %12032 = vmatmul.mubr.f32.gmra.mrb[0].mxu0 %v11662
  %v12033 = vpop.f32.mrb[0].mxu0
  %v12034 = vadd.f32 0.0, %v12033
  %v12035 = vpop.f32.mrb[0].mxu0
  %12036 = vmatprep.mubr.f32.mxu0 0.0
  %12037 = vmatmul.mubr.f32.gmra.mrb[0].mxu0 %v11665
  %v12038 = vpop.f32.mrb[0].mxu0
  %v12039 = vadd.f32 0.0, %v12038
  %v12040 = vpop.f32.mrb[0].mxu0
  %12041 = vmatprep.mubr.f32.mxu0 0.0
  %12042 = vmatmul.mubr.f32.gmra.mrb[0].mxu0 %v11668
  %v12043 = vpop.f32.mrb[0].mxu0
  %v12044 = vadd.f32 0.0, %v12043
  %v12045 = vpop.f32.mrb[0].mxu0
  %12046 = vmatprep.mubr.f32.mxu0 0.0
  %12047 = vmatmul.mubr.f32.gmra.mrb[0].mxu0 %v11671
  %v12048 = vpop.f32.mrb[0].mxu0
  %v12049 = vadd.f32 0.0, %v12048
  %v12050 = vpop.f32.mrb[0].mxu0
  %12051 = vmatprep.mubr.f32.mxu0 0.0
  %12052 = vmatmul.mubr.f32.gmra.mrb[0].mxu0 %v11674
  %v12053 = vpop.f32.mrb[0].mxu0
  %v12054 = vadd.f32 0.0, %v12053
  %v12055 = vpop.f32.mrb[0].mxu0
  %12056 = vmatprep.mubr.f32.mxu0 0.0
  %12057 = vmatmul.mubr.f32.gmra.mrb[0].mxu0 %v11677
  %v12058 = vpop.f32.mrb[0].mxu0
  %v12059 = vadd.f32 0.0, %v12058
  %v12060 = vpop.f32.mrb[0].mxu0
  %12061 = vmatprep.mubr.f32.mxu0 0.0
  %12062 = vmatmul.mubr.f32.gmra.mrb[0].mxu0 %v11680
  %v12063 = vpop.f32.mrb[0].mxu0
  %v12064 = vadd.f32 0.0, %v12063
  %v12065 = vpop.f32.mrb[0].mxu0
  %12066 = vdwg.mxu0
  %v12067 = vadd.f32 %v11357, %v11749
  %v12068 = vadd.f32 %v11358, %v11754
  %v12069 = vadd.f32 %v11359, %v11759
  %v12070 = vadd.f32 %v11360, %v11764
  %v12071 = vadd.f32 %v11361, %v11769
  %v12072 = vadd.f32 %v11362, %v11774
  %v12073 = vadd.f32 %v11363, %v11779
  %v12074 = vadd.f32 %v11364, %v11784
  %v12075 = vadd.f32 %v11365, %v11789
  %v12076 = vadd.f32 %v11366, %v11794
  %v12077 = vadd.f32 %v11367, %v11799
  %v12078 = vadd.f32 %v11368, %v11804
  %v12079 = vadd.f32 %v11369, %v11809
  %v12080 = vadd.f32 %v11370, %v11814
  %v12081 = vadd.f32 %v11371, %v11819
  %v12082 = vadd.f32 %v11372, %v11824
  %v12083 = vadd.f32 %v11373, %v11829
  %v12084 = vadd.f32 %v11374, %v11834
  %v12085 = vadd.f32 %v11375, %v11839
  %v12086 = vadd.f32 %v11376, %v11844
  %v12087 = vadd.f32 %v11377, %v11849
  %v12088 = vadd.f32 %v11378, %v11854
  %v12089 = vadd.f32 %v11379, %v11859
  %v12090 = vadd.f32 %v11380, %v11864
  %v12091 = vadd.f32 %v11381, %v11869
  %v12092 = vadd.f32 %v11382, %v11874
  %v12093 = vadd.f32 %v11383, %v11879
  %v12094 = vadd.f32 %v11384, %v11884
  %v12095 = vadd.f32 %v11385, %v11889
  %v12096 = vadd.f32 %v11386, %v11894
  %v12097 = vadd.f32 %v11387, %v11899
  %v12098 = vadd.f32 %v11388, %v11904
  %v12099 = vadd.f32 %v11389, %v11909
  %v12100 = vadd.f32 %v11390, %v11914
  %v12101 = vadd.f32 %v11391, %v11919
  %v12102 = vadd.f32 %v11392, %v11924
  %v12103 = vadd.f32 %v11393, %v11929
  %v12104 = vadd.f32 %v11394, %v11934
  %v12105 = vadd.f32 %v11395, %v11939
  %v12106 = vadd.f32 %v11396, %v11944
  %v12107 = vadd.f32 %v11397, %v11949
  %v12108 = vadd.f32 %v11398, %v11954
  %v12109 = vadd.f32 %v11399, %v11959
  %v12110 = vadd.f32 %v11400, %v11964
  %v12111 = vadd.f32 %v11401, %v11969
  %v12112 = vadd.f32 %v11402, %v11974
  %v12113 = vadd.f32 %v11403, %v11979
  %v12114 = vadd.f32 %v11404, %v11984
  %v12115 = vadd.f32 %v11405, %v11989
  %v12116 = vadd.f32 %v11406, %v11994
  %v12117 = vadd.f32 %v11407, %v11999
  %v12118 = vadd.f32 %v11408, %v12004
  %v12119 = vadd.f32 %v11409, %v12009
  %v12120 = vadd.f32 %v11410, %v12014
  %v12121 = vadd.f32 %v11411, %v12019
  %v12122 = vadd.f32 %v11412, %v12024
  %v12123 = vadd.f32 %v11413, %v12029
  %v12124 = vadd.f32 %v11414, %v12034
  %v12125 = vadd.f32 %v11415, %v12039
  %v12126 = vadd.f32 %v11416, %v12044
  %v12127 = vadd.f32 %v11417, %v12049
  %v12128 = vadd.f32 %v11418, %v12054
  %v12129 = vadd.f32 %v11419, %v12059
  %v12130 = vadd.f32 %v11420, %v12064
  %v12131 = vld [vmem:[%s10710 + $0x2] sm:$0xff]
  %v12132 = vld [vmem:[%s10710 + $0xa] sm:$0xff]
  %v12133 = vld [vmem:[%s10710 + $0x1a] sm:$0xff]
  %v12134 = vld [vmem:[%s10710 + $0x22] sm:$0xff]
  %v12135 = vld [vmem:[%s10710 + $0x32] sm:$0xff]
  %v12136 = vld [vmem:[%s10710 + $0x3a] sm:$0xff]
  %v12137 = vld [vmem:[%s10710 + $0x4a] sm:$0xff]
  %v12138 = vld [vmem:[%s10710 + $0x52] sm:$0xff]
  %v12139 = vld [vmem:[%s10710 + $0x62] sm:$0xff]
  %v12140 = vld [vmem:[%s10710 + $0x6a] sm:$0xff]
  %v12141 = vld [vmem:[%s10710 + $0x7a] sm:$0xff]
  %v12142 = vld [vmem:[%s10710 + $0x82] sm:$0xff]
  %v12143 = vld [vmem:[%s10710 + $0x92] sm:$0xff]
  %v12144 = vld [vmem:[%s10710 + $0x9a] sm:$0xff]
  %v12145 = vld [vmem:[%s10710 + $0xaa] sm:$0xff]
  %v12146 = vld [vmem:[%s10710 + $0xb2] sm:$0xff]
  %v12147 = vld [vmem:[%s10710 + $0xc2] sm:$0xff]
  %v12148 = vld [vmem:[%s10710 + $0xca] sm:$0xff]
  %v12149 = vld [vmem:[%s10710 + $0xda] sm:$0xff]
  %v12150 = vld [vmem:[%s10710 + $0xe2] sm:$0xff]
  %v12151 = vld [vmem:[%s10710 + $0xf2] sm:$0xff]
  %v12152 = vld [vmem:[%s10710 + $0xfa] sm:$0xff]
  %v12153 = vld [vmem:[%s10710 + $0x10a] sm:$0xff]
  %v12154 = vld [vmem:[%s10710 + $0x112] sm:$0xff]
  %v12155 = vld [vmem:[%s10710 + $0x122] sm:$0xff]
  %v12156 = vld [vmem:[%s10710 + $0x12a] sm:$0xff]
  %v12157 = vld [vmem:[%s10710 + $0x13a] sm:$0xff]
  %v12158 = vld [vmem:[%s10710 + $0x142] sm:$0xff]
  %v12159 = vld [vmem:[%s10710 + $0x152] sm:$0xff]
  %v12160 = vld [vmem:[%s10710 + $0x15a] sm:$0xff]
  %v12161 = vld [vmem:[%s10710 + $0x16a] sm:$0xff]
  %v12162 = vld [vmem:[%s10710 + $0x172] sm:$0xff]
  %v12163 = vld [vmem:[%s10710 + $0x1b2] sm:$0xff]
  %v12164 = vld [vmem:[%s10710 + $0x1ba] sm:$0xff]
  %v12165 = vld [vmem:[%s10710 + $0x1ca] sm:$0xff]
  %v12166 = vld [vmem:[%s10710 + $0x1d2] sm:$0xff]
  %v12167 = vld [vmem:[%s10710 + $0x1e2] sm:$0xff]
  %v12168 = vld [vmem:[%s10710 + $0x1ea] sm:$0xff]
  %v12169 = vld [vmem:[%s10710 + $0x1fa] sm:$0xff]
  %v12170 = vld [vmem:[%s10710 + $0x202] sm:$0xff]
  %v12171 = vld [vmem:[%s10710 + $0x212] sm:$0xff]
  %v12172 = vld [vmem:[%s10710 + $0x21a] sm:$0xff]
  %v12173 = vld [vmem:[%s10710 + $0x22a] sm:$0xff]
  %v12174 = vld [vmem:[%s10710 + $0x232] sm:$0xff]
  %v12175 = vld [vmem:[%s10710 + $0x242] sm:$0xff]
  %v12176 = vld [vmem:[%s10710 + $0x24a] sm:$0xff]
  %v12177 = vld [vmem:[%s10710 + $0x25a] sm:$0xff]
  %v12178 = vld [vmem:[%s10710 + $0x262] sm:$0xff]
  %v12179 = vld [vmem:[%s10710 + $0x272] sm:$0xff]
  %v12180 = vld [vmem:[%s10710 + $0x27a] sm:$0xff]
  %v12181 = vld [vmem:[%s10710 + $0x28a] sm:$0xff]
  %v12182 = vld [vmem:[%s10710 + $0x292] sm:$0xff]
  %v12183 = vld [vmem:[%s10710 + $0x2a2] sm:$0xff]
  %v12184 = vld [vmem:[%s10710 + $0x2aa] sm:$0xff]
  %v12185 = vld [vmem:[%s10710 + $0x2ba] sm:$0xff]
  %v12186 = vld [vmem:[%s10710 + $0x2c2] sm:$0xff]
  %v12187 = vld [vmem:[%s10710 + $0x2d2] sm:$0xff]
  %v12188 = vld [vmem:[%s10710 + $0x2da] sm:$0xff]
  %v12189 = vld [vmem:[%s10710 + $0x2ea] sm:$0xff]
  %v12190 = vld [vmem:[%s10710 + $0x2f2] sm:$0xff]
  %v12191 = vld [vmem:[%s10710 + $0x302] sm:$0xff]
  %v12192 = vld [vmem:[%s10710 + $0x30a] sm:$0xff]
  %v12193 = vld [vmem:[%s10710 + $0x31a] sm:$0xff]
  %v12194 = vld [vmem:[%s10710 + $0x322] sm:$0xff]
  %s12195 = scalar_lea.vmem %s3, 256
  %v12196 = vld [vmem:[%s12195] sm:$0xff]
  %v12197 = vld [vmem:[%s12195 + $0x8] sm:$0xff]
  %v12198 = vld [vmem:[%s12195 + $0x10] sm:$0xff]
  %v12199 = vld [vmem:[%s12195 + $0x18] sm:$0xff]
  %v12201 = vsel %vm6426, %v12131, 0
  %v12204 = vsel %vm6426, %v12132, 0
  %v12207 = vsel %vm6426, %v12133, 0
  %v12210 = vsel %vm6426, %v12134, 0
  %v12213 = vsel %vm6426, %v12135, 0
  %v12216 = vsel %vm6426, %v12136, 0
  %v12219 = vsel %vm6426, %v12137, 0
  %v12222 = vsel %vm6426, %v12138, 0
  %v12225 = vsel %vm6426, %v12139, 0
  %v12228 = vsel %vm6426, %v12140, 0
  %v12231 = vsel %vm6426, %v12141, 0
  %v12234 = vsel %vm6426, %v12142, 0
  %v12237 = vsel %vm6426, %v12143, 0
  %v12240 = vsel %vm6426, %v12144, 0
  %v12243 = vsel %vm6426, %v12145, 0
  %v12246 = vsel %vm6426, %v12146, 0
  %v12249 = vsel %vm6426, %v12147, 0
  %v12252 = vsel %vm6426, %v12148, 0
  %v12255 = vsel %vm6426, %v12149, 0
  %v12258 = vsel %vm6426, %v12150, 0
  %v12261 = vsel %vm6426, %v12151, 0
  %v12264 = vsel %vm6426, %v12152, 0
  %v12267 = vsel %vm6426, %v12153, 0
  %v12270 = vsel %vm6426, %v12154, 0
  %v12273 = vsel %vm6426, %v12155, 0
  %v12276 = vsel %vm6426, %v12156, 0
  %v12279 = vsel %vm6426, %v12157, 0
  %v12282 = vsel %vm6426, %v12158, 0
  %v12285 = vsel %vm6426, %v12159, 0
  %v12288 = vsel %vm6426, %v12160, 0
  %v12291 = vsel %vm6426, %v12161, 0
  %v12294 = vsel %vm6426, %v12162, 0
  %v12297 = vsel %vm6426, %v12163, 0
  %v12300 = vsel %vm6426, %v12164, 0
  %v12303 = vsel %vm6426, %v12165, 0
  %v12306 = vsel %vm6426, %v12166, 0
  %v12309 = vsel %vm6426, %v12167, 0
  %v12312 = vsel %vm6426, %v12168, 0
  %v12315 = vsel %vm6426, %v12169, 0
  %v12318 = vsel %vm6426, %v12170, 0
  %v12321 = vsel %vm6426, %v12171, 0
  %v12324 = vsel %vm6426, %v12172, 0
  %v12327 = vsel %vm6426, %v12173, 0
  %v12330 = vsel %vm6426, %v12174, 0
  %v12333 = vsel %vm6426, %v12175, 0
  %v12336 = vsel %vm6426, %v12176, 0
  %v12339 = vsel %vm6426, %v12177, 0
  %v12342 = vsel %vm6426, %v12178, 0
  %v12345 = vsel %vm6426, %v12179, 0
  %v12348 = vsel %vm6426, %v12180, 0
  %v12351 = vsel %vm6426, %v12181, 0
  %v12354 = vsel %vm6426, %v12182, 0
  %v12357 = vsel %vm6426, %v12183, 0
  %v12360 = vsel %vm6426, %v12184, 0
  %v12363 = vsel %vm6426, %v12185, 0
  %v12366 = vsel %vm6426, %v12186, 0
  %v12369 = vsel %vm6426, %v12187, 0
  %v12372 = vsel %vm6426, %v12188, 0
  %v12375 = vsel %vm6426, %v12189, 0
  %v12378 = vsel %vm6426, %v12190, 0
  %v12381 = vsel %vm6426, %v12191, 0
  %v12384 = vsel %vm6426, %v12192, 0
  %v12387 = vsel %vm6426, %v12193, 0
  %v12390 = vsel %vm6426, %v12194, 0
  %12392 = vmatprep.subr.mxu0 0.0
  %12393 = vmatpush1.msra.mxu0 %v12196
  %12394 = vmatprep.subr.mxu0 0.0
  %12395 = vmatpush1.msra.mxu0 %v12197
  %12396 = vmatprep.subr.mxu0 0.0
  %12397 = vmatpush1.msra.mxu0 %v12198
  %12398 = vmatprep.subr.mxu0 0.0
  %12399 = vmatpush1.msra.mxu0 %v12199
  %12400 = vmatprep.subr.mxu0 0.0
  %12401 = vmatpush1.msra.mxu0 0.0
  %12402 = vmatprep.subr.mxu0 0.0
  %12403 = vmatpush1.msra.mxu0 0.0
  %12404 = vmatprep.subr.mxu0 0.0
  %12405 = vmatpush1.msra.mxu0 0.0
  %12406 = vmatprep.subr.mxu0 0.0
  %12407 = vmatpush1.msra.mxu0 0.0
  %12408 = vmatprep.subr.mxu0 0.0
  %12409 = vmatpush1.msra.mxu0 0.0
  %12410 = vmatprep.subr.mxu0 0.0
  %12411 = vmatpush1.msra.mxu0 0.0
  %12412 = vmatprep.subr.mxu0 0.0
  %12413 = vmatpush1.msra.mxu0 0.0
  %12414 = vmatprep.subr.mxu0 0.0
  %12415 = vmatpush1.msra.mxu0 0.0
  %12416 = vmatprep.subr.mxu0 0.0
  %12417 = vmatpush1.msra.mxu0 0.0
  %12418 = vmatprep.subr.mxu0 0.0
  %12419 = vmatpush1.msra.mxu0 0.0
  %12420 = vmatprep.subr.mxu0 0.0
  %12421 = vmatpush1.msra.mxu0 0.0
  %12422 = vmatprep.subr.mxu0 0.0
  %12423 = vmatpush1.msra.mxu0 0.0
  %12424 = vmatprep.subr.mxu0 0.0
  %12425 = vmatpush1.msra.mxu0 0.0
  %12426 = vmatprep.subr.mxu0 0.0
  %12427 = vmatpush1.msra.mxu0 0.0
  %12428 = vmatprep.subr.mxu0 0.0
  %12429 = vmatpush1.msra.mxu0 0.0
  %12430 = vmatprep.subr.mxu0 0.0
  %12431 = vmatpush1.msra.mxu0 0.0
  %12432 = vmatprep.subr.mxu0 0.0
  %12433 = vmatpush1.msra.mxu0 0.0
  %12434 = vmatprep.subr.mxu0 0.0
  %12435 = vmatpush1.msra.mxu0 0.0
  %12436 = vmatprep.subr.mxu0 0.0
  %12437 = vmatpush1.msra.mxu0 0.0
  %12438 = vmatprep.subr.mxu0 0.0
  %12439 = vmatpush1.msra.mxu0 0.0
  %12440 = vmatprep.subr.mxu0 0.0
  %12441 = vmatpush1.msra.mxu0 0.0
  %12442 = vmatprep.subr.mxu0 0.0
  %12443 = vmatpush1.msra.mxu0 0.0
  %12444 = vmatprep.subr.mxu0 0.0
  %12445 = vmatpush1.msra.mxu0 0.0
  %12446 = vmatprep.subr.mxu0 0.0
  %12447 = vmatpush1.msra.mxu0 0.0
  %12448 = vmatprep.subr.mxu0 0.0
  %12449 = vmatpush1.msra.mxu0 0.0
  %12450 = vmatprep.subr.mxu0 0.0
  %12451 = vmatpush1.msra.mxu0 0.0
  %12452 = vmatprep.subr.mxu0 0.0
  %12453 = vmatpush1.msra.mxu0 0.0
  %12454 = vmatprep.subr.mxu0 0.0
  %12455 = vmatpush1.msra.mxu0 0.0
  %12456 = vmatprep.mubr.f32.mxu0 0.0
  %12457 = vmatmul.mubr.f32.gmra.mrb[0].mxu0 %v12201
  %v12458 = vpop.f32.mrb[0].mxu0
  %v12459 = vadd.f32 0.0, %v12458
  %v12460 = vpop.f32.mrb[0].mxu0
  %12461 = vmatprep.mubr.f32.mxu0 0.0
  %12462 = vmatmul.mubr.f32.gmra.mrb[0].mxu0 %v12204
  %v12463 = vpop.f32.mrb[0].mxu0
  %v12464 = vadd.f32 0.0, %v12463
  %v12465 = vpop.f32.mrb[0].mxu0
  %12466 = vmatprep.mubr.f32.mxu0 0.0
  %12467 = vmatmul.mubr.f32.gmra.mrb[0].mxu0 %v12207
  %v12468 = vpop.f32.mrb[0].mxu0
  %v12469 = vadd.f32 0.0, %v12468
  %v12470 = vpop.f32.mrb[0].mxu0
  %12471 = vmatprep.mubr.f32.mxu0 0.0
  %12472 = vmatmul.mubr.f32.gmra.mrb[0].mxu0 %v12210
  %v12473 = vpop.f32.mrb[0].mxu0
  %v12474 = vadd.f32 0.0, %v12473
  %v12475 = vpop.f32.mrb[0].mxu0
  %12476 = vmatprep.mubr.f32.mxu0 0.0
  %12477 = vmatmul.mubr.f32.gmra.mrb[0].mxu0 %v12213
  %v12478 = vpop.f32.mrb[0].mxu0
  %v12479 = vadd.f32 0.0, %v12478
  %v12480 = vpop.f32.mrb[0].mxu0
  %12481 = vmatprep.mubr.f32.mxu0 0.0
  %12482 = vmatmul.mubr.f32.gmra.mrb[0].mxu0 %v12216
  %v12483 = vpop.f32.mrb[0].mxu0
  %v12484 = vadd.f32 0.0, %v12483
  %v12485 = vpop.f32.mrb[0].mxu0
  %12486 = vmatprep.mubr.f32.mxu0 0.0
  %12487 = vmatmul.mubr.f32.gmra.mrb[0].mxu0 %v12219
  %v12488 = vpop.f32.mrb[0].mxu0
  %v12489 = vadd.f32 0.0, %v12488
  %v12490 = vpop.f32.mrb[0].mxu0
  %12491 = vmatprep.mubr.f32.mxu0 0.0
  %12492 = vmatmul.mubr.f32.gmra.mrb[0].mxu0 %v12222
  %v12493 = vpop.f32.mrb[0].mxu0
  %v12494 = vadd.f32 0.0, %v12493
  %v12495 = vpop.f32.mrb[0].mxu0
  %12496 = vmatprep.mubr.f32.mxu0 0.0
  %12497 = vmatmul.mubr.f32.gmra.mrb[0].mxu0 %v12225
  %v12498 = vpop.f32.mrb[0].mxu0
  %v12499 = vadd.f32 0.0, %v12498
  %v12500 = vpop.f32.mrb[0].mxu0
  %12501 = vmatprep.mubr.f32.mxu0 0.0
  %12502 = vmatmul.mubr.f32.gmra.mrb[0].mxu0 %v12228
  %v12503 = vpop.f32.mrb[0].mxu0
  %v12504 = vadd.f32 0.0, %v12503
  %v12505 = vpop.f32.mrb[0].mxu0
  %12506 = vmatprep.mubr.f32.mxu0 0.0
  %12507 = vmatmul.mubr.f32.gmra.mrb[0].mxu0 %v12231
  %v12508 = vpop.f32.mrb[0].mxu0
  %v12509 = vadd.f32 0.0, %v12508
  %v12510 = vpop.f32.mrb[0].mxu0
  %12511 = vmatprep.mubr.f32.mxu0 0.0
  %12512 = vmatmul.mubr.f32.gmra.mrb[0].mxu0 %v12234
  %v12513 = vpop.f32.mrb[0].mxu0
  %v12514 = vadd.f32 0.0, %v12513
  %v12515 = vpop.f32.mrb[0].mxu0
  %12516 = vmatprep.mubr.f32.mxu0 0.0
  %12517 = vmatmul.mubr.f32.gmra.mrb[0].mxu0 %v12237
  %v12518 = vpop.f32.mrb[0].mxu0
  %v12519 = vadd.f32 0.0, %v12518
  %v12520 = vpop.f32.mrb[0].mxu0
  %12521 = vmatprep.mubr.f32.mxu0 0.0
  %12522 = vmatmul.mubr.f32.gmra.mrb[0].mxu0 %v12240
  %v12523 = vpop.f32.mrb[0].mxu0
  %v12524 = vadd.f32 0.0, %v12523
  %v12525 = vpop.f32.mrb[0].mxu0
  %12526 = vmatprep.mubr.f32.mxu0 0.0
  %12527 = vmatmul.mubr.f32.gmra.mrb[0].mxu0 %v12243
  %v12528 = vpop.f32.mrb[0].mxu0
  %v12529 = vadd.f32 0.0, %v12528
  %v12530 = vpop.f32.mrb[0].mxu0
  %12531 = vmatprep.mubr.f32.mxu0 0.0
  %12532 = vmatmul.mubr.f32.gmra.mrb[0].mxu0 %v12246
  %v12533 = vpop.f32.mrb[0].mxu0
  %v12534 = vadd.f32 0.0, %v12533
  %v12535 = vpop.f32.mrb[0].mxu0
  %12536 = vmatprep.mubr.f32.mxu0 0.0
  %12537 = vmatmul.mubr.f32.gmra.mrb[0].mxu0 %v12249
  %v12538 = vpop.f32.mrb[0].mxu0
  %v12539 = vadd.f32 0.0, %v12538
  %v12540 = vpop.f32.mrb[0].mxu0
  %12541 = vmatprep.mubr.f32.mxu0 0.0
  %12542 = vmatmul.mubr.f32.gmra.mrb[0].mxu0 %v12252
  %v12543 = vpop.f32.mrb[0].mxu0
  %v12544 = vadd.f32 0.0, %v12543
  %v12545 = vpop.f32.mrb[0].mxu0
  %12546 = vmatprep.mubr.f32.mxu0 0.0
  %12547 = vmatmul.mubr.f32.gmra.mrb[0].mxu0 %v12255
  %v12548 = vpop.f32.mrb[0].mxu0
  %v12549 = vadd.f32 0.0, %v12548
  %v12550 = vpop.f32.mrb[0].mxu0
  %12551 = vmatprep.mubr.f32.mxu0 0.0
  %12552 = vmatmul.mubr.f32.gmra.mrb[0].mxu0 %v12258
  %v12553 = vpop.f32.mrb[0].mxu0
  %v12554 = vadd.f32 0.0, %v12553
  %v12555 = vpop.f32.mrb[0].mxu0
  %12556 = vmatprep.mubr.f32.mxu0 0.0
  %12557 = vmatmul.mubr.f32.gmra.mrb[0].mxu0 %v12261
  %v12558 = vpop.f32.mrb[0].mxu0
  %v12559 = vadd.f32 0.0, %v12558
  %v12560 = vpop.f32.mrb[0].mxu0
  %12561 = vmatprep.mubr.f32.mxu0 0.0
  %12562 = vmatmul.mubr.f32.gmra.mrb[0].mxu0 %v12264
  %v12563 = vpop.f32.mrb[0].mxu0
  %v12564 = vadd.f32 0.0, %v12563
  %v12565 = vpop.f32.mrb[0].mxu0
  %12566 = vmatprep.mubr.f32.mxu0 0.0
  %12567 = vmatmul.mubr.f32.gmra.mrb[0].mxu0 %v12267
  %v12568 = vpop.f32.mrb[0].mxu0
  %v12569 = vadd.f32 0.0, %v12568
  %v12570 = vpop.f32.mrb[0].mxu0
  %12571 = vmatprep.mubr.f32.mxu0 0.0
  %12572 = vmatmul.mubr.f32.gmra.mrb[0].mxu0 %v12270
  %v12573 = vpop.f32.mrb[0].mxu0
  %v12574 = vadd.f32 0.0, %v12573
  %v12575 = vpop.f32.mrb[0].mxu0
  %12576 = vmatprep.mubr.f32.mxu0 0.0
  %12577 = vmatmul.mubr.f32.gmra.mrb[0].mxu0 %v12273
  %v12578 = vpop.f32.mrb[0].mxu0
  %v12579 = vadd.f32 0.0, %v12578
  %v12580 = vpop.f32.mrb[0].mxu0
  %12581 = vmatprep.mubr.f32.mxu0 0.0
  %12582 = vmatmul.mubr.f32.gmra.mrb[0].mxu0 %v12276
  %v12583 = vpop.f32.mrb[0].mxu0
  %v12584 = vadd.f32 0.0, %v12583
  %v12585 = vpop.f32.mrb[0].mxu0
  %12586 = vmatprep.mubr.f32.mxu0 0.0
  %12587 = vmatmul.mubr.f32.gmra.mrb[0].mxu0 %v12279
  %v12588 = vpop.f32.mrb[0].mxu0
  %v12589 = vadd.f32 0.0, %v12588
  %v12590 = vpop.f32.mrb[0].mxu0
  %12591 = vmatprep.mubr.f32.mxu0 0.0
  %12592 = vmatmul.mubr.f32.gmra.mrb[0].mxu0 %v12282
  %v12593 = vpop.f32.mrb[0].mxu0
  %v12594 = vadd.f32 0.0, %v12593
  %v12595 = vpop.f32.mrb[0].mxu0
  %12596 = vmatprep.mubr.f32.mxu0 0.0
  %12597 = vmatmul.mubr.f32.gmra.mrb[0].mxu0 %v12285
  %v12598 = vpop.f32.mrb[0].mxu0
  %v12599 = vadd.f32 0.0, %v12598
  %v12600 = vpop.f32.mrb[0].mxu0
  %12601 = vmatprep.mubr.f32.mxu0 0.0
  %12602 = vmatmul.mubr.f32.gmra.mrb[0].mxu0 %v12288
  %v12603 = vpop.f32.mrb[0].mxu0
  %v12604 = vadd.f32 0.0, %v12603
  %v12605 = vpop.f32.mrb[0].mxu0
  %12606 = vmatprep.mubr.f32.mxu0 0.0
  %12607 = vmatmul.mubr.f32.gmra.mrb[0].mxu0 %v12291
  %v12608 = vpop.f32.mrb[0].mxu0
  %v12609 = vadd.f32 0.0, %v12608
  %v12610 = vpop.f32.mrb[0].mxu0
  %12611 = vmatprep.mubr.f32.mxu0 0.0
  %12612 = vmatmul.mubr.f32.gmra.mrb[0].mxu0 %v12294
  %v12613 = vpop.f32.mrb[0].mxu0
  %v12614 = vadd.f32 0.0, %v12613
  %v12615 = vpop.f32.mrb[0].mxu0
  %12616 = vmatprep.mubr.f32.mxu0 0.0
  %12617 = vmatmul.mubr.f32.gmra.mrb[0].mxu0 %v12297
  %v12618 = vpop.f32.mrb[0].mxu0
  %v12619 = vadd.f32 0.0, %v12618
  %v12620 = vpop.f32.mrb[0].mxu0
  %12621 = vmatprep.mubr.f32.mxu0 0.0
  %12622 = vmatmul.mubr.f32.gmra.mrb[0].mxu0 %v12300
  %v12623 = vpop.f32.mrb[0].mxu0
  %v12624 = vadd.f32 0.0, %v12623
  %v12625 = vpop.f32.mrb[0].mxu0
  %12626 = vmatprep.mubr.f32.mxu0 0.0
  %12627 = vmatmul.mubr.f32.gmra.mrb[0].mxu0 %v12303
  %v12628 = vpop.f32.mrb[0].mxu0
  %v12629 = vadd.f32 0.0, %v12628
  %v12630 = vpop.f32.mrb[0].mxu0
  %12631 = vmatprep.mubr.f32.mxu0 0.0
  %12632 = vmatmul.mubr.f32.gmra.mrb[0].mxu0 %v12306
  %v12633 = vpop.f32.mrb[0].mxu0
  %v12634 = vadd.f32 0.0, %v12633
  %v12635 = vpop.f32.mrb[0].mxu0
  %12636 = vmatprep.mubr.f32.mxu0 0.0
  %12637 = vmatmul.mubr.f32.gmra.mrb[0].mxu0 %v12309
  %v12638 = vpop.f32.mrb[0].mxu0
  %v12639 = vadd.f32 0.0, %v12638
  %v12640 = vpop.f32.mrb[0].mxu0
  %12641 = vmatprep.mubr.f32.mxu0 0.0
  %12642 = vmatmul.mubr.f32.gmra.mrb[0].mxu0 %v12312
  %v12643 = vpop.f32.mrb[0].mxu0
  %v12644 = vadd.f32 0.0, %v12643
  %v12645 = vpop.f32.mrb[0].mxu0
  %12646 = vmatprep.mubr.f32.mxu0 0.0
  %12647 = vmatmul.mubr.f32.gmra.mrb[0].mxu0 %v12315
  %v12648 = vpop.f32.mrb[0].mxu0
  %v12649 = vadd.f32 0.0, %v12648
  %v12650 = vpop.f32.mrb[0].mxu0
  %12651 = vmatprep.mubr.f32.mxu0 0.0
  %12652 = vmatmul.mubr.f32.gmra.mrb[0].mxu0 %v12318
  %v12653 = vpop.f32.mrb[0].mxu0
  %v12654 = vadd.f32 0.0, %v12653
  %v12655 = vpop.f32.mrb[0].mxu0
  %12656 = vmatprep.mubr.f32.mxu0 0.0
  %12657 = vmatmul.mubr.f32.gmra.mrb[0].mxu0 %v12321
  %v12658 = vpop.f32.mrb[0].mxu0
  %v12659 = vadd.f32 0.0, %v12658
  %v12660 = vpop.f32.mrb[0].mxu0
  %12661 = vmatprep.mubr.f32.mxu0 0.0
  %12662 = vmatmul.mubr.f32.gmra.mrb[0].mxu0 %v12324
  %v12663 = vpop.f32.mrb[0].mxu0
  %v12664 = vadd.f32 0.0, %v12663
  %v12665 = vpop.f32.mrb[0].mxu0
  %12666 = vmatprep.mubr.f32.mxu0 0.0
  %12667 = vmatmul.mubr.f32.gmra.mrb[0].mxu0 %v12327
  %v12668 = vpop.f32.mrb[0].mxu0
  %v12669 = vadd.f32 0.0, %v12668
  %v12670 = vpop.f32.mrb[0].mxu0
  %12671 = vmatprep.mubr.f32.mxu0 0.0
  %12672 = vmatmul.mubr.f32.gmra.mrb[0].mxu0 %v12330
  %v12673 = vpop.f32.mrb[0].mxu0
  %v12674 = vadd.f32 0.0, %v12673
  %v12675 = vpop.f32.mrb[0].mxu0
  %12676 = vmatprep.mubr.f32.mxu0 0.0
  %12677 = vmatmul.mubr.f32.gmra.mrb[0].mxu0 %v12333
  %v12678 = vpop.f32.mrb[0].mxu0
  %v12679 = vadd.f32 0.0, %v12678
  %v12680 = vpop.f32.mrb[0].mxu0
  %12681 = vmatprep.mubr.f32.mxu0 0.0
  %12682 = vmatmul.mubr.f32.gmra.mrb[0].mxu0 %v12336
  %v12683 = vpop.f32.mrb[0].mxu0
  %v12684 = vadd.f32 0.0, %v12683
  %v12685 = vpop.f32.mrb[0].mxu0
  %12686 = vmatprep.mubr.f32.mxu0 0.0
  %12687 = vmatmul.mubr.f32.gmra.mrb[0].mxu0 %v12339
  %v12688 = vpop.f32.mrb[0].mxu0
  %v12689 = vadd.f32 0.0, %v12688
  %v12690 = vpop.f32.mrb[0].mxu0
  %12691 = vmatprep.mubr.f32.mxu0 0.0
  %12692 = vmatmul.mubr.f32.gmra.mrb[0].mxu0 %v12342
  %v12693 = vpop.f32.mrb[0].mxu0
  %v12694 = vadd.f32 0.0, %v12693
  %v12695 = vpop.f32.mrb[0].mxu0
  %12696 = vmatprep.mubr.f32.mxu0 0.0
  %12697 = vmatmul.mubr.f32.gmra.mrb[0].mxu0 %v12345
  %v12698 = vpop.f32.mrb[0].mxu0
  %v12699 = vadd.f32 0.0, %v12698
  %v12700 = vpop.f32.mrb[0].mxu0
  %12701 = vmatprep.mubr.f32.mxu0 0.0
  %12702 = vmatmul.mubr.f32.gmra.mrb[0].mxu0 %v12348
  %v12703 = vpop.f32.mrb[0].mxu0
  %v12704 = vadd.f32 0.0, %v12703
  %v12705 = vpop.f32.mrb[0].mxu0
  %12706 = vmatprep.mubr.f32.mxu0 0.0
  %12707 = vmatmul.mubr.f32.gmra.mrb[0].mxu0 %v12351
  %v12708 = vpop.f32.mrb[0].mxu0
  %v12709 = vadd.f32 0.0, %v12708
  %v12710 = vpop.f32.mrb[0].mxu0
  %12711 = vmatprep.mubr.f32.mxu0 0.0
  %12712 = vmatmul.mubr.f32.gmra.mrb[0].mxu0 %v12354
  %v12713 = vpop.f32.mrb[0].mxu0
  %v12714 = vadd.f32 0.0, %v12713
  %v12715 = vpop.f32.mrb[0].mxu0
  %12716 = vmatprep.mubr.f32.mxu0 0.0
  %12717 = vmatmul.mubr.f32.gmra.mrb[0].mxu0 %v12357
  %v12718 = vpop.f32.mrb[0].mxu0
  %v12719 = vadd.f32 0.0, %v12718
  %v12720 = vpop.f32.mrb[0].mxu0
  %12721 = vmatprep.mubr.f32.mxu0 0.0
  %12722 = vmatmul.mubr.f32.gmra.mrb[0].mxu0 %v12360
  %v12723 = vpop.f32.mrb[0].mxu0
  %v12724 = vadd.f32 0.0, %v12723
  %v12725 = vpop.f32.mrb[0].mxu0
  %12726 = vmatprep.mubr.f32.mxu0 0.0
  %12727 = vmatmul.mubr.f32.gmra.mrb[0].mxu0 %v12363
  %v12728 = vpop.f32.mrb[0].mxu0
  %v12729 = vadd.f32 0.0, %v12728
  %v12730 = vpop.f32.mrb[0].mxu0
  %12731 = vmatprep.mubr.f32.mxu0 0.0
  %12732 = vmatmul.mubr.f32.gmra.mrb[0].mxu0 %v12366
  %v12733 = vpop.f32.mrb[0].mxu0
  %v12734 = vadd.f32 0.0, %v12733
  %v12735 = vpop.f32.mrb[0].mxu0
  %12736 = vmatprep.mubr.f32.mxu0 0.0
  %12737 = vmatmul.mubr.f32.gmra.mrb[0].mxu0 %v12369
  %v12738 = vpop.f32.mrb[0].mxu0
  %v12739 = vadd.f32 0.0, %v12738
  %v12740 = vpop.f32.mrb[0].mxu0
  %12741 = vmatprep.mubr.f32.mxu0 0.0
  %12742 = vmatmul.mubr.f32.gmra.mrb[0].mxu0 %v12372
  %v12743 = vpop.f32.mrb[0].mxu0
  %v12744 = vadd.f32 0.0, %v12743
  %v12745 = vpop.f32.mrb[0].mxu0
  %12746 = vmatprep.mubr.f32.mxu0 0.0
  %12747 = vmatmul.mubr.f32.gmra.mrb[0].mxu0 %v12375
  %v12748 = vpop.f32.mrb[0].mxu0
  %v12749 = vadd.f32 0.0, %v12748
  %v12750 = vpop.f32.mrb[0].mxu0
  %12751 = vmatprep.mubr.f32.mxu0 0.0
  %12752 = vmatmul.mubr.f32.gmra.mrb[0].mxu0 %v12378
  %v12753 = vpop.f32.mrb[0].mxu0
  %v12754 = vadd.f32 0.0, %v12753
  %v12755 = vpop.f32.mrb[0].mxu0
  %12756 = vmatprep.mubr.f32.mxu0 0.0
  %12757 = vmatmul.mubr.f32.gmra.mrb[0].mxu0 %v12381
  %v12758 = vpop.f32.mrb[0].mxu0
  %v12759 = vadd.f32 0.0, %v12758
  %v12760 = vpop.f32.mrb[0].mxu0
  %12761 = vmatprep.mubr.f32.mxu0 0.0
  %12762 = vmatmul.mubr.f32.gmra.mrb[0].mxu0 %v12384
  %v12763 = vpop.f32.mrb[0].mxu0
  %v12764 = vadd.f32 0.0, %v12763
  %v12765 = vpop.f32.mrb[0].mxu0
  %12766 = vmatprep.mubr.f32.mxu0 0.0
  %12767 = vmatmul.mubr.f32.gmra.mrb[0].mxu0 %v12387
  %v12768 = vpop.f32.mrb[0].mxu0
  %v12769 = vadd.f32 0.0, %v12768
  %v12770 = vpop.f32.mrb[0].mxu0
  %12771 = vmatprep.mubr.f32.mxu0 0.0
  %12772 = vmatmul.mubr.f32.gmra.mrb[0].mxu0 %v12390
  %v12773 = vpop.f32.mrb[0].mxu0
  %v12774 = vadd.f32 0.0, %v12773
  %v12775 = vpop.f32.mrb[0].mxu0
  %12776 = vdwg.mxu0
  %v12777 = vadd.f32 %v12067, %v12459
  %v12778 = vadd.f32 %v12068, %v12464
  %v12779 = vadd.f32 %v12069, %v12469
  %v12780 = vadd.f32 %v12070, %v12474
  %v12781 = vadd.f32 %v12071, %v12479
  %v12782 = vadd.f32 %v12072, %v12484
  %v12783 = vadd.f32 %v12073, %v12489
  %v12784 = vadd.f32 %v12074, %v12494
  %v12785 = vadd.f32 %v12075, %v12499
  %v12786 = vadd.f32 %v12076, %v12504
  %v12787 = vadd.f32 %v12077, %v12509
  %v12788 = vadd.f32 %v12078, %v12514
  %v12789 = vadd.f32 %v12079, %v12519
  %v12790 = vadd.f32 %v12080, %v12524
  %v12791 = vadd.f32 %v12081, %v12529
  %v12792 = vadd.f32 %v12082, %v12534
  %v12793 = vadd.f32 %v12083, %v12539
  %v12794 = vadd.f32 %v12084, %v12544
  %v12795 = vadd.f32 %v12085, %v12549
  %v12796 = vadd.f32 %v12086, %v12554
  %v12797 = vadd.f32 %v12087, %v12559
  %v12798 = vadd.f32 %v12088, %v12564
  %v12799 = vadd.f32 %v12089, %v12569
  %v12800 = vadd.f32 %v12090, %v12574
  %v12801 = vadd.f32 %v12091, %v12579
  %v12802 = vadd.f32 %v12092, %v12584
  %v12803 = vadd.f32 %v12093, %v12589
  %v12804 = vadd.f32 %v12094, %v12594
  %v12805 = vadd.f32 %v12095, %v12599
  %v12806 = vadd.f32 %v12096, %v12604
  %v12807 = vadd.f32 %v12097, %v12609
  %v12808 = vadd.f32 %v12098, %v12614
  %v12809 = vadd.f32 %v12099, %v12619
  %v12810 = vadd.f32 %v12100, %v12624
  %v12811 = vadd.f32 %v12101, %v12629
  %v12812 = vadd.f32 %v12102, %v12634
  %v12813 = vadd.f32 %v12103, %v12639
  %v12814 = vadd.f32 %v12104, %v12644
  %v12815 = vadd.f32 %v12105, %v12649
  %v12816 = vadd.f32 %v12106, %v12654
  %v12817 = vadd.f32 %v12107, %v12659
  %v12818 = vadd.f32 %v12108, %v12664
  %v12819 = vadd.f32 %v12109, %v12669
  %v12820 = vadd.f32 %v12110, %v12674
  %v12821 = vadd.f32 %v12111, %v12679
  %v12822 = vadd.f32 %v12112, %v12684
  %v12823 = vadd.f32 %v12113, %v12689
  %v12824 = vadd.f32 %v12114, %v12694
  %v12825 = vadd.f32 %v12115, %v12699
  %v12826 = vadd.f32 %v12116, %v12704
  %v12827 = vadd.f32 %v12117, %v12709
  %v12828 = vadd.f32 %v12118, %v12714
  %v12829 = vadd.f32 %v12119, %v12719
  %v12830 = vadd.f32 %v12120, %v12724
  %v12831 = vadd.f32 %v12121, %v12729
  %v12832 = vadd.f32 %v12122, %v12734
  %v12833 = vadd.f32 %v12123, %v12739
  %v12834 = vadd.f32 %v12124, %v12744
  %v12835 = vadd.f32 %v12125, %v12749
  %v12836 = vadd.f32 %v12126, %v12754
  %v12837 = vadd.f32 %v12127, %v12759
  %v12838 = vadd.f32 %v12128, %v12764
  %v12839 = vadd.f32 %v12129, %v12769
  %v12840 = vadd.f32 %v12130, %v12774
  %v12841 = vld [vmem:[%s4] sm:$0x1]
  %v12843 = vlaneseq
  %v12844 = vshrl.u32 %v12843, 7
  %v12845 = vsub.s32 0, %v12844
  %v12846 = vrot.slane %v12841, %v12845
  %v12848 = vadd.f32 %v12777, %v12846
  %v12849 = vadd.f32 %v12778, %v12846
  %v12850 = vadd.f32 %v12779, %v12846
  %v12851 = vadd.f32 %v12780, %v12846
  %v12852 = vadd.f32 %v12781, %v12846
  %v12853 = vadd.f32 %v12782, %v12846
  %v12854 = vadd.f32 %v12783, %v12846
  %v12855 = vadd.f32 %v12784, %v12846
  %v12856 = vadd.f32 %v12785, %v12846
  %v12857 = vadd.f32 %v12786, %v12846
  %v12858 = vadd.f32 %v12787, %v12846
  %v12859 = vadd.f32 %v12788, %v12846
  %v12860 = vadd.f32 %v12789, %v12846
  %v12861 = vadd.f32 %v12790, %v12846
  %v12862 = vadd.f32 %v12791, %v12846
  %v12863 = vadd.f32 %v12792, %v12846
  %v12864 = vadd.f32 %v12793, %v12846
  %v12865 = vadd.f32 %v12794, %v12846
  %v12866 = vadd.f32 %v12795, %v12846
  %v12867 = vadd.f32 %v12796, %v12846
  %v12868 = vadd.f32 %v12797, %v12846
  %v12869 = vadd.f32 %v12798, %v12846
  %v12870 = vadd.f32 %v12799, %v12846
  %v12871 = vadd.f32 %v12800, %v12846
  %v12872 = vadd.f32 %v12801, %v12846
  %v12873 = vadd.f32 %v12802, %v12846
  %v12874 = vadd.f32 %v12803, %v12846
  %v12875 = vadd.f32 %v12804, %v12846
  %v12876 = vadd.f32 %v12805, %v12846
  %v12877 = vadd.f32 %v12806, %v12846
  %v12878 = vadd.f32 %v12807, %v12846
  %v12879 = vadd.f32 %v12808, %v12846
  %v12880 = vadd.f32 %v12809, %v12846
  %v12881 = vadd.f32 %v12810, %v12846
  %v12882 = vadd.f32 %v12811, %v12846
  %v12883 = vadd.f32 %v12812, %v12846
  %v12884 = vadd.f32 %v12813, %v12846
  %v12885 = vadd.f32 %v12814, %v12846
  %v12886 = vadd.f32 %v12815, %v12846
  %v12887 = vadd.f32 %v12816, %v12846
  %v12888 = vadd.f32 %v12817, %v12846
  %v12889 = vadd.f32 %v12818, %v12846
  %v12890 = vadd.f32 %v12819, %v12846
  %v12891 = vadd.f32 %v12820, %v12846
  %v12892 = vadd.f32 %v12821, %v12846
  %v12893 = vadd.f32 %v12822, %v12846
  %v12894 = vadd.f32 %v12823, %v12846
  %v12895 = vadd.f32 %v12824, %v12846
  %v12896 = vadd.f32 %v12825, %v12846
  %v12897 = vadd.f32 %v12826, %v12846
  %v12898 = vadd.f32 %v12827, %v12846
  %v12899 = vadd.f32 %v12828, %v12846
  %v12900 = vadd.f32 %v12829, %v12846
  %v12901 = vadd.f32 %v12830, %v12846
  %v12902 = vadd.f32 %v12831, %v12846
  %v12903 = vadd.f32 %v12832, %v12846
  %v12904 = vadd.f32 %v12833, %v12846
  %v12905 = vadd.f32 %v12834, %v12846
  %v12906 = vadd.f32 %v12835, %v12846
  %v12907 = vadd.f32 %v12836, %v12846
  %v12908 = vadd.f32 %v12837, %v12846
  %v12909 = vadd.f32 %v12838, %v12846
  %v12910 = vadd.f32 %v12839, %v12846
  %v12911 = vadd.f32 %v12840, %v12846
  %v12912 = vmax.f32 %v12848, 0.0
  %v12913 = vmax.f32 %v12849, 0.0
  %v12914 = vmax.f32 %v12850, 0.0
  %v12915 = vmax.f32 %v12851, 0.0
  %v12916 = vmax.f32 %v12852, 0.0
  %v12917 = vmax.f32 %v12853, 0.0
  %v12918 = vmax.f32 %v12854, 0.0
  %v12919 = vmax.f32 %v12855, 0.0
  %v12920 = vmax.f32 %v12856, 0.0
  %v12921 = vmax.f32 %v12857, 0.0
  %v12922 = vmax.f32 %v12858, 0.0
  %v12923 = vmax.f32 %v12859, 0.0
  %v12924 = vmax.f32 %v12860, 0.0
  %v12925 = vmax.f32 %v12861, 0.0
  %v12926 = vmax.f32 %v12862, 0.0
  %v12927 = vmax.f32 %v12863, 0.0
  %v12928 = vmax.f32 %v12864, 0.0
  %v12929 = vmax.f32 %v12865, 0.0
  %v12930 = vmax.f32 %v12866, 0.0
  %v12931 = vmax.f32 %v12867, 0.0
  %v12932 = vmax.f32 %v12868, 0.0
  %v12933 = vmax.f32 %v12869, 0.0
  %v12934 = vmax.f32 %v12870, 0.0
  %v12935 = vmax.f32 %v12871, 0.0
  %v12936 = vmax.f32 %v12872, 0.0
  %v12937 = vmax.f32 %v12873, 0.0
  %v12938 = vmax.f32 %v12874, 0.0
  %v12939 = vmax.f32 %v12875, 0.0
  %v12940 = vmax.f32 %v12876, 0.0
  %v12941 = vmax.f32 %v12877, 0.0
  %v12942 = vmax.f32 %v12878, 0.0
  %v12943 = vmax.f32 %v12879, 0.0
  %v12944 = vmax.f32 %v12880, 0.0
  %v12945 = vmax.f32 %v12881, 0.0
  %v12946 = vmax.f32 %v12882, 0.0
  %v12947 = vmax.f32 %v12883, 0.0
  %v12948 = vmax.f32 %v12884, 0.0
  %v12949 = vmax.f32 %v12885, 0.0
  %v12950 = vmax.f32 %v12886, 0.0
  %v12951 = vmax.f32 %v12887, 0.0
  %v12952 = vmax.f32 %v12888, 0.0
  %v12953 = vmax.f32 %v12889, 0.0
  %v12954 = vmax.f32 %v12890, 0.0
  %v12955 = vmax.f32 %v12891, 0.0
  %v12956 = vmax.f32 %v12892, 0.0
  %v12957 = vmax.f32 %v12893, 0.0
  %v12958 = vmax.f32 %v12894, 0.0
  %v12959 = vmax.f32 %v12895, 0.0
  %v12960 = vmax.f32 %v12896, 0.0
  %v12961 = vmax.f32 %v12897, 0.0
  %v12962 = vmax.f32 %v12898, 0.0
  %v12963 = vmax.f32 %v12899, 0.0
  %v12964 = vmax.f32 %v12900, 0.0
  %v12965 = vmax.f32 %v12901, 0.0
  %v12966 = vmax.f32 %v12902, 0.0
  %v12967 = vmax.f32 %v12903, 0.0
  %v12968 = vmax.f32 %v12904, 0.0
  %v12969 = vmax.f32 %v12905, 0.0
  %v12970 = vmax.f32 %v12906, 0.0
  %v12971 = vmax.f32 %v12907, 0.0
  %v12972 = vmax.f32 %v12908, 0.0
  %v12973 = vmax.f32 %v12909, 0.0
  %v12974 = vmax.f32 %v12910, 0.0
  %v12975 = vmax.f32 %v12911, 0.0
  %v12976 = vld [vmem:[%s5] sm:$0x7]
  %v12977 = vld [vmem:[%s6] sm:$0x7]
  %12979 = vset.pattern.permute.xlu0 0
  %12980 = vperm.xlu0 %12979, %v12977
  %v12981 = vpop.permute.xlu0 %12980
  %vm12983 = vcmask 523264
  %v12985 = vsel %vm12983, %v12976, 0
  %v12988 = vsel %vm12983, %v12912, 0
  %v12991 = vsel %vm12983, %v12913, 0
  %v12994 = vsel %vm12983, %v12914, 0
  %v12997 = vsel %vm12983, %v12915, 0
  %v13000 = vsel %vm12983, %v12916, 0
  %v13003 = vsel %vm12983, %v12917, 0
  %v13006 = vsel %vm12983, %v12918, 0
  %v13009 = vsel %vm12983, %v12919, 0
  %v13012 = vsel %vm12983, %v12920, 0
  %v13015 = vsel %vm12983, %v12921, 0
  %v13018 = vsel %vm12983, %v12922, 0
  %v13021 = vsel %vm12983, %v12923, 0
  %v13024 = vsel %vm12983, %v12924, 0
  %v13027 = vsel %vm12983, %v12925, 0
  %v13030 = vsel %vm12983, %v12926, 0
  %v13033 = vsel %vm12983, %v12927, 0
  %v13036 = vsel %vm12983, %v12928, 0
  %v13039 = vsel %vm12983, %v12929, 0
  %v13042 = vsel %vm12983, %v12930, 0
  %v13045 = vsel %vm12983, %v12931, 0
  %v13048 = vsel %vm12983, %v12932, 0
  %v13051 = vsel %vm12983, %v12933, 0
  %v13054 = vsel %vm12983, %v12934, 0
  %v13057 = vsel %vm12983, %v12935, 0
  %v13060 = vsel %vm12983, %v12936, 0
  %v13063 = vsel %vm12983, %v12937, 0
  %v13066 = vsel %vm12983, %v12938, 0
  %v13069 = vsel %vm12983, %v12939, 0
  %v13072 = vsel %vm12983, %v12940, 0
  %v13075 = vsel %vm12983, %v12941, 0
  %v13078 = vsel %vm12983, %v12942, 0
  %v13081 = vsel %vm12983, %v12943, 0
  %v13084 = vsel %vm12983, %v12944, 0
  %v13087 = vsel %vm12983, %v12945, 0
  %v13090 = vsel %vm12983, %v12946, 0
  %v13093 = vsel %vm12983, %v12947, 0
  %v13096 = vsel %vm12983, %v12948, 0
  %v13099 = vsel %vm12983, %v12949, 0
  %v13102 = vsel %vm12983, %v12950, 0
  %v13105 = vsel %vm12983, %v12951, 0
  %v13108 = vsel %vm12983, %v12952, 0
  %v13111 = vsel %vm12983, %v12953, 0
  %v13114 = vsel %vm12983, %v12954, 0
  %v13117 = vsel %vm12983, %v12955, 0
  %v13120 = vsel %vm12983, %v12956, 0
  %v13123 = vsel %vm12983, %v12957, 0
  %v13126 = vsel %vm12983, %v12958, 0
  %v13129 = vsel %vm12983, %v12959, 0
  %v13132 = vsel %vm12983, %v12960, 0
  %v13135 = vsel %vm12983, %v12961, 0
  %v13138 = vsel %vm12983, %v12962, 0
  %v13141 = vsel %vm12983, %v12963, 0
  %v13144 = vsel %vm12983, %v12964, 0
  %v13147 = vsel %vm12983, %v12965, 0
  %v13150 = vsel %vm12983, %v12966, 0
  %v13153 = vsel %vm12983, %v12967, 0
  %v13156 = vsel %vm12983, %v12968, 0
  %v13159 = vsel %vm12983, %v12969, 0
  %v13162 = vsel %vm12983, %v12970, 0
  %v13165 = vsel %vm12983, %v12971, 0
  %v13168 = vsel %vm12983, %v12972, 0
  %v13171 = vsel %vm12983, %v12973, 0
  %v13174 = vsel %vm12983, %v12974, 0
  %v13177 = vsel %vm12983, %v12975, 0
  %13179 = vmatprep.subr.mxu0 0.0
  %13180 = vmatpush1.xpose.msra.mxu0 %v12988
  %13181 = vmatprep.subr.mxu0 0.0
  %13182 = vmatpush1.xpose.msra.mxu0 %v12991
  %13183 = vmatprep.subr.mxu0 0.0
  %13184 = vmatpush1.xpose.msra.mxu0 %v12994
  %13185 = vmatprep.subr.mxu0 0.0
  %13186 = vmatpush1.xpose.msra.mxu0 %v12997
  %13187 = vmatprep.subr.mxu0 0.0
  %13188 = vmatpush1.xpose.msra.mxu0 %v13000
  %13189 = vmatprep.subr.mxu0 0.0
  %13190 = vmatpush1.xpose.msra.mxu0 %v13003
  %13191 = vmatprep.subr.mxu0 0.0
  %13192 = vmatpush1.xpose.msra.mxu0 %v13006
  %13193 = vmatprep.subr.mxu0 0.0
  %13194 = vmatpush1.xpose.msra.mxu0 %v13009
  %13195 = vmatprep.subr.mxu0 0.0
  %13196 = vmatpush1.xpose.msra.mxu0 %v13012
  %13197 = vmatprep.subr.mxu0 0.0
  %13198 = vmatpush1.xpose.msra.mxu0 %v13015
  %13199 = vmatprep.subr.mxu0 0.0
  %13200 = vmatpush1.xpose.msra.mxu0 %v13018
  %13201 = vmatprep.subr.mxu0 0.0
  %13202 = vmatpush1.xpose.msra.mxu0 %v13021
  %13203 = vmatprep.subr.mxu0 0.0
  %13204 = vmatpush1.xpose.msra.mxu0 %v13024
  %13205 = vmatprep.subr.mxu0 0.0
  %13206 = vmatpush1.xpose.msra.mxu0 %v13027
  %13207 = vmatprep.subr.mxu0 0.0
  %13208 = vmatpush1.xpose.msra.mxu0 %v13030
  %13209 = vmatprep.subr.mxu0 0.0
  %13210 = vmatpush1.xpose.msra.mxu0 %v13033
  %13211 = vmatprep.subr.mxu0 0.0
  %13212 = vmatpush1.xpose.msra.mxu0 %v13036
  %13213 = vmatprep.subr.mxu0 0.0
  %13214 = vmatpush1.xpose.msra.mxu0 %v13039
  %13215 = vmatprep.subr.mxu0 0.0
  %13216 = vmatpush1.xpose.msra.mxu0 %v13042
  %13217 = vmatprep.subr.mxu0 0.0
  %13218 = vmatpush1.xpose.msra.mxu0 %v13045
  %13219 = vmatprep.subr.mxu0 0.0
  %13220 = vmatpush1.xpose.msra.mxu0 %v13048
  %13221 = vmatprep.subr.mxu0 0.0
  %13222 = vmatpush1.xpose.msra.mxu0 %v13051
  %13223 = vmatprep.subr.mxu0 0.0
  %13224 = vmatpush1.xpose.msra.mxu0 %v13054
  %13225 = vmatprep.subr.mxu0 0.0
  %13226 = vmatpush1.xpose.msra.mxu0 %v13057
  %13227 = vmatprep.subr.mxu0 0.0
  %13228 = vmatpush1.xpose.msra.mxu0 %v13060
  %13229 = vmatprep.subr.mxu0 0.0
  %13230 = vmatpush1.xpose.msra.mxu0 %v13063
  %13231 = vmatprep.subr.mxu0 0.0
  %13232 = vmatpush1.xpose.msra.mxu0 %v13066
  %13233 = vmatprep.subr.mxu0 0.0
  %13234 = vmatpush1.xpose.msra.mxu0 %v13069
  %13235 = vmatprep.subr.mxu0 0.0
  %13236 = vmatpush1.xpose.msra.mxu0 %v13072
  %13237 = vmatprep.subr.mxu0 0.0
  %13238 = vmatpush1.xpose.msra.mxu0 %v13075
  %13239 = vmatprep.subr.mxu0 0.0
  %13240 = vmatpush1.xpose.msra.mxu0 %v13078
  %13241 = vmatprep.subr.mxu0 0.0
  %13242 = vmatpush1.xpose.msra.mxu0 %v13081
  %13243 = vmatprep.mubr.f32.mxu0 0.0
  %13244 = vmatmul.mubr.f32.gmra.mrb[0].mxu0 %v12985
  %v13245 = vpop.f32.mrb[0].mxu0
  %v13246 = vadd.f32 %v12981, %v13245
  %v13247 = vpop.f32.mrb[0].mxu0
  %v13248 = vadd.f32 %v12981, %v13247
  %13249 = vdwg.mxu0
  %13250 = vmatprep.subr.mxu0 0.0
  %13251 = vmatpush1.xpose.msra.mxu0 %v13084
  %13252 = vmatprep.subr.mxu0 0.0
  %13253 = vmatpush1.xpose.msra.mxu0 %v13087
  %13254 = vmatprep.subr.mxu0 0.0
  %13255 = vmatpush1.xpose.msra.mxu0 %v13090
  %13256 = vmatprep.subr.mxu0 0.0
  %13257 = vmatpush1.xpose.msra.mxu0 %v13093
  %13258 = vmatprep.subr.mxu0 0.0
  %13259 = vmatpush1.xpose.msra.mxu0 %v13096
  %13260 = vmatprep.subr.mxu0 0.0
  %13261 = vmatpush1.xpose.msra.mxu0 %v13099
  %13262 = vmatprep.subr.mxu0 0.0
  %13263 = vmatpush1.xpose.msra.mxu0 %v13102
  %13264 = vmatprep.subr.mxu0 0.0
  %13265 = vmatpush1.xpose.msra.mxu0 %v13105
  %13266 = vmatprep.subr.mxu0 0.0
  %13267 = vmatpush1.xpose.msra.mxu0 %v13108
  %13268 = vmatprep.subr.mxu0 0.0
  %13269 = vmatpush1.xpose.msra.mxu0 %v13111
  %13270 = vmatprep.subr.mxu0 0.0
  %13271 = vmatpush1.xpose.msra.mxu0 %v13114
  %13272 = vmatprep.subr.mxu0 0.0
  %13273 = vmatpush1.xpose.msra.mxu0 %v13117
  %13274 = vmatprep.subr.mxu0 0.0
  %13275 = vmatpush1.xpose.msra.mxu0 %v13120
  %13276 = vmatprep.subr.mxu0 0.0
  %13277 = vmatpush1.xpose.msra.mxu0 %v13123
  %13278 = vmatprep.subr.mxu0 0.0
  %13279 = vmatpush1.xpose.msra.mxu0 %v13126
  %13280 = vmatprep.subr.mxu0 0.0
  %13281 = vmatpush1.xpose.msra.mxu0 %v13129
  %13282 = vmatprep.subr.mxu0 0.0
  %13283 = vmatpush1.xpose.msra.mxu0 %v13132
  %13284 = vmatprep.subr.mxu0 0.0
  %13285 = vmatpush1.xpose.msra.mxu0 %v13135
  %13286 = vmatprep.subr.mxu0 0.0
  %13287 = vmatpush1.xpose.msra.mxu0 %v13138
  %13288 = vmatprep.subr.mxu0 0.0
  %13289 = vmatpush1.xpose.msra.mxu0 %v13141
  %13290 = vmatprep.subr.mxu0 0.0
  %13291 = vmatpush1.xpose.msra.mxu0 %v13144
  %13292 = vmatprep.subr.mxu0 0.0
  %13293 = vmatpush1.xpose.msra.mxu0 %v13147
  %13294 = vmatprep.subr.mxu0 0.0
  %13295 = vmatpush1.xpose.msra.mxu0 %v13150
  %13296 = vmatprep.subr.mxu0 0.0
  %13297 = vmatpush1.xpose.msra.mxu0 %v13153
  %13298 = vmatprep.subr.mxu0 0.0
  %13299 = vmatpush1.xpose.msra.mxu0 %v13156
  %13300 = vmatprep.subr.mxu0 0.0
  %13301 = vmatpush1.xpose.msra.mxu0 %v13159
  %13302 = vmatprep.subr.mxu0 0.0
  %13303 = vmatpush1.xpose.msra.mxu0 %v13162
  %13304 = vmatprep.subr.mxu0 0.0
  %13305 = vmatpush1.xpose.msra.mxu0 %v13165
  %13306 = vmatprep.subr.mxu0 0.0
  %13307 = vmatpush1.xpose.msra.mxu0 %v13168
  %13308 = vmatprep.subr.mxu0 0.0
  %13309 = vmatpush1.xpose.msra.mxu0 %v13171
  %13310 = vmatprep.subr.mxu0 0.0
  %13311 = vmatpush1.xpose.msra.mxu0 %v13174
  %13312 = vmatprep.subr.mxu0 0.0
  %13313 = vmatpush1.xpose.msra.mxu0 %v13177
  %13314 = vmatprep.mubr.f32.mxu0 0.0
  %13315 = vmatmul.mubr.f32.gmra.mrb[0].mxu0 %v12985
  %v13316 = vpop.f32.mrb[0].mxu0
  %v13317 = vadd.f32 %v12981, %v13316
  %v13318 = vpop.f32.mrb[0].mxu0
  %v13319 = vadd.f32 %v12981, %v13318
  %13320 = vdwg.mxu0
  %v13323 = vcombine.low %v13246, %v13248
  %13325 = vst [vmem:[%s7] sm:$0x77] %v13323
  %v13328 = vcombine.low %v13317, %v13319
  %s13330 = scalar_lea.vmem %s7, 8
  %13331 = vst [vmem:[%s13330] sm:$0x77] %v13328
  // Predicated region
  $region30: #{module_placement_cnn_forward.1} parent=0 // pred_check
    _
  $region31: #{module_placement_cnn_forward.1} parent=0 // pred_check_branch
    %13333 = sbr.rel (0) target = $region33
  $region32: #{module_placement_cnn_forward.1} parent=0 // pred_region
    _
  $region33: #{module_placement_cnn_forward.1} parent=0 // pred_fallthru
    _
  // Predicated region
  $region34: #{module_placement_cnn_forward.1} parent=0 // pred_check
    _
  $region35: #{module_placement_cnn_forward.1} parent=0 // pred_check_branch
    %13335 = sbr.rel (0) target = $region37
  $region36: #{module_placement_cnn_forward.1} parent=0 // pred_region
    _
  $region37: #{module_placement_cnn_forward.1} parent=0 // pred_fallthru
    _

</llo_original>
